<compile_context>
chip_gen: v5e
topology: v5e:2x2
jax: 0.10.0
libtpu: 0.0.40
codegen_flags: <defaults>
</compile_context>

<pallas_src>
import jax
import jax.numpy as jnp
from jax.experimental import pallas as pl
from jax.experimental.pallas import tpu as pltpu


# ----------------------------------------------------------------------------
# Trace-time weight-matrix builders (tiny, run once under jit).
# ----------------------------------------------------------------------------
def _build_deconv_mats(wd, W, dtype=jnp.bfloat16):
    """wd: (Cin, Cout, 2, 2) -> (Cin, 2, W, 2W*Cout).

    D[ci, dy, x, x2*Cout + co] = wd[ci, co, dy, x2 - 2x] (0 if x2-2x not in {0,1}).
    Per input channel / output-row parity, so `up` rows 2y+dy for one image
    come from a single (H, W) @ (W, 2W*Cout) matmul."""
    Cin, Cout = wd.shape[0], wd.shape[1]
    W2 = 2 * W
    dx = jnp.arange(W2)[None, :] - 2 * jnp.arange(W)[:, None]            # (W, W2)
    valid = ((dx >= 0) & (dx < 2)).astype(jnp.float32)
    wperm = jnp.transpose(wd, (0, 2, 3, 1)).astype(jnp.float32)          # (ci,dy,dx,co)
    d = wperm[:, :, jnp.clip(dx, 0, 1), :]                               # (ci,dy,W,W2,co)
    d = d * valid[None, None, :, :, None]
    return d.reshape(Cin, 2, W, W2 * Cout).astype(dtype)


def _build_conv_bands(w, W, out_channel_major=False, dtype=jnp.bfloat16):
    """w: (Cout, Cin, K, K) -> per-input-channel banded matrices
    (K, Cin, W, W*Cout) with 'same' column padding folded in (valid mask).

    Output lane order is (x_out, co), or (co, x_out) if out_channel_major."""
    Cout, Cin, K, _ = w.shape
    kx = jnp.arange(W)[:, None] - jnp.arange(W)[None, :] + K // 2        # x_in - x_out + K//2
    valid = ((kx >= 0) & (kx < K)).astype(jnp.float32)
    wk = jnp.transpose(w, (2, 3, 1, 0)).astype(jnp.float32)              # (ky,kx,ci,co)
    band = wk[:, jnp.clip(kx, 0, K - 1)]                                 # (ky,Win,Wout,ci,co)
    band = band * valid[None, :, :, None, None]
    band = jnp.transpose(band, (0, 3, 1, 2, 4))                          # (ky,ci,Win,Wout,co)
    if out_channel_major:
        band = jnp.transpose(band, (0, 1, 2, 4, 3))                      # (ky,ci,Win,co,Wout)
    return band.reshape(K, Cin, W, W * Cout).astype(dtype)


def _flatten_bands(bands):
    """(K, Cin, W, N) -> (K, W*Cin, N); row order (x_in, ci) matches flat
    activations whose lane order is x*Cin + c."""
    K, Cin, W, N = bands.shape
    return jnp.transpose(bands, (0, 2, 1, 3)).reshape(K, W * Cin, N)


def _row_perm(H, dtype=jnp.bfloat16):
    """(2H, 2H) permutation: [up_even; up_odd] (block order) -> row-major up."""
    H2 = 2 * H
    y2 = jnp.arange(H2)
    src = jnp.where(y2 % 2 == 0, y2 // 2, H + y2 // 2)
    return (src[:, None] == jnp.arange(H2)[None, :]).astype(dtype)


# ----------------------------------------------------------------------------
# Kernel 1: fused ConvTranspose2d(2,2) + channel concat + 5x5 conv1 + BN1 stats
# ----------------------------------------------------------------------------
def _k1_kernel(x_ref, skip_ref, dmat_ref, perm_ref, bup_ref, bsk_ref,
               dbias_ref, bias_ref, out_ref, stats_ref):
    Cin1, H, W = x_ref.shape
    Cin2, H2, W2 = skip_ref.shape
    N = out_ref.shape[-1]                       # W2 * Cd, lane order (x, c)
    Kk = bup_ref.shape[0]
    P = Kk // 2

    # --- deconv: per-input-channel matmuls, then row-interleave via a
    #     constant permutation matmul (stays in VMEM, never written to HBM).
    up_ev = jnp.zeros((H, N), jnp.float32)
    up_od = jnp.zeros((H, N), jnp.float32)
    for ci in range(Cin1):
        xc = x_ref[ci, :, :].astype(jnp.bfloat16)
        up_ev = up_ev + jnp.dot(xc, dmat_ref[ci, 0, :, :],
                                preferred_element_type=jnp.float32)
        up_od = up_od + jnp.dot(xc, dmat_ref[ci, 1, :, :],
                                preferred_element_type=jnp.float32)
    stacked = jnp.concatenate([up_ev, up_od], axis=0).astype(jnp.bfloat16)
    up = jnp.dot(perm_ref[...], stacked, preferred_element_type=jnp.float32)
    up = (up + dbias_ref[...]).astype(jnp.bfloat16)          # + deconv bias
    zn = jnp.zeros((P, N), jnp.bfloat16)
    up_pad = jnp.concatenate([zn, up, zn], axis=0)            # (H2+2P, N)

    # --- conv1 over [up | skip] with the concat fused; column 'same' padding
    #     is already folded into the banded weights.
    acc = jnp.zeros((H2, N), jnp.float32)
    for ky in range(Kk):
        acc = acc + jnp.dot(up_pad[ky:ky + H2, :], bup_ref[ky, :, :],
                            preferred_element_type=jnp.float32)
    zw = jnp.zeros((P, W2), jnp.bfloat16)
    for ci in range(Cin2):
        sc = jnp.concatenate([zw, skip_ref[ci, :, :].astype(jnp.bfloat16), zw],
                             axis=0)
        for ky in range(Kk):
            acc = acc + jnp.dot(sc[ky:ky + H2, :], bsk_ref[ky, ci, :, :],
                                preferred_element_type=jnp.float32)
    acc = acc + bias_ref[...]
    out_ref[...] = acc.astype(out_ref.dtype)

    # BatchNorm partial statistics (f32), per batch element.
    s = jnp.sum(acc, axis=0, keepdims=True)
    q = jnp.sum(acc * acc, axis=0, keepdims=True)
    stats_ref[...] = jnp.concatenate([s, q], axis=0)


# ----------------------------------------------------------------------------
# Kernel 2: BN1 affine + ReLU (prologue) + 5x5 conv2 + BN2 stats
# ----------------------------------------------------------------------------
def _k2_kernel(y_ref, scale_ref, shift_ref, band_ref, bias_ref, out_ref, stats_ref):
    H2 = y_ref.shape[0]
    N2 = out_ref.shape[-1]                      # Cd * W2, lane order (c, x)
    Kk = band_ref.shape[0]
    P = Kk // 2

    y = jnp.maximum(y_ref[...].astype(jnp.float32) * scale_ref[...]
                    + shift_ref[...], 0.0)
    y = y.astype(jnp.bfloat16)
    zn = jnp.zeros((P, y.shape[1]), jnp.bfloat16)
    ypad = jnp.concatenate([zn, y, zn], axis=0)

    acc = jnp.zeros((H2, N2), jnp.float32)
    for ky in range(Kk):
        acc = acc + jnp.dot(ypad[ky:ky + H2, :], band_ref[ky, :, :],
                            preferred_element_type=jnp.float32)
    acc = acc + bias_ref[...]
    out_ref[...] = acc.astype(out_ref.dtype)

    s = jnp.sum(acc, axis=0, keepdims=True)
    q = jnp.sum(acc * acc, axis=0, keepdims=True)
    stats_ref[...] = jnp.concatenate([s, q], axis=0)


# ----------------------------------------------------------------------------
# Kernel 3: BN2 affine + ReLU + NCHW emission (per-channel contiguous slices)
# ----------------------------------------------------------------------------
def _k3_kernel(z_ref, scale_ref, shift_ref, o_ref):
    Cd, H2, W2 = o_ref.shape
    z = jnp.maximum(z_ref[...].astype(jnp.float32) * scale_ref[...]
                    + shift_ref[...], 0.0)       # (H2, Cd*W2), lanes (c, x)
    for co in range(Cd):
        o_ref[co, :, :] = z[:, co * W2:(co + 1) * W2]


# ----------------------------------------------------------------------------
# O(C) BatchNorm finalize on the tiny stats side output (XLA).
# ----------------------------------------------------------------------------
def _bn_affine(stats, gamma, beta, *, count, W, C, lane_order, eps=1e-5):
    s = stats[:, 0, :].sum(axis=0)
    q = stats[:, 1, :].sum(axis=0)
    if lane_order == "xc":                       # lane = x*C + c
        s = s.reshape(W, C).sum(axis=0)
        q = q.reshape(W, C).sum(axis=0)
    else:                                        # lane = c*W + x
        s = s.reshape(C, W).sum(axis=1)
        q = q.reshape(C, W).sum(axis=1)
    mean = s / count
    var = jnp.maximum(q / count - mean * mean, 0.0)   # biased var (training mode)
    inv = jax.lax.rsqrt(var + eps)
    scale = gamma.astype(jnp.float32) * inv
    shift = beta.astype(jnp.float32) - mean * scale
    if lane_order == "xc":
        return jnp.tile(scale, W)[None], jnp.tile(shift, W)[None]
    return jnp.repeat(scale, W)[None], jnp.repeat(shift, W)[None]


# ----------------------------------------------------------------------------
# Decoder forward
# ----------------------------------------------------------------------------
def decoder_forward(params, x_nchw, out_block_nchw, *, eps=1e-5):
    x = x_nchw.astype(jnp.float32)
    skip = out_block_nchw.astype(jnp.float32)
    B, Cin1, H, W = x.shape
    _, Cin2, H2, W2 = skip.shape
    Cd = params["deconv_b"].shape[0]
    assert H2 == 2 * H and W2 == 2 * W
    N1 = W2 * Cd          # lanes of up / conv1 output, order (x, c)
    N2 = Cd * W2          # lanes of conv2 output, order (c, x)

    cp = pltpu.CompilerParams(dimension_semantics=("parallel",),
                              vmem_limit_bytes=32 * 1024 * 1024)

    # Trace-time constant matrices (bf16; ~1.2 MiB total at these sizes).
    dmat = _build_deconv_mats(params["deconv_w"], W)                       # (Cin1,2,W,N1)
    perm = _row_perm(H)                                                    # (H2, H2)
    w1 = params["conv1_w"]
    bup = _flatten_bands(_build_conv_bands(w1[:, :Cd], W2))                # (5, N1, N1)
    bsk = _build_conv_bands(w1[:, Cd:], W2)                                # (5, Cin2, W2, N1)
    band2 = _flatten_bands(_build_conv_bands(params["conv2_w"], W2,
                                             out_channel_major=True))      # (5, N1, N2)
    dbias = jnp.tile(params["deconv_b"].astype(jnp.float32), W2)[None]     # (1, N1)
    bias1 = jnp.tile(params["conv1_b"].astype(jnp.float32), W2)[None]      # (1, N1)
    bias2 = jnp.repeat(params["conv2_b"].astype(jnp.float32), W2)[None]    # (1, N2)

    # K1: fused deconv + concat + conv1 + BN1 partial stats.
    out1, stats1 = pl.pallas_call(
        _k1_kernel,
        grid=(B,),
        in_specs=[
            pl.BlockSpec((None, Cin1, H, W), lambda b: (b, 0, 0, 0)),
            pl.BlockSpec((None, Cin2, H2, W2), lambda b: (b, 0, 0, 0)),
            pl.BlockSpec(dmat.shape, lambda b: (0, 0, 0, 0)),
            pl.BlockSpec(perm.shape, lambda b: (0, 0)),
            pl.BlockSpec(bup.shape, lambda b: (0, 0, 0)),
            pl.BlockSpec(bsk.shape, lambda b: (0, 0, 0, 0)),
            pl.BlockSpec(dbias.shape, lambda b: (0, 0)),
            pl.BlockSpec(bias1.shape, lambda b: (0, 0)),
        ],
        out_specs=[
            pl.BlockSpec((None, H2, N1), lambda b: (b, 0, 0)),
            pl.BlockSpec((None, 2, N1), lambda b: (b, 0, 0)),
        ],
        out_shape=[
            jax.ShapeDtypeStruct((B, H2, N1), jnp.bfloat16),
            jax.ShapeDtypeStruct((B, 2, N1), jnp.float32),
        ],
        compiler_params=cp,
    )(x, skip, dmat, perm, bup, bsk, dbias, bias1)

    scale1, shift1 = _bn_affine(stats1, params["bn_gamma"], params["bn_beta"],
                                count=B * H2 * W2, W=W2, C=Cd,
                                lane_order="xc", eps=eps)

    # K2: BN1+ReLU applied in the prologue, then conv2 + BN2 partial stats.
    out2, stats2 = pl.pallas_call(
        _k2_kernel,
        grid=(B,),
        in_specs=[
            pl.BlockSpec((None, H2, N1), lambda b: (b, 0, 0)),
            pl.BlockSpec(scale1.shape, lambda b: (0, 0)),
            pl.BlockSpec(shift1.shape, lambda b: (0, 0)),
            pl.BlockSpec(band2.shape, lambda b: (0, 0, 0)),
            pl.BlockSpec(bias2.shape, lambda b: (0, 0)),
        ],
        out_specs=[
            pl.BlockSpec((None, H2, N2), lambda b: (b, 0, 0)),
            pl.BlockSpec((None, 2, N2), lambda b: (b, 0, 0)),
        ],
        out_shape=[
            jax.ShapeDtypeStruct((B, H2, N2), jnp.bfloat16),
            jax.ShapeDtypeStruct((B, 2, N2), jnp.float32),
        ],
        compiler_params=cp,
    )(out1, scale1, shift1, band2, bias2)

    scale2, shift2 = _bn_affine(stats2, params["bn_gamma"], params["bn_beta"],
                                count=B * H2 * W2, W=W2, C=Cd,
                                lane_order="cx", eps=eps)

    # K3: BN2+ReLU and NCHW emission.
    y = pl.pallas_call(
        _k3_kernel,
        grid=(B,),
        in_specs=[
            pl.BlockSpec((None, H2, N2), lambda b: (b, 0, 0)),
            pl.BlockSpec(scale2.shape, lambda b: (0, 0)),
            pl.BlockSpec(shift2.shape, lambda b: (0, 0)),
        ],
        out_specs=pl.BlockSpec((None, Cd, H2, W2), lambda b: (b, 0, 0, 0)),
        out_shape=jax.ShapeDtypeStruct((B, Cd, H2, W2), jnp.float32),
        compiler_params=cp,
    )(out2, scale2, shift2)
    return y
    # TODO(synk): BatchNorm running_mean/running_var buffer updates are not
    # materialized (they do not affect the training-mode forward output).


def init_params(key, dim_in1, dim_in2, dim_out, ksize=5):
    ks = jax.random.split(key, 6)
    return {
        # ConvTranspose2d weight: (Cin, Cout, 2, 2)
        "deconv_w": 0.05 * jax.random.normal(ks[0], (dim_in1, dim_out, 2, 2), jnp.float32),
        "deconv_b": 0.01 * jax.random.normal(ks[1], (dim_out,), jnp.float32),
        # Conv2d weights: (Cout, Cin, k, k)
        "conv1_w": 0.05 * jax.random.normal(ks[2], (dim_out, dim_out + dim_in2, ksize, ksize), jnp.float32),
        "conv1_b": 0.01 * jax.random.normal(ks[3], (dim_out,), jnp.float32),
        "conv2_w": 0.05 * jax.random.normal(ks[4], (dim_out, dim_out, ksize, ksize), jnp.float32),
        "conv2_b": 0.01 * jax.random.normal(ks[5], (dim_out,), jnp.float32),
        # BatchNorm2d default init (shared by both NormRelu applications)
        "bn_gamma": jnp.ones((dim_out,), jnp.float32),
        "bn_beta": jnp.zeros((dim_out,), jnp.float32),
    }


# ----------------------------------------------------------------------------
# Pure-JAX reference (independent of the Pallas weight-matrix construction).
# ----------------------------------------------------------------------------
def _reference_decoder(params, x_nchw, skip_nchw, eps=1e-5):
    hp = jax.lax.Precision.HIGHEST
    up = jnp.einsum("bchw,cdij->bdhiwj", x_nchw, params["deconv_w"], precision=hp)
    B, Cd, H, _, W, _ = up.shape
    up = up.reshape(B, Cd, 2 * H, 2 * W) + params["deconv_b"][None, :, None, None]
    cat = jnp.concatenate([up, skip_nchw], axis=1)

    def conv5(z, w, b):
        o = jax.lax.conv_general_dilated(
            z, w, (1, 1), ((2, 2), (2, 2)),
            dimension_numbers=("NCHW", "OIHW", "NCHW"), precision=hp)
        return o + b[None, :, None, None]

    def bnrelu(z):
        m = z.mean(axis=(0, 2, 3), keepdims=True)
        v = ((z - m) ** 2).mean(axis=(0, 2, 3), keepdims=True)
        zn = (z - m) * jax.lax.rsqrt(v + eps)
        zn = zn * params["bn_gamma"][None, :, None, None] + params["bn_beta"][None, :, None, None]
        return jnp.maximum(zn, 0.0)

    o = bnrelu(conv5(cat, params["conv1_w"], params["conv1_b"]))
    o = bnrelu(conv5(o, params["conv2_w"], params["conv2_b"]))
    return o


if __name__ == "__main__":
    B, dim_in1, dim_in2, dim_out = 2, 8, 4, 8
    H = W = 16                                        # input spatial; output is 2x

    key = jax.random.PRNGKey(0)
    k_in, k_skip, k_par = jax.random.split(key, 3)
    x = jax.random.normal(k_in, (B, dim_in1, H, W), jnp.float32)              # NCHW
    out_block = jax.random.normal(k_skip, (B, dim_in2, 2 * H, 2 * W), jnp.float32)
    params = init_params(k_par, dim_in1, dim_in2, dim_out)

    fwd = jax.jit(decoder_forward)
    out = jax.block_until_ready(fwd(params, x, out_block))

    assert out.shape == (B, dim_out, 2 * H, 2 * W), out.shape
    assert bool(jnp.all(jnp.isfinite(out))) and bool(jnp.all(out >= 0.0))

    # Loose tolerance: bf16 storage on the matmul path (f32 accumulation);
    # a layout / indexing error would be O(1).
    ref = _reference_decoder(params, x, out_block)
    err = float(jnp.max(jnp.abs(out - ref)))
    assert err < 2.0e-1, f"max |err| = {err}"
    print("KERNEL_OK")
</pallas_src>

<mosaic_0001>
module attributes {stable_mosaic.version = 11 : i64} {
  func.func @_k1_kernel(%arg0: i32, %arg1: memref<1x8x16x16xf32, #tpu.memory_space<vmem>>, %arg2: memref<1x4x32x32xf32, #tpu.memory_space<vmem>>, %arg3: memref<8x2x16x256xbf16, #tpu.memory_space<vmem>>, %arg4: memref<32x32xbf16, #tpu.memory_space<vmem>>, %arg5: memref<5x256x256xbf16, #tpu.memory_space<vmem>>, %arg6: memref<5x4x32x256xbf16, #tpu.memory_space<vmem>>, %arg7: memref<1x256xf32, #tpu.memory_space<vmem>>, %arg8: memref<1x256xf32, #tpu.memory_space<vmem>>, %arg9: memref<1x32x256xbf16, #tpu.memory_space<vmem>>, %arg10: memref<1x2x256xf32, #tpu.memory_space<vmem>>) attributes {dimension_semantics = [#tpu.dimension_semantics<parallel>], iteration_bounds = array<i64: 2>, scalar_prefetch = 0 : i64, scratch_operands = 0 : i64, tpu.core_type = #tpu.core_type<tc>, window_params = [{transform_indices = @transform_0, window_bounds = array<i64: 1, 8, 16, 16>}, {transform_indices = @transform_1, window_bounds = array<i64: 1, 4, 32, 32>}, {pipeline_mode = #tpu.pipeline_mode<synchronous>, transform_indices = @transform_2, window_bounds = array<i64: 8, 2, 16, 256>}, {pipeline_mode = #tpu.pipeline_mode<synchronous>, transform_indices = @transform_3, window_bounds = array<i64: 32, 32>}, {pipeline_mode = #tpu.pipeline_mode<synchronous>, transform_indices = @transform_4, window_bounds = array<i64: 5, 256, 256>}, {pipeline_mode = #tpu.pipeline_mode<synchronous>, transform_indices = @transform_5, window_bounds = array<i64: 5, 4, 32, 256>}, {pipeline_mode = #tpu.pipeline_mode<synchronous>, transform_indices = @transform_6, window_bounds = array<i64: 1, 256>}, {pipeline_mode = #tpu.pipeline_mode<synchronous>, transform_indices = @transform_7, window_bounds = array<i64: 1, 256>}, {transform_indices = @transform_8, window_bounds = array<i64: 1, 32, 256>}, {transform_indices = @transform_9, window_bounds = array<i64: 1, 2, 256>}]} {
    %cst = arith.constant 0.000000e+00 : f32
    %0 = vector.broadcast %cst : f32 to vector<16x256xf32>
    %cst_0 = arith.constant 0.000000e+00 : f32
    %1 = vector.broadcast %cst_0 : f32 to vector<16x256xf32>
    %c0 = arith.constant 0 : index
    %c0_1 = arith.constant 0 : index
    %c0_2 = arith.constant 0 : index
    %c0_3 = arith.constant 0 : index
    %2 = vector.load %arg1[%c0, %c0_1, %c0_2, %c0_3] : memref<1x8x16x16xf32, #tpu.memory_space<vmem>>, vector<1x1x16x16xf32>
    %3 = vector.shape_cast %2 : vector<1x1x16x16xf32> to vector<16x16xf32>
    %4 = arith.truncf %3 : vector<16x16xf32> to vector<16x16xbf16>
    %c0_4 = arith.constant 0 : index
    %c0_5 = arith.constant 0 : index
    %c0_6 = arith.constant 0 : index
    %c0_7 = arith.constant 0 : index
    %5 = vector.load %arg3[%c0_4, %c0_5, %c0_6, %c0_7] : memref<8x2x16x256xbf16, #tpu.memory_space<vmem>>, vector<1x1x16x256xbf16>
    %6 = vector.shape_cast %5 : vector<1x1x16x256xbf16> to vector<16x256xbf16>
    %cst_8 = arith.constant dense<0.000000e+00> : vector<16x256xf32>
    %7 = tpu.matmul %4, %6, %cst_8 {dimension_numbers = #tpu.dot_dimension_numbers<[1], [0], [0], [1], [0, 0, 1, 1], [], []>} : vector<16x16xbf16>, vector<16x256xbf16>, vector<16x256xf32> -> vector<16x256xf32>
    %8 = arith.addf %0, %7 : vector<16x256xf32>
    %c0_9 = arith.constant 0 : index
    %c1 = arith.constant 1 : index
    %c0_10 = arith.constant 0 : index
    %c0_11 = arith.constant 0 : index
    %9 = vector.load %arg3[%c0_9, %c1, %c0_10, %c0_11] : memref<8x2x16x256xbf16, #tpu.memory_space<vmem>>, vector<1x1x16x256xbf16>
    %10 = vector.shape_cast %9 : vector<1x1x16x256xbf16> to vector<16x256xbf16>
    %cst_12 = arith.constant dense<0.000000e+00> : vector<16x256xf32>
    %11 = tpu.matmul %4, %10, %cst_12 {dimension_numbers = #tpu.dot_dimension_numbers<[1], [0], [0], [1], [0, 0, 1, 1], [], []>} : vector<16x16xbf16>, vector<16x256xbf16>, vector<16x256xf32> -> vector<16x256xf32>
    %12 = arith.addf %1, %11 : vector<16x256xf32>
    %c0_13 = arith.constant 0 : index
    %c1_14 = arith.constant 1 : index
    %c0_15 = arith.constant 0 : index
    %c0_16 = arith.constant 0 : index
    %13 = vector.load %arg1[%c0_13, %c1_14, %c0_15, %c0_16] : memref<1x8x16x16xf32, #tpu.memory_space<vmem>>, vector<1x1x16x16xf32>
    %14 = vector.shape_cast %13 : vector<1x1x16x16xf32> to vector<16x16xf32>
    %15 = arith.truncf %14 : vector<16x16xf32> to vector<16x16xbf16>
    %c1_17 = arith.constant 1 : index
    %c0_18 = arith.constant 0 : index
    %c0_19 = arith.constant 0 : index
    %c0_20 = arith.constant 0 : index
    %16 = vector.load %arg3[%c1_17, %c0_18, %c0_19, %c0_20] : memref<8x2x16x256xbf16, #tpu.memory_space<vmem>>, vector<1x1x16x256xbf16>
    %17 = vector.shape_cast %16 : vector<1x1x16x256xbf16> to vector<16x256xbf16>
    %cst_21 = arith.constant dense<0.000000e+00> : vector<16x256xf32>
    %18 = tpu.matmul %15, %17, %cst_21 {dimension_numbers = #tpu.dot_dimension_numbers<[1], [0], [0], [1], [0, 0, 1, 1], [], []>} : vector<16x16xbf16>, vector<16x256xbf16>, vector<16x256xf32> -> vector<16x256xf32>
    %19 = arith.addf %8, %18 : vector<16x256xf32>
    %c1_22 = arith.constant 1 : index
    %c1_23 = arith.constant 1 : index
    %c0_24 = arith.constant 0 : index
    %c0_25 = arith.constant 0 : index
    %20 = vector.load %arg3[%c1_22, %c1_23, %c0_24, %c0_25] : memref<8x2x16x256xbf16, #tpu.memory_space<vmem>>, vector<1x1x16x256xbf16>
    %21 = vector.shape_cast %20 : vector<1x1x16x256xbf16> to vector<16x256xbf16>
    %cst_26 = arith.constant dense<0.000000e+00> : vector<16x256xf32>
    %22 = tpu.matmul %15, %21, %cst_26 {dimension_numbers = #tpu.dot_dimension_numbers<[1], [0], [0], [1], [0, 0, 1, 1], [], []>} : vector<16x16xbf16>, vector<16x256xbf16>, vector<16x256xf32> -> vector<16x256xf32>
    %23 = arith.addf %12, %22 : vector<16x256xf32>
    %c0_27 = arith.constant 0 : index
    %c2 = arith.constant 2 : index
    %c0_28 = arith.constant 0 : index
    %c0_29 = arith.constant 0 : index
    %24 = vector.load %arg1[%c0_27, %c2, %c0_28, %c0_29] : memref<1x8x16x16xf32, #tpu.memory_space<vmem>>, vector<1x1x16x16xf32>
    %25 = vector.shape_cast %24 : vector<1x1x16x16xf32> to vector<16x16xf32>
    %26 = arith.truncf %25 : vector<16x16xf32> to vector<16x16xbf16>
    %c2_30 = arith.constant 2 : index
    %c0_31 = arith.constant 0 : index
    %c0_32 = arith.constant 0 : index
    %c0_33 = arith.constant 0 : index
    %27 = vector.load %arg3[%c2_30, %c0_31, %c0_32, %c0_33] : memref<8x2x16x256xbf16, #tpu.memory_space<vmem>>, vector<1x1x16x256xbf16>
    %28 = vector.shape_cast %27 : vector<1x1x16x256xbf16> to vector<16x256xbf16>
    %cst_34 = arith.constant dense<0.000000e+00> : vector<16x256xf32>
    %29 = tpu.matmul %26, %28, %cst_34 {dimension_numbers = #tpu.dot_dimension_numbers<[1], [0], [0], [1], [0, 0, 1, 1], [], []>} : vector<16x16xbf16>, vector<16x256xbf16>, vector<16x256xf32> -> vector<16x256xf32>
    %30 = arith.addf %19, %29 : vector<16x256xf32>
    %c2_35 = arith.constant 2 : index
    %c1_36 = arith.constant 1 : index
    %c0_37 = arith.constant 0 : index
    %c0_38 = arith.constant 0 : index
    %31 = vector.load %arg3[%c2_35, %c1_36, %c0_37, %c0_38] : memref<8x2x16x256xbf16, #tpu.memory_space<vmem>>, vector<1x1x16x256xbf16>
    %32 = vector.shape_cast %31 : vector<1x1x16x256xbf16> to vector<16x256xbf16>
    %cst_39 = arith.constant dense<0.000000e+00> : vector<16x256xf32>
    %33 = tpu.matmul %26, %32, %cst_39 {dimension_numbers = #tpu.dot_dimension_numbers<[1], [0], [0], [1], [0, 0, 1, 1], [], []>} : vector<16x16xbf16>, vector<16x256xbf16>, vector<16x256xf32> -> vector<16x256xf32>
    %34 = arith.addf %23, %33 : vector<16x256xf32>
    %c0_40 = arith.constant 0 : index
    %c3 = arith.constant 3 : index
    %c0_41 = arith.constant 0 : index
    %c0_42 = arith.constant 0 : index
    %35 = vector.load %arg1[%c0_40, %c3, %c0_41, %c0_42] : memref<1x8x16x16xf32, #tpu.memory_space<vmem>>, vector<1x1x16x16xf32>
    %36 = vector.shape_cast %35 : vector<1x1x16x16xf32> to vector<16x16xf32>
    %37 = arith.truncf %36 : vector<16x16xf32> to vector<16x16xbf16>
    %c3_43 = arith.constant 3 : index
    %c0_44 = arith.constant 0 : index
    %c0_45 = arith.constant 0 : index
    %c0_46 = arith.constant 0 : index
    %38 = vector.load %arg3[%c3_43, %c0_44, %c0_45, %c0_46] : memref<8x2x16x256xbf16, #tpu.memory_space<vmem>>, vector<1x1x16x256xbf16>
    %39 = vector.shape_cast %38 : vector<1x1x16x256xbf16> to vector<16x256xbf16>
    %cst_47 = arith.constant dense<0.000000e+00> : vector<16x256xf32>
    %40 = tpu.matmul %37, %39, %cst_47 {dimension_numbers = #tpu.dot_dimension_numbers<[1], [0], [0], [1], [0, 0, 1, 1], [], []>} : vector<16x16xbf16>, vector<16x256xbf16>, vector<16x256xf32> -> vector<16x256xf32>
    %41 = arith.addf %30, %40 : vector<16x256xf32>
    %c3_48 = arith.constant 3 : index
    %c1_49 = arith.constant 1 : index
    %c0_50 = arith.constant 0 : index
    %c0_51 = arith.constant 0 : index
    %42 = vector.load %arg3[%c3_48, %c1_49, %c0_50, %c0_51] : memref<8x2x16x256xbf16, #tpu.memory_space<vmem>>, vector<1x1x16x256xbf16>
    %43 = vector.shape_cast %42 : vector<1x1x16x256xbf16> to vector<16x256xbf16>
    %cst_52 = arith.constant dense<0.000000e+00> : vector<16x256xf32>
    %44 = tpu.matmul %37, %43, %cst_52 {dimension_numbers = #tpu.dot_dimension_numbers<[1], [0], [0], [1], [0, 0, 1, 1], [], []>} : vector<16x16xbf16>, vector<16x256xbf16>, vector<16x256xf32> -> vector<16x256xf32>
    %45 = arith.addf %34, %44 : vector<16x256xf32>
    %c0_53 = arith.constant 0 : index
    %c4 = arith.constant 4 : index
    %c0_54 = arith.constant 0 : index
    %c0_55 = arith.constant 0 : index
    %46 = vector.load %arg1[%c0_53, %c4, %c0_54, %c0_55] : memref<1x8x16x16xf32, #tpu.memory_space<vmem>>, vector<1x1x16x16xf32>
    %47 = vector.shape_cast %46 : vector<1x1x16x16xf32> to vector<16x16xf32>
    %48 = arith.truncf %47 : vector<16x16xf32> to vector<16x16xbf16>
    %c4_56 = arith.constant 4 : index
    %c0_57 = arith.constant 0 : index
    %c0_58 = arith.constant 0 : index
    %c0_59 = arith.constant 0 : index
    %49 = vector.load %arg3[%c4_56, %c0_57, %c0_58, %c0_59] : memref<8x2x16x256xbf16, #tpu.memory_space<vmem>>, vector<1x1x16x256xbf16>
    %50 = vector.shape_cast %49 : vector<1x1x16x256xbf16> to vector<16x256xbf16>
    %cst_60 = arith.constant dense<0.000000e+00> : vector<16x256xf32>
    %51 = tpu.matmul %48, %50, %cst_60 {dimension_numbers = #tpu.dot_dimension_numbers<[1], [0], [0], [1], [0, 0, 1, 1], [], []>} : vector<16x16xbf16>, vector<16x256xbf16>, vector<16x256xf32> -> vector<16x256xf32>
    %52 = arith.addf %41, %51 : vector<16x256xf32>
    %c4_61 = arith.constant 4 : index
    %c1_62 = arith.constant 1 : index
    %c0_63 = arith.constant 0 : index
    %c0_64 = arith.constant 0 : index
    %53 = vector.load %arg3[%c4_61, %c1_62, %c0_63, %c0_64] : memref<8x2x16x256xbf16, #tpu.memory_space<vmem>>, vector<1x1x16x256xbf16>
    %54 = vector.shape_cast %53 : vector<1x1x16x256xbf16> to vector<16x256xbf16>
    %cst_65 = arith.constant dense<0.000000e+00> : vector<16x256xf32>
    %55 = tpu.matmul %48, %54, %cst_65 {dimension_numbers = #tpu.dot_dimension_numbers<[1], [0], [0], [1], [0, 0, 1, 1], [], []>} : vector<16x16xbf16>, vector<16x256xbf16>, vector<16x256xf32> -> vector<16x256xf32>
    %56 = arith.addf %45, %55 : vector<16x256xf32>
    %c0_66 = arith.constant 0 : index
    %c5 = arith.constant 5 : index
    %c0_67 = arith.constant 0 : index
    %c0_68 = arith.constant 0 : index
    %57 = vector.load %arg1[%c0_66, %c5, %c0_67, %c0_68] : memref<1x8x16x16xf32, #tpu.memory_space<vmem>>, vector<1x1x16x16xf32>
    %58 = vector.shape_cast %57 : vector<1x1x16x16xf32> to vector<16x16xf32>
    %59 = arith.truncf %58 : vector<16x16xf32> to vector<16x16xbf16>
    %c5_69 = arith.constant 5 : index
    %c0_70 = arith.constant 0 : index
    %c0_71 = arith.constant 0 : index
    %c0_72 = arith.constant 0 : index
    %60 = vector.load %arg3[%c5_69, %c0_70, %c0_71, %c0_72] : memref<8x2x16x256xbf16, #tpu.memory_space<vmem>>, vector<1x1x16x256xbf16>
    %61 = vector.shape_cast %60 : vector<1x1x16x256xbf16> to vector<16x256xbf16>
    %cst_73 = arith.constant dense<0.000000e+00> : vector<16x256xf32>
    %62 = tpu.matmul %59, %61, %cst_73 {dimension_numbers = #tpu.dot_dimension_numbers<[1], [0], [0], [1], [0, 0, 1, 1], [], []>} : vector<16x16xbf16>, vector<16x256xbf16>, vector<16x256xf32> -> vector<16x256xf32>
    %63 = arith.addf %52, %62 : vector<16x256xf32>
    %c5_74 = arith.constant 5 : index
    %c1_75 = arith.constant 1 : index
    %c0_76 = arith.constant 0 : index
    %c0_77 = arith.constant 0 : index
    %64 = vector.load %arg3[%c5_74, %c1_75, %c0_76, %c0_77] : memref<8x2x16x256xbf16, #tpu.memory_space<vmem>>, vector<1x1x16x256xbf16>
    %65 = vector.shape_cast %64 : vector<1x1x16x256xbf16> to vector<16x256xbf16>
    %cst_78 = arith.constant dense<0.000000e+00> : vector<16x256xf32>
    %66 = tpu.matmul %59, %65, %cst_78 {dimension_numbers = #tpu.dot_dimension_numbers<[1], [0], [0], [1], [0, 0, 1, 1], [], []>} : vector<16x16xbf16>, vector<16x256xbf16>, vector<16x256xf32> -> vector<16x256xf32>
    %67 = arith.addf %56, %66 : vector<16x256xf32>
    %c0_79 = arith.constant 0 : index
    %c6 = arith.constant 6 : index
    %c0_80 = arith.constant 0 : index
    %c0_81 = arith.constant 0 : index
    %68 = vector.load %arg1[%c0_79, %c6, %c0_80, %c0_81] : memref<1x8x16x16xf32, #tpu.memory_space<vmem>>, vector<1x1x16x16xf32>
    %69 = vector.shape_cast %68 : vector<1x1x16x16xf32> to vector<16x16xf32>
    %70 = arith.truncf %69 : vector<16x16xf32> to vector<16x16xbf16>
    %c6_82 = arith.constant 6 : index
    %c0_83 = arith.constant 0 : index
    %c0_84 = arith.constant 0 : index
    %c0_85 = arith.constant 0 : index
    %71 = vector.load %arg3[%c6_82, %c0_83, %c0_84, %c0_85] : memref<8x2x16x256xbf16, #tpu.memory_space<vmem>>, vector<1x1x16x256xbf16>
    %72 = vector.shape_cast %71 : vector<1x1x16x256xbf16> to vector<16x256xbf16>
    %cst_86 = arith.constant dense<0.000000e+00> : vector<16x256xf32>
    %73 = tpu.matmul %70, %72, %cst_86 {dimension_numbers = #tpu.dot_dimension_numbers<[1], [0], [0], [1], [0, 0, 1, 1], [], []>} : vector<16x16xbf16>, vector<16x256xbf16>, vector<16x256xf32> -> vector<16x256xf32>
    %74 = arith.addf %63, %73 : vector<16x256xf32>
    %c6_87 = arith.constant 6 : index
    %c1_88 = arith.constant 1 : index
    %c0_89 = arith.constant 0 : index
    %c0_90 = arith.constant 0 : index
    %75 = vector.load %arg3[%c6_87, %c1_88, %c0_89, %c0_90] : memref<8x2x16x256xbf16, #tpu.memory_space<vmem>>, vector<1x1x16x256xbf16>
    %76 = vector.shape_cast %75 : vector<1x1x16x256xbf16> to vector<16x256xbf16>
    %cst_91 = arith.constant dense<0.000000e+00> : vector<16x256xf32>
    %77 = tpu.matmul %70, %76, %cst_91 {dimension_numbers = #tpu.dot_dimension_numbers<[1], [0], [0], [1], [0, 0, 1, 1], [], []>} : vector<16x16xbf16>, vector<16x256xbf16>, vector<16x256xf32> -> vector<16x256xf32>
    %78 = arith.addf %67, %77 : vector<16x256xf32>
    %c0_92 = arith.constant 0 : index
    %c7 = arith.constant 7 : index
    %c0_93 = arith.constant 0 : index
    %c0_94 = arith.constant 0 : index
    %79 = vector.load %arg1[%c0_92, %c7, %c0_93, %c0_94] : memref<1x8x16x16xf32, #tpu.memory_space<vmem>>, vector<1x1x16x16xf32>
    %80 = vector.shape_cast %79 : vector<1x1x16x16xf32> to vector<16x16xf32>
    %81 = arith.truncf %80 : vector<16x16xf32> to vector<16x16xbf16>
    %c7_95 = arith.constant 7 : index
    %c0_96 = arith.constant 0 : index
    %c0_97 = arith.constant 0 : index
    %c0_98 = arith.constant 0 : index
    %82 = vector.load %arg3[%c7_95, %c0_96, %c0_97, %c0_98] : memref<8x2x16x256xbf16, #tpu.memory_space<vmem>>, vector<1x1x16x256xbf16>
    %83 = vector.shape_cast %82 : vector<1x1x16x256xbf16> to vector<16x256xbf16>
    %cst_99 = arith.constant dense<0.000000e+00> : vector<16x256xf32>
    %84 = tpu.matmul %81, %83, %cst_99 {dimension_numbers = #tpu.dot_dimension_numbers<[1], [0], [0], [1], [0, 0, 1, 1], [], []>} : vector<16x16xbf16>, vector<16x256xbf16>, vector<16x256xf32> -> vector<16x256xf32>
    %85 = arith.addf %74, %84 : vector<16x256xf32>
    %c7_100 = arith.constant 7 : index
    %c1_101 = arith.constant 1 : index
    %c0_102 = arith.constant 0 : index
    %c0_103 = arith.constant 0 : index
    %86 = vector.load %arg3[%c7_100, %c1_101, %c0_102, %c0_103] : memref<8x2x16x256xbf16, #tpu.memory_space<vmem>>, vector<1x1x16x256xbf16>
    %87 = vector.shape_cast %86 : vector<1x1x16x256xbf16> to vector<16x256xbf16>
    %cst_104 = arith.constant dense<0.000000e+00> : vector<16x256xf32>
    %88 = tpu.matmul %81, %87, %cst_104 {dimension_numbers = #tpu.dot_dimension_numbers<[1], [0], [0], [1], [0, 0, 1, 1], [], []>} : vector<16x16xbf16>, vector<16x256xbf16>, vector<16x256xf32> -> vector<16x256xf32>
    %89 = arith.addf %78, %88 : vector<16x256xf32>
    %90 = tpu.concatenate %85, %89 in 0 : vector<16x256xf32>, vector<16x256xf32> -> vector<32x256xf32>
    %91 = arith.truncf %90 : vector<32x256xf32> to vector<32x256xbf16>
    %c0_105 = arith.constant 0 : index
    %c0_106 = arith.constant 0 : index
    %92 = vector.load %arg4[%c0_105, %c0_106] : memref<32x32xbf16, #tpu.memory_space<vmem>>, vector<32x32xbf16>
    %cst_107 = arith.constant dense<0.000000e+00> : vector<32x256xf32>
    %93 = tpu.matmul %92, %91, %cst_107 {dimension_numbers = #tpu.dot_dimension_numbers<[1], [0], [0], [1], [0, 0, 1, 1], [], []>} : vector<32x32xbf16>, vector<32x256xbf16>, vector<32x256xf32> -> vector<32x256xf32>
    %c0_108 = arith.constant 0 : index
    %c0_109 = arith.constant 0 : index
    %94 = vector.load %arg7[%c0_108, %c0_109] : memref<1x256xf32, #tpu.memory_space<vmem>>, vector<1x256xf32>
    %95 = vector.broadcast %94 : vector<1x256xf32> to vector<32x256xf32>
    %96 = arith.addf %93, %95 : vector<32x256xf32>
    %97 = arith.truncf %96 : vector<32x256xf32> to vector<32x256xbf16>
    %cst_110 = arith.constant 0.000000e+00 : bf16
    %98 = vector.broadcast %cst_110 : bf16 to vector<2x256xbf16>
    %99 = tpu.concatenate %98, %97, %98 in 0 : vector<2x256xbf16>, vector<32x256xbf16>, vector<2x256xbf16> -> vector<36x256xbf16>
    %cst_111 = arith.constant 0.000000e+00 : f32
    %100 = vector.broadcast %cst_111 : f32 to vector<32x256xf32>
    %101 = vector.extract_strided_slice %99 {offsets = [0, 0], sizes = [32, 256], strides = [1, 1]} : vector<36x256xbf16> to vector<32x256xbf16>
    %c0_112 = arith.constant 0 : index
    %c0_113 = arith.constant 0 : index
    %c0_114 = arith.constant 0 : index
    %102 = vector.load %arg5[%c0_112, %c0_113, %c0_114] : memref<5x256x256xbf16, #tpu.memory_space<vmem>>, vector<1x256x256xbf16>
    %103 = vector.shape_cast %102 : vector<1x256x256xbf16> to vector<256x256xbf16>
    %cst_115 = arith.constant dense<0.000000e+00> : vector<32x256xf32>
    %104 = tpu.matmul %101, %103, %cst_115 {dimension_numbers = #tpu.dot_dimension_numbers<[1], [0], [0], [1], [0, 0, 1, 1], [], []>} : vector<32x256xbf16>, vector<256x256xbf16>, vector<32x256xf32> -> vector<32x256xf32>
    %105 = arith.addf %100, %104 : vector<32x256xf32>
    %106 = vector.extract_strided_slice %99 {offsets = [1, 0], sizes = [32, 256], strides = [1, 1]} : vector<36x256xbf16> to vector<32x256xbf16>
    %c1_116 = arith.constant 1 : index
    %c0_117 = arith.constant 0 : index
    %c0_118 = arith.constant 0 : index
    %107 = vector.load %arg5[%c1_116, %c0_117, %c0_118] : memref<5x256x256xbf16, #tpu.memory_space<vmem>>, vector<1x256x256xbf16>
    %108 = vector.shape_cast %107 : vector<1x256x256xbf16> to vector<256x256xbf16>
    %cst_119 = arith.constant dense<0.000000e+00> : vector<32x256xf32>
    %109 = tpu.matmul %106, %108, %cst_119 {dimension_numbers = #tpu.dot_dimension_numbers<[1], [0], [0], [1], [0, 0, 1, 1], [], []>} : vector<32x256xbf16>, vector<256x256xbf16>, vector<32x256xf32> -> vector<32x256xf32>
    %110 = arith.addf %105, %109 : vector<32x256xf32>
    %111 = vector.extract_strided_slice %99 {offsets = [2, 0], sizes = [32, 256], strides = [1, 1]} : vector<36x256xbf16> to vector<32x256xbf16>
    %c2_120 = arith.constant 2 : index
    %c0_121 = arith.constant 0 : index
    %c0_122 = arith.constant 0 : index
    %112 = vector.load %arg5[%c2_120, %c0_121, %c0_122] : memref<5x256x256xbf16, #tpu.memory_space<vmem>>, vector<1x256x256xbf16>
    %113 = vector.shape_cast %112 : vector<1x256x256xbf16> to vector<256x256xbf16>
    %cst_123 = arith.constant dense<0.000000e+00> : vector<32x256xf32>
    %114 = tpu.matmul %111, %113, %cst_123 {dimension_numbers = #tpu.dot_dimension_numbers<[1], [0], [0], [1], [0, 0, 1, 1], [], []>} : vector<32x256xbf16>, vector<256x256xbf16>, vector<32x256xf32> -> vector<32x256xf32>
    %115 = arith.addf %110, %114 : vector<32x256xf32>
    %116 = vector.extract_strided_slice %99 {offsets = [3, 0], sizes = [32, 256], strides = [1, 1]} : vector<36x256xbf16> to vector<32x256xbf16>
    %c3_124 = arith.constant 3 : index
    %c0_125 = arith.constant 0 : index
    %c0_126 = arith.constant 0 : index
    %117 = vector.load %arg5[%c3_124, %c0_125, %c0_126] : memref<5x256x256xbf16, #tpu.memory_space<vmem>>, vector<1x256x256xbf16>
    %118 = vector.shape_cast %117 : vector<1x256x256xbf16> to vector<256x256xbf16>
    %cst_127 = arith.constant dense<0.000000e+00> : vector<32x256xf32>
    %119 = tpu.matmul %116, %118, %cst_127 {dimension_numbers = #tpu.dot_dimension_numbers<[1], [0], [0], [1], [0, 0, 1, 1], [], []>} : vector<32x256xbf16>, vector<256x256xbf16>, vector<32x256xf32> -> vector<32x256xf32>
    %120 = arith.addf %115, %119 : vector<32x256xf32>
    %121 = vector.extract_strided_slice %99 {offsets = [4, 0], sizes = [32, 256], strides = [1, 1]} : vector<36x256xbf16> to vector<32x256xbf16>
    %c4_128 = arith.constant 4 : index
    %c0_129 = arith.constant 0 : index
    %c0_130 = arith.constant 0 : index
    %122 = vector.load %arg5[%c4_128, %c0_129, %c0_130] : memref<5x256x256xbf16, #tpu.memory_space<vmem>>, vector<1x256x256xbf16>
    %123 = vector.shape_cast %122 : vector<1x256x256xbf16> to vector<256x256xbf16>
    %cst_131 = arith.constant dense<0.000000e+00> : vector<32x256xf32>
    %124 = tpu.matmul %121, %123, %cst_131 {dimension_numbers = #tpu.dot_dimension_numbers<[1], [0], [0], [1], [0, 0, 1, 1], [], []>} : vector<32x256xbf16>, vector<256x256xbf16>, vector<32x256xf32> -> vector<32x256xf32>
    %125 = arith.addf %120, %124 : vector<32x256xf32>
    %cst_132 = arith.constant 0.000000e+00 : bf16
    %126 = vector.broadcast %cst_132 : bf16 to vector<2x32xbf16>
    %c0_133 = arith.constant 0 : index
    %c0_134 = arith.constant 0 : index
    %c0_135 = arith.constant 0 : index
    %c0_136 = arith.constant 0 : index
    %127 = vector.load %arg2[%c0_133, %c0_134, %c0_135, %c0_136] : memref<1x4x32x32xf32, #tpu.memory_space<vmem>>, vector<1x1x32x32xf32>
    %128 = vector.shape_cast %127 : vector<1x1x32x32xf32> to vector<32x32xf32>
    %129 = arith.truncf %128 : vector<32x32xf32> to vector<32x32xbf16>
    %130 = tpu.concatenate %126, %129, %126 in 0 : vector<2x32xbf16>, vector<32x32xbf16>, vector<2x32xbf16> -> vector<36x32xbf16>
    %131 = vector.extract_strided_slice %130 {offsets = [0, 0], sizes = [32, 32], strides = [1, 1]} : vector<36x32xbf16> to vector<32x32xbf16>
    %c0_137 = arith.constant 0 : index
    %c0_138 = arith.constant 0 : index
    %c0_139 = arith.constant 0 : index
    %c0_140 = arith.constant 0 : index
    %132 = vector.load %arg6[%c0_137, %c0_138, %c0_139, %c0_140] : memref<5x4x32x256xbf16, #tpu.memory_space<vmem>>, vector<1x1x32x256xbf16>
    %133 = vector.shape_cast %132 : vector<1x1x32x256xbf16> to vector<32x256xbf16>
    %cst_141 = arith.constant dense<0.000000e+00> : vector<32x256xf32>
    %134 = tpu.matmul %131, %133, %cst_141 {dimension_numbers = #tpu.dot_dimension_numbers<[1], [0], [0], [1], [0, 0, 1, 1], [], []>} : vector<32x32xbf16>, vector<32x256xbf16>, vector<32x256xf32> -> vector<32x256xf32>
    %135 = arith.addf %125, %134 : vector<32x256xf32>
    %136 = vector.extract_strided_slice %130 {offsets = [1, 0], sizes = [32, 32], strides = [1, 1]} : vector<36x32xbf16> to vector<32x32xbf16>
    %c1_142 = arith.constant 1 : index
    %c0_143 = arith.constant 0 : index
    %c0_144 = arith.constant 0 : index
    %c0_145 = arith.constant 0 : index
    %137 = vector.load %arg6[%c1_142, %c0_143, %c0_144, %c0_145] : memref<5x4x32x256xbf16, #tpu.memory_space<vmem>>, vector<1x1x32x256xbf16>
    %138 = vector.shape_cast %137 : vector<1x1x32x256xbf16> to vector<32x256xbf16>
    %cst_146 = arith.constant dense<0.000000e+00> : vector<32x256xf32>
    %139 = tpu.matmul %136, %138, %cst_146 {dimension_numbers = #tpu.dot_dimension_numbers<[1], [0], [0], [1], [0, 0, 1, 1], [], []>} : vector<32x32xbf16>, vector<32x256xbf16>, vector<32x256xf32> -> vector<32x256xf32>
    %140 = arith.addf %135, %139 : vector<32x256xf32>
    %141 = vector.extract_strided_slice %130 {offsets = [2, 0], sizes = [32, 32], strides = [1, 1]} : vector<36x32xbf16> to vector<32x32xbf16>
    %c2_147 = arith.constant 2 : index
    %c0_148 = arith.constant 0 : index
    %c0_149 = arith.constant 0 : index
    %c0_150 = arith.constant 0 : index
    %142 = vector.load %arg6[%c2_147, %c0_148, %c0_149, %c0_150] : memref<5x4x32x256xbf16, #tpu.memory_space<vmem>>, vector<1x1x32x256xbf16>
    %143 = vector.shape_cast %142 : vector<1x1x32x256xbf16> to vector<32x256xbf16>
    %cst_151 = arith.constant dense<0.000000e+00> : vector<32x256xf32>
    %144 = tpu.matmul %141, %143, %cst_151 {dimension_numbers = #tpu.dot_dimension_numbers<[1], [0], [0], [1], [0, 0, 1, 1], [], []>} : vector<32x32xbf16>, vector<32x256xbf16>, vector<32x256xf32> -> vector<32x256xf32>
    %145 = arith.addf %140, %144 : vector<32x256xf32>
    %146 = vector.extract_strided_slice %130 {offsets = [3, 0], sizes = [32, 32], strides = [1, 1]} : vector<36x32xbf16> to vector<32x32xbf16>
    %c3_152 = arith.constant 3 : index
    %c0_153 = arith.constant 0 : index
    %c0_154 = arith.constant 0 : index
    %c0_155 = arith.constant 0 : index
    %147 = vector.load %arg6[%c3_152, %c0_153, %c0_154, %c0_155] : memref<5x4x32x256xbf16, #tpu.memory_space<vmem>>, vector<1x1x32x256xbf16>
    %148 = vector.shape_cast %147 : vector<1x1x32x256xbf16> to vector<32x256xbf16>
    %cst_156 = arith.constant dense<0.000000e+00> : vector<32x256xf32>
    %149 = tpu.matmul %146, %148, %cst_156 {dimension_numbers = #tpu.dot_dimension_numbers<[1], [0], [0], [1], [0, 0, 1, 1], [], []>} : vector<32x32xbf16>, vector<32x256xbf16>, vector<32x256xf32> -> vector<32x256xf32>
    %150 = arith.addf %145, %149 : vector<32x256xf32>
    %151 = vector.extract_strided_slice %130 {offsets = [4, 0], sizes = [32, 32], strides = [1, 1]} : vector<36x32xbf16> to vector<32x32xbf16>
    %c4_157 = arith.constant 4 : index
    %c0_158 = arith.constant 0 : index
    %c0_159 = arith.constant 0 : index
    %c0_160 = arith.constant 0 : index
    %152 = vector.load %arg6[%c4_157, %c0_158, %c0_159, %c0_160] : memref<5x4x32x256xbf16, #tpu.memory_space<vmem>>, vector<1x1x32x256xbf16>
    %153 = vector.shape_cast %152 : vector<1x1x32x256xbf16> to vector<32x256xbf16>
    %cst_161 = arith.constant dense<0.000000e+00> : vector<32x256xf32>
    %154 = tpu.matmul %151, %153, %cst_161 {dimension_numbers = #tpu.dot_dimension_numbers<[1], [0], [0], [1], [0, 0, 1, 1], [], []>} : vector<32x32xbf16>, vector<32x256xbf16>, vector<32x256xf32> -> vector<32x256xf32>
    %155 = arith.addf %150, %154 : vector<32x256xf32>
    %c0_162 = arith.constant 0 : index
    %c1_163 = arith.constant 1 : index
    %c0_164 = arith.constant 0 : index
    %c0_165 = arith.constant 0 : index
    %156 = vector.load %arg2[%c0_162, %c1_163, %c0_164, %c0_165] : memref<1x4x32x32xf32, #tpu.memory_space<vmem>>, vector<1x1x32x32xf32>
    %157 = vector.shape_cast %156 : vector<1x1x32x32xf32> to vector<32x32xf32>
    %158 = arith.truncf %157 : vector<32x32xf32> to vector<32x32xbf16>
    %159 = tpu.concatenate %126, %158, %126 in 0 : vector<2x32xbf16>, vector<32x32xbf16>, vector<2x32xbf16> -> vector<36x32xbf16>
    %160 = vector.extract_strided_slice %159 {offsets = [0, 0], sizes = [32, 32], strides = [1, 1]} : vector<36x32xbf16> to vector<32x32xbf16>
    %c0_166 = arith.constant 0 : index
    %c1_167 = arith.constant 1 : index
    %c0_168 = arith.constant 0 : index
    %c0_169 = arith.constant 0 : index
    %161 = vector.load %arg6[%c0_166, %c1_167, %c0_168, %c0_169] : memref<5x4x32x256xbf16, #tpu.memory_space<vmem>>, vector<1x1x32x256xbf16>
    %162 = vector.shape_cast %161 : vector<1x1x32x256xbf16> to vector<32x256xbf16>
    %cst_170 = arith.constant dense<0.000000e+00> : vector<32x256xf32>
    %163 = tpu.matmul %160, %162, %cst_170 {dimension_numbers = #tpu.dot_dimension_numbers<[1], [0], [0], [1], [0, 0, 1, 1], [], []>} : vector<32x32xbf16>, vector<32x256xbf16>, vector<32x256xf32> -> vector<32x256xf32>
    %164 = arith.addf %155, %163 : vector<32x256xf32>
    %165 = vector.extract_strided_slice %159 {offsets = [1, 0], sizes = [32, 32], strides = [1, 1]} : vector<36x32xbf16> to vector<32x32xbf16>
    %c1_171 = arith.constant 1 : index
    %c1_172 = arith.constant 1 : index
    %c0_173 = arith.constant 0 : index
    %c0_174 = arith.constant 0 : index
    %166 = vector.load %arg6[%c1_171, %c1_172, %c0_173, %c0_174] : memref<5x4x32x256xbf16, #tpu.memory_space<vmem>>, vector<1x1x32x256xbf16>
    %167 = vector.shape_cast %166 : vector<1x1x32x256xbf16> to vector<32x256xbf16>
    %cst_175 = arith.constant dense<0.000000e+00> : vector<32x256xf32>
    %168 = tpu.matmul %165, %167, %cst_175 {dimension_numbers = #tpu.dot_dimension_numbers<[1], [0], [0], [1], [0, 0, 1, 1], [], []>} : vector<32x32xbf16>, vector<32x256xbf16>, vector<32x256xf32> -> vector<32x256xf32>
    %169 = arith.addf %164, %168 : vector<32x256xf32>
    %170 = vector.extract_strided_slice %159 {offsets = [2, 0], sizes = [32, 32], strides = [1, 1]} : vector<36x32xbf16> to vector<32x32xbf16>
    %c2_176 = arith.constant 2 : index
    %c1_177 = arith.constant 1 : index
    %c0_178 = arith.constant 0 : index
    %c0_179 = arith.constant 0 : index
    %171 = vector.load %arg6[%c2_176, %c1_177, %c0_178, %c0_179] : memref<5x4x32x256xbf16, #tpu.memory_space<vmem>>, vector<1x1x32x256xbf16>
    %172 = vector.shape_cast %171 : vector<1x1x32x256xbf16> to vector<32x256xbf16>
    %cst_180 = arith.constant dense<0.000000e+00> : vector<32x256xf32>
    %173 = tpu.matmul %170, %172, %cst_180 {dimension_numbers = #tpu.dot_dimension_numbers<[1], [0], [0], [1], [0, 0, 1, 1], [], []>} : vector<32x32xbf16>, vector<32x256xbf16>, vector<32x256xf32> -> vector<32x256xf32>
    %174 = arith.addf %169, %173 : vector<32x256xf32>
    %175 = vector.extract_strided_slice %159 {offsets = [3, 0], sizes = [32, 32], strides = [1, 1]} : vector<36x32xbf16> to vector<32x32xbf16>
    %c3_181 = arith.constant 3 : index
    %c1_182 = arith.constant 1 : index
    %c0_183 = arith.constant 0 : index
    %c0_184 = arith.constant 0 : index
    %176 = vector.load %arg6[%c3_181, %c1_182, %c0_183, %c0_184] : memref<5x4x32x256xbf16, #tpu.memory_space<vmem>>, vector<1x1x32x256xbf16>
    %177 = vector.shape_cast %176 : vector<1x1x32x256xbf16> to vector<32x256xbf16>
    %cst_185 = arith.constant dense<0.000000e+00> : vector<32x256xf32>
    %178 = tpu.matmul %175, %177, %cst_185 {dimension_numbers = #tpu.dot_dimension_numbers<[1], [0], [0], [1], [0, 0, 1, 1], [], []>} : vector<32x32xbf16>, vector<32x256xbf16>, vector<32x256xf32> -> vector<32x256xf32>
    %179 = arith.addf %174, %178 : vector<32x256xf32>
    %180 = vector.extract_strided_slice %159 {offsets = [4, 0], sizes = [32, 32], strides = [1, 1]} : vector<36x32xbf16> to vector<32x32xbf16>
    %c4_186 = arith.constant 4 : index
    %c1_187 = arith.constant 1 : index
    %c0_188 = arith.constant 0 : index
    %c0_189 = arith.constant 0 : index
    %181 = vector.load %arg6[%c4_186, %c1_187, %c0_188, %c0_189] : memref<5x4x32x256xbf16, #tpu.memory_space<vmem>>, vector<1x1x32x256xbf16>
    %182 = vector.shape_cast %181 : vector<1x1x32x256xbf16> to vector<32x256xbf16>
    %cst_190 = arith.constant dense<0.000000e+00> : vector<32x256xf32>
    %183 = tpu.matmul %180, %182, %cst_190 {dimension_numbers = #tpu.dot_dimension_numbers<[1], [0], [0], [1], [0, 0, 1, 1], [], []>} : vector<32x32xbf16>, vector<32x256xbf16>, vector<32x256xf32> -> vector<32x256xf32>
    %184 = arith.addf %179, %183 : vector<32x256xf32>
    %c0_191 = arith.constant 0 : index
    %c2_192 = arith.constant 2 : index
    %c0_193 = arith.constant 0 : index
    %c0_194 = arith.constant 0 : index
    %185 = vector.load %arg2[%c0_191, %c2_192, %c0_193, %c0_194] : memref<1x4x32x32xf32, #tpu.memory_space<vmem>>, vector<1x1x32x32xf32>
    %186 = vector.shape_cast %185 : vector<1x1x32x32xf32> to vector<32x32xf32>
    %187 = arith.truncf %186 : vector<32x32xf32> to vector<32x32xbf16>
    %188 = tpu.concatenate %126, %187, %126 in 0 : vector<2x32xbf16>, vector<32x32xbf16>, vector<2x32xbf16> -> vector<36x32xbf16>
    %189 = vector.extract_strided_slice %188 {offsets = [0, 0], sizes = [32, 32], strides = [1, 1]} : vector<36x32xbf16> to vector<32x32xbf16>
    %c0_195 = arith.constant 0 : index
    %c2_196 = arith.constant 2 : index
    %c0_197 = arith.constant 0 : index
    %c0_198 = arith.constant 0 : index
    %190 = vector.load %arg6[%c0_195, %c2_196, %c0_197, %c0_198] : memref<5x4x32x256xbf16, #tpu.memory_space<vmem>>, vector<1x1x32x256xbf16>
    %191 = vector.shape_cast %190 : vector<1x1x32x256xbf16> to vector<32x256xbf16>
    %cst_199 = arith.constant dense<0.000000e+00> : vector<32x256xf32>
    %192 = tpu.matmul %189, %191, %cst_199 {dimension_numbers = #tpu.dot_dimension_numbers<[1], [0], [0], [1], [0, 0, 1, 1], [], []>} : vector<32x32xbf16>, vector<32x256xbf16>, vector<32x256xf32> -> vector<32x256xf32>
    %193 = arith.addf %184, %192 : vector<32x256xf32>
    %194 = vector.extract_strided_slice %188 {offsets = [1, 0], sizes = [32, 32], strides = [1, 1]} : vector<36x32xbf16> to vector<32x32xbf16>
    %c1_200 = arith.constant 1 : index
    %c2_201 = arith.constant 2 : index
    %c0_202 = arith.constant 0 : index
    %c0_203 = arith.constant 0 : index
    %195 = vector.load %arg6[%c1_200, %c2_201, %c0_202, %c0_203] : memref<5x4x32x256xbf16, #tpu.memory_space<vmem>>, vector<1x1x32x256xbf16>
    %196 = vector.shape_cast %195 : vector<1x1x32x256xbf16> to vector<32x256xbf16>
    %cst_204 = arith.constant dense<0.000000e+00> : vector<32x256xf32>
    %197 = tpu.matmul %194, %196, %cst_204 {dimension_numbers = #tpu.dot_dimension_numbers<[1], [0], [0], [1], [0, 0, 1, 1], [], []>} : vector<32x32xbf16>, vector<32x256xbf16>, vector<32x256xf32> -> vector<32x256xf32>
    %198 = arith.addf %193, %197 : vector<32x256xf32>
    %199 = vector.extract_strided_slice %188 {offsets = [2, 0], sizes = [32, 32], strides = [1, 1]} : vector<36x32xbf16> to vector<32x32xbf16>
    %c2_205 = arith.constant 2 : index
    %c2_206 = arith.constant 2 : index
    %c0_207 = arith.constant 0 : index
    %c0_208 = arith.constant 0 : index
    %200 = vector.load %arg6[%c2_205, %c2_206, %c0_207, %c0_208] : memref<5x4x32x256xbf16, #tpu.memory_space<vmem>>, vector<1x1x32x256xbf16>
    %201 = vector.shape_cast %200 : vector<1x1x32x256xbf16> to vector<32x256xbf16>
    %cst_209 = arith.constant dense<0.000000e+00> : vector<32x256xf32>
    %202 = tpu.matmul %199, %201, %cst_209 {dimension_numbers = #tpu.dot_dimension_numbers<[1], [0], [0], [1], [0, 0, 1, 1], [], []>} : vector<32x32xbf16>, vector<32x256xbf16>, vector<32x256xf32> -> vector<32x256xf32>
    %203 = arith.addf %198, %202 : vector<32x256xf32>
    %204 = vector.extract_strided_slice %188 {offsets = [3, 0], sizes = [32, 32], strides = [1, 1]} : vector<36x32xbf16> to vector<32x32xbf16>
    %c3_210 = arith.constant 3 : index
    %c2_211 = arith.constant 2 : index
    %c0_212 = arith.constant 0 : index
    %c0_213 = arith.constant 0 : index
    %205 = vector.load %arg6[%c3_210, %c2_211, %c0_212, %c0_213] : memref<5x4x32x256xbf16, #tpu.memory_space<vmem>>, vector<1x1x32x256xbf16>
    %206 = vector.shape_cast %205 : vector<1x1x32x256xbf16> to vector<32x256xbf16>
    %cst_214 = arith.constant dense<0.000000e+00> : vector<32x256xf32>
    %207 = tpu.matmul %204, %206, %cst_214 {dimension_numbers = #tpu.dot_dimension_numbers<[1], [0], [0], [1], [0, 0, 1, 1], [], []>} : vector<32x32xbf16>, vector<32x256xbf16>, vector<32x256xf32> -> vector<32x256xf32>
    %208 = arith.addf %203, %207 : vector<32x256xf32>
    %209 = vector.extract_strided_slice %188 {offsets = [4, 0], sizes = [32, 32], strides = [1, 1]} : vector<36x32xbf16> to vector<32x32xbf16>
    %c4_215 = arith.constant 4 : index
    %c2_216 = arith.constant 2 : index
    %c0_217 = arith.constant 0 : index
    %c0_218 = arith.constant 0 : index
    %210 = vector.load %arg6[%c4_215, %c2_216, %c0_217, %c0_218] : memref<5x4x32x256xbf16, #tpu.memory_space<vmem>>, vector<1x1x32x256xbf16>
    %211 = vector.shape_cast %210 : vector<1x1x32x256xbf16> to vector<32x256xbf16>
    %cst_219 = arith.constant dense<0.000000e+00> : vector<32x256xf32>
    %212 = tpu.matmul %209, %211, %cst_219 {dimension_numbers = #tpu.dot_dimension_numbers<[1], [0], [0], [1], [0, 0, 1, 1], [], []>} : vector<32x32xbf16>, vector<32x256xbf16>, vector<32x256xf32> -> vector<32x256xf32>
    %213 = arith.addf %208, %212 : vector<32x256xf32>
    %c0_220 = arith.constant 0 : index
    %c3_221 = arith.constant 3 : index
    %c0_222 = arith.constant 0 : index
    %c0_223 = arith.constant 0 : index
    %214 = vector.load %arg2[%c0_220, %c3_221, %c0_222, %c0_223] : memref<1x4x32x32xf32, #tpu.memory_space<vmem>>, vector<1x1x32x32xf32>
    %215 = vector.shape_cast %214 : vector<1x1x32x32xf32> to vector<32x32xf32>
    %216 = arith.truncf %215 : vector<32x32xf32> to vector<32x32xbf16>
    %217 = tpu.concatenate %126, %216, %126 in 0 : vector<2x32xbf16>, vector<32x32xbf16>, vector<2x32xbf16> -> vector<36x32xbf16>
    %218 = vector.extract_strided_slice %217 {offsets = [0, 0], sizes = [32, 32], strides = [1, 1]} : vector<36x32xbf16> to vector<32x32xbf16>
    %c0_224 = arith.constant 0 : index
    %c3_225 = arith.constant 3 : index
    %c0_226 = arith.constant 0 : index
    %c0_227 = arith.constant 0 : index
    %219 = vector.load %arg6[%c0_224, %c3_225, %c0_226, %c0_227] : memref<5x4x32x256xbf16, #tpu.memory_space<vmem>>, vector<1x1x32x256xbf16>
    %220 = vector.shape_cast %219 : vector<1x1x32x256xbf16> to vector<32x256xbf16>
    %cst_228 = arith.constant dense<0.000000e+00> : vector<32x256xf32>
    %221 = tpu.matmul %218, %220, %cst_228 {dimension_numbers = #tpu.dot_dimension_numbers<[1], [0], [0], [1], [0, 0, 1, 1], [], []>} : vector<32x32xbf16>, vector<32x256xbf16>, vector<32x256xf32> -> vector<32x256xf32>
    %222 = arith.addf %213, %221 : vector<32x256xf32>
    %223 = vector.extract_strided_slice %217 {offsets = [1, 0], sizes = [32, 32], strides = [1, 1]} : vector<36x32xbf16> to vector<32x32xbf16>
    %c1_229 = arith.constant 1 : index
    %c3_230 = arith.constant 3 : index
    %c0_231 = arith.constant 0 : index
    %c0_232 = arith.constant 0 : index
    %224 = vector.load %arg6[%c1_229, %c3_230, %c0_231, %c0_232] : memref<5x4x32x256xbf16, #tpu.memory_space<vmem>>, vector<1x1x32x256xbf16>
    %225 = vector.shape_cast %224 : vector<1x1x32x256xbf16> to vector<32x256xbf16>
    %cst_233 = arith.constant dense<0.000000e+00> : vector<32x256xf32>
    %226 = tpu.matmul %223, %225, %cst_233 {dimension_numbers = #tpu.dot_dimension_numbers<[1], [0], [0], [1], [0, 0, 1, 1], [], []>} : vector<32x32xbf16>, vector<32x256xbf16>, vector<32x256xf32> -> vector<32x256xf32>
    %227 = arith.addf %222, %226 : vector<32x256xf32>
    %228 = vector.extract_strided_slice %217 {offsets = [2, 0], sizes = [32, 32], strides = [1, 1]} : vector<36x32xbf16> to vector<32x32xbf16>
    %c2_234 = arith.constant 2 : index
    %c3_235 = arith.constant 3 : index
    %c0_236 = arith.constant 0 : index
    %c0_237 = arith.constant 0 : index
    %229 = vector.load %arg6[%c2_234, %c3_235, %c0_236, %c0_237] : memref<5x4x32x256xbf16, #tpu.memory_space<vmem>>, vector<1x1x32x256xbf16>
    %230 = vector.shape_cast %229 : vector<1x1x32x256xbf16> to vector<32x256xbf16>
    %cst_238 = arith.constant dense<0.000000e+00> : vector<32x256xf32>
    %231 = tpu.matmul %228, %230, %cst_238 {dimension_numbers = #tpu.dot_dimension_numbers<[1], [0], [0], [1], [0, 0, 1, 1], [], []>} : vector<32x32xbf16>, vector<32x256xbf16>, vector<32x256xf32> -> vector<32x256xf32>
    %232 = arith.addf %227, %231 : vector<32x256xf32>
    %233 = vector.extract_strided_slice %217 {offsets = [3, 0], sizes = [32, 32], strides = [1, 1]} : vector<36x32xbf16> to vector<32x32xbf16>
    %c3_239 = arith.constant 3 : index
    %c3_240 = arith.constant 3 : index
    %c0_241 = arith.constant 0 : index
    %c0_242 = arith.constant 0 : index
    %234 = vector.load %arg6[%c3_239, %c3_240, %c0_241, %c0_242] : memref<5x4x32x256xbf16, #tpu.memory_space<vmem>>, vector<1x1x32x256xbf16>
    %235 = vector.shape_cast %234 : vector<1x1x32x256xbf16> to vector<32x256xbf16>
    %cst_243 = arith.constant dense<0.000000e+00> : vector<32x256xf32>
    %236 = tpu.matmul %233, %235, %cst_243 {dimension_numbers = #tpu.dot_dimension_numbers<[1], [0], [0], [1], [0, 0, 1, 1], [], []>} : vector<32x32xbf16>, vector<32x256xbf16>, vector<32x256xf32> -> vector<32x256xf32>
    %237 = arith.addf %232, %236 : vector<32x256xf32>
    %238 = vector.extract_strided_slice %217 {offsets = [4, 0], sizes = [32, 32], strides = [1, 1]} : vector<36x32xbf16> to vector<32x32xbf16>
    %c4_244 = arith.constant 4 : index
    %c3_245 = arith.constant 3 : index
    %c0_246 = arith.constant 0 : index
    %c0_247 = arith.constant 0 : index
    %239 = vector.load %arg6[%c4_244, %c3_245, %c0_246, %c0_247] : memref<5x4x32x256xbf16, #tpu.memory_space<vmem>>, vector<1x1x32x256xbf16>
    %240 = vector.shape_cast %239 : vector<1x1x32x256xbf16> to vector<32x256xbf16>
    %cst_248 = arith.constant dense<0.000000e+00> : vector<32x256xf32>
    %241 = tpu.matmul %238, %240, %cst_248 {dimension_numbers = #tpu.dot_dimension_numbers<[1], [0], [0], [1], [0, 0, 1, 1], [], []>} : vector<32x32xbf16>, vector<32x256xbf16>, vector<32x256xf32> -> vector<32x256xf32>
    %242 = arith.addf %237, %241 : vector<32x256xf32>
    %c0_249 = arith.constant 0 : index
    %c0_250 = arith.constant 0 : index
    %243 = vector.load %arg8[%c0_249, %c0_250] : memref<1x256xf32, #tpu.memory_space<vmem>>, vector<1x256xf32>
    %244 = vector.broadcast %243 : vector<1x256xf32> to vector<32x256xf32>
    %245 = arith.addf %242, %244 : vector<32x256xf32>
    %246 = arith.truncf %245 : vector<32x256xf32> to vector<32x256xbf16>
    %c0_251 = arith.constant 0 : index
    %c0_252 = arith.constant 0 : index
    %c0_253 = arith.constant 0 : index
    %247 = vector.load %arg9[%c0_251, %c0_252, %c0_253] : memref<1x32x256xbf16, #tpu.memory_space<vmem>>, vector<1x32x256xbf16>
    %248 = vector.shape_cast %247 : vector<1x32x256xbf16> to vector<32x256xbf16>
    %249 = vector.shape_cast %246 : vector<32x256xbf16> to vector<1x32x256xbf16>
    tpu.vector_store %arg9[%c0_251, %c0_252, %c0_253], %249 {strides = array<i32>} : memref<1x32x256xbf16, #tpu.memory_space<vmem>>, vector<1x32x256xbf16>,
    %cst_254 = arith.constant dense<0.000000e+00> : vector<256xf32>
    %250 = vector.multi_reduction <add>, %245, %cst_254 [0] : vector<32x256xf32> to vector<256xf32>
    %251 = vector.shape_cast %250 : vector<256xf32> to vector<1x256xf32>
    %252 = arith.mulf %245, %245 : vector<32x256xf32>
    %cst_255 = arith.constant dense<0.000000e+00> : vector<256xf32>
    %253 = vector.multi_reduction <add>, %252, %cst_255 [0] : vector<32x256xf32> to vector<256xf32>
    %254 = vector.shape_cast %253 : vector<256xf32> to vector<1x256xf32>
    %255 = tpu.concatenate %251, %254 in 0 : vector<1x256xf32>, vector<1x256xf32> -> vector<2x256xf32>
    %c0_256 = arith.constant 0 : index
    %c0_257 = arith.constant 0 : index
    %c0_258 = arith.constant 0 : index
    %256 = vector.load %arg10[%c0_256, %c0_257, %c0_258] : memref<1x2x256xf32, #tpu.memory_space<vmem>>, vector<1x2x256xf32>
    %257 = vector.shape_cast %256 : vector<1x2x256xf32> to vector<2x256xf32>
    %258 = vector.shape_cast %255 : vector<2x256xf32> to vector<1x2x256xf32>
    tpu.vector_store %arg10[%c0_256, %c0_257, %c0_258], %258 {strides = array<i32>} : memref<1x2x256xf32, #tpu.memory_space<vmem>>, vector<1x2x256xf32>,
    return
  }
  func.func @transform_0(%arg0: i32) -> (i32, i32, i32, i32) {
    %c0_i32 = arith.constant 0 : i32
    %c0_i32_0 = arith.constant 0 : i32
    %c0_i32_1 = arith.constant 0 : i32
    %c0_i32_2 = arith.constant 0 : i32
    return %arg0, %c0_i32, %c0_i32_0, %c0_i32_1 : i32, i32, i32, i32
  }
  func.func @transform_1(%arg0: i32) -> (i32, i32, i32, i32) {
    %c0_i32 = arith.constant 0 : i32
    %c0_i32_0 = arith.constant 0 : i32
    %c0_i32_1 = arith.constant 0 : i32
    %c0_i32_2 = arith.constant 0 : i32
    return %arg0, %c0_i32, %c0_i32_0, %c0_i32_1 : i32, i32, i32, i32
  }
  func.func @transform_2(%arg0: i32) -> (i32, i32, i32, i32) {
    %c0_i32 = arith.constant 0 : i32
    %c0_i32_0 = arith.constant 0 : i32
    %c0_i32_1 = arith.constant 0 : i32
    %c0_i32_2 = arith.constant 0 : i32
    %c0_i32_3 = arith.constant 0 : i32
    return %c0_i32, %c0_i32_0, %c0_i32_1, %c0_i32_2 : i32, i32, i32, i32
  }
  func.func @transform_3(%arg0: i32) -> (i32, i32) {
    %c0_i32 = arith.constant 0 : i32
    %c0_i32_0 = arith.constant 0 : i32
    %c0_i32_1 = arith.constant 0 : i32
    return %c0_i32, %c0_i32_0 : i32, i32
  }
  func.func @transform_4(%arg0: i32) -> (i32, i32, i32) {
    %c0_i32 = arith.constant 0 : i32
    %c0_i32_0 = arith.constant 0 : i32
    %c0_i32_1 = arith.constant 0 : i32
    %c0_i32_2 = arith.constant 0 : i32
    return %c0_i32, %c0_i32_0, %c0_i32_1 : i32, i32, i32
  }
  func.func @transform_5(%arg0: i32) -> (i32, i32, i32, i32) {
    %c0_i32 = arith.constant 0 : i32
    %c0_i32_0 = arith.constant 0 : i32
    %c0_i32_1 = arith.constant 0 : i32
    %c0_i32_2 = arith.constant 0 : i32
    %c0_i32_3 = arith.constant 0 : i32
    return %c0_i32, %c0_i32_0, %c0_i32_1, %c0_i32_2 : i32, i32, i32, i32
  }
  func.func @transform_6(%arg0: i32) -> (i32, i32) {
    %c0_i32 = arith.constant 0 : i32
    %c0_i32_0 = arith.constant 0 : i32
    %c0_i32_1 = arith.constant 0 : i32
    return %c0_i32, %c0_i32_0 : i32, i32
  }
  func.func @transform_7(%arg0: i32) -> (i32, i32) {
    %c0_i32 = arith.constant 0 : i32
    %c0_i32_0 = arith.constant 0 : i32
    %c0_i32_1 = arith.constant 0 : i32
    return %c0_i32, %c0_i32_0 : i32, i32
  }
  func.func @transform_8(%arg0: i32) -> (i32, i32, i32) {
    %c0_i32 = arith.constant 0 : i32
    %c0_i32_0 = arith.constant 0 : i32
    %c0_i32_1 = arith.constant 0 : i32
    return %arg0, %c0_i32, %c0_i32_0 : i32, i32, i32
  }
  func.func @transform_9(%arg0: i32) -> (i32, i32, i32) {
    %c0_i32 = arith.constant 0 : i32
    %c0_i32_0 = arith.constant 0 : i32
    %c0_i32_1 = arith.constant 0 : i32
    return %arg0, %c0_i32, %c0_i32_0 : i32, i32, i32
  }
}

module attributes {stable_mosaic.version = 11 : i64} {
  func.func @_k2_kernel(%arg0: i32, %arg1: memref<1x32x256xbf16, #tpu.memory_space<vmem>>, %arg2: memref<1x256xf32, #tpu.memory_space<vmem>>, %arg3: memref<1x256xf32, #tpu.memory_space<vmem>>, %arg4: memref<5x256x256xbf16, #tpu.memory_space<vmem>>, %arg5: memref<1x256xf32, #tpu.memory_space<vmem>>, %arg6: memref<1x32x256xbf16, #tpu.memory_space<vmem>>, %arg7: memref<1x2x256xf32, #tpu.memory_space<vmem>>) attributes {dimension_semantics = [#tpu.dimension_semantics<parallel>], iteration_bounds = array<i64: 2>, scalar_prefetch = 0 : i64, scratch_operands = 0 : i64, tpu.core_type = #tpu.core_type<tc>, window_params = [{transform_indices = @transform_0, window_bounds = array<i64: 1, 32, 256>}, {pipeline_mode = #tpu.pipeline_mode<synchronous>, transform_indices = @transform_1, window_bounds = array<i64: 1, 256>}, {pipeline_mode = #tpu.pipeline_mode<synchronous>, transform_indices = @transform_2, window_bounds = array<i64: 1, 256>}, {pipeline_mode = #tpu.pipeline_mode<synchronous>, transform_indices = @transform_3, window_bounds = array<i64: 5, 256, 256>}, {pipeline_mode = #tpu.pipeline_mode<synchronous>, transform_indices = @transform_4, window_bounds = array<i64: 1, 256>}, {transform_indices = @transform_5, window_bounds = array<i64: 1, 32, 256>}, {transform_indices = @transform_6, window_bounds = array<i64: 1, 2, 256>}]} {
    %c0 = arith.constant 0 : index
    %c0_0 = arith.constant 0 : index
    %c0_1 = arith.constant 0 : index
    %0 = vector.load %arg1[%c0, %c0_0, %c0_1] : memref<1x32x256xbf16, #tpu.memory_space<vmem>>, vector<1x32x256xbf16>
    %1 = vector.shape_cast %0 : vector<1x32x256xbf16> to vector<32x256xbf16>
    %2 = arith.extf %1 : vector<32x256xbf16> to vector<32x256xf32>
    %c0_2 = arith.constant 0 : index
    %c0_3 = arith.constant 0 : index
    %3 = vector.load %arg2[%c0_2, %c0_3] : memref<1x256xf32, #tpu.memory_space<vmem>>, vector<1x256xf32>
    %4 = vector.broadcast %3 : vector<1x256xf32> to vector<32x256xf32>
    %5 = arith.mulf %2, %4 : vector<32x256xf32>
    %c0_4 = arith.constant 0 : index
    %c0_5 = arith.constant 0 : index
    %6 = vector.load %arg3[%c0_4, %c0_5] : memref<1x256xf32, #tpu.memory_space<vmem>>, vector<1x256xf32>
    %7 = vector.broadcast %6 : vector<1x256xf32> to vector<32x256xf32>
    %8 = arith.addf %5, %7 : vector<32x256xf32>
    %cst = arith.constant 0.000000e+00 : f32
    %9 = vector.broadcast %cst : f32 to vector<32x256xf32>
    %10 = arith.maximumf %8, %9 : vector<32x256xf32>
    %11 = arith.truncf %10 : vector<32x256xf32> to vector<32x256xbf16>
    %cst_6 = arith.constant 0.000000e+00 : bf16
    %12 = vector.broadcast %cst_6 : bf16 to vector<2x256xbf16>
    %13 = tpu.concatenate %12, %11, %12 in 0 : vector<2x256xbf16>, vector<32x256xbf16>, vector<2x256xbf16> -> vector<36x256xbf16>
    %cst_7 = arith.constant 0.000000e+00 : f32
    %14 = vector.broadcast %cst_7 : f32 to vector<32x256xf32>
    %15 = vector.extract_strided_slice %13 {offsets = [0, 0], sizes = [32, 256], strides = [1, 1]} : vector<36x256xbf16> to vector<32x256xbf16>
    %c0_8 = arith.constant 0 : index
    %c0_9 = arith.constant 0 : index
    %c0_10 = arith.constant 0 : index
    %16 = vector.load %arg4[%c0_8, %c0_9, %c0_10] : memref<5x256x256xbf16, #tpu.memory_space<vmem>>, vector<1x256x256xbf16>
    %17 = vector.shape_cast %16 : vector<1x256x256xbf16> to vector<256x256xbf16>
    %cst_11 = arith.constant dense<0.000000e+00> : vector<32x256xf32>
    %18 = tpu.matmul %15, %17, %cst_11 {dimension_numbers = #tpu.dot_dimension_numbers<[1], [0], [0], [1], [0, 0, 1, 1], [], []>} : vector<32x256xbf16>, vector<256x256xbf16>, vector<32x256xf32> -> vector<32x256xf32>
    %19 = arith.addf %14, %18 : vector<32x256xf32>
    %20 = vector.extract_strided_slice %13 {offsets = [1, 0], sizes = [32, 256], strides = [1, 1]} : vector<36x256xbf16> to vector<32x256xbf16>
    %c1 = arith.constant 1 : index
    %c0_12 = arith.constant 0 : index
    %c0_13 = arith.constant 0 : index
    %21 = vector.load %arg4[%c1, %c0_12, %c0_13] : memref<5x256x256xbf16, #tpu.memory_space<vmem>>, vector<1x256x256xbf16>
    %22 = vector.shape_cast %21 : vector<1x256x256xbf16> to vector<256x256xbf16>
    %cst_14 = arith.constant dense<0.000000e+00> : vector<32x256xf32>
    %23 = tpu.matmul %20, %22, %cst_14 {dimension_numbers = #tpu.dot_dimension_numbers<[1], [0], [0], [1], [0, 0, 1, 1], [], []>} : vector<32x256xbf16>, vector<256x256xbf16>, vector<32x256xf32> -> vector<32x256xf32>
    %24 = arith.addf %19, %23 : vector<32x256xf32>
    %25 = vector.extract_strided_slice %13 {offsets = [2, 0], sizes = [32, 256], strides = [1, 1]} : vector<36x256xbf16> to vector<32x256xbf16>
    %c2 = arith.constant 2 : index
    %c0_15 = arith.constant 0 : index
    %c0_16 = arith.constant 0 : index
    %26 = vector.load %arg4[%c2, %c0_15, %c0_16] : memref<5x256x256xbf16, #tpu.memory_space<vmem>>, vector<1x256x256xbf16>
    %27 = vector.shape_cast %26 : vector<1x256x256xbf16> to vector<256x256xbf16>
    %cst_17 = arith.constant dense<0.000000e+00> : vector<32x256xf32>
    %28 = tpu.matmul %25, %27, %cst_17 {dimension_numbers = #tpu.dot_dimension_numbers<[1], [0], [0], [1], [0, 0, 1, 1], [], []>} : vector<32x256xbf16>, vector<256x256xbf16>, vector<32x256xf32> -> vector<32x256xf32>
    %29 = arith.addf %24, %28 : vector<32x256xf32>
    %30 = vector.extract_strided_slice %13 {offsets = [3, 0], sizes = [32, 256], strides = [1, 1]} : vector<36x256xbf16> to vector<32x256xbf16>
    %c3 = arith.constant 3 : index
    %c0_18 = arith.constant 0 : index
    %c0_19 = arith.constant 0 : index
    %31 = vector.load %arg4[%c3, %c0_18, %c0_19] : memref<5x256x256xbf16, #tpu.memory_space<vmem>>, vector<1x256x256xbf16>
    %32 = vector.shape_cast %31 : vector<1x256x256xbf16> to vector<256x256xbf16>
    %cst_20 = arith.constant dense<0.000000e+00> : vector<32x256xf32>
    %33 = tpu.matmul %30, %32, %cst_20 {dimension_numbers = #tpu.dot_dimension_numbers<[1], [0], [0], [1], [0, 0, 1, 1], [], []>} : vector<32x256xbf16>, vector<256x256xbf16>, vector<32x256xf32> -> vector<32x256xf32>
    %34 = arith.addf %29, %33 : vector<32x256xf32>
    %35 = vector.extract_strided_slice %13 {offsets = [4, 0], sizes = [32, 256], strides = [1, 1]} : vector<36x256xbf16> to vector<32x256xbf16>
    %c4 = arith.constant 4 : index
    %c0_21 = arith.constant 0 : index
    %c0_22 = arith.constant 0 : index
    %36 = vector.load %arg4[%c4, %c0_21, %c0_22] : memref<5x256x256xbf16, #tpu.memory_space<vmem>>, vector<1x256x256xbf16>
    %37 = vector.shape_cast %36 : vector<1x256x256xbf16> to vector<256x256xbf16>
    %cst_23 = arith.constant dense<0.000000e+00> : vector<32x256xf32>
    %38 = tpu.matmul %35, %37, %cst_23 {dimension_numbers = #tpu.dot_dimension_numbers<[1], [0], [0], [1], [0, 0, 1, 1], [], []>} : vector<32x256xbf16>, vector<256x256xbf16>, vector<32x256xf32> -> vector<32x256xf32>
    %39 = arith.addf %34, %38 : vector<32x256xf32>
    %c0_24 = arith.constant 0 : index
    %c0_25 = arith.constant 0 : index
    %40 = vector.load %arg5[%c0_24, %c0_25] : memref<1x256xf32, #tpu.memory_space<vmem>>, vector<1x256xf32>
    %41 = vector.broadcast %40 : vector<1x256xf32> to vector<32x256xf32>
    %42 = arith.addf %39, %41 : vector<32x256xf32>
    %43 = arith.truncf %42 : vector<32x256xf32> to vector<32x256xbf16>
    %c0_26 = arith.constant 0 : index
    %c0_27 = arith.constant 0 : index
    %c0_28 = arith.constant 0 : index
    %44 = vector.load %arg6[%c0_26, %c0_27, %c0_28] : memref<1x32x256xbf16, #tpu.memory_space<vmem>>, vector<1x32x256xbf16>
    %45 = vector.shape_cast %44 : vector<1x32x256xbf16> to vector<32x256xbf16>
    %46 = vector.shape_cast %43 : vector<32x256xbf16> to vector<1x32x256xbf16>
    tpu.vector_store %arg6[%c0_26, %c0_27, %c0_28], %46 {strides = array<i32>} : memref<1x32x256xbf16, #tpu.memory_space<vmem>>, vector<1x32x256xbf16>,
    %cst_29 = arith.constant dense<0.000000e+00> : vector<256xf32>
    %47 = vector.multi_reduction <add>, %42, %cst_29 [0] : vector<32x256xf32> to vector<256xf32>
    %48 = vector.shape_cast %47 : vector<256xf32> to vector<1x256xf32>
    %49 = arith.mulf %42, %42 : vector<32x256xf32>
    %cst_30 = arith.constant dense<0.000000e+00> : vector<256xf32>
    %50 = vector.multi_reduction <add>, %49, %cst_30 [0] : vector<32x256xf32> to vector<256xf32>
    %51 = vector.shape_cast %50 : vector<256xf32> to vector<1x256xf32>
    %52 = tpu.concatenate %48, %51 in 0 : vector<1x256xf32>, vector<1x256xf32> -> vector<2x256xf32>
    %c0_31 = arith.constant 0 : index
    %c0_32 = arith.constant 0 : index
    %c0_33 = arith.constant 0 : index
    %53 = vector.load %arg7[%c0_31, %c0_32, %c0_33] : memref<1x2x256xf32, #tpu.memory_space<vmem>>, vector<1x2x256xf32>
    %54 = vector.shape_cast %53 : vector<1x2x256xf32> to vector<2x256xf32>
    %55 = vector.shape_cast %52 : vector<2x256xf32> to vector<1x2x256xf32>
    tpu.vector_store %arg7[%c0_31, %c0_32, %c0_33], %55 {strides = array<i32>} : memref<1x2x256xf32, #tpu.memory_space<vmem>>, vector<1x2x256xf32>,
    return
  }
  func.func @transform_0(%arg0: i32) -> (i32, i32, i32) {
    %c0_i32 = arith.constant 0 : i32
    %c0_i32_0 = arith.constant 0 : i32
    %c0_i32_1 = arith.constant 0 : i32
    return %arg0, %c0_i32, %c0_i32_0 : i32, i32, i32
  }
  func.func @transform_1(%arg0: i32) -> (i32, i32) {
    %c0_i32 = arith.constant 0 : i32
    %c0_i32_0 = arith.constant 0 : i32
    %c0_i32_1 = arith.constant 0 : i32
    return %c0_i32, %c0_i32_0 : i32, i32
  }
  func.func @transform_2(%arg0: i32) -> (i32, i32) {
    %c0_i32 = arith.constant 0 : i32
    %c0_i32_0 = arith.constant 0 : i32
    %c0_i32_1 = arith.constant 0 : i32
    return %c0_i32, %c0_i32_0 : i32, i32
  }
  func.func @transform_3(%arg0: i32) -> (i32, i32, i32) {
    %c0_i32 = arith.constant 0 : i32
    %c0_i32_0 = arith.constant 0 : i32
    %c0_i32_1 = arith.constant 0 : i32
    %c0_i32_2 = arith.constant 0 : i32
    return %c0_i32, %c0_i32_0, %c0_i32_1 : i32, i32, i32
  }
  func.func @transform_4(%arg0: i32) -> (i32, i32) {
    %c0_i32 = arith.constant 0 : i32
    %c0_i32_0 = arith.constant 0 : i32
    %c0_i32_1 = arith.constant 0 : i32
    return %c0_i32, %c0_i32_0 : i32, i32
  }
  func.func @transform_5(%arg0: i32) -> (i32, i32, i32) {
    %c0_i32 = arith.constant 0 : i32
    %c0_i32_0 = arith.constant 0 : i32
    %c0_i32_1 = arith.constant 0 : i32
    return %arg0, %c0_i32, %c0_i32_0 : i32, i32, i32
  }
  func.func @transform_6(%arg0: i32) -> (i32, i32, i32) {
    %c0_i32 = arith.constant 0 : i32
    %c0_i32_0 = arith.constant 0 : i32
    %c0_i32_1 = arith.constant 0 : i32
    return %arg0, %c0_i32, %c0_i32_0 : i32, i32, i32
  }
}

module attributes {stable_mosaic.version = 11 : i64} {
  func.func @_k3_kernel(%arg0: i32, %arg1: memref<1x32x256xbf16, #tpu.memory_space<vmem>>, %arg2: memref<1x256xf32, #tpu.memory_space<vmem>>, %arg3: memref<1x256xf32, #tpu.memory_space<vmem>>, %arg4: memref<1x8x32x32xf32, #tpu.memory_space<vmem>>) attributes {dimension_semantics = [#tpu.dimension_semantics<parallel>], iteration_bounds = array<i64: 2>, scalar_prefetch = 0 : i64, scratch_operands = 0 : i64, tpu.core_type = #tpu.core_type<tc>, window_params = [{transform_indices = @transform_0, window_bounds = array<i64: 1, 32, 256>}, {pipeline_mode = #tpu.pipeline_mode<synchronous>, transform_indices = @transform_1, window_bounds = array<i64: 1, 256>}, {pipeline_mode = #tpu.pipeline_mode<synchronous>, transform_indices = @transform_2, window_bounds = array<i64: 1, 256>}, {transform_indices = @transform_3, window_bounds = array<i64: 1, 8, 32, 32>}]} {
    %c0 = arith.constant 0 : index
    %c0_0 = arith.constant 0 : index
    %c0_1 = arith.constant 0 : index
    %0 = vector.load %arg1[%c0, %c0_0, %c0_1] : memref<1x32x256xbf16, #tpu.memory_space<vmem>>, vector<1x32x256xbf16>
    %1 = vector.shape_cast %0 : vector<1x32x256xbf16> to vector<32x256xbf16>
    %2 = arith.extf %1 : vector<32x256xbf16> to vector<32x256xf32>
    %c0_2 = arith.constant 0 : index
    %c0_3 = arith.constant 0 : index
    %3 = vector.load %arg2[%c0_2, %c0_3] : memref<1x256xf32, #tpu.memory_space<vmem>>, vector<1x256xf32>
    %4 = vector.broadcast %3 : vector<1x256xf32> to vector<32x256xf32>
    %5 = arith.mulf %2, %4 : vector<32x256xf32>
    %c0_4 = arith.constant 0 : index
    %c0_5 = arith.constant 0 : index
    %6 = vector.load %arg3[%c0_4, %c0_5] : memref<1x256xf32, #tpu.memory_space<vmem>>, vector<1x256xf32>
    %7 = vector.broadcast %6 : vector<1x256xf32> to vector<32x256xf32>
    %8 = arith.addf %5, %7 : vector<32x256xf32>
    %cst = arith.constant 0.000000e+00 : f32
    %9 = vector.broadcast %cst : f32 to vector<32x256xf32>
    %10 = arith.maximumf %8, %9 : vector<32x256xf32>
    %11 = vector.extract_strided_slice %10 {offsets = [0, 0], sizes = [32, 32], strides = [1, 1]} : vector<32x256xf32> to vector<32x32xf32>
    %c0_6 = arith.constant 0 : index
    %c0_7 = arith.constant 0 : index
    %c0_8 = arith.constant 0 : index
    %c0_9 = arith.constant 0 : index
    %12 = vector.load %arg4[%c0_6, %c0_7, %c0_8, %c0_9] : memref<1x8x32x32xf32, #tpu.memory_space<vmem>>, vector<1x1x32x32xf32>
    %13 = vector.shape_cast %12 : vector<1x1x32x32xf32> to vector<32x32xf32>
    %14 = vector.shape_cast %11 : vector<32x32xf32> to vector<1x1x32x32xf32>
    tpu.vector_store %arg4[%c0_6, %c0_7, %c0_8, %c0_9], %14 {strides = array<i32>} : memref<1x8x32x32xf32, #tpu.memory_space<vmem>>, vector<1x1x32x32xf32>,
    %15 = vector.extract_strided_slice %10 {offsets = [0, 32], sizes = [32, 32], strides = [1, 1]} : vector<32x256xf32> to vector<32x32xf32>
    %c0_10 = arith.constant 0 : index
    %c1 = arith.constant 1 : index
    %c0_11 = arith.constant 0 : index
    %c0_12 = arith.constant 0 : index
    %16 = vector.load %arg4[%c0_10, %c1, %c0_11, %c0_12] : memref<1x8x32x32xf32, #tpu.memory_space<vmem>>, vector<1x1x32x32xf32>
    %17 = vector.shape_cast %16 : vector<1x1x32x32xf32> to vector<32x32xf32>
    %18 = vector.shape_cast %15 : vector<32x32xf32> to vector<1x1x32x32xf32>
    tpu.vector_store %arg4[%c0_10, %c1, %c0_11, %c0_12], %18 {strides = array<i32>} : memref<1x8x32x32xf32, #tpu.memory_space<vmem>>, vector<1x1x32x32xf32>,
    %19 = vector.extract_strided_slice %10 {offsets = [0, 64], sizes = [32, 32], strides = [1, 1]} : vector<32x256xf32> to vector<32x32xf32>
    %c0_13 = arith.constant 0 : index
    %c2 = arith.constant 2 : index
    %c0_14 = arith.constant 0 : index
    %c0_15 = arith.constant 0 : index
    %20 = vector.load %arg4[%c0_13, %c2, %c0_14, %c0_15] : memref<1x8x32x32xf32, #tpu.memory_space<vmem>>, vector<1x1x32x32xf32>
    %21 = vector.shape_cast %20 : vector<1x1x32x32xf32> to vector<32x32xf32>
    %22 = vector.shape_cast %19 : vector<32x32xf32> to vector<1x1x32x32xf32>
    tpu.vector_store %arg4[%c0_13, %c2, %c0_14, %c0_15], %22 {strides = array<i32>} : memref<1x8x32x32xf32, #tpu.memory_space<vmem>>, vector<1x1x32x32xf32>,
    %23 = vector.extract_strided_slice %10 {offsets = [0, 96], sizes = [32, 32], strides = [1, 1]} : vector<32x256xf32> to vector<32x32xf32>
    %c0_16 = arith.constant 0 : index
    %c3 = arith.constant 3 : index
    %c0_17 = arith.constant 0 : index
    %c0_18 = arith.constant 0 : index
    %24 = vector.load %arg4[%c0_16, %c3, %c0_17, %c0_18] : memref<1x8x32x32xf32, #tpu.memory_space<vmem>>, vector<1x1x32x32xf32>
    %25 = vector.shape_cast %24 : vector<1x1x32x32xf32> to vector<32x32xf32>
    %26 = vector.shape_cast %23 : vector<32x32xf32> to vector<1x1x32x32xf32>
    tpu.vector_store %arg4[%c0_16, %c3, %c0_17, %c0_18], %26 {strides = array<i32>} : memref<1x8x32x32xf32, #tpu.memory_space<vmem>>, vector<1x1x32x32xf32>,
    %27 = vector.extract_strided_slice %10 {offsets = [0, 128], sizes = [32, 32], strides = [1, 1]} : vector<32x256xf32> to vector<32x32xf32>
    %c0_19 = arith.constant 0 : index
    %c4 = arith.constant 4 : index
    %c0_20 = arith.constant 0 : index
    %c0_21 = arith.constant 0 : index
    %28 = vector.load %arg4[%c0_19, %c4, %c0_20, %c0_21] : memref<1x8x32x32xf32, #tpu.memory_space<vmem>>, vector<1x1x32x32xf32>
    %29 = vector.shape_cast %28 : vector<1x1x32x32xf32> to vector<32x32xf32>
    %30 = vector.shape_cast %27 : vector<32x32xf32> to vector<1x1x32x32xf32>
    tpu.vector_store %arg4[%c0_19, %c4, %c0_20, %c0_21], %30 {strides = array<i32>} : memref<1x8x32x32xf32, #tpu.memory_space<vmem>>, vector<1x1x32x32xf32>,
    %31 = vector.extract_strided_slice %10 {offsets = [0, 160], sizes = [32, 32], strides = [1, 1]} : vector<32x256xf32> to vector<32x32xf32>
    %c0_22 = arith.constant 0 : index
    %c5 = arith.constant 5 : index
    %c0_23 = arith.constant 0 : index
    %c0_24 = arith.constant 0 : index
    %32 = vector.load %arg4[%c0_22, %c5, %c0_23, %c0_24] : memref<1x8x32x32xf32, #tpu.memory_space<vmem>>, vector<1x1x32x32xf32>
    %33 = vector.shape_cast %32 : vector<1x1x32x32xf32> to vector<32x32xf32>
    %34 = vector.shape_cast %31 : vector<32x32xf32> to vector<1x1x32x32xf32>
    tpu.vector_store %arg4[%c0_22, %c5, %c0_23, %c0_24], %34 {strides = array<i32>} : memref<1x8x32x32xf32, #tpu.memory_space<vmem>>, vector<1x1x32x32xf32>,
    %35 = vector.extract_strided_slice %10 {offsets = [0, 192], sizes = [32, 32], strides = [1, 1]} : vector<32x256xf32> to vector<32x32xf32>
    %c0_25 = arith.constant 0 : index
    %c6 = arith.constant 6 : index
    %c0_26 = arith.constant 0 : index
    %c0_27 = arith.constant 0 : index
    %36 = vector.load %arg4[%c0_25, %c6, %c0_26, %c0_27] : memref<1x8x32x32xf32, #tpu.memory_space<vmem>>, vector<1x1x32x32xf32>
    %37 = vector.shape_cast %36 : vector<1x1x32x32xf32> to vector<32x32xf32>
    %38 = vector.shape_cast %35 : vector<32x32xf32> to vector<1x1x32x32xf32>
    tpu.vector_store %arg4[%c0_25, %c6, %c0_26, %c0_27], %38 {strides = array<i32>} : memref<1x8x32x32xf32, #tpu.memory_space<vmem>>, vector<1x1x32x32xf32>,
    %39 = vector.extract_strided_slice %10 {offsets = [0, 224], sizes = [32, 32], strides = [1, 1]} : vector<32x256xf32> to vector<32x32xf32>
    %c0_28 = arith.constant 0 : index
    %c7 = arith.constant 7 : index
    %c0_29 = arith.constant 0 : index
    %c0_30 = arith.constant 0 : index
    %40 = vector.load %arg4[%c0_28, %c7, %c0_29, %c0_30] : memref<1x8x32x32xf32, #tpu.memory_space<vmem>>, vector<1x1x32x32xf32>
    %41 = vector.shape_cast %40 : vector<1x1x32x32xf32> to vector<32x32xf32>
    %42 = vector.shape_cast %39 : vector<32x32xf32> to vector<1x1x32x32xf32>
    tpu.vector_store %arg4[%c0_28, %c7, %c0_29, %c0_30], %42 {strides = array<i32>} : memref<1x8x32x32xf32, #tpu.memory_space<vmem>>, vector<1x1x32x32xf32>,
    return
  }
  func.func @transform_0(%arg0: i32) -> (i32, i32, i32) {
    %c0_i32 = arith.constant 0 : i32
    %c0_i32_0 = arith.constant 0 : i32
    %c0_i32_1 = arith.constant 0 : i32
    return %arg0, %c0_i32, %c0_i32_0 : i32, i32, i32
  }
  func.func @transform_1(%arg0: i32) -> (i32, i32) {
    %c0_i32 = arith.constant 0 : i32
    %c0_i32_0 = arith.constant 0 : i32
    %c0_i32_1 = arith.constant 0 : i32
    return %c0_i32, %c0_i32_0 : i32, i32
  }
  func.func @transform_2(%arg0: i32) -> (i32, i32) {
    %c0_i32 = arith.constant 0 : i32
    %c0_i32_0 = arith.constant 0 : i32
    %c0_i32_1 = arith.constant 0 : i32
    return %c0_i32, %c0_i32_0 : i32, i32
  }
  func.func @transform_3(%arg0: i32) -> (i32, i32, i32, i32) {
    %c0_i32 = arith.constant 0 : i32
    %c0_i32_0 = arith.constant 0 : i32
    %c0_i32_1 = arith.constant 0 : i32
    %c0_i32_2 = arith.constant 0 : i32
    return %arg0, %c0_i32, %c0_i32_0, %c0_i32_1 : i32, i32, i32, i32
  }
}

</mosaic_0001>

<llo_original>
// kernel: tile.23
$region0: #{tile.23}
  #allocation0 [shape = 's32[1]{0}', space=sflag, size = 0x4, scoped, tag = 'scoped memory for tile.23']
  %s0 = inlined_call_operand.vmem [shape: f32[8], index: 0, kind: input, shape index: {}]
  %s1 = inlined_call_operand.vmem [shape: f32[32,8], index: 1, kind: output, shape index: {}]
  // Predicated region
  $region2: #{tile.23} parent=0 // pred_check
    _
  $region3: #{tile.23} parent=0 // pred_check_branch
    %3 = sbr.rel (0) target = $region5
  $region4: #{tile.23} parent=0 // pred_region
    _
  $region5: #{tile.23} parent=0 // pred_fallthru
    _
  %v4 = vld [vmem:[%s0] ss:$0 sm:$0xff]
  %5 = vst [vmem:[%s1] sm:$0xff] %v4
  %s6 = scalar_lea.vmem %s1, 8
  %7 = vst [vmem:[%s6] sm:$0xff] %v4
  %s8 = scalar_lea.vmem %s1, 16
  %9 = vst [vmem:[%s8] sm:$0xff] %v4
  %s10 = scalar_lea.vmem %s1, 24
  %11 = vst [vmem:[%s10] sm:$0xff] %v4

// kernel: tile.24
$region0: #{tile.24}
  %s0 = inlined_call_operand.vmem [shape: f32[32,8], index: 0, kind: input, shape index: {}]
  %s1 = inlined_call_operand.vmem [shape: f32[1,256], index: 1, kind: output, shape index: {}]
  $region1: #{tile.24} parent=0
    #allocation0 [shape = 'u8[8192]{0}', space=vmem, size = 0x2000, scoped, tag = 'scoped mem for output reshape']
    %s2 = smov 3
    %v3 = vld [vmem:[%s0] ss:$16 sm:%s2]
    %vm4 = vcmask 64512
    %5 = vst.msk [vmem:[#allocation0] ss:$8 sm:$0x3] %vm4, %v3
    %s6 = scalar_lea.vmem %s0, 15
    %s7 = smov 3
    %v8 = vld [vmem:[%s6] ss:$16 sm:%s7]
    %9 = vrot.lane.b32.xlu0 %v8, 120
    %v10 = vpop.permute.xlu0 %9
    %vm11 = vcmask 1048512
    %12 = vst.msk [vmem:[#allocation0] ss:$8 sm:$0x3] %vm11, %v10
    %s13 = scalar_lea.vmem %s0, 14
    %s14 = smov 3
    %v15 = vld [vmem:[%s13] ss:$16 sm:%s14]
    %16 = vrot.lane.b32.xlu0 %v15, 112
    %v17 = vpop.permute.xlu0 %16
    %vm18 = vcmask 982912
    %19 = vst.msk [vmem:[#allocation0] ss:$8 sm:$0x3] %vm18, %v17
    %s20 = scalar_lea.vmem %s0, 13
    %s21 = smov 3
    %v22 = vld [vmem:[%s20] ss:$16 sm:%s21]
    %23 = vrot.lane.b32.xlu0 %v22, 104
    %v24 = vpop.permute.xlu0 %23
    %vm25 = vcmask 917312
    %26 = vst.msk [vmem:[#allocation0] ss:$8 sm:$0x3] %vm25, %v24
    %s27 = scalar_lea.vmem %s0, 12
    %s28 = smov 3
    %v29 = vld [vmem:[%s27] ss:$16 sm:%s28]
    %30 = vrot.lane.b32.xlu0 %v29, 96
    %v31 = vpop.permute.xlu0 %30
    %vm32 = vcmask 851712
    %33 = vst.msk [vmem:[#allocation0] ss:$8 sm:$0x3] %vm32, %v31
    %s34 = scalar_lea.vmem %s0, 11
    %s35 = smov 3
    %v36 = vld [vmem:[%s34] ss:$16 sm:%s35]
    %37 = vrot.lane.b32.xlu0 %v36, 88
    %v38 = vpop.permute.xlu0 %37
    %vm39 = vcmask 786112
    %40 = vst.msk [vmem:[#allocation0] ss:$8 sm:$0x3] %vm39, %v38
    %s41 = scalar_lea.vmem %s0, 10
    %s42 = smov 3
    %v43 = vld [vmem:[%s41] ss:$16 sm:%s42]
    %44 = vrot.lane.b32.xlu0 %v43, 80
    %v45 = vpop.permute.xlu0 %44
    %vm46 = vcmask 720512
    %47 = vst.msk [vmem:[#allocation0] ss:$8 sm:$0x3] %vm46, %v45
    %s48 = scalar_lea.vmem %s0, 9
    %s49 = smov 3
    %v50 = vld [vmem:[%s48] ss:$16 sm:%s49]
    %51 = vrot.lane.b32.xlu0 %v50, 72
    %v52 = vpop.permute.xlu0 %51
    %vm53 = vcmask 654912
    %54 = vst.msk [vmem:[#allocation0] ss:$8 sm:$0x3] %vm53, %v52
    %s55 = scalar_lea.vmem %s0, 8
    %s56 = smov 3
    %v57 = vld [vmem:[%s55] ss:$16 sm:%s56]
    %58 = vrot.lane.b32.xlu0 %v57, 64
    %v59 = vpop.permute.xlu0 %58
    %vm60 = vcmask 589312
    %61 = vst.msk [vmem:[#allocation0] ss:$8 sm:$0x3] %vm60, %v59
    %s62 = scalar_lea.vmem %s0, 7
    %s63 = smov 3
    %v64 = vld [vmem:[%s62] ss:$16 sm:%s63]
    %65 = vrot.lane.b32.xlu0 %v64, 56
    %v66 = vpop.permute.xlu0 %65
    %vm67 = vcmask 523712
    %68 = vst.msk [vmem:[#allocation0] ss:$8 sm:$0x3] %vm67, %v66
    %s69 = scalar_lea.vmem %s0, 6
    %s70 = smov 3
    %v71 = vld [vmem:[%s69] ss:$16 sm:%s70]
    %72 = vrot.lane.b32.xlu0 %v71, 48
    %v73 = vpop.permute.xlu0 %72
    %vm74 = vcmask 458112
    %75 = vst.msk [vmem:[#allocation0] ss:$8 sm:$0x3] %vm74, %v73
    %s76 = scalar_lea.vmem %s0, 5
    %s77 = smov 3
    %v78 = vld [vmem:[%s76] ss:$16 sm:%s77]
    %79 = vrot.lane.b32.xlu0 %v78, 40
    %v80 = vpop.permute.xlu0 %79
    %vm81 = vcmask 392512
    %82 = vst.msk [vmem:[#allocation0] ss:$8 sm:$0x3] %vm81, %v80
    %s83 = scalar_lea.vmem %s0, 4
    %s84 = smov 3
    %v85 = vld [vmem:[%s83] ss:$16 sm:%s84]
    %86 = vrot.lane.b32.xlu0 %v85, 32
    %v87 = vpop.permute.xlu0 %86
    %vm88 = vcmask 326912
    %89 = vst.msk [vmem:[#allocation0] ss:$8 sm:$0x3] %vm88, %v87
    %s90 = scalar_lea.vmem %s0, 3
    %s91 = smov 3
    %v92 = vld [vmem:[%s90] ss:$16 sm:%s91]
    %93 = vrot.lane.b32.xlu0 %v92, 24
    %v94 = vpop.permute.xlu0 %93
    %vm95 = vcmask 261312
    %96 = vst.msk [vmem:[#allocation0] ss:$8 sm:$0x3] %vm95, %v94
    %s97 = scalar_lea.vmem %s0, 2
    %s98 = smov 3
    %v99 = vld [vmem:[%s97] ss:$16 sm:%s98]
    %100 = vrot.lane.b32.xlu0 %v99, 16
    %v101 = vpop.permute.xlu0 %100
    %vm102 = vcmask 195712
    %103 = vst.msk [vmem:[#allocation0] ss:$8 sm:$0x3] %vm102, %v101
    %s104 = scalar_lea.vmem %s0, 1
    %s105 = smov 3
    %v106 = vld [vmem:[%s104] ss:$16 sm:%s105]
    %107 = vrot.lane.b32.xlu0 %v106, 8
    %v108 = vpop.permute.xlu0 %107
    %vm109 = vcmask 130112
    %110 = vst.msk [vmem:[#allocation0] ss:$8 sm:$0x3] %vm109, %v108
    %s112 = ssub.s32 2, 1
    %v113 = vld [vmem:[#allocation0] sm:%s112]
    %s115 = ssub.s32 2, 1
    %116 = vst [vmem:[%s1] sm:%s115] %v113
    %s117 = scalar_lea.vmem [#allocation0], 8
    %v118 = vld [vmem:[%s117] sm:%s112]
    %s120 = ssub.s32 2, 1
    %s121 = scalar_lea.vmem %s1, 1
    %122 = vst [vmem:[%s121] sm:%s120] %v118

// kernel: decoder_forward.3
$region0: #{decoder_forward.3}
  #allocation0 [shape = 'u32[]', space=smem, size = 0x4, offset = 0x4, fixed_abs, tag = 'smem constant byte address 0x4 - core index']
  #allocation1 [shape = 'u32[72,128]{1,0:T(1,128)}', space=vmem, size = 0x9000, scoped, tag = 'internal scratch']
  %s0 = inlined_call_operand.vmem [shape: f32[2,8,16,16], index: 0, kind: input, shape index: {}]
  %s1 = inlined_call_operand.vmem [shape: f32[2,4,32,32], index: 1, kind: input, shape index: {}]
  %s2 = inlined_call_operand.vmem [shape: bf16[8,2,16,256], index: 2, kind: input, shape index: {}]
  %s3 = inlined_call_operand.vmem [shape: bf16[32,32], index: 3, kind: input, shape index: {}]
  %s4 = inlined_call_operand.vmem [shape: bf16[5,256,256], index: 4, kind: input, shape index: {}]
  %s5 = inlined_call_operand.vmem [shape: bf16[5,4,32,256], index: 5, kind: input, shape index: {}]
  %s6 = inlined_call_operand.vmem [shape: f32[1,256], index: 6, kind: input, shape index: {}]
  %s7 = inlined_call_operand.vmem [shape: f32[1,256], index: 7, kind: input, shape index: {}]
  %s8 = inlined_call_operand.vmem [shape: bf16[2,32,256], index: 8, kind: output, shape index: {0}]
  %s9 = inlined_call_operand.vmem [shape: f32[2,2,256], index: 9, kind: output, shape index: {1}]
  %10 = xla_tuple %s8, %s9
  %s11 = sld [smem:[#allocation0]]
  $region73: #{decoder_forward.3} parent=0
    _
  %s13 = ssub.s32 1, %s11
  %s14 = scalar_select 0, %s13, %s11
  loop: start=0, step=1, limit=4
  $region2: #{decoder_forward.3} parent=0 // loop_pre_header
    _
  $region3: #{decoder_forward.3} parent=0 // loop_header
    %s16 = sphi 0, %s20
    %p17 = scmp.ge.s32.totalorder %s16, 4
    %s26 = sphi 0, %s28
    %s29 = sphi 0, %s26
    %s30 = sphi 0, %s29
    %s46 = sphi 0, %s30
    %s52 = sphi 0, %s54
    %s55 = sphi 0, %s52
    %s56 = sphi 0, %s55
    %s72 = sphi 0, %s56
    %s76 = sphi 0, %s76
    %s78 = sphi 0, %s76
    %s79 = sphi 0, %s78
    %s93 = sphi 0, %s79
    %s97 = sphi 0, %s97
    %s99 = sphi 0, %s97
    %s100 = sphi 0, %s99
    %s114 = sphi 0, %s100
    %s118 = sphi 0, %s118
    %s120 = sphi 0, %s118
    %s121 = sphi 0, %s120
    %s135 = sphi 0, %s121
    %s139 = sphi 0, %s139
    %s141 = sphi 0, %s139
    %s142 = sphi 0, %s141
    %s156 = sphi 0, %s142
    %s160 = sphi 0, %s160
    %s162 = sphi 0, %s160
    %s163 = sphi 0, %s162
    %s177 = sphi 0, %s163
    %s181 = sphi 0, %s181
    %s183 = sphi 0, %s181
    %s184 = sphi 0, %s183
    %s198 = sphi 0, %s184
    %s204 = sphi 0, %s206
    %s207 = sphi 0, %s204
    %s208 = sphi 0, %s207
    %s224 = sphi 0, %s208
    %s230 = sphi 0, %s232
    %s233 = sphi 0, %s230
    %s234 = sphi 0, %s233
    %s250 = sphi 0, %s234
  $region4: #{decoder_forward.3} parent=0 // loop_header_branch
    %19 = sbr.rel (%p17) target = $region8
  $region5: #{decoder_forward.3} parent=0 // loop_body
    %s21 = ssub.s32 %s16, 1
    %s22 = ssub.s32 %s16, 2
    %s23 = sadd.s32 %s16, 1
    %s24 = ssub.s32 %s16, %s23
    %p25 = scmp.eq.s32.totalorder %s24, 0
    %s27 = sadd.s32 %s26, 1
    %s28 = scalar_select %p25, %s26, %s27
    %p31 = pneg %p25
    %p32 = scmp.eq.s32.totalorder %s16, 1
    %p33 = por %p31, %p32
    %p34 = scmp.ne.s32.totalorder %s26, %s29
    %p35 = scmp.eq.s32.totalorder %s16, 0
    %p36 = por %p34, %p35
    %p37 = scmp.ne.s32.totalorder %s26, %s29
    %p38 = scmp.eq.s32.totalorder %s21, 1
    %p39 = por %p37, %p38
    %p40 = scmp.ne.s32.totalorder %s29, %s30
    %p41 = scmp.eq.s32.totalorder %s21, 0
    %p42 = por %p40, %p41
    %p43 = scmp.ne.s32.totalorder %s29, %s30
    %p44 = scmp.eq.s32.totalorder %s22, 1
    %p45 = por %p43, %p44
    %p47 = scmp.ne.s32.totalorder %s30, %s46
    %p48 = scmp.eq.s32.totalorder %s22, 0
    %p49 = por %p47, %p48
    %s50 = ssub.s32 %s16, %s23
    %p51 = scmp.eq.s32.totalorder %s50, 0
    %s53 = sadd.s32 %s52, 1
    %s54 = scalar_select %p51, %s52, %s53
    %p57 = pneg %p51
    %p58 = scmp.eq.s32.totalorder %s16, 1
    %p59 = por %p57, %p58
    %p60 = scmp.ne.s32.totalorder %s52, %s55
    %p61 = scmp.eq.s32.totalorder %s16, 0
    %p62 = por %p60, %p61
    %p63 = scmp.ne.s32.totalorder %s52, %s55
    %p64 = scmp.eq.s32.totalorder %s21, 1
    %p65 = por %p63, %p64
    %p66 = scmp.ne.s32.totalorder %s55, %s56
    %p67 = scmp.eq.s32.totalorder %s21, 0
    %p68 = por %p66, %p67
    %p69 = scmp.ne.s32.totalorder %s55, %s56
    %p70 = scmp.eq.s32.totalorder %s22, 1
    %p71 = por %p69, %p70
    %p73 = scmp.ne.s32.totalorder %s56, %s72
    %p74 = scmp.eq.s32.totalorder %s22, 0
    %p75 = por %p73, %p74
    %s77 = sadd.s32 %s76, 1
    %p80 = scmp.eq.s32.totalorder %s16, 1
    %p81 = scmp.ne.s32.totalorder %s76, %s78
    %p82 = scmp.eq.s32.totalorder %s16, 0
    %p83 = por %p81, %p82
    %p84 = scmp.ne.s32.totalorder %s76, %s78
    %p85 = scmp.eq.s32.totalorder %s21, 1
    %p86 = por %p84, %p85
    %p87 = scmp.ne.s32.totalorder %s78, %s79
    %p88 = scmp.eq.s32.totalorder %s21, 0
    %p89 = por %p87, %p88
    %p90 = scmp.ne.s32.totalorder %s78, %s79
    %p91 = scmp.eq.s32.totalorder %s22, 1
    %p92 = por %p90, %p91
    %p94 = scmp.ne.s32.totalorder %s79, %s93
    %p95 = scmp.eq.s32.totalorder %s22, 0
    %p96 = por %p94, %p95
    %s98 = sadd.s32 %s97, 1
    %p101 = scmp.eq.s32.totalorder %s16, 1
    %p102 = scmp.ne.s32.totalorder %s97, %s99
    %p103 = scmp.eq.s32.totalorder %s16, 0
    %p104 = por %p102, %p103
    %p105 = scmp.ne.s32.totalorder %s97, %s99
    %p106 = scmp.eq.s32.totalorder %s21, 1
    %p107 = por %p105, %p106
    %p108 = scmp.ne.s32.totalorder %s99, %s100
    %p109 = scmp.eq.s32.totalorder %s21, 0
    %p110 = por %p108, %p109
    %p111 = scmp.ne.s32.totalorder %s99, %s100
    %p112 = scmp.eq.s32.totalorder %s22, 1
    %p113 = por %p111, %p112
    %p115 = scmp.ne.s32.totalorder %s100, %s114
    %p116 = scmp.eq.s32.totalorder %s22, 0
    %p117 = por %p115, %p116
    %s119 = sadd.s32 %s118, 1
    %p122 = scmp.eq.s32.totalorder %s16, 1
    %p123 = scmp.ne.s32.totalorder %s118, %s120
    %p124 = scmp.eq.s32.totalorder %s16, 0
    %p125 = por %p123, %p124
    %p126 = scmp.ne.s32.totalorder %s118, %s120
    %p127 = scmp.eq.s32.totalorder %s21, 1
    %p128 = por %p126, %p127
    %p129 = scmp.ne.s32.totalorder %s120, %s121
    %p130 = scmp.eq.s32.totalorder %s21, 0
    %p131 = por %p129, %p130
    %p132 = scmp.ne.s32.totalorder %s120, %s121
    %p133 = scmp.eq.s32.totalorder %s22, 1
    %p134 = por %p132, %p133
    %p136 = scmp.ne.s32.totalorder %s121, %s135
    %p137 = scmp.eq.s32.totalorder %s22, 0
    %p138 = por %p136, %p137
    %s140 = sadd.s32 %s139, 1
    %p143 = scmp.eq.s32.totalorder %s16, 1
    %p144 = scmp.ne.s32.totalorder %s139, %s141
    %p145 = scmp.eq.s32.totalorder %s16, 0
    %p146 = por %p144, %p145
    %p147 = scmp.ne.s32.totalorder %s139, %s141
    %p148 = scmp.eq.s32.totalorder %s21, 1
    %p149 = por %p147, %p148
    %p150 = scmp.ne.s32.totalorder %s141, %s142
    %p151 = scmp.eq.s32.totalorder %s21, 0
    %p152 = por %p150, %p151
    %p153 = scmp.ne.s32.totalorder %s141, %s142
    %p154 = scmp.eq.s32.totalorder %s22, 1
    %p155 = por %p153, %p154
    %p157 = scmp.ne.s32.totalorder %s142, %s156
    %p158 = scmp.eq.s32.totalorder %s22, 0
    %p159 = por %p157, %p158
    %s161 = sadd.s32 %s160, 1
    %p164 = scmp.eq.s32.totalorder %s16, 1
    %p165 = scmp.ne.s32.totalorder %s160, %s162
    %p166 = scmp.eq.s32.totalorder %s16, 0
    %p167 = por %p165, %p166
    %p168 = scmp.ne.s32.totalorder %s160, %s162
    %p169 = scmp.eq.s32.totalorder %s21, 1
    %p170 = por %p168, %p169
    %p171 = scmp.ne.s32.totalorder %s162, %s163
    %p172 = scmp.eq.s32.totalorder %s21, 0
    %p173 = por %p171, %p172
    %p174 = scmp.ne.s32.totalorder %s162, %s163
    %p175 = scmp.eq.s32.totalorder %s22, 1
    %p176 = por %p174, %p175
    %p178 = scmp.ne.s32.totalorder %s163, %s177
    %p179 = scmp.eq.s32.totalorder %s22, 0
    %p180 = por %p178, %p179
    %s182 = sadd.s32 %s181, 1
    %p185 = scmp.eq.s32.totalorder %s16, 1
    %p186 = scmp.ne.s32.totalorder %s181, %s183
    %p187 = scmp.eq.s32.totalorder %s16, 0
    %p188 = por %p186, %p187
    %p189 = scmp.ne.s32.totalorder %s181, %s183
    %p190 = scmp.eq.s32.totalorder %s21, 1
    %p191 = por %p189, %p190
    %p192 = scmp.ne.s32.totalorder %s183, %s184
    %p193 = scmp.eq.s32.totalorder %s21, 0
    %p194 = por %p192, %p193
    %p195 = scmp.ne.s32.totalorder %s183, %s184
    %p196 = scmp.eq.s32.totalorder %s22, 1
    %p197 = por %p195, %p196
    %p199 = scmp.ne.s32.totalorder %s184, %s198
    %p200 = scmp.eq.s32.totalorder %s22, 0
    %p201 = por %p199, %p200
    %s202 = ssub.s32 %s16, %s23
    %p203 = scmp.eq.s32.totalorder %s202, 0
    %s205 = sadd.s32 %s204, 1
    %s206 = scalar_select %p203, %s204, %s205
    %p209 = pneg %p203
    %p210 = scmp.eq.s32.totalorder %s16, 1
    %p211 = por %p209, %p210
    %p212 = scmp.ne.s32.totalorder %s204, %s207
    %p213 = scmp.eq.s32.totalorder %s16, 0
    %p214 = por %p212, %p213
    %p215 = scmp.ne.s32.totalorder %s204, %s207
    %p216 = scmp.eq.s32.totalorder %s21, 1
    %p217 = por %p215, %p216
    %p218 = scmp.ne.s32.totalorder %s207, %s208
    %p219 = scmp.eq.s32.totalorder %s21, 0
    %p220 = por %p218, %p219
    %p221 = scmp.ne.s32.totalorder %s207, %s208
    %p222 = scmp.eq.s32.totalorder %s22, 1
    %p223 = por %p221, %p222
    %p225 = scmp.ne.s32.totalorder %s208, %s224
    %p226 = scmp.eq.s32.totalorder %s22, 0
    %p227 = por %p225, %p226
    %s228 = ssub.s32 %s16, %s23
    %p229 = scmp.eq.s32.totalorder %s228, 0
    %s231 = sadd.s32 %s230, 1
    %s232 = scalar_select %p229, %s230, %s231
    %p235 = pneg %p229
    %p236 = scmp.eq.s32.totalorder %s16, 1
    %p237 = por %p235, %p236
    %p238 = scmp.ne.s32.totalorder %s230, %s233
    %p239 = scmp.eq.s32.totalorder %s16, 0
    %p240 = por %p238, %p239
    %p241 = scmp.ne.s32.totalorder %s230, %s233
    %p242 = scmp.eq.s32.totalorder %s21, 1
    %p243 = por %p241, %p242
    %p244 = scmp.ne.s32.totalorder %s233, %s234
    %p245 = scmp.eq.s32.totalorder %s21, 0
    %p246 = por %p244, %p245
    %p247 = scmp.ne.s32.totalorder %s233, %s234
    %p248 = scmp.eq.s32.totalorder %s22, 1
    %p249 = por %p247, %p248
    %p251 = scmp.ne.s32.totalorder %s234, %s250
    %p252 = scmp.eq.s32.totalorder %s22, 0
    %p253 = por %p251, %p252
    %p254 = scmp.le.s32.totalorder 1, %s16
    %p255 = scmp.lt.s32.totalorder %s16, 3
    %p256 = pnand %p254, %p255
    %p257 = pneg %p256
    // Predicated region
    $region9: #{decoder_forward.3} parent=5 // pred_check
      _
    $region10: #{decoder_forward.3} parent=5 // pred_check_branch
      %259 = sbr.rel (%p256) target = $region12
    $region11: #{decoder_forward.3} parent=5 // pred_region
      %s260 = ssub.s32 %s16, 1
      // Predicated region
      $region13: #{decoder_forward.3} parent=11 // pred_check
        %p261 = pneg %p89
      $region14: #{decoder_forward.3} parent=11 // pred_check_branch
        %263 = sbr.rel (%p261) target = $region16
      $region15: #{decoder_forward.3} parent=11 // pred_region
        _
      $region16: #{decoder_forward.3} parent=11 // pred_fallthru
        _
      // Predicated region
      $region17: #{decoder_forward.3} parent=11 // pred_check
        %p264 = pneg %p110
      $region18: #{decoder_forward.3} parent=11 // pred_check_branch
        %266 = sbr.rel (%p264) target = $region20
      $region19: #{decoder_forward.3} parent=11 // pred_region
        _
      $region20: #{decoder_forward.3} parent=11 // pred_fallthru
        _
      // Predicated region
      $region21: #{decoder_forward.3} parent=11 // pred_check
        %p267 = pneg %p131
      $region22: #{decoder_forward.3} parent=11 // pred_check_branch
        %269 = sbr.rel (%p267) target = $region24
      $region23: #{decoder_forward.3} parent=11 // pred_region
        _
      $region24: #{decoder_forward.3} parent=11 // pred_fallthru
        _
      // Predicated region
      $region25: #{decoder_forward.3} parent=11 // pred_check
        %p270 = pneg %p152
      $region26: #{decoder_forward.3} parent=11 // pred_check_branch
        %272 = sbr.rel (%p270) target = $region28
      $region27: #{decoder_forward.3} parent=11 // pred_region
        _
      $region28: #{decoder_forward.3} parent=11 // pred_fallthru
        _
      // Predicated region
      $region29: #{decoder_forward.3} parent=11 // pred_check
        %p273 = pneg %p173
      $region30: #{decoder_forward.3} parent=11 // pred_check_branch
        %275 = sbr.rel (%p273) target = $region32
      $region31: #{decoder_forward.3} parent=11 // pred_region
        _
      $region32: #{decoder_forward.3} parent=11 // pred_fallthru
        _
      // Predicated region
      $region33: #{decoder_forward.3} parent=11 // pred_check
        %p276 = pneg %p194
      $region34: #{decoder_forward.3} parent=11 // pred_check_branch
        %278 = sbr.rel (%p276) target = $region36
      $region35: #{decoder_forward.3} parent=11 // pred_region
        _
      $region36: #{decoder_forward.3} parent=11 // pred_fallthru
        _
    $region12: #{decoder_forward.3} parent=5 // pred_fallthru
      _
    %p279 = scmp.lt.s32.totalorder %s16, 2
    // Predicated region
    $region37: #{decoder_forward.3} parent=5 // pred_check
      %p280 = pneg %p279
    $region38: #{decoder_forward.3} parent=5 // pred_check_branch
      %282 = sbr.rel (%p280) target = $region40
    $region39: #{decoder_forward.3} parent=5 // pred_region
      // Predicated region
      $region41: #{decoder_forward.3} parent=39 // pred_check
        %p283 = pneg %p36
      $region42: #{decoder_forward.3} parent=39 // pred_check_branch
        %285 = sbr.rel (%p283) target = $region44
      $region43: #{decoder_forward.3} parent=39 // pred_region
        %p286 = scmp.lt.s32.totalorder %s16, 1
        %s287 = scalar_select %p286, %s16, 1
        %s288 = smul.addr %s287, 16
        %s289 = smul.addr %s288, 8
        %s290 = scalar_lea.vmem %s0, %s289
      $region44: #{decoder_forward.3} parent=39 // pred_fallthru
        _
      // Predicated region
      $region45: #{decoder_forward.3} parent=39 // pred_check
        %p291 = pneg %p62
      $region46: #{decoder_forward.3} parent=39 // pred_check_branch
        %293 = sbr.rel (%p291) target = $region48
      $region47: #{decoder_forward.3} parent=39 // pred_region
        %p294 = scmp.lt.s32.totalorder %s16, 1
        %s295 = scalar_select %p294, %s16, 1
        %s296 = smul.addr %s295, 16
        %s297 = smul.addr %s296, 8
        %s298 = scalar_lea.vmem %s1, %s297
      $region48: #{decoder_forward.3} parent=39 // pred_fallthru
        _
    $region40: #{decoder_forward.3} parent=5 // pred_fallthru
      _
    %p299 = scmp.le.s32.totalorder 1, %s16
    %p300 = scmp.lt.s32.totalorder %s16, 3
    %p301 = pnand %p299, %p300
    %p302 = pneg %p301
    // Predicated region
    $region49: #{decoder_forward.3} parent=5 // pred_check
      _
    $region50: #{decoder_forward.3} parent=5 // pred_check_branch
      %304 = sbr.rel (%p301) target = $region52
    $region51: #{decoder_forward.3} parent=5 // pred_region
      %s305 = ssub.s32 %s16, 1
      %p306 = scmp.lt.s32.totalorder %s21, 1
      %s307 = scalar_select %p306, %s21, 1
      %s308 = smul.addr %s307, 16
      %s309 = smul.addr %s308, 8
      %s310 = scalar_lea.vmem %s0, %s309
      %p311 = pneg %p42
      %p312 = pneg %p39
      %p313 = scmp.lt.s32.totalorder %s21, 1
      %s314 = scalar_select %p313, %s21, 1
      %s315 = smul.addr %s314, 16
      %s316 = smul.addr %s315, 8
      %s317 = scalar_lea.vmem %s1, %s316
      %p318 = pneg %p68
      %p319 = pneg %p65
      %p320 = pneg %p89
      %p321 = pneg %p86
      %p322 = pneg %p110
      %p323 = pneg %p107
      %p324 = pneg %p131
      %p325 = pneg %p128
      %p326 = pneg %p152
      %p327 = pneg %p149
      %p328 = pneg %p173
      %p329 = pneg %p170
      %p330 = pneg %p194
      %p331 = pneg %p191
      %p332 = pneg %p220
      %p333 = pneg %p217
      %p334 = scmp.lt.s32.totalorder %s21, 1
      %s335 = scalar_select %p334, %s21, 1
      %s336 = smul.addr %s335, 8
      %s337 = smul.addr %s336, 4
      %s338 = scalar_lea.vmem %s8, %s337
      %p339 = pneg %p246
      %p340 = pneg %p243
      %p341 = scmp.lt.s32.totalorder %s21, 1
      %s342 = scalar_select %p341, %s21, 1
      %s343 = smul.addr %s342, 2
      %s344 = smul.addr %s343, 2
      %s345 = scalar_lea.vmem %s9, %s344
      %p346 = scmp.lt.s32.totalorder %s21, 1
      %s347 = scalar_select %p346, %s21, 1
      %s348 = smul.addr %s347, 16
      %s349 = smul.addr %s348, 8
      %s350 = scalar_lea.vmem %s0, %s349
      %p351 = scmp.lt.s32.totalorder %s21, 1
      %s352 = scalar_select %p351, %s21, 1
      %s353 = smul.addr %s352, 16
      %s354 = smul.addr %s353, 8
      %s355 = scalar_lea.vmem %s1, %s354
      %p356 = scmp.lt.s32.totalorder %s21, 1
      %s357 = scalar_select %p356, %s21, 1
      %s358 = smul.addr %s357, 8
      %s359 = smul.addr %s358, 4
      %s360 = scalar_lea.vmem %s8, %s359
      %p361 = scmp.lt.s32.totalorder %s21, 1
      %s362 = scalar_select %p361, %s21, 1
      %s363 = smul.addr %s362, 2
      %s364 = smul.addr %s363, 2
      %s365 = scalar_lea.vmem %s9, %s364
      %v367 = vld [vmem:[%s350] sm:$0xff]
      %v368 = vld [vmem:[%s350 + $0x8] sm:$0xff]
      %v369 = vpack.c.bf16 %v368, %v367
      %v370 = vld [vmem:[%s2] sm:$0xff]
      %v371 = vld [vmem:[%s2 + $0x8] sm:$0xff]
      %s372 = scalar_lea.vmem %s2, 16
      %v373 = vld [vmem:[%s372] sm:$0xff]
      %v374 = vld [vmem:[%s372 + $0x8] sm:$0xff]
      %s375 = scalar_lea.vmem %s350, 16
      %v376 = vld [vmem:[%s375] sm:$0xff]
      %v377 = vld [vmem:[%s375 + $0x8] sm:$0xff]
      %v378 = vpack.c.bf16 %v377, %v376
      %s379 = scalar_lea.vmem %s2, 32
      %v380 = vld [vmem:[%s379] sm:$0xff]
      %v381 = vld [vmem:[%s379 + $0x8] sm:$0xff]
      %v384 = vunpack.c.l.b16 %v380
      %v385 = vunpack.c.h.b16 %v380
      %v386 = vunpack.c.l.b16 %v381
      %v387 = vunpack.c.h.b16 %v381
      %v388 = vpack.c.b16 %v386, %v384
      %v389 = vpack.c.b16 %v387, %v385
      %vm392 = vcmask 130048
      %v394 = vsel %vm392, %v378, 0
      %396 = vmatpush.bf16.msra.mxu0 0
      %397 = vmatpush.bf16.msra.mxu0 0
      %398 = vmatpush.bf16.msra.mxu0 0
      %399 = vmatpush.bf16.msra.mxu0 0
      %400 = vmatpush.bf16.msra.mxu0 0
      %401 = vmatpush.bf16.msra.mxu0 0
      %402 = vmatpush.bf16.msra.mxu0 0
      %403 = vmatpush.bf16.msra.mxu0 %v388
      %404 = vmatmul.bf16.gmra.mxu0 %v394
      %v405 = vpop.f32.mrf.mxu0
      %v406 = vadd.f32 0.0, %v405
      %v407 = vpop.f32.mrf.mxu0
      %v408 = vadd.f32 0.0, %v407
      %409 = vdwg.mxu0
      %410 = vmatpush.bf16.msra.mxu0 0
      %411 = vmatpush.bf16.msra.mxu0 0
      %412 = vmatpush.bf16.msra.mxu0 0
      %413 = vmatpush.bf16.msra.mxu0 0
      %414 = vmatpush.bf16.msra.mxu0 0
      %415 = vmatpush.bf16.msra.mxu0 0
      %416 = vmatpush.bf16.msra.mxu0 0
      %417 = vmatpush.bf16.msra.mxu0 %v389
      %418 = vmatmul.bf16.gmra.mxu0 %v394
      %v419 = vpop.f32.mrf.mxu0
      %v420 = vadd.f32 0.0, %v419
      %v421 = vpop.f32.mrf.mxu0
      %v422 = vadd.f32 0.0, %v421
      %423 = vdwg.mxu0
      %v426 = vunpack.c.l.b16 %v370
      %v427 = vunpack.c.h.b16 %v370
      %v428 = vunpack.c.l.b16 %v371
      %v429 = vunpack.c.h.b16 %v371
      %v430 = vpack.c.b16 %v428, %v426
      %v431 = vpack.c.b16 %v429, %v427
      %v435 = vsel %vm392, %v369, 0
      %437 = vmatpush.bf16.msra.mxu0 0
      %438 = vmatpush.bf16.msra.mxu0 0
      %439 = vmatpush.bf16.msra.mxu0 0
      %440 = vmatpush.bf16.msra.mxu0 0
      %441 = vmatpush.bf16.msra.mxu0 0
      %442 = vmatpush.bf16.msra.mxu0 0
      %443 = vmatpush.bf16.msra.mxu0 0
      %444 = vmatpush.bf16.msra.mxu0 %v430
      %445 = vmatmul.bf16.gmra.mxu0 %v435
      %v446 = vpop.f32.mrf.mxu0
      %v447 = vadd.f32 %v406, %v446
      %v448 = vpop.f32.mrf.mxu0
      %v449 = vadd.f32 %v408, %v448
      %450 = vdwg.mxu0
      %451 = vmatpush.bf16.msra.mxu0 0
      %452 = vmatpush.bf16.msra.mxu0 0
      %453 = vmatpush.bf16.msra.mxu0 0
      %454 = vmatpush.bf16.msra.mxu0 0
      %455 = vmatpush.bf16.msra.mxu0 0
      %456 = vmatpush.bf16.msra.mxu0 0
      %457 = vmatpush.bf16.msra.mxu0 0
      %458 = vmatpush.bf16.msra.mxu0 %v431
      %459 = vmatmul.bf16.gmra.mxu0 %v435
      %v460 = vpop.f32.mrf.mxu0
      %v461 = vadd.f32 %v420, %v460
      %v462 = vpop.f32.mrf.mxu0
      %v463 = vadd.f32 %v422, %v462
      %464 = vdwg.mxu0
      %s465 = scalar_lea.vmem %s2, 48
      %v466 = vld [vmem:[%s465] sm:$0xff]
      %v467 = vld [vmem:[%s465 + $0x8] sm:$0xff]
      %v470 = vunpack.c.l.b16 %v466
      %v471 = vunpack.c.h.b16 %v466
      %v472 = vunpack.c.l.b16 %v467
      %v473 = vunpack.c.h.b16 %v467
      %v474 = vpack.c.b16 %v472, %v470
      %v475 = vpack.c.b16 %v473, %v471
      %478 = vmatpush.bf16.msra.mxu0 0
      %479 = vmatpush.bf16.msra.mxu0 0
      %480 = vmatpush.bf16.msra.mxu0 0
      %481 = vmatpush.bf16.msra.mxu0 0
      %482 = vmatpush.bf16.msra.mxu0 0
      %483 = vmatpush.bf16.msra.mxu0 0
      %484 = vmatpush.bf16.msra.mxu0 0
      %485 = vmatpush.bf16.msra.mxu0 %v474
      %486 = vmatmul.bf16.gmra.mxu0 %v394
      %v487 = vpop.f32.mrf.mxu0
      %v488 = vadd.f32 0.0, %v487
      %v489 = vpop.f32.mrf.mxu0
      %v490 = vadd.f32 0.0, %v489
      %491 = vdwg.mxu0
      %492 = vmatpush.bf16.msra.mxu0 0
      %493 = vmatpush.bf16.msra.mxu0 0
      %494 = vmatpush.bf16.msra.mxu0 0
      %495 = vmatpush.bf16.msra.mxu0 0
      %496 = vmatpush.bf16.msra.mxu0 0
      %497 = vmatpush.bf16.msra.mxu0 0
      %498 = vmatpush.bf16.msra.mxu0 0
      %499 = vmatpush.bf16.msra.mxu0 %v475
      %500 = vmatmul.bf16.gmra.mxu0 %v394
      %v501 = vpop.f32.mrf.mxu0
      %v502 = vadd.f32 0.0, %v501
      %v503 = vpop.f32.mrf.mxu0
      %v504 = vadd.f32 0.0, %v503
      %505 = vdwg.mxu0
      %v508 = vunpack.c.l.b16 %v373
      %v509 = vunpack.c.h.b16 %v373
      %v510 = vunpack.c.l.b16 %v374
      %v511 = vunpack.c.h.b16 %v374
      %v512 = vpack.c.b16 %v510, %v508
      %v513 = vpack.c.b16 %v511, %v509
      %516 = vmatpush.bf16.msra.mxu0 0
      %517 = vmatpush.bf16.msra.mxu0 0
      %518 = vmatpush.bf16.msra.mxu0 0
      %519 = vmatpush.bf16.msra.mxu0 0
      %520 = vmatpush.bf16.msra.mxu0 0
      %521 = vmatpush.bf16.msra.mxu0 0
      %522 = vmatpush.bf16.msra.mxu0 0
      %523 = vmatpush.bf16.msra.mxu0 %v512
      %524 = vmatmul.bf16.gmra.mxu0 %v435
      %v525 = vpop.f32.mrf.mxu0
      %v526 = vadd.f32 %v488, %v525
      %v527 = vpop.f32.mrf.mxu0
      %v528 = vadd.f32 %v490, %v527
      %529 = vdwg.mxu0
      %530 = vmatpush.bf16.msra.mxu0 0
      %531 = vmatpush.bf16.msra.mxu0 0
      %532 = vmatpush.bf16.msra.mxu0 0
      %533 = vmatpush.bf16.msra.mxu0 0
      %534 = vmatpush.bf16.msra.mxu0 0
      %535 = vmatpush.bf16.msra.mxu0 0
      %536 = vmatpush.bf16.msra.mxu0 0
      %537 = vmatpush.bf16.msra.mxu0 %v513
      %538 = vmatmul.bf16.gmra.mxu0 %v435
      %v539 = vpop.f32.mrf.mxu0
      %v540 = vadd.f32 %v502, %v539
      %v541 = vpop.f32.mrf.mxu0
      %v542 = vadd.f32 %v504, %v541
      %543 = vdwg.mxu0
      %s544 = scalar_lea.vmem %s350, 32
      %v545 = vld [vmem:[%s544] sm:$0xff]
      %v546 = vld [vmem:[%s544 + $0x8] sm:$0xff]
      %v547 = vpack.c.bf16 %v546, %v545
      %s548 = scalar_lea.vmem %s2, 64
      %v549 = vld [vmem:[%s548] sm:$0xff]
      %v550 = vld [vmem:[%s548 + $0x8] sm:$0xff]
      %v553 = vunpack.c.l.b16 %v549
      %v554 = vunpack.c.h.b16 %v549
      %v555 = vunpack.c.l.b16 %v550
      %v556 = vunpack.c.h.b16 %v550
      %v557 = vpack.c.b16 %v555, %v553
      %v558 = vpack.c.b16 %v556, %v554
      %v562 = vsel %vm392, %v547, 0
      %564 = vmatpush.bf16.msra.mxu0 0
      %565 = vmatpush.bf16.msra.mxu0 0
      %566 = vmatpush.bf16.msra.mxu0 0
      %567 = vmatpush.bf16.msra.mxu0 0
      %568 = vmatpush.bf16.msra.mxu0 0
      %569 = vmatpush.bf16.msra.mxu0 0
      %570 = vmatpush.bf16.msra.mxu0 0
      %571 = vmatpush.bf16.msra.mxu0 %v557
      %572 = vmatmul.bf16.gmra.mxu0 %v562
      %v573 = vpop.f32.mrf.mxu0
      %v574 = vadd.f32 0.0, %v573
      %v575 = vpop.f32.mrf.mxu0
      %v576 = vadd.f32 0.0, %v575
      %577 = vdwg.mxu0
      %578 = vmatpush.bf16.msra.mxu0 0
      %579 = vmatpush.bf16.msra.mxu0 0
      %580 = vmatpush.bf16.msra.mxu0 0
      %581 = vmatpush.bf16.msra.mxu0 0
      %582 = vmatpush.bf16.msra.mxu0 0
      %583 = vmatpush.bf16.msra.mxu0 0
      %584 = vmatpush.bf16.msra.mxu0 0
      %585 = vmatpush.bf16.msra.mxu0 %v558
      %586 = vmatmul.bf16.gmra.mxu0 %v562
      %v587 = vpop.f32.mrf.mxu0
      %v588 = vadd.f32 0.0, %v587
      %v589 = vpop.f32.mrf.mxu0
      %v590 = vadd.f32 0.0, %v589
      %591 = vdwg.mxu0
      %v592 = vadd.f32 %v447, %v574
      %v593 = vadd.f32 %v461, %v588
      %v594 = vadd.f32 %v449, %v576
      %v595 = vadd.f32 %v463, %v590
      %s596 = scalar_lea.vmem %s2, 80
      %v597 = vld [vmem:[%s596] sm:$0xff]
      %v598 = vld [vmem:[%s596 + $0x8] sm:$0xff]
      %v601 = vunpack.c.l.b16 %v597
      %v602 = vunpack.c.h.b16 %v597
      %v603 = vunpack.c.l.b16 %v598
      %v604 = vunpack.c.h.b16 %v598
      %v605 = vpack.c.b16 %v603, %v601
      %v606 = vpack.c.b16 %v604, %v602
      %609 = vmatpush.bf16.msra.mxu0 0
      %610 = vmatpush.bf16.msra.mxu0 0
      %611 = vmatpush.bf16.msra.mxu0 0
      %612 = vmatpush.bf16.msra.mxu0 0
      %613 = vmatpush.bf16.msra.mxu0 0
      %614 = vmatpush.bf16.msra.mxu0 0
      %615 = vmatpush.bf16.msra.mxu0 0
      %616 = vmatpush.bf16.msra.mxu0 %v605
      %617 = vmatmul.bf16.gmra.mxu0 %v562
      %v618 = vpop.f32.mrf.mxu0
      %v619 = vadd.f32 0.0, %v618
      %v620 = vpop.f32.mrf.mxu0
      %v621 = vadd.f32 0.0, %v620
      %622 = vdwg.mxu0
      %623 = vmatpush.bf16.msra.mxu0 0
      %624 = vmatpush.bf16.msra.mxu0 0
      %625 = vmatpush.bf16.msra.mxu0 0
      %626 = vmatpush.bf16.msra.mxu0 0
      %627 = vmatpush.bf16.msra.mxu0 0
      %628 = vmatpush.bf16.msra.mxu0 0
      %629 = vmatpush.bf16.msra.mxu0 0
      %630 = vmatpush.bf16.msra.mxu0 %v606
      %631 = vmatmul.bf16.gmra.mxu0 %v562
      %v632 = vpop.f32.mrf.mxu0
      %v633 = vadd.f32 0.0, %v632
      %v634 = vpop.f32.mrf.mxu0
      %v635 = vadd.f32 0.0, %v634
      %636 = vdwg.mxu0
      %v637 = vadd.f32 %v526, %v619
      %v638 = vadd.f32 %v540, %v633
      %v639 = vadd.f32 %v528, %v621
      %v640 = vadd.f32 %v542, %v635
      %s641 = scalar_lea.vmem %s350, 48
      %v642 = vld [vmem:[%s641] sm:$0xff]
      %v643 = vld [vmem:[%s641 + $0x8] sm:$0xff]
      %v644 = vpack.c.bf16 %v643, %v642
      %s645 = scalar_lea.vmem %s2, 96
      %v646 = vld [vmem:[%s645] sm:$0xff]
      %v647 = vld [vmem:[%s645 + $0x8] sm:$0xff]
      %v650 = vunpack.c.l.b16 %v646
      %v651 = vunpack.c.h.b16 %v646
      %v652 = vunpack.c.l.b16 %v647
      %v653 = vunpack.c.h.b16 %v647
      %v654 = vpack.c.b16 %v652, %v650
      %v655 = vpack.c.b16 %v653, %v651
      %v659 = vsel %vm392, %v644, 0
      %661 = vmatpush.bf16.msra.mxu0 0
      %662 = vmatpush.bf16.msra.mxu0 0
      %663 = vmatpush.bf16.msra.mxu0 0
      %664 = vmatpush.bf16.msra.mxu0 0
      %665 = vmatpush.bf16.msra.mxu0 0
      %666 = vmatpush.bf16.msra.mxu0 0
      %667 = vmatpush.bf16.msra.mxu0 0
      %668 = vmatpush.bf16.msra.mxu0 %v654
      %669 = vmatmul.bf16.gmra.mxu0 %v659
      %v670 = vpop.f32.mrf.mxu0
      %v671 = vadd.f32 0.0, %v670
      %v672 = vpop.f32.mrf.mxu0
      %v673 = vadd.f32 0.0, %v672
      %674 = vdwg.mxu0
      %675 = vmatpush.bf16.msra.mxu0 0
      %676 = vmatpush.bf16.msra.mxu0 0
      %677 = vmatpush.bf16.msra.mxu0 0
      %678 = vmatpush.bf16.msra.mxu0 0
      %679 = vmatpush.bf16.msra.mxu0 0
      %680 = vmatpush.bf16.msra.mxu0 0
      %681 = vmatpush.bf16.msra.mxu0 0
      %682 = vmatpush.bf16.msra.mxu0 %v655
      %683 = vmatmul.bf16.gmra.mxu0 %v659
      %v684 = vpop.f32.mrf.mxu0
      %v685 = vadd.f32 0.0, %v684
      %v686 = vpop.f32.mrf.mxu0
      %v687 = vadd.f32 0.0, %v686
      %688 = vdwg.mxu0
      %v689 = vadd.f32 %v592, %v671
      %v690 = vadd.f32 %v593, %v685
      %v691 = vadd.f32 %v594, %v673
      %v692 = vadd.f32 %v595, %v687
      %s693 = scalar_lea.vmem %s2, 112
      %v694 = vld [vmem:[%s693] sm:$0xff]
      %v695 = vld [vmem:[%s693 + $0x8] sm:$0xff]
      %v698 = vunpack.c.l.b16 %v694
      %v699 = vunpack.c.h.b16 %v694
      %v700 = vunpack.c.l.b16 %v695
      %v701 = vunpack.c.h.b16 %v695
      %v702 = vpack.c.b16 %v700, %v698
      %v703 = vpack.c.b16 %v701, %v699
      %706 = vmatpush.bf16.msra.mxu0 0
      %707 = vmatpush.bf16.msra.mxu0 0
      %708 = vmatpush.bf16.msra.mxu0 0
      %709 = vmatpush.bf16.msra.mxu0 0
      %710 = vmatpush.bf16.msra.mxu0 0
      %711 = vmatpush.bf16.msra.mxu0 0
      %712 = vmatpush.bf16.msra.mxu0 0
      %713 = vmatpush.bf16.msra.mxu0 %v702
      %714 = vmatmul.bf16.gmra.mxu0 %v659
      %v715 = vpop.f32.mrf.mxu0
      %v716 = vadd.f32 0.0, %v715
      %v717 = vpop.f32.mrf.mxu0
      %v718 = vadd.f32 0.0, %v717
      %719 = vdwg.mxu0
      %720 = vmatpush.bf16.msra.mxu0 0
      %721 = vmatpush.bf16.msra.mxu0 0
      %722 = vmatpush.bf16.msra.mxu0 0
      %723 = vmatpush.bf16.msra.mxu0 0
      %724 = vmatpush.bf16.msra.mxu0 0
      %725 = vmatpush.bf16.msra.mxu0 0
      %726 = vmatpush.bf16.msra.mxu0 0
      %727 = vmatpush.bf16.msra.mxu0 %v703
      %728 = vmatmul.bf16.gmra.mxu0 %v659
      %v729 = vpop.f32.mrf.mxu0
      %v730 = vadd.f32 0.0, %v729
      %v731 = vpop.f32.mrf.mxu0
      %v732 = vadd.f32 0.0, %v731
      %733 = vdwg.mxu0
      %v734 = vadd.f32 %v637, %v716
      %v735 = vadd.f32 %v638, %v730
      %v736 = vadd.f32 %v639, %v718
      %v737 = vadd.f32 %v640, %v732
      %s738 = scalar_lea.vmem %s350, 64
      %v739 = vld [vmem:[%s738] sm:$0xff]
      %v740 = vld [vmem:[%s738 + $0x8] sm:$0xff]
      %v741 = vpack.c.bf16 %v740, %v739
      %s742 = scalar_lea.vmem %s2, 128
      %v743 = vld [vmem:[%s742] sm:$0xff]
      %v744 = vld [vmem:[%s742 + $0x8] sm:$0xff]
      %v747 = vunpack.c.l.b16 %v743
      %v748 = vunpack.c.h.b16 %v743
      %v749 = vunpack.c.l.b16 %v744
      %v750 = vunpack.c.h.b16 %v744
      %v751 = vpack.c.b16 %v749, %v747
      %v752 = vpack.c.b16 %v750, %v748
      %v756 = vsel %vm392, %v741, 0
      %758 = vmatpush.bf16.msra.mxu0 0
      %759 = vmatpush.bf16.msra.mxu0 0
      %760 = vmatpush.bf16.msra.mxu0 0
      %761 = vmatpush.bf16.msra.mxu0 0
      %762 = vmatpush.bf16.msra.mxu0 0
      %763 = vmatpush.bf16.msra.mxu0 0
      %764 = vmatpush.bf16.msra.mxu0 0
      %765 = vmatpush.bf16.msra.mxu0 %v751
      %766 = vmatmul.bf16.gmra.mxu0 %v756
      %v767 = vpop.f32.mrf.mxu0
      %v768 = vadd.f32 0.0, %v767
      %v769 = vpop.f32.mrf.mxu0
      %v770 = vadd.f32 0.0, %v769
      %771 = vdwg.mxu0
      %772 = vmatpush.bf16.msra.mxu0 0
      %773 = vmatpush.bf16.msra.mxu0 0
      %774 = vmatpush.bf16.msra.mxu0 0
      %775 = vmatpush.bf16.msra.mxu0 0
      %776 = vmatpush.bf16.msra.mxu0 0
      %777 = vmatpush.bf16.msra.mxu0 0
      %778 = vmatpush.bf16.msra.mxu0 0
      %779 = vmatpush.bf16.msra.mxu0 %v752
      %780 = vmatmul.bf16.gmra.mxu0 %v756
      %v781 = vpop.f32.mrf.mxu0
      %v782 = vadd.f32 0.0, %v781
      %v783 = vpop.f32.mrf.mxu0
      %v784 = vadd.f32 0.0, %v783
      %785 = vdwg.mxu0
      %v786 = vadd.f32 %v689, %v768
      %v787 = vadd.f32 %v690, %v782
      %v788 = vadd.f32 %v691, %v770
      %v789 = vadd.f32 %v692, %v784
      %s790 = scalar_lea.vmem %s2, 144
      %v791 = vld [vmem:[%s790] sm:$0xff]
      %v792 = vld [vmem:[%s790 + $0x8] sm:$0xff]
      %v795 = vunpack.c.l.b16 %v791
      %v796 = vunpack.c.h.b16 %v791
      %v797 = vunpack.c.l.b16 %v792
      %v798 = vunpack.c.h.b16 %v792
      %v799 = vpack.c.b16 %v797, %v795
      %v800 = vpack.c.b16 %v798, %v796
      %803 = vmatpush.bf16.msra.mxu0 0
      %804 = vmatpush.bf16.msra.mxu0 0
      %805 = vmatpush.bf16.msra.mxu0 0
      %806 = vmatpush.bf16.msra.mxu0 0
      %807 = vmatpush.bf16.msra.mxu0 0
      %808 = vmatpush.bf16.msra.mxu0 0
      %809 = vmatpush.bf16.msra.mxu0 0
      %810 = vmatpush.bf16.msra.mxu0 %v799
      %811 = vmatmul.bf16.gmra.mxu0 %v756
      %v812 = vpop.f32.mrf.mxu0
      %v813 = vadd.f32 0.0, %v812
      %v814 = vpop.f32.mrf.mxu0
      %v815 = vadd.f32 0.0, %v814
      %816 = vdwg.mxu0
      %817 = vmatpush.bf16.msra.mxu0 0
      %818 = vmatpush.bf16.msra.mxu0 0
      %819 = vmatpush.bf16.msra.mxu0 0
      %820 = vmatpush.bf16.msra.mxu0 0
      %821 = vmatpush.bf16.msra.mxu0 0
      %822 = vmatpush.bf16.msra.mxu0 0
      %823 = vmatpush.bf16.msra.mxu0 0
      %824 = vmatpush.bf16.msra.mxu0 %v800
      %825 = vmatmul.bf16.gmra.mxu0 %v756
      %v826 = vpop.f32.mrf.mxu0
      %v827 = vadd.f32 0.0, %v826
      %v828 = vpop.f32.mrf.mxu0
      %v829 = vadd.f32 0.0, %v828
      %830 = vdwg.mxu0
      %v831 = vadd.f32 %v734, %v813
      %v832 = vadd.f32 %v735, %v827
      %v833 = vadd.f32 %v736, %v815
      %v834 = vadd.f32 %v737, %v829
      %s835 = scalar_lea.vmem %s350, 80
      %v836 = vld [vmem:[%s835] sm:$0xff]
      %v837 = vld [vmem:[%s835 + $0x8] sm:$0xff]
      %v838 = vpack.c.bf16 %v837, %v836
      %s839 = scalar_lea.vmem %s2, 160
      %v840 = vld [vmem:[%s839] sm:$0xff]
      %v841 = vld [vmem:[%s839 + $0x8] sm:$0xff]
      %v844 = vunpack.c.l.b16 %v840
      %v845 = vunpack.c.h.b16 %v840
      %v846 = vunpack.c.l.b16 %v841
      %v847 = vunpack.c.h.b16 %v841
      %v848 = vpack.c.b16 %v846, %v844
      %v849 = vpack.c.b16 %v847, %v845
      %v853 = vsel %vm392, %v838, 0
      %855 = vmatpush.bf16.msra.mxu0 0
      %856 = vmatpush.bf16.msra.mxu0 0
      %857 = vmatpush.bf16.msra.mxu0 0
      %858 = vmatpush.bf16.msra.mxu0 0
      %859 = vmatpush.bf16.msra.mxu0 0
      %860 = vmatpush.bf16.msra.mxu0 0
      %861 = vmatpush.bf16.msra.mxu0 0
      %862 = vmatpush.bf16.msra.mxu0 %v848
      %863 = vmatmul.bf16.gmra.mxu0 %v853
      %v864 = vpop.f32.mrf.mxu0
      %v865 = vadd.f32 0.0, %v864
      %v866 = vpop.f32.mrf.mxu0
      %v867 = vadd.f32 0.0, %v866
      %868 = vdwg.mxu0
      %869 = vmatpush.bf16.msra.mxu0 0
      %870 = vmatpush.bf16.msra.mxu0 0
      %871 = vmatpush.bf16.msra.mxu0 0
      %872 = vmatpush.bf16.msra.mxu0 0
      %873 = vmatpush.bf16.msra.mxu0 0
      %874 = vmatpush.bf16.msra.mxu0 0
      %875 = vmatpush.bf16.msra.mxu0 0
      %876 = vmatpush.bf16.msra.mxu0 %v849
      %877 = vmatmul.bf16.gmra.mxu0 %v853
      %v878 = vpop.f32.mrf.mxu0
      %v879 = vadd.f32 0.0, %v878
      %v880 = vpop.f32.mrf.mxu0
      %v881 = vadd.f32 0.0, %v880
      %882 = vdwg.mxu0
      %v883 = vadd.f32 %v786, %v865
      %v884 = vadd.f32 %v787, %v879
      %v885 = vadd.f32 %v788, %v867
      %v886 = vadd.f32 %v789, %v881
      %s887 = scalar_lea.vmem %s2, 176
      %v888 = vld [vmem:[%s887] sm:$0xff]
      %v889 = vld [vmem:[%s887 + $0x8] sm:$0xff]
      %v892 = vunpack.c.l.b16 %v888
      %v893 = vunpack.c.h.b16 %v888
      %v894 = vunpack.c.l.b16 %v889
      %v895 = vunpack.c.h.b16 %v889
      %v896 = vpack.c.b16 %v894, %v892
      %v897 = vpack.c.b16 %v895, %v893
      %900 = vmatpush.bf16.msra.mxu0 0
      %901 = vmatpush.bf16.msra.mxu0 0
      %902 = vmatpush.bf16.msra.mxu0 0
      %903 = vmatpush.bf16.msra.mxu0 0
      %904 = vmatpush.bf16.msra.mxu0 0
      %905 = vmatpush.bf16.msra.mxu0 0
      %906 = vmatpush.bf16.msra.mxu0 0
      %907 = vmatpush.bf16.msra.mxu0 %v896
      %908 = vmatmul.bf16.gmra.mxu0 %v853
      %v909 = vpop.f32.mrf.mxu0
      %v910 = vadd.f32 0.0, %v909
      %v911 = vpop.f32.mrf.mxu0
      %v912 = vadd.f32 0.0, %v911
      %913 = vdwg.mxu0
      %914 = vmatpush.bf16.msra.mxu0 0
      %915 = vmatpush.bf16.msra.mxu0 0
      %916 = vmatpush.bf16.msra.mxu0 0
      %917 = vmatpush.bf16.msra.mxu0 0
      %918 = vmatpush.bf16.msra.mxu0 0
      %919 = vmatpush.bf16.msra.mxu0 0
      %920 = vmatpush.bf16.msra.mxu0 0
      %921 = vmatpush.bf16.msra.mxu0 %v897
      %922 = vmatmul.bf16.gmra.mxu0 %v853
      %v923 = vpop.f32.mrf.mxu0
      %v924 = vadd.f32 0.0, %v923
      %v925 = vpop.f32.mrf.mxu0
      %v926 = vadd.f32 0.0, %v925
      %927 = vdwg.mxu0
      %v928 = vadd.f32 %v831, %v910
      %v929 = vadd.f32 %v832, %v924
      %v930 = vadd.f32 %v833, %v912
      %v931 = vadd.f32 %v834, %v926
      %s932 = scalar_lea.vmem %s350, 96
      %v933 = vld [vmem:[%s932] sm:$0xff]
      %v934 = vld [vmem:[%s932 + $0x8] sm:$0xff]
      %v935 = vpack.c.bf16 %v934, %v933
      %s936 = scalar_lea.vmem %s2, 192
      %v937 = vld [vmem:[%s936] sm:$0xff]
      %v938 = vld [vmem:[%s936 + $0x8] sm:$0xff]
      %v941 = vunpack.c.l.b16 %v937
      %v942 = vunpack.c.h.b16 %v937
      %v943 = vunpack.c.l.b16 %v938
      %v944 = vunpack.c.h.b16 %v938
      %v945 = vpack.c.b16 %v943, %v941
      %v946 = vpack.c.b16 %v944, %v942
      %v950 = vsel %vm392, %v935, 0
      %952 = vmatpush.bf16.msra.mxu0 0
      %953 = vmatpush.bf16.msra.mxu0 0
      %954 = vmatpush.bf16.msra.mxu0 0
      %955 = vmatpush.bf16.msra.mxu0 0
      %956 = vmatpush.bf16.msra.mxu0 0
      %957 = vmatpush.bf16.msra.mxu0 0
      %958 = vmatpush.bf16.msra.mxu0 0
      %959 = vmatpush.bf16.msra.mxu0 %v945
      %960 = vmatmul.bf16.gmra.mxu0 %v950
      %v961 = vpop.f32.mrf.mxu0
      %v962 = vadd.f32 0.0, %v961
      %v963 = vpop.f32.mrf.mxu0
      %v964 = vadd.f32 0.0, %v963
      %965 = vdwg.mxu0
      %966 = vmatpush.bf16.msra.mxu0 0
      %967 = vmatpush.bf16.msra.mxu0 0
      %968 = vmatpush.bf16.msra.mxu0 0
      %969 = vmatpush.bf16.msra.mxu0 0
      %970 = vmatpush.bf16.msra.mxu0 0
      %971 = vmatpush.bf16.msra.mxu0 0
      %972 = vmatpush.bf16.msra.mxu0 0
      %973 = vmatpush.bf16.msra.mxu0 %v946
      %974 = vmatmul.bf16.gmra.mxu0 %v950
      %v975 = vpop.f32.mrf.mxu0
      %v976 = vadd.f32 0.0, %v975
      %v977 = vpop.f32.mrf.mxu0
      %v978 = vadd.f32 0.0, %v977
      %979 = vdwg.mxu0
      %v980 = vadd.f32 %v883, %v962
      %v981 = vadd.f32 %v884, %v976
      %v982 = vadd.f32 %v885, %v964
      %v983 = vadd.f32 %v886, %v978
      %s984 = scalar_lea.vmem %s2, 208
      %v985 = vld [vmem:[%s984] sm:$0xff]
      %v986 = vld [vmem:[%s984 + $0x8] sm:$0xff]
      %v989 = vunpack.c.l.b16 %v985
      %v990 = vunpack.c.h.b16 %v985
      %v991 = vunpack.c.l.b16 %v986
      %v992 = vunpack.c.h.b16 %v986
      %v993 = vpack.c.b16 %v991, %v989
      %v994 = vpack.c.b16 %v992, %v990
      %997 = vmatpush.bf16.msra.mxu0 0
      %998 = vmatpush.bf16.msra.mxu0 0
      %999 = vmatpush.bf16.msra.mxu0 0
      %1000 = vmatpush.bf16.msra.mxu0 0
      %1001 = vmatpush.bf16.msra.mxu0 0
      %1002 = vmatpush.bf16.msra.mxu0 0
      %1003 = vmatpush.bf16.msra.mxu0 0
      %1004 = vmatpush.bf16.msra.mxu0 %v993
      %1005 = vmatmul.bf16.gmra.mxu0 %v950
      %v1006 = vpop.f32.mrf.mxu0
      %v1007 = vadd.f32 0.0, %v1006
      %v1008 = vpop.f32.mrf.mxu0
      %v1009 = vadd.f32 0.0, %v1008
      %1010 = vdwg.mxu0
      %1011 = vmatpush.bf16.msra.mxu0 0
      %1012 = vmatpush.bf16.msra.mxu0 0
      %1013 = vmatpush.bf16.msra.mxu0 0
      %1014 = vmatpush.bf16.msra.mxu0 0
      %1015 = vmatpush.bf16.msra.mxu0 0
      %1016 = vmatpush.bf16.msra.mxu0 0
      %1017 = vmatpush.bf16.msra.mxu0 0
      %1018 = vmatpush.bf16.msra.mxu0 %v994
      %1019 = vmatmul.bf16.gmra.mxu0 %v950
      %v1020 = vpop.f32.mrf.mxu0
      %v1021 = vadd.f32 0.0, %v1020
      %v1022 = vpop.f32.mrf.mxu0
      %v1023 = vadd.f32 0.0, %v1022
      %1024 = vdwg.mxu0
      %v1025 = vadd.f32 %v928, %v1007
      %v1026 = vadd.f32 %v929, %v1021
      %v1027 = vadd.f32 %v930, %v1009
      %v1028 = vadd.f32 %v931, %v1023
      %s1029 = scalar_lea.vmem %s350, 112
      %v1030 = vld [vmem:[%s1029] sm:$0xff]
      %v1031 = vld [vmem:[%s1029 + $0x8] sm:$0xff]
      %v1032 = vpack.c.bf16 %v1031, %v1030
      %s1033 = scalar_lea.vmem %s2, 224
      %v1034 = vld [vmem:[%s1033] sm:$0xff]
      %v1035 = vld [vmem:[%s1033 + $0x8] sm:$0xff]
      %v1038 = vunpack.c.l.b16 %v1034
      %v1039 = vunpack.c.h.b16 %v1034
      %v1040 = vunpack.c.l.b16 %v1035
      %v1041 = vunpack.c.h.b16 %v1035
      %v1042 = vpack.c.b16 %v1040, %v1038
      %v1043 = vpack.c.b16 %v1041, %v1039
      %v1047 = vsel %vm392, %v1032, 0
      %1049 = vmatpush.bf16.msra.mxu0 0
      %1050 = vmatpush.bf16.msra.mxu0 0
      %1051 = vmatpush.bf16.msra.mxu0 0
      %1052 = vmatpush.bf16.msra.mxu0 0
      %1053 = vmatpush.bf16.msra.mxu0 0
      %1054 = vmatpush.bf16.msra.mxu0 0
      %1055 = vmatpush.bf16.msra.mxu0 0
      %1056 = vmatpush.bf16.msra.mxu0 %v1042
      %1057 = vmatmul.bf16.gmra.mxu0 %v1047
      %v1058 = vpop.f32.mrf.mxu0
      %v1059 = vadd.f32 0.0, %v1058
      %v1060 = vpop.f32.mrf.mxu0
      %v1061 = vadd.f32 0.0, %v1060
      %1062 = vdwg.mxu0
      %1063 = vmatpush.bf16.msra.mxu0 0
      %1064 = vmatpush.bf16.msra.mxu0 0
      %1065 = vmatpush.bf16.msra.mxu0 0
      %1066 = vmatpush.bf16.msra.mxu0 0
      %1067 = vmatpush.bf16.msra.mxu0 0
      %1068 = vmatpush.bf16.msra.mxu0 0
      %1069 = vmatpush.bf16.msra.mxu0 0
      %1070 = vmatpush.bf16.msra.mxu0 %v1043
      %1071 = vmatmul.bf16.gmra.mxu0 %v1047
      %v1072 = vpop.f32.mrf.mxu0
      %v1073 = vadd.f32 0.0, %v1072
      %v1074 = vpop.f32.mrf.mxu0
      %v1075 = vadd.f32 0.0, %v1074
      %1076 = vdwg.mxu0
      %v1077 = vadd.f32 %v980, %v1059
      %v1078 = vadd.f32 %v981, %v1073
      %v1079 = vadd.f32 %v982, %v1061
      %v1080 = vadd.f32 %v983, %v1075
      %s1081 = scalar_lea.vmem %s2, 240
      %v1082 = vld [vmem:[%s1081] sm:$0xff]
      %v1083 = vld [vmem:[%s1081 + $0x8] sm:$0xff]
      %v1086 = vunpack.c.l.b16 %v1082
      %v1087 = vunpack.c.h.b16 %v1082
      %v1088 = vunpack.c.l.b16 %v1083
      %v1089 = vunpack.c.h.b16 %v1083
      %v1090 = vpack.c.b16 %v1088, %v1086
      %v1091 = vpack.c.b16 %v1089, %v1087
      %1094 = vmatpush.bf16.msra.mxu0 0
      %1095 = vmatpush.bf16.msra.mxu0 0
      %1096 = vmatpush.bf16.msra.mxu0 0
      %1097 = vmatpush.bf16.msra.mxu0 0
      %1098 = vmatpush.bf16.msra.mxu0 0
      %1099 = vmatpush.bf16.msra.mxu0 0
      %1100 = vmatpush.bf16.msra.mxu0 0
      %1101 = vmatpush.bf16.msra.mxu0 %v1090
      %1102 = vmatmul.bf16.gmra.mxu0 %v1047
      %v1103 = vpop.f32.mrf.mxu0
      %v1104 = vadd.f32 0.0, %v1103
      %v1105 = vpop.f32.mrf.mxu0
      %v1106 = vadd.f32 0.0, %v1105
      %1107 = vdwg.mxu0
      %1108 = vmatpush.bf16.msra.mxu0 0
      %1109 = vmatpush.bf16.msra.mxu0 0
      %1110 = vmatpush.bf16.msra.mxu0 0
      %1111 = vmatpush.bf16.msra.mxu0 0
      %1112 = vmatpush.bf16.msra.mxu0 0
      %1113 = vmatpush.bf16.msra.mxu0 0
      %1114 = vmatpush.bf16.msra.mxu0 0
      %1115 = vmatpush.bf16.msra.mxu0 %v1091
      %1116 = vmatmul.bf16.gmra.mxu0 %v1047
      %v1117 = vpop.f32.mrf.mxu0
      %v1118 = vadd.f32 0.0, %v1117
      %v1119 = vpop.f32.mrf.mxu0
      %v1120 = vadd.f32 0.0, %v1119
      %1121 = vdwg.mxu0
      %v1122 = vadd.f32 %v1025, %v1104
      %v1123 = vadd.f32 %v1026, %v1118
      %v1124 = vadd.f32 %v1027, %v1106
      %v1125 = vadd.f32 %v1028, %v1120
      %v1126 = vpack.c.bf16 %v1079, %v1077
      %v1127 = vpack.c.bf16 %v1080, %v1078
      %v1128 = vpack.c.bf16 %v1124, %v1122
      %v1129 = vpack.c.bf16 %v1125, %v1123
      %v1130 = vld [vmem:[%s3] sm:$0xf]
      %v1131 = vld [vmem:[%s3 + $0x4] sm:$0xf]
      %v1132 = vld [vmem:[%s3 + $0x8] sm:$0xf]
      %v1133 = vld [vmem:[%s3 + $0xc] sm:$0xf]
      %v1134 = vld [vmem:[%s6] sm:$0x3]
      %v1136 = vperm.slane %v1134, 0
      %v1137 = vperm.slane %v1134, 1
      %v1144 = vunpack.c.l.b16 %v1130
      %v1145 = vunpack.c.l.b16 %v1131
      %v1146 = vunpack.c.l.b16 %v1132
      %v1147 = vunpack.c.l.b16 %v1133
      %v1148 = vpack.c.b16 %v1145, %v1144
      %v1149 = vpack.c.b16 %v1147, %v1146
      %vm1150 = vcmask 261120
      %v1152 = vsel %vm1150, %v1148, 0
      %v1155 = vsel %vm1150, %v1149, 0
      %1157 = vmatpush.bf16.msra.mxu0 0
      %1158 = vmatpush.bf16.msra.mxu0 0
      %1159 = vmatpush.bf16.msra.mxu0 0
      %1160 = vmatpush.bf16.msra.mxu0 0
      %1161 = vmatpush.bf16.msra.mxu0 0
      %1162 = vmatpush.bf16.msra.mxu0 0
      %1163 = vmatpush.bf16.msra.mxu0 %v1128
      %1164 = vmatpush.bf16.msra.mxu0 %v1126
      %1165 = vmatmul.bf16.gmra.mxu0 %v1152
      %v1166 = vpop.f32.mrf.mxu0
      %v1167 = vadd.f32 %v1136, %v1166
      %v1168 = vpop.f32.mrf.mxu0
      %v1169 = vadd.f32 %v1136, %v1168
      %1170 = vmatmul.bf16.gmra.mxu0 %v1155
      %v1171 = vpop.f32.mrf.mxu0
      %v1172 = vadd.f32 %v1136, %v1171
      %v1173 = vpop.f32.mrf.mxu0
      %v1174 = vadd.f32 %v1136, %v1173
      %1175 = vdwg.mxu0
      %1176 = vmatpush.bf16.msra.mxu0 0
      %1177 = vmatpush.bf16.msra.mxu0 0
      %1178 = vmatpush.bf16.msra.mxu0 0
      %1179 = vmatpush.bf16.msra.mxu0 0
      %1180 = vmatpush.bf16.msra.mxu0 0
      %1181 = vmatpush.bf16.msra.mxu0 0
      %1182 = vmatpush.bf16.msra.mxu0 %v1129
      %1183 = vmatpush.bf16.msra.mxu0 %v1127
      %1184 = vmatmul.bf16.gmra.mxu0 %v1152
      %v1185 = vpop.f32.mrf.mxu0
      %v1186 = vadd.f32 %v1137, %v1185
      %v1187 = vpop.f32.mrf.mxu0
      %v1188 = vadd.f32 %v1137, %v1187
      %1189 = vmatmul.bf16.gmra.mxu0 %v1155
      %v1190 = vpop.f32.mrf.mxu0
      %v1191 = vadd.f32 %v1137, %v1190
      %v1192 = vpop.f32.mrf.mxu0
      %v1193 = vadd.f32 %v1137, %v1192
      %1194 = vdwg.mxu0
      %v1195 = vpack.c.bf16 %v1186, %v1167
      %v1196 = vpack.c.bf16 %v1188, %v1169
      %v1197 = vpack.c.bf16 %v1191, %v1172
      %v1198 = vpack.c.bf16 %v1193, %v1174
      %v1203 = vunpack.c.l.b16 %v1195
      %v1204 = vunpack.c.h.b16 %v1195
      %v1205 = vunpack.c.l.b16 %v1196
      %v1206 = vunpack.c.h.b16 %v1196
      %v1207 = vunpack.c.l.b16 %v1197
      %v1208 = vunpack.c.h.b16 %v1197
      %v1209 = vunpack.c.l.b16 %v1198
      %v1210 = vunpack.c.h.b16 %v1198
      %v1211 = vpack.c.b16 %v1205, %v1203
      %v1212 = vpack.c.b16 %v1206, %v1204
      %v1213 = vpack.c.b16 %v1209, %v1207
      %v1214 = vpack.c.b16 %v1210, %v1208
      %vm1215 = vcmask 1040384
      %v1216 = vrot.slane %v1211, 7
      %v1217 = vrot.slane %v1212, 7
      %v1218 = vrot.slane %v1213, 7
      %v1219 = vsel %vm1215, %v1216, %v1218
      %v1220 = vrot.slane %v1214, 7
      %v1221 = vsel %vm1215, %v1217, %v1220
      %vm1224 = vcmask 1040384
      %v1227 = vsel %vm1224, 0, %v1216
      %v1230 = vsel %vm1224, 0, %v1217
      %v1233 = vsel %vm1224, %v1218, 0
      %v1235 = vsel %vm1224, %v1220, 0
      %v1236 = vld [vmem:[%s4] sm:$0xff]
      %v1237 = vld [vmem:[%s4 + $0x8] sm:$0xff]
      %v1238 = vld [vmem:[%s4 + $0x10] sm:$0xff]
      %v1239 = vld [vmem:[%s4 + $0x18] sm:$0xff]
      %v1240 = vld [vmem:[%s4 + $0x20] sm:$0xff]
      %v1241 = vld [vmem:[%s4 + $0x28] sm:$0xff]
      %v1242 = vld [vmem:[%s4 + $0x30] sm:$0xff]
      %v1243 = vld [vmem:[%s4 + $0x38] sm:$0xff]
      %v1244 = vld [vmem:[%s4 + $0x40] sm:$0xff]
      %v1245 = vld [vmem:[%s4 + $0x48] sm:$0xff]
      %v1246 = vld [vmem:[%s4 + $0x50] sm:$0xff]
      %v1247 = vld [vmem:[%s4 + $0x58] sm:$0xff]
      %v1248 = vld [vmem:[%s4 + $0x60] sm:$0xff]
      %v1249 = vld [vmem:[%s4 + $0x68] sm:$0xff]
      %v1250 = vld [vmem:[%s4 + $0x70] sm:$0xff]
      %v1251 = vld [vmem:[%s4 + $0x78] sm:$0xff]
      %v1252 = vld [vmem:[%s4 + $0x80] sm:$0xff]
      %v1253 = vld [vmem:[%s4 + $0x88] sm:$0xff]
      %v1254 = vld [vmem:[%s4 + $0x90] sm:$0xff]
      %v1255 = vld [vmem:[%s4 + $0x98] sm:$0xff]
      %v1256 = vld [vmem:[%s4 + $0xa0] sm:$0xff]
      %v1257 = vld [vmem:[%s4 + $0xa8] sm:$0xff]
      %v1258 = vld [vmem:[%s4 + $0xb0] sm:$0xff]
      %v1259 = vld [vmem:[%s4 + $0xb8] sm:$0xff]
      %v1260 = vld [vmem:[%s4 + $0xc0] sm:$0xff]
      %v1261 = vld [vmem:[%s4 + $0xc8] sm:$0xff]
      %v1262 = vld [vmem:[%s4 + $0xd0] sm:$0xff]
      %v1263 = vld [vmem:[%s4 + $0xd8] sm:$0xff]
      %v1264 = vld [vmem:[%s4 + $0xe0] sm:$0xff]
      %v1265 = vld [vmem:[%s4 + $0xe8] sm:$0xff]
      %v1266 = vld [vmem:[%s4 + $0xf0] sm:$0xff]
      %v1267 = vld [vmem:[%s4 + $0xf8] sm:$0xff]
      %s1268 = scalar_lea.vmem %s4, 256
      %v1269 = vld [vmem:[%s1268] sm:$0xff]
      %v1270 = vld [vmem:[%s1268 + $0x8] sm:$0xff]
      %v1271 = vld [vmem:[%s1268 + $0x10] sm:$0xff]
      %v1272 = vld [vmem:[%s1268 + $0x18] sm:$0xff]
      %v1273 = vld [vmem:[%s1268 + $0x20] sm:$0xff]
      %v1274 = vld [vmem:[%s1268 + $0x28] sm:$0xff]
      %v1275 = vld [vmem:[%s1268 + $0x30] sm:$0xff]
      %v1276 = vld [vmem:[%s1268 + $0x38] sm:$0xff]
      %v1277 = vld [vmem:[%s1268 + $0x40] sm:$0xff]
      %v1278 = vld [vmem:[%s1268 + $0x48] sm:$0xff]
      %v1279 = vld [vmem:[%s1268 + $0x50] sm:$0xff]
      %v1280 = vld [vmem:[%s1268 + $0x58] sm:$0xff]
      %v1281 = vld [vmem:[%s1268 + $0x60] sm:$0xff]
      %v1282 = vld [vmem:[%s1268 + $0x68] sm:$0xff]
      %v1283 = vld [vmem:[%s1268 + $0x70] sm:$0xff]
      %v1284 = vld [vmem:[%s1268 + $0x78] sm:$0xff]
      %v1285 = vld [vmem:[%s1268 + $0x80] sm:$0xff]
      %v1286 = vld [vmem:[%s1268 + $0x88] sm:$0xff]
      %v1287 = vld [vmem:[%s1268 + $0x90] sm:$0xff]
      %v1288 = vld [vmem:[%s1268 + $0x98] sm:$0xff]
      %v1289 = vld [vmem:[%s1268 + $0xa0] sm:$0xff]
      %v1290 = vld [vmem:[%s1268 + $0xa8] sm:$0xff]
      %v1291 = vld [vmem:[%s1268 + $0xb0] sm:$0xff]
      %v1292 = vld [vmem:[%s1268 + $0xb8] sm:$0xff]
      %v1293 = vld [vmem:[%s1268 + $0xc0] sm:$0xff]
      %v1294 = vld [vmem:[%s1268 + $0xc8] sm:$0xff]
      %v1295 = vld [vmem:[%s1268 + $0xd0] sm:$0xff]
      %v1296 = vld [vmem:[%s1268 + $0xd8] sm:$0xff]
      %v1297 = vld [vmem:[%s1268 + $0xe0] sm:$0xff]
      %v1298 = vld [vmem:[%s1268 + $0xe8] sm:$0xff]
      %v1299 = vld [vmem:[%s1268 + $0xf0] sm:$0xff]
      %v1300 = vld [vmem:[%s1268 + $0xf8] sm:$0xff]
      %vm1301 = vsmask.f32 7424
      %v1302 = vshrl.u32 %v1227, 16
      %v1304 = vshll.u32 %v1227, 16
      %v1306 = vrot.slane %v1304, 1
      %v1307 = vor.u32 %v1302, %v1306
      %v1309 = vshll.u32 %v1219, 16
      %v1311 = vrot.slane %v1309, 1
      %v1312 = vsel %vm1301, %v1307, %v1311
      %v1313 = vshrl.u32 %v1230, 16
      %v1315 = vshll.u32 %v1230, 16
      %v1317 = vrot.slane %v1315, 1
      %v1318 = vor.u32 %v1313, %v1317
      %v1320 = vshll.u32 %v1221, 16
      %v1322 = vrot.slane %v1320, 1
      %v1323 = vsel %vm1301, %v1318, %v1322
      %v1324 = vshrl.u32 %v1219, 16
      %v1326 = vor.u32 %v1324, %v1311
      %v1327 = vshll.u32 %v1233, 16
      %v1329 = vrot.slane %v1327, 1
      %v1330 = vsel %vm1301, %v1326, %v1329
      %v1331 = vshrl.u32 %v1221, 16
      %v1333 = vor.u32 %v1331, %v1322
      %v1334 = vshll.u32 %v1235, 16
      %v1336 = vrot.slane %v1334, 1
      %v1337 = vsel %vm1301, %v1333, %v1336
      %v1374 = vunpack.c.l.b16 %v1269
      %v1375 = vunpack.c.h.b16 %v1269
      %v1376 = vunpack.c.l.b16 %v1270
      %v1377 = vunpack.c.h.b16 %v1270
      %v1378 = vunpack.c.l.b16 %v1271
      %v1379 = vunpack.c.h.b16 %v1271
      %v1380 = vunpack.c.l.b16 %v1272
      %v1381 = vunpack.c.h.b16 %v1272
      %v1382 = vunpack.c.l.b16 %v1273
      %v1383 = vunpack.c.h.b16 %v1273
      %v1384 = vunpack.c.l.b16 %v1274
      %v1385 = vunpack.c.h.b16 %v1274
      %v1386 = vunpack.c.l.b16 %v1275
      %v1387 = vunpack.c.h.b16 %v1275
      %v1388 = vunpack.c.l.b16 %v1276
      %v1389 = vunpack.c.h.b16 %v1276
      %v1390 = vunpack.c.l.b16 %v1277
      %v1391 = vunpack.c.h.b16 %v1277
      %v1392 = vunpack.c.l.b16 %v1278
      %v1393 = vunpack.c.h.b16 %v1278
      %v1394 = vunpack.c.l.b16 %v1279
      %v1395 = vunpack.c.h.b16 %v1279
      %v1396 = vunpack.c.l.b16 %v1280
      %v1397 = vunpack.c.h.b16 %v1280
      %v1398 = vunpack.c.l.b16 %v1281
      %v1399 = vunpack.c.h.b16 %v1281
      %v1400 = vunpack.c.l.b16 %v1282
      %v1401 = vunpack.c.h.b16 %v1282
      %v1402 = vunpack.c.l.b16 %v1283
      %v1403 = vunpack.c.h.b16 %v1283
      %v1404 = vunpack.c.l.b16 %v1284
      %v1405 = vunpack.c.h.b16 %v1284
      %v1406 = vunpack.c.l.b16 %v1285
      %v1407 = vunpack.c.h.b16 %v1285
      %v1408 = vunpack.c.l.b16 %v1286
      %v1409 = vunpack.c.h.b16 %v1286
      %v1410 = vunpack.c.l.b16 %v1287
      %v1411 = vunpack.c.h.b16 %v1287
      %v1412 = vunpack.c.l.b16 %v1288
      %v1413 = vunpack.c.h.b16 %v1288
      %v1414 = vunpack.c.l.b16 %v1289
      %v1415 = vunpack.c.h.b16 %v1289
      %v1416 = vunpack.c.l.b16 %v1290
      %v1417 = vunpack.c.h.b16 %v1290
      %v1418 = vunpack.c.l.b16 %v1291
      %v1419 = vunpack.c.h.b16 %v1291
      %v1420 = vunpack.c.l.b16 %v1292
      %v1421 = vunpack.c.h.b16 %v1292
      %v1422 = vunpack.c.l.b16 %v1293
      %v1423 = vunpack.c.h.b16 %v1293
      %v1424 = vunpack.c.l.b16 %v1294
      %v1425 = vunpack.c.h.b16 %v1294
      %v1426 = vunpack.c.l.b16 %v1295
      %v1427 = vunpack.c.h.b16 %v1295
      %v1428 = vunpack.c.l.b16 %v1296
      %v1429 = vunpack.c.h.b16 %v1296
      %v1430 = vunpack.c.l.b16 %v1297
      %v1431 = vunpack.c.h.b16 %v1297
      %v1432 = vunpack.c.l.b16 %v1298
      %v1433 = vunpack.c.h.b16 %v1298
      %v1434 = vunpack.c.l.b16 %v1299
      %v1435 = vunpack.c.h.b16 %v1299
      %v1436 = vunpack.c.l.b16 %v1300
      %v1437 = vunpack.c.h.b16 %v1300
      %v1438 = vpack.c.b16 %v1376, %v1374
      %v1439 = vpack.c.b16 %v1377, %v1375
      %v1440 = vpack.c.b16 %v1380, %v1378
      %v1441 = vpack.c.b16 %v1381, %v1379
      %v1442 = vpack.c.b16 %v1384, %v1382
      %v1443 = vpack.c.b16 %v1385, %v1383
      %v1444 = vpack.c.b16 %v1388, %v1386
      %v1445 = vpack.c.b16 %v1389, %v1387
      %v1446 = vpack.c.b16 %v1392, %v1390
      %v1447 = vpack.c.b16 %v1393, %v1391
      %v1448 = vpack.c.b16 %v1396, %v1394
      %v1449 = vpack.c.b16 %v1397, %v1395
      %v1450 = vpack.c.b16 %v1400, %v1398
      %v1451 = vpack.c.b16 %v1401, %v1399
      %v1452 = vpack.c.b16 %v1404, %v1402
      %v1453 = vpack.c.b16 %v1405, %v1403
      %v1454 = vpack.c.b16 %v1408, %v1406
      %v1455 = vpack.c.b16 %v1409, %v1407
      %v1456 = vpack.c.b16 %v1412, %v1410
      %v1457 = vpack.c.b16 %v1413, %v1411
      %v1458 = vpack.c.b16 %v1416, %v1414
      %v1459 = vpack.c.b16 %v1417, %v1415
      %v1460 = vpack.c.b16 %v1420, %v1418
      %v1461 = vpack.c.b16 %v1421, %v1419
      %v1462 = vpack.c.b16 %v1424, %v1422
      %v1463 = vpack.c.b16 %v1425, %v1423
      %v1464 = vpack.c.b16 %v1428, %v1426
      %v1465 = vpack.c.b16 %v1429, %v1427
      %v1466 = vpack.c.b16 %v1432, %v1430
      %v1467 = vpack.c.b16 %v1433, %v1431
      %v1468 = vpack.c.b16 %v1436, %v1434
      %v1469 = vpack.c.b16 %v1437, %v1435
      %1502 = vmatpush.bf16.msra.mxu0 %v1452
      %1503 = vmatpush.bf16.msra.mxu0 %v1450
      %1504 = vmatpush.bf16.msra.mxu0 %v1448
      %1505 = vmatpush.bf16.msra.mxu0 %v1446
      %1506 = vmatpush.bf16.msra.mxu0 %v1444
      %1507 = vmatpush.bf16.msra.mxu0 %v1442
      %1508 = vmatpush.bf16.msra.mxu0 %v1440
      %1509 = vmatpush.bf16.msra.mxu0 %v1438
      %1510 = vmatmul.bf16.gmra.mxu0 %v1312
      %v1511 = vpop.f32.mrf.mxu0
      %v1512 = vadd.f32 0.0, %v1511
      %v1513 = vpop.f32.mrf.mxu0
      %v1514 = vadd.f32 0.0, %v1513
      %1515 = vmatmul.bf16.gmra.mxu0 %v1330
      %v1516 = vpop.f32.mrf.mxu0
      %v1517 = vadd.f32 0.0, %v1516
      %v1518 = vpop.f32.mrf.mxu0
      %v1519 = vadd.f32 0.0, %v1518
      %1520 = vdwg.mxu0
      %1521 = vmatpush.bf16.msra.mxu0 %v1468
      %1522 = vmatpush.bf16.msra.mxu0 %v1466
      %1523 = vmatpush.bf16.msra.mxu0 %v1464
      %1524 = vmatpush.bf16.msra.mxu0 %v1462
      %1525 = vmatpush.bf16.msra.mxu0 %v1460
      %1526 = vmatpush.bf16.msra.mxu0 %v1458
      %1527 = vmatpush.bf16.msra.mxu0 %v1456
      %1528 = vmatpush.bf16.msra.mxu0 %v1454
      %1529 = vmatmul.bf16.gmra.mxu0 %v1323
      %v1530 = vpop.f32.mrf.mxu0
      %v1531 = vadd.f32 %v1512, %v1530
      %v1532 = vpop.f32.mrf.mxu0
      %v1533 = vadd.f32 %v1514, %v1532
      %1534 = vmatmul.bf16.gmra.mxu0 %v1337
      %v1535 = vpop.f32.mrf.mxu0
      %v1536 = vadd.f32 %v1517, %v1535
      %v1537 = vpop.f32.mrf.mxu0
      %v1538 = vadd.f32 %v1519, %v1537
      %1539 = vdwg.mxu0
      %1540 = vmatpush.bf16.msra.mxu0 %v1453
      %1541 = vmatpush.bf16.msra.mxu0 %v1451
      %1542 = vmatpush.bf16.msra.mxu0 %v1449
      %1543 = vmatpush.bf16.msra.mxu0 %v1447
      %1544 = vmatpush.bf16.msra.mxu0 %v1445
      %1545 = vmatpush.bf16.msra.mxu0 %v1443
      %1546 = vmatpush.bf16.msra.mxu0 %v1441
      %1547 = vmatpush.bf16.msra.mxu0 %v1439
      %1548 = vmatmul.bf16.gmra.mxu0 %v1312
      %v1549 = vpop.f32.mrf.mxu0
      %v1550 = vadd.f32 0.0, %v1549
      %v1551 = vpop.f32.mrf.mxu0
      %v1552 = vadd.f32 0.0, %v1551
      %1553 = vmatmul.bf16.gmra.mxu0 %v1330
      %v1554 = vpop.f32.mrf.mxu0
      %v1555 = vadd.f32 0.0, %v1554
      %v1556 = vpop.f32.mrf.mxu0
      %v1557 = vadd.f32 0.0, %v1556
      %1558 = vdwg.mxu0
      %1559 = vmatpush.bf16.msra.mxu0 %v1469
      %1560 = vmatpush.bf16.msra.mxu0 %v1467
      %1561 = vmatpush.bf16.msra.mxu0 %v1465
      %1562 = vmatpush.bf16.msra.mxu0 %v1463
      %1563 = vmatpush.bf16.msra.mxu0 %v1461
      %1564 = vmatpush.bf16.msra.mxu0 %v1459
      %1565 = vmatpush.bf16.msra.mxu0 %v1457
      %1566 = vmatpush.bf16.msra.mxu0 %v1455
      %1567 = vmatmul.bf16.gmra.mxu0 %v1323
      %v1568 = vpop.f32.mrf.mxu0
      %v1569 = vadd.f32 %v1550, %v1568
      %v1570 = vpop.f32.mrf.mxu0
      %v1571 = vadd.f32 %v1552, %v1570
      %1572 = vmatmul.bf16.gmra.mxu0 %v1337
      %v1573 = vpop.f32.mrf.mxu0
      %v1574 = vadd.f32 %v1555, %v1573
      %v1575 = vpop.f32.mrf.mxu0
      %v1576 = vadd.f32 %v1557, %v1575
      %1577 = vdwg.mxu0
      %v1610 = vunpack.c.l.b16 %v1236
      %v1611 = vunpack.c.h.b16 %v1236
      %v1612 = vunpack.c.l.b16 %v1237
      %v1613 = vunpack.c.h.b16 %v1237
      %v1614 = vunpack.c.l.b16 %v1238
      %v1615 = vunpack.c.h.b16 %v1238
      %v1616 = vunpack.c.l.b16 %v1239
      %v1617 = vunpack.c.h.b16 %v1239
      %v1618 = vunpack.c.l.b16 %v1240
      %v1619 = vunpack.c.h.b16 %v1240
      %v1620 = vunpack.c.l.b16 %v1241
      %v1621 = vunpack.c.h.b16 %v1241
      %v1622 = vunpack.c.l.b16 %v1242
      %v1623 = vunpack.c.h.b16 %v1242
      %v1624 = vunpack.c.l.b16 %v1243
      %v1625 = vunpack.c.h.b16 %v1243
      %v1626 = vunpack.c.l.b16 %v1244
      %v1627 = vunpack.c.h.b16 %v1244
      %v1628 = vunpack.c.l.b16 %v1245
      %v1629 = vunpack.c.h.b16 %v1245
      %v1630 = vunpack.c.l.b16 %v1246
      %v1631 = vunpack.c.h.b16 %v1246
      %v1632 = vunpack.c.l.b16 %v1247
      %v1633 = vunpack.c.h.b16 %v1247
      %v1634 = vunpack.c.l.b16 %v1248
      %v1635 = vunpack.c.h.b16 %v1248
      %v1636 = vunpack.c.l.b16 %v1249
      %v1637 = vunpack.c.h.b16 %v1249
      %v1638 = vunpack.c.l.b16 %v1250
      %v1639 = vunpack.c.h.b16 %v1250
      %v1640 = vunpack.c.l.b16 %v1251
      %v1641 = vunpack.c.h.b16 %v1251
      %v1642 = vunpack.c.l.b16 %v1252
      %v1643 = vunpack.c.h.b16 %v1252
      %v1644 = vunpack.c.l.b16 %v1253
      %v1645 = vunpack.c.h.b16 %v1253
      %v1646 = vunpack.c.l.b16 %v1254
      %v1647 = vunpack.c.h.b16 %v1254
      %v1648 = vunpack.c.l.b16 %v1255
      %v1649 = vunpack.c.h.b16 %v1255
      %v1650 = vunpack.c.l.b16 %v1256
      %v1651 = vunpack.c.h.b16 %v1256
      %v1652 = vunpack.c.l.b16 %v1257
      %v1653 = vunpack.c.h.b16 %v1257
      %v1654 = vunpack.c.l.b16 %v1258
      %v1655 = vunpack.c.h.b16 %v1258
      %v1656 = vunpack.c.l.b16 %v1259
      %v1657 = vunpack.c.h.b16 %v1259
      %v1658 = vunpack.c.l.b16 %v1260
      %v1659 = vunpack.c.h.b16 %v1260
      %v1660 = vunpack.c.l.b16 %v1261
      %v1661 = vunpack.c.h.b16 %v1261
      %v1662 = vunpack.c.l.b16 %v1262
      %v1663 = vunpack.c.h.b16 %v1262
      %v1664 = vunpack.c.l.b16 %v1263
      %v1665 = vunpack.c.h.b16 %v1263
      %v1666 = vunpack.c.l.b16 %v1264
      %v1667 = vunpack.c.h.b16 %v1264
      %v1668 = vunpack.c.l.b16 %v1265
      %v1669 = vunpack.c.h.b16 %v1265
      %v1670 = vunpack.c.l.b16 %v1266
      %v1671 = vunpack.c.h.b16 %v1266
      %v1672 = vunpack.c.l.b16 %v1267
      %v1673 = vunpack.c.h.b16 %v1267
      %v1674 = vpack.c.b16 %v1612, %v1610
      %v1675 = vpack.c.b16 %v1613, %v1611
      %v1676 = vpack.c.b16 %v1616, %v1614
      %v1677 = vpack.c.b16 %v1617, %v1615
      %v1678 = vpack.c.b16 %v1620, %v1618
      %v1679 = vpack.c.b16 %v1621, %v1619
      %v1680 = vpack.c.b16 %v1624, %v1622
      %v1681 = vpack.c.b16 %v1625, %v1623
      %v1682 = vpack.c.b16 %v1628, %v1626
      %v1683 = vpack.c.b16 %v1629, %v1627
      %v1684 = vpack.c.b16 %v1632, %v1630
      %v1685 = vpack.c.b16 %v1633, %v1631
      %v1686 = vpack.c.b16 %v1636, %v1634
      %v1687 = vpack.c.b16 %v1637, %v1635
      %v1688 = vpack.c.b16 %v1640, %v1638
      %v1689 = vpack.c.b16 %v1641, %v1639
      %v1690 = vpack.c.b16 %v1644, %v1642
      %v1691 = vpack.c.b16 %v1645, %v1643
      %v1692 = vpack.c.b16 %v1648, %v1646
      %v1693 = vpack.c.b16 %v1649, %v1647
      %v1694 = vpack.c.b16 %v1652, %v1650
      %v1695 = vpack.c.b16 %v1653, %v1651
      %v1696 = vpack.c.b16 %v1656, %v1654
      %v1697 = vpack.c.b16 %v1657, %v1655
      %v1698 = vpack.c.b16 %v1660, %v1658
      %v1699 = vpack.c.b16 %v1661, %v1659
      %v1700 = vpack.c.b16 %v1664, %v1662
      %v1701 = vpack.c.b16 %v1665, %v1663
      %v1702 = vpack.c.b16 %v1668, %v1666
      %v1703 = vpack.c.b16 %v1669, %v1667
      %v1704 = vpack.c.b16 %v1672, %v1670
      %v1705 = vpack.c.b16 %v1673, %v1671
      %1738 = vmatpush.bf16.msra.mxu0 %v1688
      %1739 = vmatpush.bf16.msra.mxu0 %v1686
      %1740 = vmatpush.bf16.msra.mxu0 %v1684
      %1741 = vmatpush.bf16.msra.mxu0 %v1682
      %1742 = vmatpush.bf16.msra.mxu0 %v1680
      %1743 = vmatpush.bf16.msra.mxu0 %v1678
      %1744 = vmatpush.bf16.msra.mxu0 %v1676
      %1745 = vmatpush.bf16.msra.mxu0 %v1674
      %1746 = vmatmul.bf16.gmra.mxu0 %v1227
      %v1747 = vpop.f32.mrf.mxu0
      %v1748 = vadd.f32 %v1531, %v1747
      %v1749 = vpop.f32.mrf.mxu0
      %v1750 = vadd.f32 %v1533, %v1749
      %1751 = vmatmul.bf16.gmra.mxu0 %v1219
      %v1752 = vpop.f32.mrf.mxu0
      %v1753 = vadd.f32 %v1536, %v1752
      %v1754 = vpop.f32.mrf.mxu0
      %v1755 = vadd.f32 %v1538, %v1754
      %1756 = vdwg.mxu0
      %1757 = vmatpush.bf16.msra.mxu0 %v1704
      %1758 = vmatpush.bf16.msra.mxu0 %v1702
      %1759 = vmatpush.bf16.msra.mxu0 %v1700
      %1760 = vmatpush.bf16.msra.mxu0 %v1698
      %1761 = vmatpush.bf16.msra.mxu0 %v1696
      %1762 = vmatpush.bf16.msra.mxu0 %v1694
      %1763 = vmatpush.bf16.msra.mxu0 %v1692
      %1764 = vmatpush.bf16.msra.mxu0 %v1690
      %1765 = vmatmul.bf16.gmra.mxu0 %v1230
      %v1766 = vpop.f32.mrf.mxu0
      %v1767 = vadd.f32 %v1748, %v1766
      %v1768 = vpop.f32.mrf.mxu0
      %v1769 = vadd.f32 %v1750, %v1768
      %1770 = vmatmul.bf16.gmra.mxu0 %v1221
      %v1771 = vpop.f32.mrf.mxu0
      %v1772 = vadd.f32 %v1753, %v1771
      %v1773 = vpop.f32.mrf.mxu0
      %v1774 = vadd.f32 %v1755, %v1773
      %1775 = vdwg.mxu0
      %1776 = vmatpush.bf16.msra.mxu0 %v1689
      %1777 = vmatpush.bf16.msra.mxu0 %v1687
      %1778 = vmatpush.bf16.msra.mxu0 %v1685
      %1779 = vmatpush.bf16.msra.mxu0 %v1683
      %1780 = vmatpush.bf16.msra.mxu0 %v1681
      %1781 = vmatpush.bf16.msra.mxu0 %v1679
      %1782 = vmatpush.bf16.msra.mxu0 %v1677
      %1783 = vmatpush.bf16.msra.mxu0 %v1675
      %1784 = vmatmul.bf16.gmra.mxu0 %v1227
      %v1785 = vpop.f32.mrf.mxu0
      %v1786 = vadd.f32 %v1569, %v1785
      %v1787 = vpop.f32.mrf.mxu0
      %v1788 = vadd.f32 %v1571, %v1787
      %1789 = vmatmul.bf16.gmra.mxu0 %v1219
      %v1790 = vpop.f32.mrf.mxu0
      %v1791 = vadd.f32 %v1574, %v1790
      %v1792 = vpop.f32.mrf.mxu0
      %v1793 = vadd.f32 %v1576, %v1792
      %1794 = vdwg.mxu0
      %1795 = vmatpush.bf16.msra.mxu0 %v1705
      %1796 = vmatpush.bf16.msra.mxu0 %v1703
      %1797 = vmatpush.bf16.msra.mxu0 %v1701
      %1798 = vmatpush.bf16.msra.mxu0 %v1699
      %1799 = vmatpush.bf16.msra.mxu0 %v1697
      %1800 = vmatpush.bf16.msra.mxu0 %v1695
      %1801 = vmatpush.bf16.msra.mxu0 %v1693
      %1802 = vmatpush.bf16.msra.mxu0 %v1691
      %1803 = vmatmul.bf16.gmra.mxu0 %v1230
      %v1804 = vpop.f32.mrf.mxu0
      %v1805 = vadd.f32 %v1786, %v1804
      %v1806 = vpop.f32.mrf.mxu0
      %v1807 = vadd.f32 %v1788, %v1806
      %1808 = vmatmul.bf16.gmra.mxu0 %v1221
      %v1809 = vpop.f32.mrf.mxu0
      %v1810 = vadd.f32 %v1791, %v1809
      %v1811 = vpop.f32.mrf.mxu0
      %v1812 = vadd.f32 %v1793, %v1811
      %1813 = vdwg.mxu0
      %s1814 = scalar_lea.vmem %s4, 512
      %v1815 = vld [vmem:[%s1814] sm:$0xff]
      %v1816 = vld [vmem:[%s1814 + $0x8] sm:$0xff]
      %v1817 = vld [vmem:[%s1814 + $0x10] sm:$0xff]
      %v1818 = vld [vmem:[%s1814 + $0x18] sm:$0xff]
      %v1819 = vld [vmem:[%s1814 + $0x20] sm:$0xff]
      %v1820 = vld [vmem:[%s1814 + $0x28] sm:$0xff]
      %v1821 = vld [vmem:[%s1814 + $0x30] sm:$0xff]
      %v1822 = vld [vmem:[%s1814 + $0x38] sm:$0xff]
      %v1823 = vld [vmem:[%s1814 + $0x40] sm:$0xff]
      %v1824 = vld [vmem:[%s1814 + $0x48] sm:$0xff]
      %v1825 = vld [vmem:[%s1814 + $0x50] sm:$0xff]
      %v1826 = vld [vmem:[%s1814 + $0x58] sm:$0xff]
      %v1827 = vld [vmem:[%s1814 + $0x60] sm:$0xff]
      %v1828 = vld [vmem:[%s1814 + $0x68] sm:$0xff]
      %v1829 = vld [vmem:[%s1814 + $0x70] sm:$0xff]
      %v1830 = vld [vmem:[%s1814 + $0x78] sm:$0xff]
      %v1831 = vld [vmem:[%s1814 + $0x80] sm:$0xff]
      %v1832 = vld [vmem:[%s1814 + $0x88] sm:$0xff]
      %v1833 = vld [vmem:[%s1814 + $0x90] sm:$0xff]
      %v1834 = vld [vmem:[%s1814 + $0x98] sm:$0xff]
      %v1835 = vld [vmem:[%s1814 + $0xa0] sm:$0xff]
      %v1836 = vld [vmem:[%s1814 + $0xa8] sm:$0xff]
      %v1837 = vld [vmem:[%s1814 + $0xb0] sm:$0xff]
      %v1838 = vld [vmem:[%s1814 + $0xb8] sm:$0xff]
      %v1839 = vld [vmem:[%s1814 + $0xc0] sm:$0xff]
      %v1840 = vld [vmem:[%s1814 + $0xc8] sm:$0xff]
      %v1841 = vld [vmem:[%s1814 + $0xd0] sm:$0xff]
      %v1842 = vld [vmem:[%s1814 + $0xd8] sm:$0xff]
      %v1843 = vld [vmem:[%s1814 + $0xe0] sm:$0xff]
      %v1844 = vld [vmem:[%s1814 + $0xe8] sm:$0xff]
      %v1845 = vld [vmem:[%s1814 + $0xf0] sm:$0xff]
      %v1846 = vld [vmem:[%s1814 + $0xf8] sm:$0xff]
      %vm1851 = vcmask 1046528
      %v1852 = vrot.slane %v1227, 1
      %v1853 = vrot.slane %v1219, 1
      %v1854 = vsel %vm1851, %v1852, %v1853
      %v1855 = vrot.slane %v1230, 1
      %v1856 = vrot.slane %v1221, 1
      %v1857 = vsel %vm1851, %v1855, %v1856
      %v1858 = vrot.slane %v1233, 1
      %v1859 = vsel %vm1851, %v1853, %v1858
      %v1860 = vrot.slane %v1235, 1
      %v1861 = vsel %vm1851, %v1856, %v1860
      %v1898 = vunpack.c.l.b16 %v1815
      %v1899 = vunpack.c.h.b16 %v1815
      %v1900 = vunpack.c.l.b16 %v1816
      %v1901 = vunpack.c.h.b16 %v1816
      %v1902 = vunpack.c.l.b16 %v1817
      %v1903 = vunpack.c.h.b16 %v1817
      %v1904 = vunpack.c.l.b16 %v1818
      %v1905 = vunpack.c.h.b16 %v1818
      %v1906 = vunpack.c.l.b16 %v1819
      %v1907 = vunpack.c.h.b16 %v1819
      %v1908 = vunpack.c.l.b16 %v1820
      %v1909 = vunpack.c.h.b16 %v1820
      %v1910 = vunpack.c.l.b16 %v1821
      %v1911 = vunpack.c.h.b16 %v1821
      %v1912 = vunpack.c.l.b16 %v1822
      %v1913 = vunpack.c.h.b16 %v1822
      %v1914 = vunpack.c.l.b16 %v1823
      %v1915 = vunpack.c.h.b16 %v1823
      %v1916 = vunpack.c.l.b16 %v1824
      %v1917 = vunpack.c.h.b16 %v1824
      %v1918 = vunpack.c.l.b16 %v1825
      %v1919 = vunpack.c.h.b16 %v1825
      %v1920 = vunpack.c.l.b16 %v1826
      %v1921 = vunpack.c.h.b16 %v1826
      %v1922 = vunpack.c.l.b16 %v1827
      %v1923 = vunpack.c.h.b16 %v1827
      %v1924 = vunpack.c.l.b16 %v1828
      %v1925 = vunpack.c.h.b16 %v1828
      %v1926 = vunpack.c.l.b16 %v1829
      %v1927 = vunpack.c.h.b16 %v1829
      %v1928 = vunpack.c.l.b16 %v1830
      %v1929 = vunpack.c.h.b16 %v1830
      %v1930 = vunpack.c.l.b16 %v1831
      %v1931 = vunpack.c.h.b16 %v1831
      %v1932 = vunpack.c.l.b16 %v1832
      %v1933 = vunpack.c.h.b16 %v1832
      %v1934 = vunpack.c.l.b16 %v1833
      %v1935 = vunpack.c.h.b16 %v1833
      %v1936 = vunpack.c.l.b16 %v1834
      %v1937 = vunpack.c.h.b16 %v1834
      %v1938 = vunpack.c.l.b16 %v1835
      %v1939 = vunpack.c.h.b16 %v1835
      %v1940 = vunpack.c.l.b16 %v1836
      %v1941 = vunpack.c.h.b16 %v1836
      %v1942 = vunpack.c.l.b16 %v1837
      %v1943 = vunpack.c.h.b16 %v1837
      %v1944 = vunpack.c.l.b16 %v1838
      %v1945 = vunpack.c.h.b16 %v1838
      %v1946 = vunpack.c.l.b16 %v1839
      %v1947 = vunpack.c.h.b16 %v1839
      %v1948 = vunpack.c.l.b16 %v1840
      %v1949 = vunpack.c.h.b16 %v1840
      %v1950 = vunpack.c.l.b16 %v1841
      %v1951 = vunpack.c.h.b16 %v1841
      %v1952 = vunpack.c.l.b16 %v1842
      %v1953 = vunpack.c.h.b16 %v1842
      %v1954 = vunpack.c.l.b16 %v1843
      %v1955 = vunpack.c.h.b16 %v1843
      %v1956 = vunpack.c.l.b16 %v1844
      %v1957 = vunpack.c.h.b16 %v1844
      %v1958 = vunpack.c.l.b16 %v1845
      %v1959 = vunpack.c.h.b16 %v1845
      %v1960 = vunpack.c.l.b16 %v1846
      %v1961 = vunpack.c.h.b16 %v1846
      %v1962 = vpack.c.b16 %v1900, %v1898
      %v1963 = vpack.c.b16 %v1901, %v1899
      %v1964 = vpack.c.b16 %v1904, %v1902
      %v1965 = vpack.c.b16 %v1905, %v1903
      %v1966 = vpack.c.b16 %v1908, %v1906
      %v1967 = vpack.c.b16 %v1909, %v1907
      %v1968 = vpack.c.b16 %v1912, %v1910
      %v1969 = vpack.c.b16 %v1913, %v1911
      %v1970 = vpack.c.b16 %v1916, %v1914
      %v1971 = vpack.c.b16 %v1917, %v1915
      %v1972 = vpack.c.b16 %v1920, %v1918
      %v1973 = vpack.c.b16 %v1921, %v1919
      %v1974 = vpack.c.b16 %v1924, %v1922
      %v1975 = vpack.c.b16 %v1925, %v1923
      %v1976 = vpack.c.b16 %v1928, %v1926
      %v1977 = vpack.c.b16 %v1929, %v1927
      %v1978 = vpack.c.b16 %v1932, %v1930
      %v1979 = vpack.c.b16 %v1933, %v1931
      %v1980 = vpack.c.b16 %v1936, %v1934
      %v1981 = vpack.c.b16 %v1937, %v1935
      %v1982 = vpack.c.b16 %v1940, %v1938
      %v1983 = vpack.c.b16 %v1941, %v1939
      %v1984 = vpack.c.b16 %v1944, %v1942
      %v1985 = vpack.c.b16 %v1945, %v1943
      %v1986 = vpack.c.b16 %v1948, %v1946
      %v1987 = vpack.c.b16 %v1949, %v1947
      %v1988 = vpack.c.b16 %v1952, %v1950
      %v1989 = vpack.c.b16 %v1953, %v1951
      %v1990 = vpack.c.b16 %v1956, %v1954
      %v1991 = vpack.c.b16 %v1957, %v1955
      %v1992 = vpack.c.b16 %v1960, %v1958
      %v1993 = vpack.c.b16 %v1961, %v1959
      %2026 = vmatpush.bf16.msra.mxu0 %v1976
      %2027 = vmatpush.bf16.msra.mxu0 %v1974
      %2028 = vmatpush.bf16.msra.mxu0 %v1972
      %2029 = vmatpush.bf16.msra.mxu0 %v1970
      %2030 = vmatpush.bf16.msra.mxu0 %v1968
      %2031 = vmatpush.bf16.msra.mxu0 %v1966
      %2032 = vmatpush.bf16.msra.mxu0 %v1964
      %2033 = vmatpush.bf16.msra.mxu0 %v1962
      %2034 = vmatmul.bf16.gmra.mxu0 %v1854
      %v2035 = vpop.f32.mrf.mxu0
      %v2036 = vadd.f32 0.0, %v2035
      %v2037 = vpop.f32.mrf.mxu0
      %v2038 = vadd.f32 0.0, %v2037
      %2039 = vmatmul.bf16.gmra.mxu0 %v1859
      %v2040 = vpop.f32.mrf.mxu0
      %v2041 = vadd.f32 0.0, %v2040
      %v2042 = vpop.f32.mrf.mxu0
      %v2043 = vadd.f32 0.0, %v2042
      %2044 = vdwg.mxu0
      %2045 = vmatpush.bf16.msra.mxu0 %v1992
      %2046 = vmatpush.bf16.msra.mxu0 %v1990
      %2047 = vmatpush.bf16.msra.mxu0 %v1988
      %2048 = vmatpush.bf16.msra.mxu0 %v1986
      %2049 = vmatpush.bf16.msra.mxu0 %v1984
      %2050 = vmatpush.bf16.msra.mxu0 %v1982
      %2051 = vmatpush.bf16.msra.mxu0 %v1980
      %2052 = vmatpush.bf16.msra.mxu0 %v1978
      %2053 = vmatmul.bf16.gmra.mxu0 %v1857
      %v2054 = vpop.f32.mrf.mxu0
      %v2055 = vadd.f32 %v2036, %v2054
      %v2056 = vpop.f32.mrf.mxu0
      %v2057 = vadd.f32 %v2038, %v2056
      %2058 = vmatmul.bf16.gmra.mxu0 %v1861
      %v2059 = vpop.f32.mrf.mxu0
      %v2060 = vadd.f32 %v2041, %v2059
      %v2061 = vpop.f32.mrf.mxu0
      %v2062 = vadd.f32 %v2043, %v2061
      %2063 = vdwg.mxu0
      %2064 = vmatpush.bf16.msra.mxu0 %v1977
      %2065 = vmatpush.bf16.msra.mxu0 %v1975
      %2066 = vmatpush.bf16.msra.mxu0 %v1973
      %2067 = vmatpush.bf16.msra.mxu0 %v1971
      %2068 = vmatpush.bf16.msra.mxu0 %v1969
      %2069 = vmatpush.bf16.msra.mxu0 %v1967
      %2070 = vmatpush.bf16.msra.mxu0 %v1965
      %2071 = vmatpush.bf16.msra.mxu0 %v1963
      %2072 = vmatmul.bf16.gmra.mxu0 %v1854
      %v2073 = vpop.f32.mrf.mxu0
      %v2074 = vadd.f32 0.0, %v2073
      %v2075 = vpop.f32.mrf.mxu0
      %v2076 = vadd.f32 0.0, %v2075
      %2077 = vmatmul.bf16.gmra.mxu0 %v1859
      %v2078 = vpop.f32.mrf.mxu0
      %v2079 = vadd.f32 0.0, %v2078
      %v2080 = vpop.f32.mrf.mxu0
      %v2081 = vadd.f32 0.0, %v2080
      %2082 = vdwg.mxu0
      %2083 = vmatpush.bf16.msra.mxu0 %v1993
      %2084 = vmatpush.bf16.msra.mxu0 %v1991
      %2085 = vmatpush.bf16.msra.mxu0 %v1989
      %2086 = vmatpush.bf16.msra.mxu0 %v1987
      %2087 = vmatpush.bf16.msra.mxu0 %v1985
      %2088 = vmatpush.bf16.msra.mxu0 %v1983
      %2089 = vmatpush.bf16.msra.mxu0 %v1981
      %2090 = vmatpush.bf16.msra.mxu0 %v1979
      %2091 = vmatmul.bf16.gmra.mxu0 %v1857
      %v2092 = vpop.f32.mrf.mxu0
      %v2093 = vadd.f32 %v2074, %v2092
      %v2094 = vpop.f32.mrf.mxu0
      %v2095 = vadd.f32 %v2076, %v2094
      %2096 = vmatmul.bf16.gmra.mxu0 %v1861
      %v2097 = vpop.f32.mrf.mxu0
      %v2098 = vadd.f32 %v2079, %v2097
      %v2099 = vpop.f32.mrf.mxu0
      %v2100 = vadd.f32 %v2081, %v2099
      %2101 = vdwg.mxu0
      %v2102 = vadd.f32 %v1767, %v2055
      %v2103 = vadd.f32 %v1805, %v2093
      %v2104 = vadd.f32 %v1769, %v2057
      %v2105 = vadd.f32 %v1807, %v2095
      %v2106 = vadd.f32 %v1772, %v2060
      %v2107 = vadd.f32 %v1810, %v2098
      %v2108 = vadd.f32 %v1774, %v2062
      %v2109 = vadd.f32 %v1812, %v2100
      %s2110 = scalar_lea.vmem %s4, 768
      %v2111 = vld [vmem:[%s2110] sm:$0xff]
      %v2112 = vld [vmem:[%s2110 + $0x8] sm:$0xff]
      %v2113 = vld [vmem:[%s2110 + $0x10] sm:$0xff]
      %v2114 = vld [vmem:[%s2110 + $0x18] sm:$0xff]
      %v2115 = vld [vmem:[%s2110 + $0x20] sm:$0xff]
      %v2116 = vld [vmem:[%s2110 + $0x28] sm:$0xff]
      %v2117 = vld [vmem:[%s2110 + $0x30] sm:$0xff]
      %v2118 = vld [vmem:[%s2110 + $0x38] sm:$0xff]
      %v2119 = vld [vmem:[%s2110 + $0x40] sm:$0xff]
      %v2120 = vld [vmem:[%s2110 + $0x48] sm:$0xff]
      %v2121 = vld [vmem:[%s2110 + $0x50] sm:$0xff]
      %v2122 = vld [vmem:[%s2110 + $0x58] sm:$0xff]
      %v2123 = vld [vmem:[%s2110 + $0x60] sm:$0xff]
      %v2124 = vld [vmem:[%s2110 + $0x68] sm:$0xff]
      %v2125 = vld [vmem:[%s2110 + $0x70] sm:$0xff]
      %v2126 = vld [vmem:[%s2110 + $0x78] sm:$0xff]
      %v2127 = vld [vmem:[%s2110 + $0x80] sm:$0xff]
      %v2128 = vld [vmem:[%s2110 + $0x88] sm:$0xff]
      %v2129 = vld [vmem:[%s2110 + $0x90] sm:$0xff]
      %v2130 = vld [vmem:[%s2110 + $0x98] sm:$0xff]
      %v2131 = vld [vmem:[%s2110 + $0xa0] sm:$0xff]
      %v2132 = vld [vmem:[%s2110 + $0xa8] sm:$0xff]
      %v2133 = vld [vmem:[%s2110 + $0xb0] sm:$0xff]
      %v2134 = vld [vmem:[%s2110 + $0xb8] sm:$0xff]
      %v2135 = vld [vmem:[%s2110 + $0xc0] sm:$0xff]
      %v2136 = vld [vmem:[%s2110 + $0xc8] sm:$0xff]
      %v2137 = vld [vmem:[%s2110 + $0xd0] sm:$0xff]
      %v2138 = vld [vmem:[%s2110 + $0xd8] sm:$0xff]
      %v2139 = vld [vmem:[%s2110 + $0xe0] sm:$0xff]
      %v2140 = vld [vmem:[%s2110 + $0xe8] sm:$0xff]
      %v2141 = vld [vmem:[%s2110 + $0xf0] sm:$0xff]
      %v2142 = vld [vmem:[%s2110 + $0xf8] sm:$0xff]
      %vm2143 = vsmask.f32 6400
      %v2144 = vrot.slane %v1302, 1
      %v2145 = vrot.slane %v1304, 2
      %v2146 = vor.u32 %v2144, %v2145
      %v2147 = vrot.slane %v1324, 1
      %v2148 = vrot.slane %v1309, 2
      %v2149 = vor.u32 %v2147, %v2148
      %v2150 = vsel %vm2143, %v2146, %v2149
      %v2151 = vrot.slane %v1313, 1
      %v2152 = vrot.slane %v1315, 2
      %v2153 = vor.u32 %v2151, %v2152
      %v2154 = vrot.slane %v1331, 1
      %v2155 = vrot.slane %v1320, 2
      %v2156 = vor.u32 %v2154, %v2155
      %v2157 = vsel %vm2143, %v2153, %v2156
      %v2158 = vshrl.u32 %v1233, 16
      %v2160 = vrot.slane %v2158, 1
      %v2161 = vrot.slane %v1327, 2
      %v2162 = vor.u32 %v2160, %v2161
      %v2163 = vsel %vm2143, %v2149, %v2162
      %v2164 = vshrl.u32 %v1235, 16
      %v2166 = vrot.slane %v2164, 1
      %v2167 = vrot.slane %v1334, 2
      %v2168 = vor.u32 %v2166, %v2167
      %v2169 = vsel %vm2143, %v2156, %v2168
      %v2206 = vunpack.c.l.b16 %v2111
      %v2207 = vunpack.c.h.b16 %v2111
      %v2208 = vunpack.c.l.b16 %v2112
      %v2209 = vunpack.c.h.b16 %v2112
      %v2210 = vunpack.c.l.b16 %v2113
      %v2211 = vunpack.c.h.b16 %v2113
      %v2212 = vunpack.c.l.b16 %v2114
      %v2213 = vunpack.c.h.b16 %v2114
      %v2214 = vunpack.c.l.b16 %v2115
      %v2215 = vunpack.c.h.b16 %v2115
      %v2216 = vunpack.c.l.b16 %v2116
      %v2217 = vunpack.c.h.b16 %v2116
      %v2218 = vunpack.c.l.b16 %v2117
      %v2219 = vunpack.c.h.b16 %v2117
      %v2220 = vunpack.c.l.b16 %v2118
      %v2221 = vunpack.c.h.b16 %v2118
      %v2222 = vunpack.c.l.b16 %v2119
      %v2223 = vunpack.c.h.b16 %v2119
      %v2224 = vunpack.c.l.b16 %v2120
      %v2225 = vunpack.c.h.b16 %v2120
      %v2226 = vunpack.c.l.b16 %v2121
      %v2227 = vunpack.c.h.b16 %v2121
      %v2228 = vunpack.c.l.b16 %v2122
      %v2229 = vunpack.c.h.b16 %v2122
      %v2230 = vunpack.c.l.b16 %v2123
      %v2231 = vunpack.c.h.b16 %v2123
      %v2232 = vunpack.c.l.b16 %v2124
      %v2233 = vunpack.c.h.b16 %v2124
      %v2234 = vunpack.c.l.b16 %v2125
      %v2235 = vunpack.c.h.b16 %v2125
      %v2236 = vunpack.c.l.b16 %v2126
      %v2237 = vunpack.c.h.b16 %v2126
      %v2238 = vunpack.c.l.b16 %v2127
      %v2239 = vunpack.c.h.b16 %v2127
      %v2240 = vunpack.c.l.b16 %v2128
      %v2241 = vunpack.c.h.b16 %v2128
      %v2242 = vunpack.c.l.b16 %v2129
      %v2243 = vunpack.c.h.b16 %v2129
      %v2244 = vunpack.c.l.b16 %v2130
      %v2245 = vunpack.c.h.b16 %v2130
      %v2246 = vunpack.c.l.b16 %v2131
      %v2247 = vunpack.c.h.b16 %v2131
      %v2248 = vunpack.c.l.b16 %v2132
      %v2249 = vunpack.c.h.b16 %v2132
      %v2250 = vunpack.c.l.b16 %v2133
      %v2251 = vunpack.c.h.b16 %v2133
      %v2252 = vunpack.c.l.b16 %v2134
      %v2253 = vunpack.c.h.b16 %v2134
      %v2254 = vunpack.c.l.b16 %v2135
      %v2255 = vunpack.c.h.b16 %v2135
      %v2256 = vunpack.c.l.b16 %v2136
      %v2257 = vunpack.c.h.b16 %v2136
      %v2258 = vunpack.c.l.b16 %v2137
      %v2259 = vunpack.c.h.b16 %v2137
      %v2260 = vunpack.c.l.b16 %v2138
      %v2261 = vunpack.c.h.b16 %v2138
      %v2262 = vunpack.c.l.b16 %v2139
      %v2263 = vunpack.c.h.b16 %v2139
      %v2264 = vunpack.c.l.b16 %v2140
      %v2265 = vunpack.c.h.b16 %v2140
      %v2266 = vunpack.c.l.b16 %v2141
      %v2267 = vunpack.c.h.b16 %v2141
      %v2268 = vunpack.c.l.b16 %v2142
      %v2269 = vunpack.c.h.b16 %v2142
      %v2270 = vpack.c.b16 %v2208, %v2206
      %v2271 = vpack.c.b16 %v2209, %v2207
      %v2272 = vpack.c.b16 %v2212, %v2210
      %v2273 = vpack.c.b16 %v2213, %v2211
      %v2274 = vpack.c.b16 %v2216, %v2214
      %v2275 = vpack.c.b16 %v2217, %v2215
      %v2276 = vpack.c.b16 %v2220, %v2218
      %v2277 = vpack.c.b16 %v2221, %v2219
      %v2278 = vpack.c.b16 %v2224, %v2222
      %v2279 = vpack.c.b16 %v2225, %v2223
      %v2280 = vpack.c.b16 %v2228, %v2226
      %v2281 = vpack.c.b16 %v2229, %v2227
      %v2282 = vpack.c.b16 %v2232, %v2230
      %v2283 = vpack.c.b16 %v2233, %v2231
      %v2284 = vpack.c.b16 %v2236, %v2234
      %v2285 = vpack.c.b16 %v2237, %v2235
      %v2286 = vpack.c.b16 %v2240, %v2238
      %v2287 = vpack.c.b16 %v2241, %v2239
      %v2288 = vpack.c.b16 %v2244, %v2242
      %v2289 = vpack.c.b16 %v2245, %v2243
      %v2290 = vpack.c.b16 %v2248, %v2246
      %v2291 = vpack.c.b16 %v2249, %v2247
      %v2292 = vpack.c.b16 %v2252, %v2250
      %v2293 = vpack.c.b16 %v2253, %v2251
      %v2294 = vpack.c.b16 %v2256, %v2254
      %v2295 = vpack.c.b16 %v2257, %v2255
      %v2296 = vpack.c.b16 %v2260, %v2258
      %v2297 = vpack.c.b16 %v2261, %v2259
      %v2298 = vpack.c.b16 %v2264, %v2262
      %v2299 = vpack.c.b16 %v2265, %v2263
      %v2300 = vpack.c.b16 %v2268, %v2266
      %v2301 = vpack.c.b16 %v2269, %v2267
      %2334 = vmatpush.bf16.msra.mxu0 %v2284
      %2335 = vmatpush.bf16.msra.mxu0 %v2282
      %2336 = vmatpush.bf16.msra.mxu0 %v2280
      %2337 = vmatpush.bf16.msra.mxu0 %v2278
      %2338 = vmatpush.bf16.msra.mxu0 %v2276
      %2339 = vmatpush.bf16.msra.mxu0 %v2274
      %2340 = vmatpush.bf16.msra.mxu0 %v2272
      %2341 = vmatpush.bf16.msra.mxu0 %v2270
      %2342 = vmatmul.bf16.gmra.mxu0 %v2150
      %v2343 = vpop.f32.mrf.mxu0
      %v2344 = vadd.f32 0.0, %v2343
      %v2345 = vpop.f32.mrf.mxu0
      %v2346 = vadd.f32 0.0, %v2345
      %2347 = vmatmul.bf16.gmra.mxu0 %v2163
      %v2348 = vpop.f32.mrf.mxu0
      %v2349 = vadd.f32 0.0, %v2348
      %v2350 = vpop.f32.mrf.mxu0
      %v2351 = vadd.f32 0.0, %v2350
      %2352 = vdwg.mxu0
      %2353 = vmatpush.bf16.msra.mxu0 %v2300
      %2354 = vmatpush.bf16.msra.mxu0 %v2298
      %2355 = vmatpush.bf16.msra.mxu0 %v2296
      %2356 = vmatpush.bf16.msra.mxu0 %v2294
      %2357 = vmatpush.bf16.msra.mxu0 %v2292
      %2358 = vmatpush.bf16.msra.mxu0 %v2290
      %2359 = vmatpush.bf16.msra.mxu0 %v2288
      %2360 = vmatpush.bf16.msra.mxu0 %v2286
      %2361 = vmatmul.bf16.gmra.mxu0 %v2157
      %v2362 = vpop.f32.mrf.mxu0
      %v2363 = vadd.f32 %v2344, %v2362
      %v2364 = vpop.f32.mrf.mxu0
      %v2365 = vadd.f32 %v2346, %v2364
      %2366 = vmatmul.bf16.gmra.mxu0 %v2169
      %v2367 = vpop.f32.mrf.mxu0
      %v2368 = vadd.f32 %v2349, %v2367
      %v2369 = vpop.f32.mrf.mxu0
      %v2370 = vadd.f32 %v2351, %v2369
      %2371 = vdwg.mxu0
      %2372 = vmatpush.bf16.msra.mxu0 %v2285
      %2373 = vmatpush.bf16.msra.mxu0 %v2283
      %2374 = vmatpush.bf16.msra.mxu0 %v2281
      %2375 = vmatpush.bf16.msra.mxu0 %v2279
      %2376 = vmatpush.bf16.msra.mxu0 %v2277
      %2377 = vmatpush.bf16.msra.mxu0 %v2275
      %2378 = vmatpush.bf16.msra.mxu0 %v2273
      %2379 = vmatpush.bf16.msra.mxu0 %v2271
      %2380 = vmatmul.bf16.gmra.mxu0 %v2150
      %v2381 = vpop.f32.mrf.mxu0
      %v2382 = vadd.f32 0.0, %v2381
      %v2383 = vpop.f32.mrf.mxu0
      %v2384 = vadd.f32 0.0, %v2383
      %2385 = vmatmul.bf16.gmra.mxu0 %v2163
      %v2386 = vpop.f32.mrf.mxu0
      %v2387 = vadd.f32 0.0, %v2386
      %v2388 = vpop.f32.mrf.mxu0
      %v2389 = vadd.f32 0.0, %v2388
      %2390 = vdwg.mxu0
      %2391 = vmatpush.bf16.msra.mxu0 %v2301
      %2392 = vmatpush.bf16.msra.mxu0 %v2299
      %2393 = vmatpush.bf16.msra.mxu0 %v2297
      %2394 = vmatpush.bf16.msra.mxu0 %v2295
      %2395 = vmatpush.bf16.msra.mxu0 %v2293
      %2396 = vmatpush.bf16.msra.mxu0 %v2291
      %2397 = vmatpush.bf16.msra.mxu0 %v2289
      %2398 = vmatpush.bf16.msra.mxu0 %v2287
      %2399 = vmatmul.bf16.gmra.mxu0 %v2157
      %v2400 = vpop.f32.mrf.mxu0
      %v2401 = vadd.f32 %v2382, %v2400
      %v2402 = vpop.f32.mrf.mxu0
      %v2403 = vadd.f32 %v2384, %v2402
      %2404 = vmatmul.bf16.gmra.mxu0 %v2169
      %v2405 = vpop.f32.mrf.mxu0
      %v2406 = vadd.f32 %v2387, %v2405
      %v2407 = vpop.f32.mrf.mxu0
      %v2408 = vadd.f32 %v2389, %v2407
      %2409 = vdwg.mxu0
      %v2410 = vadd.f32 %v2102, %v2363
      %v2411 = vadd.f32 %v2103, %v2401
      %v2412 = vadd.f32 %v2104, %v2365
      %v2413 = vadd.f32 %v2105, %v2403
      %v2414 = vadd.f32 %v2106, %v2368
      %v2415 = vadd.f32 %v2107, %v2406
      %v2416 = vadd.f32 %v2108, %v2370
      %v2417 = vadd.f32 %v2109, %v2408
      %s2418 = scalar_lea.vmem %s4, 1024
      %v2419 = vld [vmem:[%s2418] sm:$0xff]
      %v2420 = vld [vmem:[%s2418 + $0x8] sm:$0xff]
      %v2421 = vld [vmem:[%s2418 + $0x10] sm:$0xff]
      %v2422 = vld [vmem:[%s2418 + $0x18] sm:$0xff]
      %v2423 = vld [vmem:[%s2418 + $0x20] sm:$0xff]
      %v2424 = vld [vmem:[%s2418 + $0x28] sm:$0xff]
      %v2425 = vld [vmem:[%s2418 + $0x30] sm:$0xff]
      %v2426 = vld [vmem:[%s2418 + $0x38] sm:$0xff]
      %v2427 = vld [vmem:[%s2418 + $0x40] sm:$0xff]
      %v2428 = vld [vmem:[%s2418 + $0x48] sm:$0xff]
      %v2429 = vld [vmem:[%s2418 + $0x50] sm:$0xff]
      %v2430 = vld [vmem:[%s2418 + $0x58] sm:$0xff]
      %v2431 = vld [vmem:[%s2418 + $0x60] sm:$0xff]
      %v2432 = vld [vmem:[%s2418 + $0x68] sm:$0xff]
      %v2433 = vld [vmem:[%s2418 + $0x70] sm:$0xff]
      %v2434 = vld [vmem:[%s2418 + $0x78] sm:$0xff]
      %v2435 = vld [vmem:[%s2418 + $0x80] sm:$0xff]
      %v2436 = vld [vmem:[%s2418 + $0x88] sm:$0xff]
      %v2437 = vld [vmem:[%s2418 + $0x90] sm:$0xff]
      %v2438 = vld [vmem:[%s2418 + $0x98] sm:$0xff]
      %v2439 = vld [vmem:[%s2418 + $0xa0] sm:$0xff]
      %v2440 = vld [vmem:[%s2418 + $0xa8] sm:$0xff]
      %v2441 = vld [vmem:[%s2418 + $0xb0] sm:$0xff]
      %v2442 = vld [vmem:[%s2418 + $0xb8] sm:$0xff]
      %v2443 = vld [vmem:[%s2418 + $0xc0] sm:$0xff]
      %v2444 = vld [vmem:[%s2418 + $0xc8] sm:$0xff]
      %v2445 = vld [vmem:[%s2418 + $0xd0] sm:$0xff]
      %v2446 = vld [vmem:[%s2418 + $0xd8] sm:$0xff]
      %v2447 = vld [vmem:[%s2418 + $0xe0] sm:$0xff]
      %v2448 = vld [vmem:[%s2418 + $0xe8] sm:$0xff]
      %v2449 = vld [vmem:[%s2418 + $0xf0] sm:$0xff]
      %v2450 = vld [vmem:[%s2418 + $0xf8] sm:$0xff]
      %vm2451 = vcmask 1045504
      %v2452 = vrot.slane %v1227, 2
      %v2453 = vrot.slane %v1219, 2
      %v2454 = vsel %vm2451, %v2452, %v2453
      %v2455 = vrot.slane %v1230, 2
      %v2456 = vrot.slane %v1221, 2
      %v2457 = vsel %vm2451, %v2455, %v2456
      %v2458 = vrot.slane %v1233, 2
      %v2459 = vsel %vm2451, %v2453, %v2458
      %v2460 = vrot.slane %v1235, 2
      %v2461 = vsel %vm2451, %v2456, %v2460
      %v2498 = vunpack.c.l.b16 %v2419
      %v2499 = vunpack.c.h.b16 %v2419
      %v2500 = vunpack.c.l.b16 %v2420
      %v2501 = vunpack.c.h.b16 %v2420
      %v2502 = vunpack.c.l.b16 %v2421
      %v2503 = vunpack.c.h.b16 %v2421
      %v2504 = vunpack.c.l.b16 %v2422
      %v2505 = vunpack.c.h.b16 %v2422
      %v2506 = vunpack.c.l.b16 %v2423
      %v2507 = vunpack.c.h.b16 %v2423
      %v2508 = vunpack.c.l.b16 %v2424
      %v2509 = vunpack.c.h.b16 %v2424
      %v2510 = vunpack.c.l.b16 %v2425
      %v2511 = vunpack.c.h.b16 %v2425
      %v2512 = vunpack.c.l.b16 %v2426
      %v2513 = vunpack.c.h.b16 %v2426
      %v2514 = vunpack.c.l.b16 %v2427
      %v2515 = vunpack.c.h.b16 %v2427
      %v2516 = vunpack.c.l.b16 %v2428
      %v2517 = vunpack.c.h.b16 %v2428
      %v2518 = vunpack.c.l.b16 %v2429
      %v2519 = vunpack.c.h.b16 %v2429
      %v2520 = vunpack.c.l.b16 %v2430
      %v2521 = vunpack.c.h.b16 %v2430
      %v2522 = vunpack.c.l.b16 %v2431
      %v2523 = vunpack.c.h.b16 %v2431
      %v2524 = vunpack.c.l.b16 %v2432
      %v2525 = vunpack.c.h.b16 %v2432
      %v2526 = vunpack.c.l.b16 %v2433
      %v2527 = vunpack.c.h.b16 %v2433
      %v2528 = vunpack.c.l.b16 %v2434
      %v2529 = vunpack.c.h.b16 %v2434
      %v2530 = vunpack.c.l.b16 %v2435
      %v2531 = vunpack.c.h.b16 %v2435
      %v2532 = vunpack.c.l.b16 %v2436
      %v2533 = vunpack.c.h.b16 %v2436
      %v2534 = vunpack.c.l.b16 %v2437
      %v2535 = vunpack.c.h.b16 %v2437
      %v2536 = vunpack.c.l.b16 %v2438
      %v2537 = vunpack.c.h.b16 %v2438
      %v2538 = vunpack.c.l.b16 %v2439
      %v2539 = vunpack.c.h.b16 %v2439
      %v2540 = vunpack.c.l.b16 %v2440
      %v2541 = vunpack.c.h.b16 %v2440
      %v2542 = vunpack.c.l.b16 %v2441
      %v2543 = vunpack.c.h.b16 %v2441
      %v2544 = vunpack.c.l.b16 %v2442
      %v2545 = vunpack.c.h.b16 %v2442
      %v2546 = vunpack.c.l.b16 %v2443
      %v2547 = vunpack.c.h.b16 %v2443
      %v2548 = vunpack.c.l.b16 %v2444
      %v2549 = vunpack.c.h.b16 %v2444
      %v2550 = vunpack.c.l.b16 %v2445
      %v2551 = vunpack.c.h.b16 %v2445
      %v2552 = vunpack.c.l.b16 %v2446
      %v2553 = vunpack.c.h.b16 %v2446
      %v2554 = vunpack.c.l.b16 %v2447
      %v2555 = vunpack.c.h.b16 %v2447
      %v2556 = vunpack.c.l.b16 %v2448
      %v2557 = vunpack.c.h.b16 %v2448
      %v2558 = vunpack.c.l.b16 %v2449
      %v2559 = vunpack.c.h.b16 %v2449
      %v2560 = vunpack.c.l.b16 %v2450
      %v2561 = vunpack.c.h.b16 %v2450
      %v2562 = vpack.c.b16 %v2500, %v2498
      %v2563 = vpack.c.b16 %v2501, %v2499
      %v2564 = vpack.c.b16 %v2504, %v2502
      %v2565 = vpack.c.b16 %v2505, %v2503
      %v2566 = vpack.c.b16 %v2508, %v2506
      %v2567 = vpack.c.b16 %v2509, %v2507
      %v2568 = vpack.c.b16 %v2512, %v2510
      %v2569 = vpack.c.b16 %v2513, %v2511
      %v2570 = vpack.c.b16 %v2516, %v2514
      %v2571 = vpack.c.b16 %v2517, %v2515
      %v2572 = vpack.c.b16 %v2520, %v2518
      %v2573 = vpack.c.b16 %v2521, %v2519
      %v2574 = vpack.c.b16 %v2524, %v2522
      %v2575 = vpack.c.b16 %v2525, %v2523
      %v2576 = vpack.c.b16 %v2528, %v2526
      %v2577 = vpack.c.b16 %v2529, %v2527
      %v2578 = vpack.c.b16 %v2532, %v2530
      %v2579 = vpack.c.b16 %v2533, %v2531
      %v2580 = vpack.c.b16 %v2536, %v2534
      %v2581 = vpack.c.b16 %v2537, %v2535
      %v2582 = vpack.c.b16 %v2540, %v2538
      %v2583 = vpack.c.b16 %v2541, %v2539
      %v2584 = vpack.c.b16 %v2544, %v2542
      %v2585 = vpack.c.b16 %v2545, %v2543
      %v2586 = vpack.c.b16 %v2548, %v2546
      %v2587 = vpack.c.b16 %v2549, %v2547
      %v2588 = vpack.c.b16 %v2552, %v2550
      %v2589 = vpack.c.b16 %v2553, %v2551
      %v2590 = vpack.c.b16 %v2556, %v2554
      %v2591 = vpack.c.b16 %v2557, %v2555
      %v2592 = vpack.c.b16 %v2560, %v2558
      %v2593 = vpack.c.b16 %v2561, %v2559
      %2626 = vmatpush.bf16.msra.mxu0 %v2576
      %2627 = vmatpush.bf16.msra.mxu0 %v2574
      %2628 = vmatpush.bf16.msra.mxu0 %v2572
      %2629 = vmatpush.bf16.msra.mxu0 %v2570
      %2630 = vmatpush.bf16.msra.mxu0 %v2568
      %2631 = vmatpush.bf16.msra.mxu0 %v2566
      %2632 = vmatpush.bf16.msra.mxu0 %v2564
      %2633 = vmatpush.bf16.msra.mxu0 %v2562
      %2634 = vmatmul.bf16.gmra.mxu0 %v2454
      %v2635 = vpop.f32.mrf.mxu0
      %v2636 = vadd.f32 0.0, %v2635
      %v2637 = vpop.f32.mrf.mxu0
      %v2638 = vadd.f32 0.0, %v2637
      %2639 = vmatmul.bf16.gmra.mxu0 %v2459
      %v2640 = vpop.f32.mrf.mxu0
      %v2641 = vadd.f32 0.0, %v2640
      %v2642 = vpop.f32.mrf.mxu0
      %v2643 = vadd.f32 0.0, %v2642
      %2644 = vdwg.mxu0
      %2645 = vmatpush.bf16.msra.mxu0 %v2592
      %2646 = vmatpush.bf16.msra.mxu0 %v2590
      %2647 = vmatpush.bf16.msra.mxu0 %v2588
      %2648 = vmatpush.bf16.msra.mxu0 %v2586
      %2649 = vmatpush.bf16.msra.mxu0 %v2584
      %2650 = vmatpush.bf16.msra.mxu0 %v2582
      %2651 = vmatpush.bf16.msra.mxu0 %v2580
      %2652 = vmatpush.bf16.msra.mxu0 %v2578
      %2653 = vmatmul.bf16.gmra.mxu0 %v2457
      %v2654 = vpop.f32.mrf.mxu0
      %v2655 = vadd.f32 %v2636, %v2654
      %v2656 = vpop.f32.mrf.mxu0
      %v2657 = vadd.f32 %v2638, %v2656
      %2658 = vmatmul.bf16.gmra.mxu0 %v2461
      %v2659 = vpop.f32.mrf.mxu0
      %v2660 = vadd.f32 %v2641, %v2659
      %v2661 = vpop.f32.mrf.mxu0
      %v2662 = vadd.f32 %v2643, %v2661
      %2663 = vdwg.mxu0
      %2664 = vmatpush.bf16.msra.mxu0 %v2577
      %2665 = vmatpush.bf16.msra.mxu0 %v2575
      %2666 = vmatpush.bf16.msra.mxu0 %v2573
      %2667 = vmatpush.bf16.msra.mxu0 %v2571
      %2668 = vmatpush.bf16.msra.mxu0 %v2569
      %2669 = vmatpush.bf16.msra.mxu0 %v2567
      %2670 = vmatpush.bf16.msra.mxu0 %v2565
      %2671 = vmatpush.bf16.msra.mxu0 %v2563
      %2672 = vmatmul.bf16.gmra.mxu0 %v2454
      %v2673 = vpop.f32.mrf.mxu0
      %v2674 = vadd.f32 0.0, %v2673
      %v2675 = vpop.f32.mrf.mxu0
      %v2676 = vadd.f32 0.0, %v2675
      %2677 = vmatmul.bf16.gmra.mxu0 %v2459
      %v2678 = vpop.f32.mrf.mxu0
      %v2679 = vadd.f32 0.0, %v2678
      %v2680 = vpop.f32.mrf.mxu0
      %v2681 = vadd.f32 0.0, %v2680
      %2682 = vdwg.mxu0
      %2683 = vmatpush.bf16.msra.mxu0 %v2593
      %2684 = vmatpush.bf16.msra.mxu0 %v2591
      %2685 = vmatpush.bf16.msra.mxu0 %v2589
      %2686 = vmatpush.bf16.msra.mxu0 %v2587
      %2687 = vmatpush.bf16.msra.mxu0 %v2585
      %2688 = vmatpush.bf16.msra.mxu0 %v2583
      %2689 = vmatpush.bf16.msra.mxu0 %v2581
      %2690 = vmatpush.bf16.msra.mxu0 %v2579
      %2691 = vmatmul.bf16.gmra.mxu0 %v2457
      %v2692 = vpop.f32.mrf.mxu0
      %v2693 = vadd.f32 %v2674, %v2692
      %v2694 = vpop.f32.mrf.mxu0
      %v2695 = vadd.f32 %v2676, %v2694
      %2696 = vmatmul.bf16.gmra.mxu0 %v2461
      %v2697 = vpop.f32.mrf.mxu0
      %v2698 = vadd.f32 %v2679, %v2697
      %v2699 = vpop.f32.mrf.mxu0
      %v2700 = vadd.f32 %v2681, %v2699
      %2701 = vdwg.mxu0
      %v2702 = vadd.f32 %v2410, %v2655
      %v2703 = vadd.f32 %v2411, %v2693
      %v2704 = vadd.f32 %v2412, %v2657
      %v2705 = vadd.f32 %v2413, %v2695
      %v2706 = vadd.f32 %v2414, %v2660
      %v2707 = vadd.f32 %v2415, %v2698
      %v2708 = vadd.f32 %v2416, %v2662
      %v2709 = vadd.f32 %v2417, %v2700
      %v2710 = vld [vmem:[%s355] sm:$0xff]
      %v2711 = vld [vmem:[%s355 + $0x8] sm:$0xff]
      %v2712 = vld [vmem:[%s355 + $0x10] sm:$0xff]
      %v2713 = vld [vmem:[%s355 + $0x18] sm:$0xff]
      %v2714 = vpack.c.bf16 %v2710, %v2710
      %v2715 = vpack.c.bf16 %v2711, %v2711
      %v2716 = vpack.c.bf16 %v2712, %v2712
      %v2717 = vpack.c.bf16 %v2713, %v2713
      %v2722 = vunpack.c.l.b16 %v2714
      %v2723 = vunpack.c.l.b16 %v2715
      %v2724 = vunpack.c.l.b16 %v2716
      %v2725 = vunpack.c.l.b16 %v2717
      %v2726 = vpack.c.b16 %v2723, %v2722
      %v2727 = vpack.c.b16 %v2725, %v2724
      %v2728 = vrot.slane %v2726, 7
      %v2729 = vrot.slane %v2727, 7
      %v2730 = vsel %vm1215, %v2728, %v2729
      %v2732 = vsel %vm1224, 0, %v2728
      %v2734 = vsel %vm1224, %v2729, 0
      %v2735 = vld [vmem:[%s5] sm:$0xff]
      %v2736 = vld [vmem:[%s5 + $0x8] sm:$0xff]
      %v2737 = vld [vmem:[%s5 + $0x10] sm:$0xff]
      %v2738 = vld [vmem:[%s5 + $0x18] sm:$0xff]
      %v2743 = vunpack.c.l.b16 %v2735
      %v2744 = vunpack.c.h.b16 %v2735
      %v2745 = vunpack.c.l.b16 %v2736
      %v2746 = vunpack.c.h.b16 %v2736
      %v2747 = vunpack.c.l.b16 %v2737
      %v2748 = vunpack.c.h.b16 %v2737
      %v2749 = vunpack.c.l.b16 %v2738
      %v2750 = vunpack.c.h.b16 %v2738
      %v2751 = vpack.c.b16 %v2745, %v2743
      %v2752 = vpack.c.b16 %v2746, %v2744
      %v2753 = vpack.c.b16 %v2749, %v2747
      %v2754 = vpack.c.b16 %v2750, %v2748
      %v2759 = vsel %vm1150, %v2732, 0
      %v2762 = vsel %vm1150, %v2730, 0
      %2764 = vmatpush.bf16.msra.mxu0 0
      %2765 = vmatpush.bf16.msra.mxu0 0
      %2766 = vmatpush.bf16.msra.mxu0 0
      %2767 = vmatpush.bf16.msra.mxu0 0
      %2768 = vmatpush.bf16.msra.mxu0 0
      %2769 = vmatpush.bf16.msra.mxu0 0
      %2770 = vmatpush.bf16.msra.mxu0 %v2753
      %2771 = vmatpush.bf16.msra.mxu0 %v2751
      %2772 = vmatmul.bf16.gmra.mxu0 %v2759
      %v2773 = vpop.f32.mrf.mxu0
      %v2774 = vadd.f32 0.0, %v2773
      %v2775 = vpop.f32.mrf.mxu0
      %v2776 = vadd.f32 0.0, %v2775
      %2777 = vmatmul.bf16.gmra.mxu0 %v2762
      %v2778 = vpop.f32.mrf.mxu0
      %v2779 = vadd.f32 0.0, %v2778
      %v2780 = vpop.f32.mrf.mxu0
      %v2781 = vadd.f32 0.0, %v2780
      %2782 = vdwg.mxu0
      %2783 = vmatpush.bf16.msra.mxu0 0
      %2784 = vmatpush.bf16.msra.mxu0 0
      %2785 = vmatpush.bf16.msra.mxu0 0
      %2786 = vmatpush.bf16.msra.mxu0 0
      %2787 = vmatpush.bf16.msra.mxu0 0
      %2788 = vmatpush.bf16.msra.mxu0 0
      %2789 = vmatpush.bf16.msra.mxu0 %v2754
      %2790 = vmatpush.bf16.msra.mxu0 %v2752
      %2791 = vmatmul.bf16.gmra.mxu0 %v2759
      %v2792 = vpop.f32.mrf.mxu0
      %v2793 = vadd.f32 0.0, %v2792
      %v2794 = vpop.f32.mrf.mxu0
      %v2795 = vadd.f32 0.0, %v2794
      %2796 = vmatmul.bf16.gmra.mxu0 %v2762
      %v2797 = vpop.f32.mrf.mxu0
      %v2798 = vadd.f32 0.0, %v2797
      %v2799 = vpop.f32.mrf.mxu0
      %v2800 = vadd.f32 0.0, %v2799
      %2801 = vdwg.mxu0
      %v2802 = vadd.f32 %v2702, %v2774
      %v2803 = vadd.f32 %v2703, %v2793
      %v2804 = vadd.f32 %v2704, %v2776
      %v2805 = vadd.f32 %v2705, %v2795
      %v2806 = vadd.f32 %v2706, %v2779
      %v2807 = vadd.f32 %v2707, %v2798
      %v2808 = vadd.f32 %v2708, %v2781
      %v2809 = vadd.f32 %v2709, %v2800
      %s2810 = scalar_lea.vmem %s5, 128
      %v2811 = vld [vmem:[%s2810] sm:$0xff]
      %v2812 = vld [vmem:[%s2810 + $0x8] sm:$0xff]
      %v2813 = vld [vmem:[%s2810 + $0x10] sm:$0xff]
      %v2814 = vld [vmem:[%s2810 + $0x18] sm:$0xff]
      %v2815 = vshrl.u32 %v2732, 16
      %v2817 = vshll.u32 %v2732, 16
      %v2819 = vrot.slane %v2817, 1
      %v2820 = vor.u32 %v2815, %v2819
      %v2821 = vshll.u32 %v2730, 16
      %v2823 = vrot.slane %v2821, 1
      %v2824 = vsel %vm1301, %v2820, %v2823
      %v2825 = vshrl.u32 %v2730, 16
      %v2827 = vor.u32 %v2825, %v2823
      %v2828 = vshll.u32 %v2734, 16
      %v2830 = vrot.slane %v2828, 1
      %v2831 = vsel %vm1301, %v2827, %v2830
      %v2836 = vunpack.c.l.b16 %v2811
      %v2837 = vunpack.c.h.b16 %v2811
      %v2838 = vunpack.c.l.b16 %v2812
      %v2839 = vunpack.c.h.b16 %v2812
      %v2840 = vunpack.c.l.b16 %v2813
      %v2841 = vunpack.c.h.b16 %v2813
      %v2842 = vunpack.c.l.b16 %v2814
      %v2843 = vunpack.c.h.b16 %v2814
      %v2844 = vpack.c.b16 %v2838, %v2836
      %v2845 = vpack.c.b16 %v2839, %v2837
      %v2846 = vpack.c.b16 %v2842, %v2840
      %v2847 = vpack.c.b16 %v2843, %v2841
      %v2853 = vsel %vm1150, %v2824, 0
      %v2856 = vsel %vm1150, %v2831, 0
      %2858 = vmatpush.bf16.msra.mxu0 0
      %2859 = vmatpush.bf16.msra.mxu0 0
      %2860 = vmatpush.bf16.msra.mxu0 0
      %2861 = vmatpush.bf16.msra.mxu0 0
      %2862 = vmatpush.bf16.msra.mxu0 0
      %2863 = vmatpush.bf16.msra.mxu0 0
      %2864 = vmatpush.bf16.msra.mxu0 %v2846
      %2865 = vmatpush.bf16.msra.mxu0 %v2844
      %2866 = vmatmul.bf16.gmra.mxu0 %v2853
      %v2867 = vpop.f32.mrf.mxu0
      %v2868 = vadd.f32 0.0, %v2867
      %v2869 = vpop.f32.mrf.mxu0
      %v2870 = vadd.f32 0.0, %v2869
      %2871 = vmatmul.bf16.gmra.mxu0 %v2856
      %v2872 = vpop.f32.mrf.mxu0
      %v2873 = vadd.f32 0.0, %v2872
      %v2874 = vpop.f32.mrf.mxu0
      %v2875 = vadd.f32 0.0, %v2874
      %2876 = vdwg.mxu0
      %2877 = vmatpush.bf16.msra.mxu0 0
      %2878 = vmatpush.bf16.msra.mxu0 0
      %2879 = vmatpush.bf16.msra.mxu0 0
      %2880 = vmatpush.bf16.msra.mxu0 0
      %2881 = vmatpush.bf16.msra.mxu0 0
      %2882 = vmatpush.bf16.msra.mxu0 0
      %2883 = vmatpush.bf16.msra.mxu0 %v2847
      %2884 = vmatpush.bf16.msra.mxu0 %v2845
      %2885 = vmatmul.bf16.gmra.mxu0 %v2853
      %v2886 = vpop.f32.mrf.mxu0
      %v2887 = vadd.f32 0.0, %v2886
      %v2888 = vpop.f32.mrf.mxu0
      %v2889 = vadd.f32 0.0, %v2888
      %2890 = vmatmul.bf16.gmra.mxu0 %v2856
      %v2891 = vpop.f32.mrf.mxu0
      %v2892 = vadd.f32 0.0, %v2891
      %v2893 = vpop.f32.mrf.mxu0
      %v2894 = vadd.f32 0.0, %v2893
      %2895 = vdwg.mxu0
      %v2896 = vadd.f32 %v2802, %v2868
      %v2897 = vadd.f32 %v2803, %v2887
      %v2898 = vadd.f32 %v2804, %v2870
      %v2899 = vadd.f32 %v2805, %v2889
      %v2900 = vadd.f32 %v2806, %v2873
      %v2901 = vadd.f32 %v2807, %v2892
      %v2902 = vadd.f32 %v2808, %v2875
      %v2903 = vadd.f32 %v2809, %v2894
      %s2904 = scalar_lea.vmem %s5, 256
      %v2905 = vld [vmem:[%s2904] sm:$0xff]
      %v2906 = vld [vmem:[%s2904 + $0x8] sm:$0xff]
      %v2907 = vld [vmem:[%s2904 + $0x10] sm:$0xff]
      %v2908 = vld [vmem:[%s2904 + $0x18] sm:$0xff]
      %v2911 = vrot.slane %v2732, 1
      %v2912 = vrot.slane %v2730, 1
      %v2913 = vsel %vm1851, %v2911, %v2912
      %v2914 = vrot.slane %v2734, 1
      %v2915 = vsel %vm1851, %v2912, %v2914
      %v2920 = vunpack.c.l.b16 %v2905
      %v2921 = vunpack.c.h.b16 %v2905
      %v2922 = vunpack.c.l.b16 %v2906
      %v2923 = vunpack.c.h.b16 %v2906
      %v2924 = vunpack.c.l.b16 %v2907
      %v2925 = vunpack.c.h.b16 %v2907
      %v2926 = vunpack.c.l.b16 %v2908
      %v2927 = vunpack.c.h.b16 %v2908
      %v2928 = vpack.c.b16 %v2922, %v2920
      %v2929 = vpack.c.b16 %v2923, %v2921
      %v2930 = vpack.c.b16 %v2926, %v2924
      %v2931 = vpack.c.b16 %v2927, %v2925
      %v2937 = vsel %vm1150, %v2913, 0
      %v2940 = vsel %vm1150, %v2915, 0
      %2942 = vmatpush.bf16.msra.mxu0 0
      %2943 = vmatpush.bf16.msra.mxu0 0
      %2944 = vmatpush.bf16.msra.mxu0 0
      %2945 = vmatpush.bf16.msra.mxu0 0
      %2946 = vmatpush.bf16.msra.mxu0 0
      %2947 = vmatpush.bf16.msra.mxu0 0
      %2948 = vmatpush.bf16.msra.mxu0 %v2930
      %2949 = vmatpush.bf16.msra.mxu0 %v2928
      %2950 = vmatmul.bf16.gmra.mxu0 %v2937
      %v2951 = vpop.f32.mrf.mxu0
      %v2952 = vadd.f32 0.0, %v2951
      %v2953 = vpop.f32.mrf.mxu0
      %v2954 = vadd.f32 0.0, %v2953
      %2955 = vmatmul.bf16.gmra.mxu0 %v2940
      %v2956 = vpop.f32.mrf.mxu0
      %v2957 = vadd.f32 0.0, %v2956
      %v2958 = vpop.f32.mrf.mxu0
      %v2959 = vadd.f32 0.0, %v2958
      %2960 = vdwg.mxu0
      %2961 = vmatpush.bf16.msra.mxu0 0
      %2962 = vmatpush.bf16.msra.mxu0 0
      %2963 = vmatpush.bf16.msra.mxu0 0
      %2964 = vmatpush.bf16.msra.mxu0 0
      %2965 = vmatpush.bf16.msra.mxu0 0
      %2966 = vmatpush.bf16.msra.mxu0 0
      %2967 = vmatpush.bf16.msra.mxu0 %v2931
      %2968 = vmatpush.bf16.msra.mxu0 %v2929
      %2969 = vmatmul.bf16.gmra.mxu0 %v2937
      %v2970 = vpop.f32.mrf.mxu0
      %v2971 = vadd.f32 0.0, %v2970
      %v2972 = vpop.f32.mrf.mxu0
      %v2973 = vadd.f32 0.0, %v2972
      %2974 = vmatmul.bf16.gmra.mxu0 %v2940
      %v2975 = vpop.f32.mrf.mxu0
      %v2976 = vadd.f32 0.0, %v2975
      %v2977 = vpop.f32.mrf.mxu0
      %v2978 = vadd.f32 0.0, %v2977
      %2979 = vdwg.mxu0
      %v2980 = vadd.f32 %v2896, %v2952
      %v2981 = vadd.f32 %v2897, %v2971
      %v2982 = vadd.f32 %v2898, %v2954
      %v2983 = vadd.f32 %v2899, %v2973
      %v2984 = vadd.f32 %v2900, %v2957
      %v2985 = vadd.f32 %v2901, %v2976
      %v2986 = vadd.f32 %v2902, %v2959
      %v2987 = vadd.f32 %v2903, %v2978
      %s2988 = scalar_lea.vmem %s5, 384
      %v2989 = vld [vmem:[%s2988] sm:$0xff]
      %v2990 = vld [vmem:[%s2988 + $0x8] sm:$0xff]
      %v2991 = vld [vmem:[%s2988 + $0x10] sm:$0xff]
      %v2992 = vld [vmem:[%s2988 + $0x18] sm:$0xff]
      %v2993 = vrot.slane %v2815, 1
      %v2994 = vrot.slane %v2817, 2
      %v2995 = vor.u32 %v2993, %v2994
      %v2996 = vrot.slane %v2825, 1
      %v2997 = vrot.slane %v2821, 2
      %v2998 = vor.u32 %v2996, %v2997
      %v2999 = vsel %vm2143, %v2995, %v2998
      %v3000 = vshrl.u32 %v2734, 16
      %v3002 = vrot.slane %v3000, 1
      %v3003 = vrot.slane %v2828, 2
      %v3004 = vor.u32 %v3002, %v3003
      %v3005 = vsel %vm2143, %v2998, %v3004
      %v3010 = vunpack.c.l.b16 %v2989
      %v3011 = vunpack.c.h.b16 %v2989
      %v3012 = vunpack.c.l.b16 %v2990
      %v3013 = vunpack.c.h.b16 %v2990
      %v3014 = vunpack.c.l.b16 %v2991
      %v3015 = vunpack.c.h.b16 %v2991
      %v3016 = vunpack.c.l.b16 %v2992
      %v3017 = vunpack.c.h.b16 %v2992
      %v3018 = vpack.c.b16 %v3012, %v3010
      %v3019 = vpack.c.b16 %v3013, %v3011
      %v3020 = vpack.c.b16 %v3016, %v3014
      %v3021 = vpack.c.b16 %v3017, %v3015
      %v3027 = vsel %vm1150, %v2999, 0
      %v3030 = vsel %vm1150, %v3005, 0
      %3032 = vmatpush.bf16.msra.mxu0 0
      %3033 = vmatpush.bf16.msra.mxu0 0
      %3034 = vmatpush.bf16.msra.mxu0 0
      %3035 = vmatpush.bf16.msra.mxu0 0
      %3036 = vmatpush.bf16.msra.mxu0 0
      %3037 = vmatpush.bf16.msra.mxu0 0
      %3038 = vmatpush.bf16.msra.mxu0 %v3020
      %3039 = vmatpush.bf16.msra.mxu0 %v3018
      %3040 = vmatmul.bf16.gmra.mxu0 %v3027
      %v3041 = vpop.f32.mrf.mxu0
      %v3042 = vadd.f32 0.0, %v3041
      %v3043 = vpop.f32.mrf.mxu0
      %v3044 = vadd.f32 0.0, %v3043
      %3045 = vmatmul.bf16.gmra.mxu0 %v3030
      %v3046 = vpop.f32.mrf.mxu0
      %v3047 = vadd.f32 0.0, %v3046
      %v3048 = vpop.f32.mrf.mxu0
      %v3049 = vadd.f32 0.0, %v3048
      %3050 = vdwg.mxu0
      %3051 = vmatpush.bf16.msra.mxu0 0
      %3052 = vmatpush.bf16.msra.mxu0 0
      %3053 = vmatpush.bf16.msra.mxu0 0
      %3054 = vmatpush.bf16.msra.mxu0 0
      %3055 = vmatpush.bf16.msra.mxu0 0
      %3056 = vmatpush.bf16.msra.mxu0 0
      %3057 = vmatpush.bf16.msra.mxu0 %v3021
      %3058 = vmatpush.bf16.msra.mxu0 %v3019
      %3059 = vmatmul.bf16.gmra.mxu0 %v3027
      %v3060 = vpop.f32.mrf.mxu0
      %v3061 = vadd.f32 0.0, %v3060
      %v3062 = vpop.f32.mrf.mxu0
      %v3063 = vadd.f32 0.0, %v3062
      %3064 = vmatmul.bf16.gmra.mxu0 %v3030
      %v3065 = vpop.f32.mrf.mxu0
      %v3066 = vadd.f32 0.0, %v3065
      %v3067 = vpop.f32.mrf.mxu0
      %v3068 = vadd.f32 0.0, %v3067
      %3069 = vdwg.mxu0
      %v3070 = vadd.f32 %v2980, %v3042
      %v3071 = vadd.f32 %v2981, %v3061
      %v3072 = vadd.f32 %v2982, %v3044
      %v3073 = vadd.f32 %v2983, %v3063
      %v3074 = vadd.f32 %v2984, %v3047
      %v3075 = vadd.f32 %v2985, %v3066
      %v3076 = vadd.f32 %v2986, %v3049
      %v3077 = vadd.f32 %v2987, %v3068
      %s3078 = scalar_lea.vmem %s5, 512
      %v3079 = vld [vmem:[%s3078] sm:$0xff]
      %v3080 = vld [vmem:[%s3078 + $0x8] sm:$0xff]
      %v3081 = vld [vmem:[%s3078 + $0x10] sm:$0xff]
      %v3082 = vld [vmem:[%s3078 + $0x18] sm:$0xff]
      %v3083 = vrot.slane %v2732, 2
      %v3084 = vrot.slane %v2730, 2
      %v3085 = vsel %vm2451, %v3083, %v3084
      %v3086 = vrot.slane %v2734, 2
      %v3087 = vsel %vm2451, %v3084, %v3086
      %v3092 = vunpack.c.l.b16 %v3079
      %v3093 = vunpack.c.h.b16 %v3079
      %v3094 = vunpack.c.l.b16 %v3080
      %v3095 = vunpack.c.h.b16 %v3080
      %v3096 = vunpack.c.l.b16 %v3081
      %v3097 = vunpack.c.h.b16 %v3081
      %v3098 = vunpack.c.l.b16 %v3082
      %v3099 = vunpack.c.h.b16 %v3082
      %v3100 = vpack.c.b16 %v3094, %v3092
      %v3101 = vpack.c.b16 %v3095, %v3093
      %v3102 = vpack.c.b16 %v3098, %v3096
      %v3103 = vpack.c.b16 %v3099, %v3097
      %v3109 = vsel %vm1150, %v3085, 0
      %v3112 = vsel %vm1150, %v3087, 0
      %3114 = vmatpush.bf16.msra.mxu0 0
      %3115 = vmatpush.bf16.msra.mxu0 0
      %3116 = vmatpush.bf16.msra.mxu0 0
      %3117 = vmatpush.bf16.msra.mxu0 0
      %3118 = vmatpush.bf16.msra.mxu0 0
      %3119 = vmatpush.bf16.msra.mxu0 0
      %3120 = vmatpush.bf16.msra.mxu0 %v3102
      %3121 = vmatpush.bf16.msra.mxu0 %v3100
      %3122 = vmatmul.bf16.gmra.mxu0 %v3109
      %v3123 = vpop.f32.mrf.mxu0
      %v3124 = vadd.f32 0.0, %v3123
      %v3125 = vpop.f32.mrf.mxu0
      %v3126 = vadd.f32 0.0, %v3125
      %3127 = vmatmul.bf16.gmra.mxu0 %v3112
      %v3128 = vpop.f32.mrf.mxu0
      %v3129 = vadd.f32 0.0, %v3128
      %v3130 = vpop.f32.mrf.mxu0
      %v3131 = vadd.f32 0.0, %v3130
      %3132 = vdwg.mxu0
      %3133 = vmatpush.bf16.msra.mxu0 0
      %3134 = vmatpush.bf16.msra.mxu0 0
      %3135 = vmatpush.bf16.msra.mxu0 0
      %3136 = vmatpush.bf16.msra.mxu0 0
      %3137 = vmatpush.bf16.msra.mxu0 0
      %3138 = vmatpush.bf16.msra.mxu0 0
      %3139 = vmatpush.bf16.msra.mxu0 %v3103
      %3140 = vmatpush.bf16.msra.mxu0 %v3101
      %3141 = vmatmul.bf16.gmra.mxu0 %v3109
      %v3142 = vpop.f32.mrf.mxu0
      %v3143 = vadd.f32 0.0, %v3142
      %v3144 = vpop.f32.mrf.mxu0
      %v3145 = vadd.f32 0.0, %v3144
      %3146 = vmatmul.bf16.gmra.mxu0 %v3112
      %v3147 = vpop.f32.mrf.mxu0
      %v3148 = vadd.f32 0.0, %v3147
      %v3149 = vpop.f32.mrf.mxu0
      %v3150 = vadd.f32 0.0, %v3149
      %3151 = vdwg.mxu0
      %v3152 = vadd.f32 %v3070, %v3124
      %v3153 = vadd.f32 %v3071, %v3143
      %v3154 = vadd.f32 %v3072, %v3126
      %v3155 = vadd.f32 %v3073, %v3145
      %v3156 = vadd.f32 %v3074, %v3129
      %v3157 = vadd.f32 %v3075, %v3148
      %v3158 = vadd.f32 %v3076, %v3131
      %v3159 = vadd.f32 %v3077, %v3150
      %s3160 = scalar_lea.vmem %s355, 32
      %v3161 = vld [vmem:[%s3160] sm:$0xff]
      %v3162 = vld [vmem:[%s3160 + $0x8] sm:$0xff]
      %v3163 = vld [vmem:[%s3160 + $0x10] sm:$0xff]
      %v3164 = vld [vmem:[%s3160 + $0x18] sm:$0xff]
      %v3165 = vpack.c.bf16 %v3161, %v3161
      %v3166 = vpack.c.bf16 %v3162, %v3162
      %v3167 = vpack.c.bf16 %v3163, %v3163
      %v3168 = vpack.c.bf16 %v3164, %v3164
      %v3173 = vunpack.c.l.b16 %v3165
      %v3174 = vunpack.c.l.b16 %v3166
      %v3175 = vunpack.c.l.b16 %v3167
      %v3176 = vunpack.c.l.b16 %v3168
      %v3177 = vpack.c.b16 %v3174, %v3173
      %v3178 = vpack.c.b16 %v3176, %v3175
      %v3179 = vrot.slane %v3177, 7
      %v3180 = vrot.slane %v3178, 7
      %v3181 = vsel %vm1215, %v3179, %v3180
      %v3183 = vsel %vm1224, 0, %v3179
      %v3185 = vsel %vm1224, %v3180, 0
      %s3186 = scalar_lea.vmem %s5, 32
      %v3187 = vld [vmem:[%s3186] sm:$0xff]
      %v3188 = vld [vmem:[%s3186 + $0x8] sm:$0xff]
      %v3189 = vld [vmem:[%s3186 + $0x10] sm:$0xff]
      %v3190 = vld [vmem:[%s3186 + $0x18] sm:$0xff]
      %v3195 = vunpack.c.l.b16 %v3187
      %v3196 = vunpack.c.h.b16 %v3187
      %v3197 = vunpack.c.l.b16 %v3188
      %v3198 = vunpack.c.h.b16 %v3188
      %v3199 = vunpack.c.l.b16 %v3189
      %v3200 = vunpack.c.h.b16 %v3189
      %v3201 = vunpack.c.l.b16 %v3190
      %v3202 = vunpack.c.h.b16 %v3190
      %v3203 = vpack.c.b16 %v3197, %v3195
      %v3204 = vpack.c.b16 %v3198, %v3196
      %v3205 = vpack.c.b16 %v3201, %v3199
      %v3206 = vpack.c.b16 %v3202, %v3200
      %v3211 = vsel %vm1150, %v3183, 0
      %v3214 = vsel %vm1150, %v3181, 0
      %3216 = vmatpush.bf16.msra.mxu0 0
      %3217 = vmatpush.bf16.msra.mxu0 0
      %3218 = vmatpush.bf16.msra.mxu0 0
      %3219 = vmatpush.bf16.msra.mxu0 0
      %3220 = vmatpush.bf16.msra.mxu0 0
      %3221 = vmatpush.bf16.msra.mxu0 0
      %3222 = vmatpush.bf16.msra.mxu0 %v3205
      %3223 = vmatpush.bf16.msra.mxu0 %v3203
      %3224 = vmatmul.bf16.gmra.mxu0 %v3211
      %v3225 = vpop.f32.mrf.mxu0
      %v3226 = vadd.f32 0.0, %v3225
      %v3227 = vpop.f32.mrf.mxu0
      %v3228 = vadd.f32 0.0, %v3227
      %3229 = vmatmul.bf16.gmra.mxu0 %v3214
      %v3230 = vpop.f32.mrf.mxu0
      %v3231 = vadd.f32 0.0, %v3230
      %v3232 = vpop.f32.mrf.mxu0
      %v3233 = vadd.f32 0.0, %v3232
      %3234 = vdwg.mxu0
      %3235 = vmatpush.bf16.msra.mxu0 0
      %3236 = vmatpush.bf16.msra.mxu0 0
      %3237 = vmatpush.bf16.msra.mxu0 0
      %3238 = vmatpush.bf16.msra.mxu0 0
      %3239 = vmatpush.bf16.msra.mxu0 0
      %3240 = vmatpush.bf16.msra.mxu0 0
      %3241 = vmatpush.bf16.msra.mxu0 %v3206
      %3242 = vmatpush.bf16.msra.mxu0 %v3204
      %3243 = vmatmul.bf16.gmra.mxu0 %v3211
      %v3244 = vpop.f32.mrf.mxu0
      %v3245 = vadd.f32 0.0, %v3244
      %v3246 = vpop.f32.mrf.mxu0
      %v3247 = vadd.f32 0.0, %v3246
      %3248 = vmatmul.bf16.gmra.mxu0 %v3214
      %v3249 = vpop.f32.mrf.mxu0
      %v3250 = vadd.f32 0.0, %v3249
      %v3251 = vpop.f32.mrf.mxu0
      %v3252 = vadd.f32 0.0, %v3251
      %3253 = vdwg.mxu0
      %v3254 = vadd.f32 %v3152, %v3226
      %v3255 = vadd.f32 %v3153, %v3245
      %v3256 = vadd.f32 %v3154, %v3228
      %v3257 = vadd.f32 %v3155, %v3247
      %v3258 = vadd.f32 %v3156, %v3231
      %v3259 = vadd.f32 %v3157, %v3250
      %v3260 = vadd.f32 %v3158, %v3233
      %v3261 = vadd.f32 %v3159, %v3252
      %s3262 = scalar_lea.vmem %s5, 160
      %v3263 = vld [vmem:[%s3262] sm:$0xff]
      %v3264 = vld [vmem:[%s3262 + $0x8] sm:$0xff]
      %v3265 = vld [vmem:[%s3262 + $0x10] sm:$0xff]
      %v3266 = vld [vmem:[%s3262 + $0x18] sm:$0xff]
      %v3267 = vshrl.u32 %v3183, 16
      %v3269 = vshll.u32 %v3183, 16
      %v3271 = vrot.slane %v3269, 1
      %v3272 = vor.u32 %v3267, %v3271
      %v3273 = vshll.u32 %v3181, 16
      %v3275 = vrot.slane %v3273, 1
      %v3276 = vsel %vm1301, %v3272, %v3275
      %v3277 = vshrl.u32 %v3181, 16
      %v3279 = vor.u32 %v3277, %v3275
      %v3280 = vshll.u32 %v3185, 16
      %v3282 = vrot.slane %v3280, 1
      %v3283 = vsel %vm1301, %v3279, %v3282
      %v3288 = vunpack.c.l.b16 %v3263
      %v3289 = vunpack.c.h.b16 %v3263
      %v3290 = vunpack.c.l.b16 %v3264
      %v3291 = vunpack.c.h.b16 %v3264
      %v3292 = vunpack.c.l.b16 %v3265
      %v3293 = vunpack.c.h.b16 %v3265
      %v3294 = vunpack.c.l.b16 %v3266
      %v3295 = vunpack.c.h.b16 %v3266
      %v3296 = vpack.c.b16 %v3290, %v3288
      %v3297 = vpack.c.b16 %v3291, %v3289
      %v3298 = vpack.c.b16 %v3294, %v3292
      %v3299 = vpack.c.b16 %v3295, %v3293
      %v3305 = vsel %vm1150, %v3276, 0
      %v3308 = vsel %vm1150, %v3283, 0
      %3310 = vmatpush.bf16.msra.mxu0 0
      %3311 = vmatpush.bf16.msra.mxu0 0
      %3312 = vmatpush.bf16.msra.mxu0 0
      %3313 = vmatpush.bf16.msra.mxu0 0
      %3314 = vmatpush.bf16.msra.mxu0 0
      %3315 = vmatpush.bf16.msra.mxu0 0
      %3316 = vmatpush.bf16.msra.mxu0 %v3298
      %3317 = vmatpush.bf16.msra.mxu0 %v3296
      %3318 = vmatmul.bf16.gmra.mxu0 %v3305
      %v3319 = vpop.f32.mrf.mxu0
      %v3320 = vadd.f32 0.0, %v3319
      %v3321 = vpop.f32.mrf.mxu0
      %v3322 = vadd.f32 0.0, %v3321
      %3323 = vmatmul.bf16.gmra.mxu0 %v3308
      %v3324 = vpop.f32.mrf.mxu0
      %v3325 = vadd.f32 0.0, %v3324
      %v3326 = vpop.f32.mrf.mxu0
      %v3327 = vadd.f32 0.0, %v3326
      %3328 = vdwg.mxu0
      %3329 = vmatpush.bf16.msra.mxu0 0
      %3330 = vmatpush.bf16.msra.mxu0 0
      %3331 = vmatpush.bf16.msra.mxu0 0
      %3332 = vmatpush.bf16.msra.mxu0 0
      %3333 = vmatpush.bf16.msra.mxu0 0
      %3334 = vmatpush.bf16.msra.mxu0 0
      %3335 = vmatpush.bf16.msra.mxu0 %v3299
      %3336 = vmatpush.bf16.msra.mxu0 %v3297
      %3337 = vmatmul.bf16.gmra.mxu0 %v3305
      %v3338 = vpop.f32.mrf.mxu0
      %v3339 = vadd.f32 0.0, %v3338
      %v3340 = vpop.f32.mrf.mxu0
      %v3341 = vadd.f32 0.0, %v3340
      %3342 = vmatmul.bf16.gmra.mxu0 %v3308
      %v3343 = vpop.f32.mrf.mxu0
      %v3344 = vadd.f32 0.0, %v3343
      %v3345 = vpop.f32.mrf.mxu0
      %v3346 = vadd.f32 0.0, %v3345
      %3347 = vdwg.mxu0
      %v3348 = vadd.f32 %v3254, %v3320
      %v3349 = vadd.f32 %v3255, %v3339
      %v3350 = vadd.f32 %v3256, %v3322
      %v3351 = vadd.f32 %v3257, %v3341
      %v3352 = vadd.f32 %v3258, %v3325
      %v3353 = vadd.f32 %v3259, %v3344
      %v3354 = vadd.f32 %v3260, %v3327
      %v3355 = vadd.f32 %v3261, %v3346
      %s3356 = scalar_lea.vmem %s5, 288
      %v3357 = vld [vmem:[%s3356] sm:$0xff]
      %v3358 = vld [vmem:[%s3356 + $0x8] sm:$0xff]
      %v3359 = vld [vmem:[%s3356 + $0x10] sm:$0xff]
      %v3360 = vld [vmem:[%s3356 + $0x18] sm:$0xff]
      %v3363 = vrot.slane %v3183, 1
      %v3364 = vrot.slane %v3181, 1
      %v3365 = vsel %vm1851, %v3363, %v3364
      %v3366 = vrot.slane %v3185, 1
      %v3367 = vsel %vm1851, %v3364, %v3366
      %v3372 = vunpack.c.l.b16 %v3357
      %v3373 = vunpack.c.h.b16 %v3357
      %v3374 = vunpack.c.l.b16 %v3358
      %v3375 = vunpack.c.h.b16 %v3358
      %v3376 = vunpack.c.l.b16 %v3359
      %v3377 = vunpack.c.h.b16 %v3359
      %v3378 = vunpack.c.l.b16 %v3360
      %v3379 = vunpack.c.h.b16 %v3360
      %v3380 = vpack.c.b16 %v3374, %v3372
      %v3381 = vpack.c.b16 %v3375, %v3373
      %v3382 = vpack.c.b16 %v3378, %v3376
      %v3383 = vpack.c.b16 %v3379, %v3377
      %v3389 = vsel %vm1150, %v3365, 0
      %v3392 = vsel %vm1150, %v3367, 0
      %3394 = vmatpush.bf16.msra.mxu0 0
      %3395 = vmatpush.bf16.msra.mxu0 0
      %3396 = vmatpush.bf16.msra.mxu0 0
      %3397 = vmatpush.bf16.msra.mxu0 0
      %3398 = vmatpush.bf16.msra.mxu0 0
      %3399 = vmatpush.bf16.msra.mxu0 0
      %3400 = vmatpush.bf16.msra.mxu0 %v3382
      %3401 = vmatpush.bf16.msra.mxu0 %v3380
      %3402 = vmatmul.bf16.gmra.mxu0 %v3389
      %v3403 = vpop.f32.mrf.mxu0
      %v3404 = vadd.f32 0.0, %v3403
      %v3405 = vpop.f32.mrf.mxu0
      %v3406 = vadd.f32 0.0, %v3405
      %3407 = vmatmul.bf16.gmra.mxu0 %v3392
      %v3408 = vpop.f32.mrf.mxu0
      %v3409 = vadd.f32 0.0, %v3408
      %v3410 = vpop.f32.mrf.mxu0
      %v3411 = vadd.f32 0.0, %v3410
      %3412 = vdwg.mxu0
      %3413 = vmatpush.bf16.msra.mxu0 0
      %3414 = vmatpush.bf16.msra.mxu0 0
      %3415 = vmatpush.bf16.msra.mxu0 0
      %3416 = vmatpush.bf16.msra.mxu0 0
      %3417 = vmatpush.bf16.msra.mxu0 0
      %3418 = vmatpush.bf16.msra.mxu0 0
      %3419 = vmatpush.bf16.msra.mxu0 %v3383
      %3420 = vmatpush.bf16.msra.mxu0 %v3381
      %3421 = vmatmul.bf16.gmra.mxu0 %v3389
      %v3422 = vpop.f32.mrf.mxu0
      %v3423 = vadd.f32 0.0, %v3422
      %v3424 = vpop.f32.mrf.mxu0
      %v3425 = vadd.f32 0.0, %v3424
      %3426 = vmatmul.bf16.gmra.mxu0 %v3392
      %v3427 = vpop.f32.mrf.mxu0
      %v3428 = vadd.f32 0.0, %v3427
      %v3429 = vpop.f32.mrf.mxu0
      %v3430 = vadd.f32 0.0, %v3429
      %3431 = vdwg.mxu0
      %v3432 = vadd.f32 %v3348, %v3404
      %v3433 = vadd.f32 %v3349, %v3423
      %v3434 = vadd.f32 %v3350, %v3406
      %v3435 = vadd.f32 %v3351, %v3425
      %v3436 = vadd.f32 %v3352, %v3409
      %v3437 = vadd.f32 %v3353, %v3428
      %v3438 = vadd.f32 %v3354, %v3411
      %v3439 = vadd.f32 %v3355, %v3430
      %s3440 = scalar_lea.vmem %s5, 416
      %v3441 = vld [vmem:[%s3440] sm:$0xff]
      %v3442 = vld [vmem:[%s3440 + $0x8] sm:$0xff]
      %v3443 = vld [vmem:[%s3440 + $0x10] sm:$0xff]
      %v3444 = vld [vmem:[%s3440 + $0x18] sm:$0xff]
      %v3445 = vrot.slane %v3267, 1
      %v3446 = vrot.slane %v3269, 2
      %v3447 = vor.u32 %v3445, %v3446
      %v3448 = vrot.slane %v3277, 1
      %v3449 = vrot.slane %v3273, 2
      %v3450 = vor.u32 %v3448, %v3449
      %v3451 = vsel %vm2143, %v3447, %v3450
      %v3452 = vshrl.u32 %v3185, 16
      %v3454 = vrot.slane %v3452, 1
      %v3455 = vrot.slane %v3280, 2
      %v3456 = vor.u32 %v3454, %v3455
      %v3457 = vsel %vm2143, %v3450, %v3456
      %v3462 = vunpack.c.l.b16 %v3441
      %v3463 = vunpack.c.h.b16 %v3441
      %v3464 = vunpack.c.l.b16 %v3442
      %v3465 = vunpack.c.h.b16 %v3442
      %v3466 = vunpack.c.l.b16 %v3443
      %v3467 = vunpack.c.h.b16 %v3443
      %v3468 = vunpack.c.l.b16 %v3444
      %v3469 = vunpack.c.h.b16 %v3444
      %v3470 = vpack.c.b16 %v3464, %v3462
      %v3471 = vpack.c.b16 %v3465, %v3463
      %v3472 = vpack.c.b16 %v3468, %v3466
      %v3473 = vpack.c.b16 %v3469, %v3467
      %v3479 = vsel %vm1150, %v3451, 0
      %v3482 = vsel %vm1150, %v3457, 0
      %3484 = vmatpush.bf16.msra.mxu0 0
      %3485 = vmatpush.bf16.msra.mxu0 0
      %3486 = vmatpush.bf16.msra.mxu0 0
      %3487 = vmatpush.bf16.msra.mxu0 0
      %3488 = vmatpush.bf16.msra.mxu0 0
      %3489 = vmatpush.bf16.msra.mxu0 0
      %3490 = vmatpush.bf16.msra.mxu0 %v3472
      %3491 = vmatpush.bf16.msra.mxu0 %v3470
      %3492 = vmatmul.bf16.gmra.mxu0 %v3479
      %v3493 = vpop.f32.mrf.mxu0
      %v3494 = vadd.f32 0.0, %v3493
      %v3495 = vpop.f32.mrf.mxu0
      %v3496 = vadd.f32 0.0, %v3495
      %3497 = vmatmul.bf16.gmra.mxu0 %v3482
      %v3498 = vpop.f32.mrf.mxu0
      %v3499 = vadd.f32 0.0, %v3498
      %v3500 = vpop.f32.mrf.mxu0
      %v3501 = vadd.f32 0.0, %v3500
      %3502 = vdwg.mxu0
      %3503 = vmatpush.bf16.msra.mxu0 0
      %3504 = vmatpush.bf16.msra.mxu0 0
      %3505 = vmatpush.bf16.msra.mxu0 0
      %3506 = vmatpush.bf16.msra.mxu0 0
      %3507 = vmatpush.bf16.msra.mxu0 0
      %3508 = vmatpush.bf16.msra.mxu0 0
      %3509 = vmatpush.bf16.msra.mxu0 %v3473
      %3510 = vmatpush.bf16.msra.mxu0 %v3471
      %3511 = vmatmul.bf16.gmra.mxu0 %v3479
      %v3512 = vpop.f32.mrf.mxu0
      %v3513 = vadd.f32 0.0, %v3512
      %v3514 = vpop.f32.mrf.mxu0
      %v3515 = vadd.f32 0.0, %v3514
      %3516 = vmatmul.bf16.gmra.mxu0 %v3482
      %v3517 = vpop.f32.mrf.mxu0
      %v3518 = vadd.f32 0.0, %v3517
      %v3519 = vpop.f32.mrf.mxu0
      %v3520 = vadd.f32 0.0, %v3519
      %3521 = vdwg.mxu0
      %v3522 = vadd.f32 %v3432, %v3494
      %v3523 = vadd.f32 %v3433, %v3513
      %v3524 = vadd.f32 %v3434, %v3496
      %v3525 = vadd.f32 %v3435, %v3515
      %v3526 = vadd.f32 %v3436, %v3499
      %v3527 = vadd.f32 %v3437, %v3518
      %v3528 = vadd.f32 %v3438, %v3501
      %v3529 = vadd.f32 %v3439, %v3520
      %s3530 = scalar_lea.vmem %s5, 544
      %v3531 = vld [vmem:[%s3530] sm:$0xff]
      %v3532 = vld [vmem:[%s3530 + $0x8] sm:$0xff]
      %v3533 = vld [vmem:[%s3530 + $0x10] sm:$0xff]
      %v3534 = vld [vmem:[%s3530 + $0x18] sm:$0xff]
      %v3535 = vrot.slane %v3183, 2
      %v3536 = vrot.slane %v3181, 2
      %v3537 = vsel %vm2451, %v3535, %v3536
      %v3538 = vrot.slane %v3185, 2
      %v3539 = vsel %vm2451, %v3536, %v3538
      %v3544 = vunpack.c.l.b16 %v3531
      %v3545 = vunpack.c.h.b16 %v3531
      %v3546 = vunpack.c.l.b16 %v3532
      %v3547 = vunpack.c.h.b16 %v3532
      %v3548 = vunpack.c.l.b16 %v3533
      %v3549 = vunpack.c.h.b16 %v3533
      %v3550 = vunpack.c.l.b16 %v3534
      %v3551 = vunpack.c.h.b16 %v3534
      %v3552 = vpack.c.b16 %v3546, %v3544
      %v3553 = vpack.c.b16 %v3547, %v3545
      %v3554 = vpack.c.b16 %v3550, %v3548
      %v3555 = vpack.c.b16 %v3551, %v3549
      %v3561 = vsel %vm1150, %v3537, 0
      %v3564 = vsel %vm1150, %v3539, 0
      %3566 = vmatpush.bf16.msra.mxu0 0
      %3567 = vmatpush.bf16.msra.mxu0 0
      %3568 = vmatpush.bf16.msra.mxu0 0
      %3569 = vmatpush.bf16.msra.mxu0 0
      %3570 = vmatpush.bf16.msra.mxu0 0
      %3571 = vmatpush.bf16.msra.mxu0 0
      %3572 = vmatpush.bf16.msra.mxu0 %v3554
      %3573 = vmatpush.bf16.msra.mxu0 %v3552
      %3574 = vmatmul.bf16.gmra.mxu0 %v3561
      %v3575 = vpop.f32.mrf.mxu0
      %v3576 = vadd.f32 0.0, %v3575
      %v3577 = vpop.f32.mrf.mxu0
      %v3578 = vadd.f32 0.0, %v3577
      %3579 = vmatmul.bf16.gmra.mxu0 %v3564
      %v3580 = vpop.f32.mrf.mxu0
      %v3581 = vadd.f32 0.0, %v3580
      %v3582 = vpop.f32.mrf.mxu0
      %v3583 = vadd.f32 0.0, %v3582
      %3584 = vdwg.mxu0
      %3585 = vmatpush.bf16.msra.mxu0 0
      %3586 = vmatpush.bf16.msra.mxu0 0
      %3587 = vmatpush.bf16.msra.mxu0 0
      %3588 = vmatpush.bf16.msra.mxu0 0
      %3589 = vmatpush.bf16.msra.mxu0 0
      %3590 = vmatpush.bf16.msra.mxu0 0
      %3591 = vmatpush.bf16.msra.mxu0 %v3555
      %3592 = vmatpush.bf16.msra.mxu0 %v3553
      %3593 = vmatmul.bf16.gmra.mxu0 %v3561
      %v3594 = vpop.f32.mrf.mxu0
      %v3595 = vadd.f32 0.0, %v3594
      %v3596 = vpop.f32.mrf.mxu0
      %v3597 = vadd.f32 0.0, %v3596
      %3598 = vmatmul.bf16.gmra.mxu0 %v3564
      %v3599 = vpop.f32.mrf.mxu0
      %v3600 = vadd.f32 0.0, %v3599
      %v3601 = vpop.f32.mrf.mxu0
      %v3602 = vadd.f32 0.0, %v3601
      %3603 = vdwg.mxu0
      %v3604 = vadd.f32 %v3522, %v3576
      %v3605 = vadd.f32 %v3523, %v3595
      %v3606 = vadd.f32 %v3524, %v3578
      %v3607 = vadd.f32 %v3525, %v3597
      %v3608 = vadd.f32 %v3526, %v3581
      %v3609 = vadd.f32 %v3527, %v3600
      %v3610 = vadd.f32 %v3528, %v3583
      %v3611 = vadd.f32 %v3529, %v3602
      %s3612 = scalar_lea.vmem %s355, 64
      %v3613 = vld [vmem:[%s3612] sm:$0xff]
      %v3614 = vld [vmem:[%s3612 + $0x8] sm:$0xff]
      %v3615 = vld [vmem:[%s3612 + $0x10] sm:$0xff]
      %v3616 = vld [vmem:[%s3612 + $0x18] sm:$0xff]
      %v3617 = vpack.c.bf16 %v3613, %v3613
      %v3618 = vpack.c.bf16 %v3614, %v3614
      %v3619 = vpack.c.bf16 %v3615, %v3615
      %v3620 = vpack.c.bf16 %v3616, %v3616
      %v3625 = vunpack.c.l.b16 %v3617
      %v3626 = vunpack.c.l.b16 %v3618
      %v3627 = vunpack.c.l.b16 %v3619
      %v3628 = vunpack.c.l.b16 %v3620
      %v3629 = vpack.c.b16 %v3626, %v3625
      %v3630 = vpack.c.b16 %v3628, %v3627
      %v3631 = vrot.slane %v3629, 7
      %v3632 = vrot.slane %v3630, 7
      %v3633 = vsel %vm1215, %v3631, %v3632
      %v3635 = vsel %vm1224, 0, %v3631
      %v3637 = vsel %vm1224, %v3632, 0
      %s3638 = scalar_lea.vmem %s5, 64
      %v3639 = vld [vmem:[%s3638] sm:$0xff]
      %v3640 = vld [vmem:[%s3638 + $0x8] sm:$0xff]
      %v3641 = vld [vmem:[%s3638 + $0x10] sm:$0xff]
      %v3642 = vld [vmem:[%s3638 + $0x18] sm:$0xff]
      %v3647 = vunpack.c.l.b16 %v3639
      %v3648 = vunpack.c.h.b16 %v3639
      %v3649 = vunpack.c.l.b16 %v3640
      %v3650 = vunpack.c.h.b16 %v3640
      %v3651 = vunpack.c.l.b16 %v3641
      %v3652 = vunpack.c.h.b16 %v3641
      %v3653 = vunpack.c.l.b16 %v3642
      %v3654 = vunpack.c.h.b16 %v3642
      %v3655 = vpack.c.b16 %v3649, %v3647
      %v3656 = vpack.c.b16 %v3650, %v3648
      %v3657 = vpack.c.b16 %v3653, %v3651
      %v3658 = vpack.c.b16 %v3654, %v3652
      %v3663 = vsel %vm1150, %v3635, 0
      %v3666 = vsel %vm1150, %v3633, 0
      %3668 = vmatpush.bf16.msra.mxu0 0
      %3669 = vmatpush.bf16.msra.mxu0 0
      %3670 = vmatpush.bf16.msra.mxu0 0
      %3671 = vmatpush.bf16.msra.mxu0 0
      %3672 = vmatpush.bf16.msra.mxu0 0
      %3673 = vmatpush.bf16.msra.mxu0 0
      %3674 = vmatpush.bf16.msra.mxu0 %v3657
      %3675 = vmatpush.bf16.msra.mxu0 %v3655
      %3676 = vmatmul.bf16.gmra.mxu0 %v3663
      %v3677 = vpop.f32.mrf.mxu0
      %v3678 = vadd.f32 0.0, %v3677
      %v3679 = vpop.f32.mrf.mxu0
      %v3680 = vadd.f32 0.0, %v3679
      %3681 = vmatmul.bf16.gmra.mxu0 %v3666
      %v3682 = vpop.f32.mrf.mxu0
      %v3683 = vadd.f32 0.0, %v3682
      %v3684 = vpop.f32.mrf.mxu0
      %v3685 = vadd.f32 0.0, %v3684
      %3686 = vdwg.mxu0
      %3687 = vmatpush.bf16.msra.mxu0 0
      %3688 = vmatpush.bf16.msra.mxu0 0
      %3689 = vmatpush.bf16.msra.mxu0 0
      %3690 = vmatpush.bf16.msra.mxu0 0
      %3691 = vmatpush.bf16.msra.mxu0 0
      %3692 = vmatpush.bf16.msra.mxu0 0
      %3693 = vmatpush.bf16.msra.mxu0 %v3658
      %3694 = vmatpush.bf16.msra.mxu0 %v3656
      %3695 = vmatmul.bf16.gmra.mxu0 %v3663
      %v3696 = vpop.f32.mrf.mxu0
      %v3697 = vadd.f32 0.0, %v3696
      %v3698 = vpop.f32.mrf.mxu0
      %v3699 = vadd.f32 0.0, %v3698
      %3700 = vmatmul.bf16.gmra.mxu0 %v3666
      %v3701 = vpop.f32.mrf.mxu0
      %v3702 = vadd.f32 0.0, %v3701
      %v3703 = vpop.f32.mrf.mxu0
      %v3704 = vadd.f32 0.0, %v3703
      %3705 = vdwg.mxu0
      %v3706 = vadd.f32 %v3604, %v3678
      %v3707 = vadd.f32 %v3605, %v3697
      %v3708 = vadd.f32 %v3606, %v3680
      %v3709 = vadd.f32 %v3607, %v3699
      %v3710 = vadd.f32 %v3608, %v3683
      %v3711 = vadd.f32 %v3609, %v3702
      %v3712 = vadd.f32 %v3610, %v3685
      %v3713 = vadd.f32 %v3611, %v3704
      %s3714 = scalar_lea.vmem %s5, 192
      %v3715 = vld [vmem:[%s3714] sm:$0xff]
      %v3716 = vld [vmem:[%s3714 + $0x8] sm:$0xff]
      %v3717 = vld [vmem:[%s3714 + $0x10] sm:$0xff]
      %v3718 = vld [vmem:[%s3714 + $0x18] sm:$0xff]
      %v3719 = vshrl.u32 %v3635, 16
      %v3721 = vshll.u32 %v3635, 16
      %v3723 = vrot.slane %v3721, 1
      %v3724 = vor.u32 %v3719, %v3723
      %v3725 = vshll.u32 %v3633, 16
      %v3727 = vrot.slane %v3725, 1
      %v3728 = vsel %vm1301, %v3724, %v3727
      %v3729 = vshrl.u32 %v3633, 16
      %v3731 = vor.u32 %v3729, %v3727
      %v3732 = vshll.u32 %v3637, 16
      %v3734 = vrot.slane %v3732, 1
      %v3735 = vsel %vm1301, %v3731, %v3734
      %v3740 = vunpack.c.l.b16 %v3715
      %v3741 = vunpack.c.h.b16 %v3715
      %v3742 = vunpack.c.l.b16 %v3716
      %v3743 = vunpack.c.h.b16 %v3716
      %v3744 = vunpack.c.l.b16 %v3717
      %v3745 = vunpack.c.h.b16 %v3717
      %v3746 = vunpack.c.l.b16 %v3718
      %v3747 = vunpack.c.h.b16 %v3718
      %v3748 = vpack.c.b16 %v3742, %v3740
      %v3749 = vpack.c.b16 %v3743, %v3741
      %v3750 = vpack.c.b16 %v3746, %v3744
      %v3751 = vpack.c.b16 %v3747, %v3745
      %v3757 = vsel %vm1150, %v3728, 0
      %v3760 = vsel %vm1150, %v3735, 0
      %3762 = vmatpush.bf16.msra.mxu0 0
      %3763 = vmatpush.bf16.msra.mxu0 0
      %3764 = vmatpush.bf16.msra.mxu0 0
      %3765 = vmatpush.bf16.msra.mxu0 0
      %3766 = vmatpush.bf16.msra.mxu0 0
      %3767 = vmatpush.bf16.msra.mxu0 0
      %3768 = vmatpush.bf16.msra.mxu0 %v3750
      %3769 = vmatpush.bf16.msra.mxu0 %v3748
      %3770 = vmatmul.bf16.gmra.mxu0 %v3757
      %v3771 = vpop.f32.mrf.mxu0
      %v3772 = vadd.f32 0.0, %v3771
      %v3773 = vpop.f32.mrf.mxu0
      %v3774 = vadd.f32 0.0, %v3773
      %3775 = vmatmul.bf16.gmra.mxu0 %v3760
      %v3776 = vpop.f32.mrf.mxu0
      %v3777 = vadd.f32 0.0, %v3776
      %v3778 = vpop.f32.mrf.mxu0
      %v3779 = vadd.f32 0.0, %v3778
      %3780 = vdwg.mxu0
      %3781 = vmatpush.bf16.msra.mxu0 0
      %3782 = vmatpush.bf16.msra.mxu0 0
      %3783 = vmatpush.bf16.msra.mxu0 0
      %3784 = vmatpush.bf16.msra.mxu0 0
      %3785 = vmatpush.bf16.msra.mxu0 0
      %3786 = vmatpush.bf16.msra.mxu0 0
      %3787 = vmatpush.bf16.msra.mxu0 %v3751
      %3788 = vmatpush.bf16.msra.mxu0 %v3749
      %3789 = vmatmul.bf16.gmra.mxu0 %v3757
      %v3790 = vpop.f32.mrf.mxu0
      %v3791 = vadd.f32 0.0, %v3790
      %v3792 = vpop.f32.mrf.mxu0
      %v3793 = vadd.f32 0.0, %v3792
      %3794 = vmatmul.bf16.gmra.mxu0 %v3760
      %v3795 = vpop.f32.mrf.mxu0
      %v3796 = vadd.f32 0.0, %v3795
      %v3797 = vpop.f32.mrf.mxu0
      %v3798 = vadd.f32 0.0, %v3797
      %3799 = vdwg.mxu0
      %v3800 = vadd.f32 %v3706, %v3772
      %v3801 = vadd.f32 %v3707, %v3791
      %v3802 = vadd.f32 %v3708, %v3774
      %v3803 = vadd.f32 %v3709, %v3793
      %v3804 = vadd.f32 %v3710, %v3777
      %v3805 = vadd.f32 %v3711, %v3796
      %v3806 = vadd.f32 %v3712, %v3779
      %v3807 = vadd.f32 %v3713, %v3798
      %s3808 = scalar_lea.vmem %s5, 320
      %v3809 = vld [vmem:[%s3808] sm:$0xff]
      %v3810 = vld [vmem:[%s3808 + $0x8] sm:$0xff]
      %v3811 = vld [vmem:[%s3808 + $0x10] sm:$0xff]
      %v3812 = vld [vmem:[%s3808 + $0x18] sm:$0xff]
      %v3815 = vrot.slane %v3635, 1
      %v3816 = vrot.slane %v3633, 1
      %v3817 = vsel %vm1851, %v3815, %v3816
      %v3818 = vrot.slane %v3637, 1
      %v3819 = vsel %vm1851, %v3816, %v3818
      %v3824 = vunpack.c.l.b16 %v3809
      %v3825 = vunpack.c.h.b16 %v3809
      %v3826 = vunpack.c.l.b16 %v3810
      %v3827 = vunpack.c.h.b16 %v3810
      %v3828 = vunpack.c.l.b16 %v3811
      %v3829 = vunpack.c.h.b16 %v3811
      %v3830 = vunpack.c.l.b16 %v3812
      %v3831 = vunpack.c.h.b16 %v3812
      %v3832 = vpack.c.b16 %v3826, %v3824
      %v3833 = vpack.c.b16 %v3827, %v3825
      %v3834 = vpack.c.b16 %v3830, %v3828
      %v3835 = vpack.c.b16 %v3831, %v3829
      %v3841 = vsel %vm1150, %v3817, 0
      %v3844 = vsel %vm1150, %v3819, 0
      %3846 = vmatpush.bf16.msra.mxu0 0
      %3847 = vmatpush.bf16.msra.mxu0 0
      %3848 = vmatpush.bf16.msra.mxu0 0
      %3849 = vmatpush.bf16.msra.mxu0 0
      %3850 = vmatpush.bf16.msra.mxu0 0
      %3851 = vmatpush.bf16.msra.mxu0 0
      %3852 = vmatpush.bf16.msra.mxu0 %v3834
      %3853 = vmatpush.bf16.msra.mxu0 %v3832
      %3854 = vmatmul.bf16.gmra.mxu0 %v3841
      %v3855 = vpop.f32.mrf.mxu0
      %v3856 = vadd.f32 0.0, %v3855
      %v3857 = vpop.f32.mrf.mxu0
      %v3858 = vadd.f32 0.0, %v3857
      %3859 = vmatmul.bf16.gmra.mxu0 %v3844
      %v3860 = vpop.f32.mrf.mxu0
      %v3861 = vadd.f32 0.0, %v3860
      %v3862 = vpop.f32.mrf.mxu0
      %v3863 = vadd.f32 0.0, %v3862
      %3864 = vdwg.mxu0
      %3865 = vmatpush.bf16.msra.mxu0 0
      %3866 = vmatpush.bf16.msra.mxu0 0
      %3867 = vmatpush.bf16.msra.mxu0 0
      %3868 = vmatpush.bf16.msra.mxu0 0
      %3869 = vmatpush.bf16.msra.mxu0 0
      %3870 = vmatpush.bf16.msra.mxu0 0
      %3871 = vmatpush.bf16.msra.mxu0 %v3835
      %3872 = vmatpush.bf16.msra.mxu0 %v3833
      %3873 = vmatmul.bf16.gmra.mxu0 %v3841
      %v3874 = vpop.f32.mrf.mxu0
      %v3875 = vadd.f32 0.0, %v3874
      %v3876 = vpop.f32.mrf.mxu0
      %v3877 = vadd.f32 0.0, %v3876
      %3878 = vmatmul.bf16.gmra.mxu0 %v3844
      %v3879 = vpop.f32.mrf.mxu0
      %v3880 = vadd.f32 0.0, %v3879
      %v3881 = vpop.f32.mrf.mxu0
      %v3882 = vadd.f32 0.0, %v3881
      %3883 = vdwg.mxu0
      %v3884 = vadd.f32 %v3800, %v3856
      %v3885 = vadd.f32 %v3801, %v3875
      %v3886 = vadd.f32 %v3802, %v3858
      %v3887 = vadd.f32 %v3803, %v3877
      %v3888 = vadd.f32 %v3804, %v3861
      %v3889 = vadd.f32 %v3805, %v3880
      %v3890 = vadd.f32 %v3806, %v3863
      %v3891 = vadd.f32 %v3807, %v3882
      %s3892 = scalar_lea.vmem %s5, 448
      %v3893 = vld [vmem:[%s3892] sm:$0xff]
      %v3894 = vld [vmem:[%s3892 + $0x8] sm:$0xff]
      %v3895 = vld [vmem:[%s3892 + $0x10] sm:$0xff]
      %v3896 = vld [vmem:[%s3892 + $0x18] sm:$0xff]
      %v3897 = vrot.slane %v3719, 1
      %v3898 = vrot.slane %v3721, 2
      %v3899 = vor.u32 %v3897, %v3898
      %v3900 = vrot.slane %v3729, 1
      %v3901 = vrot.slane %v3725, 2
      %v3902 = vor.u32 %v3900, %v3901
      %v3903 = vsel %vm2143, %v3899, %v3902
      %v3904 = vshrl.u32 %v3637, 16
      %v3906 = vrot.slane %v3904, 1
      %v3907 = vrot.slane %v3732, 2
      %v3908 = vor.u32 %v3906, %v3907
      %v3909 = vsel %vm2143, %v3902, %v3908
      %v3914 = vunpack.c.l.b16 %v3893
      %v3915 = vunpack.c.h.b16 %v3893
      %v3916 = vunpack.c.l.b16 %v3894
      %v3917 = vunpack.c.h.b16 %v3894
      %v3918 = vunpack.c.l.b16 %v3895
      %v3919 = vunpack.c.h.b16 %v3895
      %v3920 = vunpack.c.l.b16 %v3896
      %v3921 = vunpack.c.h.b16 %v3896
      %v3922 = vpack.c.b16 %v3916, %v3914
      %v3923 = vpack.c.b16 %v3917, %v3915
      %v3924 = vpack.c.b16 %v3920, %v3918
      %v3925 = vpack.c.b16 %v3921, %v3919
      %v3931 = vsel %vm1150, %v3903, 0
      %v3934 = vsel %vm1150, %v3909, 0
      %3936 = vmatpush.bf16.msra.mxu0 0
      %3937 = vmatpush.bf16.msra.mxu0 0
      %3938 = vmatpush.bf16.msra.mxu0 0
      %3939 = vmatpush.bf16.msra.mxu0 0
      %3940 = vmatpush.bf16.msra.mxu0 0
      %3941 = vmatpush.bf16.msra.mxu0 0
      %3942 = vmatpush.bf16.msra.mxu0 %v3924
      %3943 = vmatpush.bf16.msra.mxu0 %v3922
      %3944 = vmatmul.bf16.gmra.mxu0 %v3931
      %v3945 = vpop.f32.mrf.mxu0
      %v3946 = vadd.f32 0.0, %v3945
      %v3947 = vpop.f32.mrf.mxu0
      %v3948 = vadd.f32 0.0, %v3947
      %3949 = vmatmul.bf16.gmra.mxu0 %v3934
      %v3950 = vpop.f32.mrf.mxu0
      %v3951 = vadd.f32 0.0, %v3950
      %v3952 = vpop.f32.mrf.mxu0
      %v3953 = vadd.f32 0.0, %v3952
      %3954 = vdwg.mxu0
      %3955 = vmatpush.bf16.msra.mxu0 0
      %3956 = vmatpush.bf16.msra.mxu0 0
      %3957 = vmatpush.bf16.msra.mxu0 0
      %3958 = vmatpush.bf16.msra.mxu0 0
      %3959 = vmatpush.bf16.msra.mxu0 0
      %3960 = vmatpush.bf16.msra.mxu0 0
      %3961 = vmatpush.bf16.msra.mxu0 %v3925
      %3962 = vmatpush.bf16.msra.mxu0 %v3923
      %3963 = vmatmul.bf16.gmra.mxu0 %v3931
      %v3964 = vpop.f32.mrf.mxu0
      %v3965 = vadd.f32 0.0, %v3964
      %v3966 = vpop.f32.mrf.mxu0
      %v3967 = vadd.f32 0.0, %v3966
      %3968 = vmatmul.bf16.gmra.mxu0 %v3934
      %v3969 = vpop.f32.mrf.mxu0
      %v3970 = vadd.f32 0.0, %v3969
      %v3971 = vpop.f32.mrf.mxu0
      %v3972 = vadd.f32 0.0, %v3971
      %3973 = vdwg.mxu0
      %v3974 = vadd.f32 %v3884, %v3946
      %v3975 = vadd.f32 %v3885, %v3965
      %v3976 = vadd.f32 %v3886, %v3948
      %v3977 = vadd.f32 %v3887, %v3967
      %v3978 = vadd.f32 %v3888, %v3951
      %v3979 = vadd.f32 %v3889, %v3970
      %v3980 = vadd.f32 %v3890, %v3953
      %v3981 = vadd.f32 %v3891, %v3972
      %s3982 = scalar_lea.vmem %s5, 576
      %v3983 = vld [vmem:[%s3982] sm:$0xff]
      %v3984 = vld [vmem:[%s3982 + $0x8] sm:$0xff]
      %v3985 = vld [vmem:[%s3982 + $0x10] sm:$0xff]
      %v3986 = vld [vmem:[%s3982 + $0x18] sm:$0xff]
      %v3987 = vrot.slane %v3635, 2
      %v3988 = vrot.slane %v3633, 2
      %v3989 = vsel %vm2451, %v3987, %v3988
      %v3990 = vrot.slane %v3637, 2
      %v3991 = vsel %vm2451, %v3988, %v3990
      %v3996 = vunpack.c.l.b16 %v3983
      %v3997 = vunpack.c.h.b16 %v3983
      %v3998 = vunpack.c.l.b16 %v3984
      %v3999 = vunpack.c.h.b16 %v3984
      %v4000 = vunpack.c.l.b16 %v3985
      %v4001 = vunpack.c.h.b16 %v3985
      %v4002 = vunpack.c.l.b16 %v3986
      %v4003 = vunpack.c.h.b16 %v3986
      %v4004 = vpack.c.b16 %v3998, %v3996
      %v4005 = vpack.c.b16 %v3999, %v3997
      %v4006 = vpack.c.b16 %v4002, %v4000
      %v4007 = vpack.c.b16 %v4003, %v4001
      %v4013 = vsel %vm1150, %v3989, 0
      %v4016 = vsel %vm1150, %v3991, 0
      %4018 = vmatpush.bf16.msra.mxu0 0
      %4019 = vmatpush.bf16.msra.mxu0 0
      %4020 = vmatpush.bf16.msra.mxu0 0
      %4021 = vmatpush.bf16.msra.mxu0 0
      %4022 = vmatpush.bf16.msra.mxu0 0
      %4023 = vmatpush.bf16.msra.mxu0 0
      %4024 = vmatpush.bf16.msra.mxu0 %v4006
      %4025 = vmatpush.bf16.msra.mxu0 %v4004
      %4026 = vmatmul.bf16.gmra.mxu0 %v4013
      %v4027 = vpop.f32.mrf.mxu0
      %v4028 = vadd.f32 0.0, %v4027
      %v4029 = vpop.f32.mrf.mxu0
      %v4030 = vadd.f32 0.0, %v4029
      %4031 = vmatmul.bf16.gmra.mxu0 %v4016
      %v4032 = vpop.f32.mrf.mxu0
      %v4033 = vadd.f32 0.0, %v4032
      %v4034 = vpop.f32.mrf.mxu0
      %v4035 = vadd.f32 0.0, %v4034
      %4036 = vdwg.mxu0
      %4037 = vmatpush.bf16.msra.mxu0 0
      %4038 = vmatpush.bf16.msra.mxu0 0
      %4039 = vmatpush.bf16.msra.mxu0 0
      %4040 = vmatpush.bf16.msra.mxu0 0
      %4041 = vmatpush.bf16.msra.mxu0 0
      %4042 = vmatpush.bf16.msra.mxu0 0
      %4043 = vmatpush.bf16.msra.mxu0 %v4007
      %4044 = vmatpush.bf16.msra.mxu0 %v4005
      %4045 = vmatmul.bf16.gmra.mxu0 %v4013
      %v4046 = vpop.f32.mrf.mxu0
      %v4047 = vadd.f32 0.0, %v4046
      %v4048 = vpop.f32.mrf.mxu0
      %v4049 = vadd.f32 0.0, %v4048
      %4050 = vmatmul.bf16.gmra.mxu0 %v4016
      %v4051 = vpop.f32.mrf.mxu0
      %v4052 = vadd.f32 0.0, %v4051
      %v4053 = vpop.f32.mrf.mxu0
      %v4054 = vadd.f32 0.0, %v4053
      %4055 = vdwg.mxu0
      %v4056 = vadd.f32 %v3974, %v4028
      %v4057 = vadd.f32 %v3975, %v4047
      %v4058 = vadd.f32 %v3976, %v4030
      %v4059 = vadd.f32 %v3977, %v4049
      %v4060 = vadd.f32 %v3978, %v4033
      %v4061 = vadd.f32 %v3979, %v4052
      %v4062 = vadd.f32 %v3980, %v4035
      %v4063 = vadd.f32 %v3981, %v4054
      %s4064 = scalar_lea.vmem %s355, 96
      %v4065 = vld [vmem:[%s4064] sm:$0xff]
      %v4066 = vld [vmem:[%s4064 + $0x8] sm:$0xff]
      %v4067 = vld [vmem:[%s4064 + $0x10] sm:$0xff]
      %v4068 = vld [vmem:[%s4064 + $0x18] sm:$0xff]
      %v4069 = vpack.c.bf16 %v4065, %v4065
      %v4070 = vpack.c.bf16 %v4066, %v4066
      %v4071 = vpack.c.bf16 %v4067, %v4067
      %v4072 = vpack.c.bf16 %v4068, %v4068
      %v4077 = vunpack.c.l.b16 %v4069
      %v4078 = vunpack.c.l.b16 %v4070
      %v4079 = vunpack.c.l.b16 %v4071
      %v4080 = vunpack.c.l.b16 %v4072
      %v4081 = vpack.c.b16 %v4078, %v4077
      %v4082 = vpack.c.b16 %v4080, %v4079
      %v4083 = vrot.slane %v4081, 7
      %v4084 = vrot.slane %v4082, 7
      %v4085 = vsel %vm1215, %v4083, %v4084
      %v4087 = vsel %vm1224, 0, %v4083
      %v4089 = vsel %vm1224, %v4084, 0
      %s4090 = scalar_lea.vmem %s5, 96
      %v4091 = vld [vmem:[%s4090] sm:$0xff]
      %v4092 = vld [vmem:[%s4090 + $0x8] sm:$0xff]
      %v4093 = vld [vmem:[%s4090 + $0x10] sm:$0xff]
      %v4094 = vld [vmem:[%s4090 + $0x18] sm:$0xff]
      %v4099 = vunpack.c.l.b16 %v4091
      %v4100 = vunpack.c.h.b16 %v4091
      %v4101 = vunpack.c.l.b16 %v4092
      %v4102 = vunpack.c.h.b16 %v4092
      %v4103 = vunpack.c.l.b16 %v4093
      %v4104 = vunpack.c.h.b16 %v4093
      %v4105 = vunpack.c.l.b16 %v4094
      %v4106 = vunpack.c.h.b16 %v4094
      %v4107 = vpack.c.b16 %v4101, %v4099
      %v4108 = vpack.c.b16 %v4102, %v4100
      %v4109 = vpack.c.b16 %v4105, %v4103
      %v4110 = vpack.c.b16 %v4106, %v4104
      %v4115 = vsel %vm1150, %v4087, 0
      %v4118 = vsel %vm1150, %v4085, 0
      %4120 = vmatpush.bf16.msra.mxu0 0
      %4121 = vmatpush.bf16.msra.mxu0 0
      %4122 = vmatpush.bf16.msra.mxu0 0
      %4123 = vmatpush.bf16.msra.mxu0 0
      %4124 = vmatpush.bf16.msra.mxu0 0
      %4125 = vmatpush.bf16.msra.mxu0 0
      %4126 = vmatpush.bf16.msra.mxu0 %v4109
      %4127 = vmatpush.bf16.msra.mxu0 %v4107
      %4128 = vmatmul.bf16.gmra.mxu0 %v4115
      %v4129 = vpop.f32.mrf.mxu0
      %v4130 = vadd.f32 0.0, %v4129
      %v4131 = vpop.f32.mrf.mxu0
      %v4132 = vadd.f32 0.0, %v4131
      %4133 = vmatmul.bf16.gmra.mxu0 %v4118
      %v4134 = vpop.f32.mrf.mxu0
      %v4135 = vadd.f32 0.0, %v4134
      %v4136 = vpop.f32.mrf.mxu0
      %v4137 = vadd.f32 0.0, %v4136
      %4138 = vdwg.mxu0
      %4139 = vmatpush.bf16.msra.mxu0 0
      %4140 = vmatpush.bf16.msra.mxu0 0
      %4141 = vmatpush.bf16.msra.mxu0 0
      %4142 = vmatpush.bf16.msra.mxu0 0
      %4143 = vmatpush.bf16.msra.mxu0 0
      %4144 = vmatpush.bf16.msra.mxu0 0
      %4145 = vmatpush.bf16.msra.mxu0 %v4110
      %4146 = vmatpush.bf16.msra.mxu0 %v4108
      %4147 = vmatmul.bf16.gmra.mxu0 %v4115
      %v4148 = vpop.f32.mrf.mxu0
      %v4149 = vadd.f32 0.0, %v4148
      %v4150 = vpop.f32.mrf.mxu0
      %v4151 = vadd.f32 0.0, %v4150
      %4152 = vmatmul.bf16.gmra.mxu0 %v4118
      %v4153 = vpop.f32.mrf.mxu0
      %v4154 = vadd.f32 0.0, %v4153
      %v4155 = vpop.f32.mrf.mxu0
      %v4156 = vadd.f32 0.0, %v4155
      %4157 = vdwg.mxu0
      %v4158 = vadd.f32 %v4056, %v4130
      %v4159 = vadd.f32 %v4057, %v4149
      %v4160 = vadd.f32 %v4058, %v4132
      %v4161 = vadd.f32 %v4059, %v4151
      %v4162 = vadd.f32 %v4060, %v4135
      %v4163 = vadd.f32 %v4061, %v4154
      %v4164 = vadd.f32 %v4062, %v4137
      %v4165 = vadd.f32 %v4063, %v4156
      %s4166 = scalar_lea.vmem %s5, 224
      %v4167 = vld [vmem:[%s4166] sm:$0xff]
      %v4168 = vld [vmem:[%s4166 + $0x8] sm:$0xff]
      %v4169 = vld [vmem:[%s4166 + $0x10] sm:$0xff]
      %v4170 = vld [vmem:[%s4166 + $0x18] sm:$0xff]
      %v4171 = vshrl.u32 %v4087, 16
      %v4173 = vshll.u32 %v4087, 16
      %v4175 = vrot.slane %v4173, 1
      %v4176 = vor.u32 %v4171, %v4175
      %v4177 = vshll.u32 %v4085, 16
      %v4179 = vrot.slane %v4177, 1
      %v4180 = vsel %vm1301, %v4176, %v4179
      %v4181 = vshrl.u32 %v4085, 16
      %v4183 = vor.u32 %v4181, %v4179
      %v4184 = vshll.u32 %v4089, 16
      %v4186 = vrot.slane %v4184, 1
      %v4187 = vsel %vm1301, %v4183, %v4186
      %v4192 = vunpack.c.l.b16 %v4167
      %v4193 = vunpack.c.h.b16 %v4167
      %v4194 = vunpack.c.l.b16 %v4168
      %v4195 = vunpack.c.h.b16 %v4168
      %v4196 = vunpack.c.l.b16 %v4169
      %v4197 = vunpack.c.h.b16 %v4169
      %v4198 = vunpack.c.l.b16 %v4170
      %v4199 = vunpack.c.h.b16 %v4170
      %v4200 = vpack.c.b16 %v4194, %v4192
      %v4201 = vpack.c.b16 %v4195, %v4193
      %v4202 = vpack.c.b16 %v4198, %v4196
      %v4203 = vpack.c.b16 %v4199, %v4197
      %v4209 = vsel %vm1150, %v4180, 0
      %v4212 = vsel %vm1150, %v4187, 0
      %4214 = vmatpush.bf16.msra.mxu0 0
      %4215 = vmatpush.bf16.msra.mxu0 0
      %4216 = vmatpush.bf16.msra.mxu0 0
      %4217 = vmatpush.bf16.msra.mxu0 0
      %4218 = vmatpush.bf16.msra.mxu0 0
      %4219 = vmatpush.bf16.msra.mxu0 0
      %4220 = vmatpush.bf16.msra.mxu0 %v4202
      %4221 = vmatpush.bf16.msra.mxu0 %v4200
      %4222 = vmatmul.bf16.gmra.mxu0 %v4209
      %v4223 = vpop.f32.mrf.mxu0
      %v4224 = vadd.f32 0.0, %v4223
      %v4225 = vpop.f32.mrf.mxu0
      %v4226 = vadd.f32 0.0, %v4225
      %4227 = vmatmul.bf16.gmra.mxu0 %v4212
      %v4228 = vpop.f32.mrf.mxu0
      %v4229 = vadd.f32 0.0, %v4228
      %v4230 = vpop.f32.mrf.mxu0
      %v4231 = vadd.f32 0.0, %v4230
      %4232 = vdwg.mxu0
      %4233 = vmatpush.bf16.msra.mxu0 0
      %4234 = vmatpush.bf16.msra.mxu0 0
      %4235 = vmatpush.bf16.msra.mxu0 0
      %4236 = vmatpush.bf16.msra.mxu0 0
      %4237 = vmatpush.bf16.msra.mxu0 0
      %4238 = vmatpush.bf16.msra.mxu0 0
      %4239 = vmatpush.bf16.msra.mxu0 %v4203
      %4240 = vmatpush.bf16.msra.mxu0 %v4201
      %4241 = vmatmul.bf16.gmra.mxu0 %v4209
      %v4242 = vpop.f32.mrf.mxu0
      %v4243 = vadd.f32 0.0, %v4242
      %v4244 = vpop.f32.mrf.mxu0
      %v4245 = vadd.f32 0.0, %v4244
      %4246 = vmatmul.bf16.gmra.mxu0 %v4212
      %v4247 = vpop.f32.mrf.mxu0
      %v4248 = vadd.f32 0.0, %v4247
      %v4249 = vpop.f32.mrf.mxu0
      %v4250 = vadd.f32 0.0, %v4249
      %4251 = vdwg.mxu0
      %v4252 = vadd.f32 %v4158, %v4224
      %v4253 = vadd.f32 %v4159, %v4243
      %v4254 = vadd.f32 %v4160, %v4226
      %v4255 = vadd.f32 %v4161, %v4245
      %v4256 = vadd.f32 %v4162, %v4229
      %v4257 = vadd.f32 %v4163, %v4248
      %v4258 = vadd.f32 %v4164, %v4231
      %v4259 = vadd.f32 %v4165, %v4250
      %s4260 = scalar_lea.vmem %s5, 352
      %v4261 = vld [vmem:[%s4260] sm:$0xff]
      %v4262 = vld [vmem:[%s4260 + $0x8] sm:$0xff]
      %v4263 = vld [vmem:[%s4260 + $0x10] sm:$0xff]
      %v4264 = vld [vmem:[%s4260 + $0x18] sm:$0xff]
      %v4267 = vrot.slane %v4087, 1
      %v4268 = vrot.slane %v4085, 1
      %v4269 = vsel %vm1851, %v4267, %v4268
      %v4270 = vrot.slane %v4089, 1
      %v4271 = vsel %vm1851, %v4268, %v4270
      %v4276 = vunpack.c.l.b16 %v4261
      %v4277 = vunpack.c.h.b16 %v4261
      %v4278 = vunpack.c.l.b16 %v4262
      %v4279 = vunpack.c.h.b16 %v4262
      %v4280 = vunpack.c.l.b16 %v4263
      %v4281 = vunpack.c.h.b16 %v4263
      %v4282 = vunpack.c.l.b16 %v4264
      %v4283 = vunpack.c.h.b16 %v4264
      %v4284 = vpack.c.b16 %v4278, %v4276
      %v4285 = vpack.c.b16 %v4279, %v4277
      %v4286 = vpack.c.b16 %v4282, %v4280
      %v4287 = vpack.c.b16 %v4283, %v4281
      %v4293 = vsel %vm1150, %v4269, 0
      %v4296 = vsel %vm1150, %v4271, 0
      %4298 = vmatpush.bf16.msra.mxu0 0
      %4299 = vmatpush.bf16.msra.mxu0 0
      %4300 = vmatpush.bf16.msra.mxu0 0
      %4301 = vmatpush.bf16.msra.mxu0 0
      %4302 = vmatpush.bf16.msra.mxu0 0
      %4303 = vmatpush.bf16.msra.mxu0 0
      %4304 = vmatpush.bf16.msra.mxu0 %v4286
      %4305 = vmatpush.bf16.msra.mxu0 %v4284
      %4306 = vmatmul.bf16.gmra.mxu0 %v4293
      %v4307 = vpop.f32.mrf.mxu0
      %v4308 = vadd.f32 0.0, %v4307
      %v4309 = vpop.f32.mrf.mxu0
      %v4310 = vadd.f32 0.0, %v4309
      %4311 = vmatmul.bf16.gmra.mxu0 %v4296
      %v4312 = vpop.f32.mrf.mxu0
      %v4313 = vadd.f32 0.0, %v4312
      %v4314 = vpop.f32.mrf.mxu0
      %v4315 = vadd.f32 0.0, %v4314
      %4316 = vdwg.mxu0
      %4317 = vmatpush.bf16.msra.mxu0 0
      %4318 = vmatpush.bf16.msra.mxu0 0
      %4319 = vmatpush.bf16.msra.mxu0 0
      %4320 = vmatpush.bf16.msra.mxu0 0
      %4321 = vmatpush.bf16.msra.mxu0 0
      %4322 = vmatpush.bf16.msra.mxu0 0
      %4323 = vmatpush.bf16.msra.mxu0 %v4287
      %4324 = vmatpush.bf16.msra.mxu0 %v4285
      %4325 = vmatmul.bf16.gmra.mxu0 %v4293
      %v4326 = vpop.f32.mrf.mxu0
      %v4327 = vadd.f32 0.0, %v4326
      %v4328 = vpop.f32.mrf.mxu0
      %v4329 = vadd.f32 0.0, %v4328
      %4330 = vmatmul.bf16.gmra.mxu0 %v4296
      %v4331 = vpop.f32.mrf.mxu0
      %v4332 = vadd.f32 0.0, %v4331
      %v4333 = vpop.f32.mrf.mxu0
      %v4334 = vadd.f32 0.0, %v4333
      %4335 = vdwg.mxu0
      %v4336 = vadd.f32 %v4252, %v4308
      %v4337 = vadd.f32 %v4253, %v4327
      %v4338 = vadd.f32 %v4254, %v4310
      %v4339 = vadd.f32 %v4255, %v4329
      %v4340 = vadd.f32 %v4256, %v4313
      %v4341 = vadd.f32 %v4257, %v4332
      %v4342 = vadd.f32 %v4258, %v4315
      %v4343 = vadd.f32 %v4259, %v4334
      %s4344 = scalar_lea.vmem %s5, 480
      %v4345 = vld [vmem:[%s4344] sm:$0xff]
      %v4346 = vld [vmem:[%s4344 + $0x8] sm:$0xff]
      %v4347 = vld [vmem:[%s4344 + $0x10] sm:$0xff]
      %v4348 = vld [vmem:[%s4344 + $0x18] sm:$0xff]
      %v4349 = vrot.slane %v4171, 1
      %v4350 = vrot.slane %v4173, 2
      %v4351 = vor.u32 %v4349, %v4350
      %v4352 = vrot.slane %v4181, 1
      %v4353 = vrot.slane %v4177, 2
      %v4354 = vor.u32 %v4352, %v4353
      %v4355 = vsel %vm2143, %v4351, %v4354
      %v4356 = vshrl.u32 %v4089, 16
      %v4358 = vrot.slane %v4356, 1
      %v4359 = vrot.slane %v4184, 2
      %v4360 = vor.u32 %v4358, %v4359
      %v4361 = vsel %vm2143, %v4354, %v4360
      %v4366 = vunpack.c.l.b16 %v4345
      %v4367 = vunpack.c.h.b16 %v4345
      %v4368 = vunpack.c.l.b16 %v4346
      %v4369 = vunpack.c.h.b16 %v4346
      %v4370 = vunpack.c.l.b16 %v4347
      %v4371 = vunpack.c.h.b16 %v4347
      %v4372 = vunpack.c.l.b16 %v4348
      %v4373 = vunpack.c.h.b16 %v4348
      %v4374 = vpack.c.b16 %v4368, %v4366
      %v4375 = vpack.c.b16 %v4369, %v4367
      %v4376 = vpack.c.b16 %v4372, %v4370
      %v4377 = vpack.c.b16 %v4373, %v4371
      %v4383 = vsel %vm1150, %v4355, 0
      %v4386 = vsel %vm1150, %v4361, 0
      %4388 = vmatpush.bf16.msra.mxu0 0
      %4389 = vmatpush.bf16.msra.mxu0 0
      %4390 = vmatpush.bf16.msra.mxu0 0
      %4391 = vmatpush.bf16.msra.mxu0 0
      %4392 = vmatpush.bf16.msra.mxu0 0
      %4393 = vmatpush.bf16.msra.mxu0 0
      %4394 = vmatpush.bf16.msra.mxu0 %v4376
      %4395 = vmatpush.bf16.msra.mxu0 %v4374
      %4396 = vmatmul.bf16.gmra.mxu0 %v4383
      %v4397 = vpop.f32.mrf.mxu0
      %v4398 = vadd.f32 0.0, %v4397
      %v4399 = vpop.f32.mrf.mxu0
      %v4400 = vadd.f32 0.0, %v4399
      %4401 = vmatmul.bf16.gmra.mxu0 %v4386
      %v4402 = vpop.f32.mrf.mxu0
      %v4403 = vadd.f32 0.0, %v4402
      %v4404 = vpop.f32.mrf.mxu0
      %v4405 = vadd.f32 0.0, %v4404
      %4406 = vdwg.mxu0
      %4407 = vmatpush.bf16.msra.mxu0 0
      %4408 = vmatpush.bf16.msra.mxu0 0
      %4409 = vmatpush.bf16.msra.mxu0 0
      %4410 = vmatpush.bf16.msra.mxu0 0
      %4411 = vmatpush.bf16.msra.mxu0 0
      %4412 = vmatpush.bf16.msra.mxu0 0
      %4413 = vmatpush.bf16.msra.mxu0 %v4377
      %4414 = vmatpush.bf16.msra.mxu0 %v4375
      %4415 = vmatmul.bf16.gmra.mxu0 %v4383
      %v4416 = vpop.f32.mrf.mxu0
      %v4417 = vadd.f32 0.0, %v4416
      %v4418 = vpop.f32.mrf.mxu0
      %v4419 = vadd.f32 0.0, %v4418
      %4420 = vmatmul.bf16.gmra.mxu0 %v4386
      %v4421 = vpop.f32.mrf.mxu0
      %v4422 = vadd.f32 0.0, %v4421
      %v4423 = vpop.f32.mrf.mxu0
      %v4424 = vadd.f32 0.0, %v4423
      %4425 = vdwg.mxu0
      %v4426 = vadd.f32 %v4336, %v4398
      %v4427 = vadd.f32 %v4337, %v4417
      %v4428 = vadd.f32 %v4338, %v4400
      %v4429 = vadd.f32 %v4339, %v4419
      %v4430 = vadd.f32 %v4340, %v4403
      %v4431 = vadd.f32 %v4341, %v4422
      %v4432 = vadd.f32 %v4342, %v4405
      %v4433 = vadd.f32 %v4343, %v4424
      %s4434 = scalar_lea.vmem %s5, 608
      %v4435 = vld [vmem:[%s4434] sm:$0xff]
      %v4436 = vld [vmem:[%s4434 + $0x8] sm:$0xff]
      %v4437 = vld [vmem:[%s4434 + $0x10] sm:$0xff]
      %v4438 = vld [vmem:[%s4434 + $0x18] sm:$0xff]
      %v4439 = vrot.slane %v4087, 2
      %v4440 = vrot.slane %v4085, 2
      %v4441 = vsel %vm2451, %v4439, %v4440
      %v4442 = vrot.slane %v4089, 2
      %v4443 = vsel %vm2451, %v4440, %v4442
      %v4448 = vunpack.c.l.b16 %v4435
      %v4449 = vunpack.c.h.b16 %v4435
      %v4450 = vunpack.c.l.b16 %v4436
      %v4451 = vunpack.c.h.b16 %v4436
      %v4452 = vunpack.c.l.b16 %v4437
      %v4453 = vunpack.c.h.b16 %v4437
      %v4454 = vunpack.c.l.b16 %v4438
      %v4455 = vunpack.c.h.b16 %v4438
      %v4456 = vpack.c.b16 %v4450, %v4448
      %v4457 = vpack.c.b16 %v4451, %v4449
      %v4458 = vpack.c.b16 %v4454, %v4452
      %v4459 = vpack.c.b16 %v4455, %v4453
      %v4465 = vsel %vm1150, %v4441, 0
      %v4468 = vsel %vm1150, %v4443, 0
      %4470 = vmatpush.bf16.msra.mxu0 0
      %4471 = vmatpush.bf16.msra.mxu0 0
      %4472 = vmatpush.bf16.msra.mxu0 0
      %4473 = vmatpush.bf16.msra.mxu0 0
      %4474 = vmatpush.bf16.msra.mxu0 0
      %4475 = vmatpush.bf16.msra.mxu0 0
      %4476 = vmatpush.bf16.msra.mxu0 %v4458
      %4477 = vmatpush.bf16.msra.mxu0 %v4456
      %4478 = vmatmul.bf16.gmra.mxu0 %v4465
      %v4479 = vpop.f32.mrf.mxu0
      %v4480 = vadd.f32 0.0, %v4479
      %v4481 = vpop.f32.mrf.mxu0
      %v4482 = vadd.f32 0.0, %v4481
      %4483 = vmatmul.bf16.gmra.mxu0 %v4468
      %v4484 = vpop.f32.mrf.mxu0
      %v4485 = vadd.f32 0.0, %v4484
      %v4486 = vpop.f32.mrf.mxu0
      %v4487 = vadd.f32 0.0, %v4486
      %4488 = vdwg.mxu0
      %4489 = vmatpush.bf16.msra.mxu0 0
      %4490 = vmatpush.bf16.msra.mxu0 0
      %4491 = vmatpush.bf16.msra.mxu0 0
      %4492 = vmatpush.bf16.msra.mxu0 0
      %4493 = vmatpush.bf16.msra.mxu0 0
      %4494 = vmatpush.bf16.msra.mxu0 0
      %4495 = vmatpush.bf16.msra.mxu0 %v4459
      %4496 = vmatpush.bf16.msra.mxu0 %v4457
      %4497 = vmatmul.bf16.gmra.mxu0 %v4465
      %v4498 = vpop.f32.mrf.mxu0
      %v4499 = vadd.f32 0.0, %v4498
      %v4500 = vpop.f32.mrf.mxu0
      %v4501 = vadd.f32 0.0, %v4500
      %4502 = vmatmul.bf16.gmra.mxu0 %v4468
      %v4503 = vpop.f32.mrf.mxu0
      %v4504 = vadd.f32 0.0, %v4503
      %v4505 = vpop.f32.mrf.mxu0
      %v4506 = vadd.f32 0.0, %v4505
      %4507 = vdwg.mxu0
      %v4508 = vadd.f32 %v4426, %v4480
      %v4509 = vadd.f32 %v4427, %v4499
      %v4510 = vadd.f32 %v4428, %v4482
      %v4511 = vadd.f32 %v4429, %v4501
      %v4512 = vadd.f32 %v4430, %v4485
      %v4513 = vadd.f32 %v4431, %v4504
      %v4514 = vadd.f32 %v4432, %v4487
      %v4515 = vadd.f32 %v4433, %v4506
      %v4516 = vld [vmem:[%s7] sm:$0x3]
      %v4518 = vperm.slane %v4516, 0
      %v4519 = vperm.slane %v4516, 1
      %v4522 = vadd.f32 %v4508, %v4518
      %v4523 = vadd.f32 %v4509, %v4519
      %v4524 = vadd.f32 %v4510, %v4518
      %v4525 = vadd.f32 %v4511, %v4519
      %v4526 = vadd.f32 %v4512, %v4518
      %v4527 = vadd.f32 %v4513, %v4519
      %v4528 = vadd.f32 %v4514, %v4518
      %v4529 = vadd.f32 %v4515, %v4519
      %v4530 = vpack.c.bf16 %v4523, %v4522
      %v4531 = vpack.c.bf16 %v4525, %v4524
      %v4532 = vpack.c.bf16 %v4527, %v4526
      %v4533 = vpack.c.bf16 %v4529, %v4528
      %4534 = vst [vmem:[%s360] sm:$0xff] %v4530
      %4535 = vst [vmem:[%s360 + $0x8] sm:$0xff] %v4531
      %4536 = vst [vmem:[%s360 + $0x10] sm:$0xff] %v4532
      %4537 = vst [vmem:[%s360 + $0x18] sm:$0xff] %v4533
      %v4538 = vadd.f32 %v4522, %v4524
      %v4539 = vadd.f32 %v4538, %v4526
      %v4540 = vadd.f32 %v4539, %v4528
      %v4541 = vrot.slane %v4540, 4
      %v4542 = vadd.f32 %v4540, %v4541
      %v4543 = vrot.slane %v4542, 2
      %v4544 = vadd.f32 %v4542, %v4543
      %v4545 = vrot.slane %v4544, 1
      %v4546 = vadd.f32 %v4544, %v4545
      %v4547 = vadd.f32 %v4523, %v4525
      %v4548 = vadd.f32 %v4547, %v4527
      %v4549 = vadd.f32 %v4548, %v4529
      %v4550 = vrot.slane %v4549, 4
      %v4551 = vadd.f32 %v4549, %v4550
      %v4552 = vrot.slane %v4551, 2
      %v4553 = vadd.f32 %v4551, %v4552
      %v4554 = vrot.slane %v4553, 1
      %v4555 = vadd.f32 %v4553, %v4554
      %v4556 = vmul.f32 %v4522, %v4522
      %v4557 = vmul.f32 %v4523, %v4523
      %v4558 = vmul.f32 %v4524, %v4524
      %v4559 = vmul.f32 %v4525, %v4525
      %v4560 = vmul.f32 %v4526, %v4526
      %v4561 = vmul.f32 %v4527, %v4527
      %v4562 = vmul.f32 %v4528, %v4528
      %v4563 = vmul.f32 %v4529, %v4529
      %v4564 = vadd.f32 %v4556, %v4558
      %v4565 = vadd.f32 %v4564, %v4560
      %v4566 = vadd.f32 %v4565, %v4562
      %v4567 = vrot.slane %v4566, 4
      %v4568 = vadd.f32 %v4566, %v4567
      %v4569 = vrot.slane %v4568, 2
      %v4570 = vadd.f32 %v4568, %v4569
      %v4571 = vrot.slane %v4570, 1
      %v4572 = vadd.f32 %v4570, %v4571
      %v4573 = vadd.f32 %v4557, %v4559
      %v4574 = vadd.f32 %v4573, %v4561
      %v4575 = vadd.f32 %v4574, %v4563
      %v4576 = vrot.slane %v4575, 4
      %v4577 = vadd.f32 %v4575, %v4576
      %v4578 = vrot.slane %v4577, 2
      %v4579 = vadd.f32 %v4577, %v4578
      %v4580 = vrot.slane %v4579, 1
      %v4581 = vadd.f32 %v4579, %v4580
      %v4582 = vsel %vm1224, %v4546, %v4572
      %v4583 = vsel %vm1224, %v4555, %v4581
      %v4586 = vrot.slane %v4583, 6
      %vm4587 = vcmask 1041408
      %v4588 = vsel %vm4587, %v4582, %v4586
      %4590 = vst [vmem:[%s365] sm:$0xf] %v4588
      %p4591 = scmp.lt.s32.totalorder %s21, 1
      %s4592 = scalar_select %p4591, %s21, 1
      %s4593 = smul.addr %s4592, 8
      %s4594 = smul.addr %s4593, 4
      %s4595 = scalar_lea.vmem %s8, %s4594
      %p4596 = scmp.lt.s32.totalorder %s21, 1
      %s4597 = scalar_select %p4596, %s21, 1
      %s4598 = smul.addr %s4597, 2
      %s4599 = smul.addr %s4598, 2
      %s4600 = scalar_lea.vmem %s9, %s4599
      // Predicated region
      $region53: #{decoder_forward.3} parent=51 // pred_check
        %p4601 = pneg %p217
      $region54: #{decoder_forward.3} parent=51 // pred_check_branch
        %4603 = sbr.rel (%p4601) target = $region56
      $region55: #{decoder_forward.3} parent=51 // pred_region
        _
      $region56: #{decoder_forward.3} parent=51 // pred_fallthru
        _
      // Predicated region
      $region57: #{decoder_forward.3} parent=51 // pred_check
        %p4604 = pneg %p243
      $region58: #{decoder_forward.3} parent=51 // pred_check_branch
        %4606 = sbr.rel (%p4604) target = $region60
      $region59: #{decoder_forward.3} parent=51 // pred_region
        _
      $region60: #{decoder_forward.3} parent=51 // pred_fallthru
        _
    $region52: #{decoder_forward.3} parent=5 // pred_fallthru
      _
    %p4607 = scmp.le.s32.totalorder 2, %s16
    // Predicated region
    $region61: #{decoder_forward.3} parent=5 // pred_check
      %p4608 = pneg %p4607
    $region62: #{decoder_forward.3} parent=5 // pred_check_branch
      %4610 = sbr.rel (%p4608) target = $region64
    $region63: #{decoder_forward.3} parent=5 // pred_region
      %s4611 = ssub.s32 %s16, 2
      // Predicated region
      $region65: #{decoder_forward.3} parent=63 // pred_check
        %p4612 = pneg %p223
      $region66: #{decoder_forward.3} parent=63 // pred_check_branch
        %4614 = sbr.rel (%p4612) target = $region68
      $region67: #{decoder_forward.3} parent=63 // pred_region
        %p4615 = scmp.lt.s32.totalorder %s22, 1
        %s4616 = scalar_select %p4615, %s22, 1
        %s4617 = smul.addr %s4616, 8
        %s4618 = smul.addr %s4617, 4
        %s4619 = scalar_lea.vmem %s8, %s4618
      $region68: #{decoder_forward.3} parent=63 // pred_fallthru
        _
      // Predicated region
      $region69: #{decoder_forward.3} parent=63 // pred_check
        %p4620 = pneg %p249
      $region70: #{decoder_forward.3} parent=63 // pred_check_branch
        %4622 = sbr.rel (%p4620) target = $region72
      $region71: #{decoder_forward.3} parent=63 // pred_region
        %p4623 = scmp.lt.s32.totalorder %s22, 1
        %s4624 = scalar_select %p4623, %s22, 1
        %s4625 = smul.addr %s4624, 2
        %s4626 = smul.addr %s4625, 2
        %s4627 = scalar_lea.vmem %s9, %s4626
      $region72: #{decoder_forward.3} parent=63 // pred_fallthru
        _
    $region64: #{decoder_forward.3} parent=5 // pred_fallthru
      _
  $region6: #{decoder_forward.3} parent=0 // loop_footer
    %s20 = sadd.s32 1, %s16
  $region7: #{decoder_forward.3} parent=0 // loop_footer_branch
    %15 = sbr.rel target = $region3
  $region8: #{decoder_forward.3} parent=0 // loop_exit
    _

// kernel: decoder_forward.4
$region0: #{decoder_forward.4}
  #allocation0 [shape = 'u32[]', space=smem, size = 0x4, offset = 0x4, fixed_abs, tag = 'smem constant byte address 0x4 - core index']
  #allocation1 [shape = 'u32[72,128]{1,0:T(1,128)}', space=vmem, size = 0x9000, scoped, tag = 'internal scratch']
  %s0 = inlined_call_operand.vmem [shape: bf16[2,32,256], index: 0, kind: input, shape index: {}]
  %s1 = inlined_call_operand.vmem [shape: f32[1,256], index: 1, kind: input, shape index: {}]
  %s2 = inlined_call_operand.vmem [shape: f32[1,256], index: 2, kind: input, shape index: {}]
  %s3 = inlined_call_operand.vmem [shape: bf16[5,256,256], index: 3, kind: input, shape index: {}]
  %s4 = inlined_call_operand.vmem [shape: f32[1,256], index: 4, kind: input, shape index: {}]
  %s5 = inlined_call_operand.vmem [shape: bf16[2,32,256], index: 5, kind: output, shape index: {0}]
  %s6 = inlined_call_operand.vmem [shape: f32[2,2,256], index: 6, kind: output, shape index: {1}]
  %7 = xla_tuple %s5, %s6
  %s8 = sld [smem:[#allocation0]]
  $region61: #{decoder_forward.4} parent=0
    _
  %s10 = ssub.s32 1, %s8
  %s11 = scalar_select 0, %s10, %s8
  loop: start=0, step=1, limit=4
  $region2: #{decoder_forward.4} parent=0 // loop_pre_header
    _
  $region3: #{decoder_forward.4} parent=0 // loop_header
    %s13 = sphi 0, %s17
    %p14 = scmp.ge.s32.totalorder %s13, 4
    %s23 = sphi 0, %s25
    %s26 = sphi 0, %s23
    %s27 = sphi 0, %s26
    %s43 = sphi 0, %s27
    %s47 = sphi 0, %s47
    %s49 = sphi 0, %s47
    %s50 = sphi 0, %s49
    %s64 = sphi 0, %s50
    %s68 = sphi 0, %s68
    %s70 = sphi 0, %s68
    %s71 = sphi 0, %s70
    %s85 = sphi 0, %s71
    %s89 = sphi 0, %s89
    %s91 = sphi 0, %s89
    %s92 = sphi 0, %s91
    %s106 = sphi 0, %s92
    %s110 = sphi 0, %s110
    %s112 = sphi 0, %s110
    %s113 = sphi 0, %s112
    %s127 = sphi 0, %s113
    %s133 = sphi 0, %s135
    %s136 = sphi 0, %s133
    %s137 = sphi 0, %s136
    %s153 = sphi 0, %s137
    %s159 = sphi 0, %s161
    %s162 = sphi 0, %s159
    %s163 = sphi 0, %s162
    %s179 = sphi 0, %s163
  $region4: #{decoder_forward.4} parent=0 // loop_header_branch
    %16 = sbr.rel (%p14) target = $region8
  $region5: #{decoder_forward.4} parent=0 // loop_body
    %s18 = ssub.s32 %s13, 1
    %s19 = ssub.s32 %s13, 2
    %s20 = sadd.s32 %s13, 1
    %s21 = ssub.s32 %s13, %s20
    %p22 = scmp.eq.s32.totalorder %s21, 0
    %s24 = sadd.s32 %s23, 1
    %s25 = scalar_select %p22, %s23, %s24
    %p28 = pneg %p22
    %p29 = scmp.eq.s32.totalorder %s13, 1
    %p30 = por %p28, %p29
    %p31 = scmp.ne.s32.totalorder %s23, %s26
    %p32 = scmp.eq.s32.totalorder %s13, 0
    %p33 = por %p31, %p32
    %p34 = scmp.ne.s32.totalorder %s23, %s26
    %p35 = scmp.eq.s32.totalorder %s18, 1
    %p36 = por %p34, %p35
    %p37 = scmp.ne.s32.totalorder %s26, %s27
    %p38 = scmp.eq.s32.totalorder %s18, 0
    %p39 = por %p37, %p38
    %p40 = scmp.ne.s32.totalorder %s26, %s27
    %p41 = scmp.eq.s32.totalorder %s19, 1
    %p42 = por %p40, %p41
    %p44 = scmp.ne.s32.totalorder %s27, %s43
    %p45 = scmp.eq.s32.totalorder %s19, 0
    %p46 = por %p44, %p45
    %s48 = sadd.s32 %s47, 1
    %p51 = scmp.eq.s32.totalorder %s13, 1
    %p52 = scmp.ne.s32.totalorder %s47, %s49
    %p53 = scmp.eq.s32.totalorder %s13, 0
    %p54 = por %p52, %p53
    %p55 = scmp.ne.s32.totalorder %s47, %s49
    %p56 = scmp.eq.s32.totalorder %s18, 1
    %p57 = por %p55, %p56
    %p58 = scmp.ne.s32.totalorder %s49, %s50
    %p59 = scmp.eq.s32.totalorder %s18, 0
    %p60 = por %p58, %p59
    %p61 = scmp.ne.s32.totalorder %s49, %s50
    %p62 = scmp.eq.s32.totalorder %s19, 1
    %p63 = por %p61, %p62
    %p65 = scmp.ne.s32.totalorder %s50, %s64
    %p66 = scmp.eq.s32.totalorder %s19, 0
    %p67 = por %p65, %p66
    %s69 = sadd.s32 %s68, 1
    %p72 = scmp.eq.s32.totalorder %s13, 1
    %p73 = scmp.ne.s32.totalorder %s68, %s70
    %p74 = scmp.eq.s32.totalorder %s13, 0
    %p75 = por %p73, %p74
    %p76 = scmp.ne.s32.totalorder %s68, %s70
    %p77 = scmp.eq.s32.totalorder %s18, 1
    %p78 = por %p76, %p77
    %p79 = scmp.ne.s32.totalorder %s70, %s71
    %p80 = scmp.eq.s32.totalorder %s18, 0
    %p81 = por %p79, %p80
    %p82 = scmp.ne.s32.totalorder %s70, %s71
    %p83 = scmp.eq.s32.totalorder %s19, 1
    %p84 = por %p82, %p83
    %p86 = scmp.ne.s32.totalorder %s71, %s85
    %p87 = scmp.eq.s32.totalorder %s19, 0
    %p88 = por %p86, %p87
    %s90 = sadd.s32 %s89, 1
    %p93 = scmp.eq.s32.totalorder %s13, 1
    %p94 = scmp.ne.s32.totalorder %s89, %s91
    %p95 = scmp.eq.s32.totalorder %s13, 0
    %p96 = por %p94, %p95
    %p97 = scmp.ne.s32.totalorder %s89, %s91
    %p98 = scmp.eq.s32.totalorder %s18, 1
    %p99 = por %p97, %p98
    %p100 = scmp.ne.s32.totalorder %s91, %s92
    %p101 = scmp.eq.s32.totalorder %s18, 0
    %p102 = por %p100, %p101
    %p103 = scmp.ne.s32.totalorder %s91, %s92
    %p104 = scmp.eq.s32.totalorder %s19, 1
    %p105 = por %p103, %p104
    %p107 = scmp.ne.s32.totalorder %s92, %s106
    %p108 = scmp.eq.s32.totalorder %s19, 0
    %p109 = por %p107, %p108
    %s111 = sadd.s32 %s110, 1
    %p114 = scmp.eq.s32.totalorder %s13, 1
    %p115 = scmp.ne.s32.totalorder %s110, %s112
    %p116 = scmp.eq.s32.totalorder %s13, 0
    %p117 = por %p115, %p116
    %p118 = scmp.ne.s32.totalorder %s110, %s112
    %p119 = scmp.eq.s32.totalorder %s18, 1
    %p120 = por %p118, %p119
    %p121 = scmp.ne.s32.totalorder %s112, %s113
    %p122 = scmp.eq.s32.totalorder %s18, 0
    %p123 = por %p121, %p122
    %p124 = scmp.ne.s32.totalorder %s112, %s113
    %p125 = scmp.eq.s32.totalorder %s19, 1
    %p126 = por %p124, %p125
    %p128 = scmp.ne.s32.totalorder %s113, %s127
    %p129 = scmp.eq.s32.totalorder %s19, 0
    %p130 = por %p128, %p129
    %s131 = ssub.s32 %s13, %s20
    %p132 = scmp.eq.s32.totalorder %s131, 0
    %s134 = sadd.s32 %s133, 1
    %s135 = scalar_select %p132, %s133, %s134
    %p138 = pneg %p132
    %p139 = scmp.eq.s32.totalorder %s13, 1
    %p140 = por %p138, %p139
    %p141 = scmp.ne.s32.totalorder %s133, %s136
    %p142 = scmp.eq.s32.totalorder %s13, 0
    %p143 = por %p141, %p142
    %p144 = scmp.ne.s32.totalorder %s133, %s136
    %p145 = scmp.eq.s32.totalorder %s18, 1
    %p146 = por %p144, %p145
    %p147 = scmp.ne.s32.totalorder %s136, %s137
    %p148 = scmp.eq.s32.totalorder %s18, 0
    %p149 = por %p147, %p148
    %p150 = scmp.ne.s32.totalorder %s136, %s137
    %p151 = scmp.eq.s32.totalorder %s19, 1
    %p152 = por %p150, %p151
    %p154 = scmp.ne.s32.totalorder %s137, %s153
    %p155 = scmp.eq.s32.totalorder %s19, 0
    %p156 = por %p154, %p155
    %s157 = ssub.s32 %s13, %s20
    %p158 = scmp.eq.s32.totalorder %s157, 0
    %s160 = sadd.s32 %s159, 1
    %s161 = scalar_select %p158, %s159, %s160
    %p164 = pneg %p158
    %p165 = scmp.eq.s32.totalorder %s13, 1
    %p166 = por %p164, %p165
    %p167 = scmp.ne.s32.totalorder %s159, %s162
    %p168 = scmp.eq.s32.totalorder %s13, 0
    %p169 = por %p167, %p168
    %p170 = scmp.ne.s32.totalorder %s159, %s162
    %p171 = scmp.eq.s32.totalorder %s18, 1
    %p172 = por %p170, %p171
    %p173 = scmp.ne.s32.totalorder %s162, %s163
    %p174 = scmp.eq.s32.totalorder %s18, 0
    %p175 = por %p173, %p174
    %p176 = scmp.ne.s32.totalorder %s162, %s163
    %p177 = scmp.eq.s32.totalorder %s19, 1
    %p178 = por %p176, %p177
    %p180 = scmp.ne.s32.totalorder %s163, %s179
    %p181 = scmp.eq.s32.totalorder %s19, 0
    %p182 = por %p180, %p181
    %p183 = scmp.le.s32.totalorder 1, %s13
    %p184 = scmp.lt.s32.totalorder %s13, 3
    %p185 = pnand %p183, %p184
    %p186 = pneg %p185
    // Predicated region
    $region9: #{decoder_forward.4} parent=5 // pred_check
      _
    $region10: #{decoder_forward.4} parent=5 // pred_check_branch
      %188 = sbr.rel (%p185) target = $region12
    $region11: #{decoder_forward.4} parent=5 // pred_region
      %s189 = ssub.s32 %s13, 1
      // Predicated region
      $region13: #{decoder_forward.4} parent=11 // pred_check
        %p190 = pneg %p60
      $region14: #{decoder_forward.4} parent=11 // pred_check_branch
        %192 = sbr.rel (%p190) target = $region16
      $region15: #{decoder_forward.4} parent=11 // pred_region
        _
      $region16: #{decoder_forward.4} parent=11 // pred_fallthru
        _
      // Predicated region
      $region17: #{decoder_forward.4} parent=11 // pred_check
        %p193 = pneg %p81
      $region18: #{decoder_forward.4} parent=11 // pred_check_branch
        %195 = sbr.rel (%p193) target = $region20
      $region19: #{decoder_forward.4} parent=11 // pred_region
        _
      $region20: #{decoder_forward.4} parent=11 // pred_fallthru
        _
      // Predicated region
      $region21: #{decoder_forward.4} parent=11 // pred_check
        %p196 = pneg %p102
      $region22: #{decoder_forward.4} parent=11 // pred_check_branch
        %198 = sbr.rel (%p196) target = $region24
      $region23: #{decoder_forward.4} parent=11 // pred_region
        _
      $region24: #{decoder_forward.4} parent=11 // pred_fallthru
        _
      // Predicated region
      $region25: #{decoder_forward.4} parent=11 // pred_check
        %p199 = pneg %p123
      $region26: #{decoder_forward.4} parent=11 // pred_check_branch
        %201 = sbr.rel (%p199) target = $region28
      $region27: #{decoder_forward.4} parent=11 // pred_region
        _
      $region28: #{decoder_forward.4} parent=11 // pred_fallthru
        _
    $region12: #{decoder_forward.4} parent=5 // pred_fallthru
      _
    %p202 = scmp.lt.s32.totalorder %s13, 2
    // Predicated region
    $region29: #{decoder_forward.4} parent=5 // pred_check
      %p203 = pneg %p202
    $region30: #{decoder_forward.4} parent=5 // pred_check_branch
      %205 = sbr.rel (%p203) target = $region32
    $region31: #{decoder_forward.4} parent=5 // pred_region
      // Predicated region
      $region33: #{decoder_forward.4} parent=31 // pred_check
        %p206 = pneg %p33
      $region34: #{decoder_forward.4} parent=31 // pred_check_branch
        %208 = sbr.rel (%p206) target = $region36
      $region35: #{decoder_forward.4} parent=31 // pred_region
        %p209 = scmp.lt.s32.totalorder %s13, 1
        %s210 = scalar_select %p209, %s13, 1
        %s211 = smul.addr %s210, 8
        %s212 = smul.addr %s211, 4
        %s213 = scalar_lea.vmem %s0, %s212
      $region36: #{decoder_forward.4} parent=31 // pred_fallthru
        _
    $region32: #{decoder_forward.4} parent=5 // pred_fallthru
      _
    %p214 = scmp.le.s32.totalorder 1, %s13
    %p215 = scmp.lt.s32.totalorder %s13, 3
    %p216 = pnand %p214, %p215
    %p217 = pneg %p216
    // Predicated region
    $region37: #{decoder_forward.4} parent=5 // pred_check
      _
    $region38: #{decoder_forward.4} parent=5 // pred_check_branch
      %219 = sbr.rel (%p216) target = $region40
    $region39: #{decoder_forward.4} parent=5 // pred_region
      %s220 = ssub.s32 %s13, 1
      %p221 = scmp.lt.s32.totalorder %s18, 1
      %s222 = scalar_select %p221, %s18, 1
      %s223 = smul.addr %s222, 8
      %s224 = smul.addr %s223, 4
      %s225 = scalar_lea.vmem %s0, %s224
      %p226 = pneg %p39
      %p227 = pneg %p36
      %p228 = pneg %p60
      %p229 = pneg %p57
      %p230 = pneg %p81
      %p231 = pneg %p78
      %p232 = pneg %p102
      %p233 = pneg %p99
      %p234 = pneg %p123
      %p235 = pneg %p120
      %p236 = pneg %p149
      %p237 = pneg %p146
      %p238 = scmp.lt.s32.totalorder %s18, 1
      %s239 = scalar_select %p238, %s18, 1
      %s240 = smul.addr %s239, 8
      %s241 = smul.addr %s240, 4
      %s242 = scalar_lea.vmem %s5, %s241
      %p243 = pneg %p175
      %p244 = pneg %p172
      %p245 = scmp.lt.s32.totalorder %s18, 1
      %s246 = scalar_select %p245, %s18, 1
      %s247 = smul.addr %s246, 2
      %s248 = smul.addr %s247, 2
      %s249 = scalar_lea.vmem %s6, %s248
      %p250 = scmp.lt.s32.totalorder %s18, 1
      %s251 = scalar_select %p250, %s18, 1
      %s252 = smul.addr %s251, 8
      %s253 = smul.addr %s252, 4
      %s254 = scalar_lea.vmem %s0, %s253
      %p255 = scmp.lt.s32.totalorder %s18, 1
      %s256 = scalar_select %p255, %s18, 1
      %s257 = smul.addr %s256, 8
      %s258 = smul.addr %s257, 4
      %s259 = scalar_lea.vmem %s5, %s258
      %p260 = scmp.lt.s32.totalorder %s18, 1
      %s261 = scalar_select %p260, %s18, 1
      %s262 = smul.addr %s261, 2
      %s263 = smul.addr %s262, 2
      %s264 = scalar_lea.vmem %s6, %s263
      %v266 = vld [vmem:[%s254] sm:$0xff]
      %v267 = vld [vmem:[%s254 + $0x8] sm:$0xff]
      %v268 = vld [vmem:[%s254 + $0x10] sm:$0xff]
      %v269 = vld [vmem:[%s254 + $0x18] sm:$0xff]
      %v270 = vunpack.c.l.bf16 %v266
      %v271 = vunpack.c.h.bf16 %v266
      %v272 = vunpack.c.l.bf16 %v267
      %v273 = vunpack.c.h.bf16 %v267
      %v274 = vunpack.c.l.bf16 %v268
      %v275 = vunpack.c.h.bf16 %v268
      %v276 = vunpack.c.l.bf16 %v269
      %v277 = vunpack.c.h.bf16 %v269
      %v278 = vld [vmem:[%s1] sm:$0x3]
      %v280 = vperm.slane %v278, 0
      %v281 = vperm.slane %v278, 1
      %v284 = vmul.f32 %v270, %v280
      %v285 = vmul.f32 %v271, %v281
      %v286 = vmul.f32 %v272, %v280
      %v287 = vmul.f32 %v273, %v281
      %v288 = vmul.f32 %v274, %v280
      %v289 = vmul.f32 %v275, %v281
      %v290 = vmul.f32 %v276, %v280
      %v291 = vmul.f32 %v277, %v281
      %v292 = vld [vmem:[%s2] sm:$0x3]
      %v294 = vperm.slane %v292, 0
      %v295 = vperm.slane %v292, 1
      %v298 = vadd.f32 %v284, %v294
      %v299 = vadd.f32 %v285, %v295
      %v300 = vadd.f32 %v286, %v294
      %v301 = vadd.f32 %v287, %v295
      %v302 = vadd.f32 %v288, %v294
      %v303 = vadd.f32 %v289, %v295
      %v304 = vadd.f32 %v290, %v294
      %v305 = vadd.f32 %v291, %v295
      %v306 = vmax.f32 %v298, 0.0
      %v307 = vmax.f32 %v299, 0.0
      %v308 = vmax.f32 %v300, 0.0
      %v309 = vmax.f32 %v301, 0.0
      %v310 = vmax.f32 %v302, 0.0
      %v311 = vmax.f32 %v303, 0.0
      %v312 = vmax.f32 %v304, 0.0
      %v313 = vmax.f32 %v305, 0.0
      %v314 = vpack.c.bf16 %v307, %v306
      %v315 = vpack.c.bf16 %v309, %v308
      %v316 = vpack.c.bf16 %v311, %v310
      %v317 = vpack.c.bf16 %v313, %v312
      %v322 = vunpack.c.l.b16 %v314
      %v323 = vunpack.c.h.b16 %v314
      %v324 = vunpack.c.l.b16 %v315
      %v325 = vunpack.c.h.b16 %v315
      %v326 = vunpack.c.l.b16 %v316
      %v327 = vunpack.c.h.b16 %v316
      %v328 = vunpack.c.l.b16 %v317
      %v329 = vunpack.c.h.b16 %v317
      %v330 = vpack.c.b16 %v324, %v322
      %v331 = vpack.c.b16 %v325, %v323
      %v332 = vpack.c.b16 %v328, %v326
      %v333 = vpack.c.b16 %v329, %v327
      %vm334 = vcmask 1040384
      %v335 = vrot.slane %v330, 7
      %v336 = vrot.slane %v331, 7
      %v337 = vrot.slane %v332, 7
      %v338 = vsel %vm334, %v335, %v337
      %v339 = vrot.slane %v333, 7
      %v340 = vsel %vm334, %v336, %v339
      %vm343 = vcmask 1040384
      %v346 = vsel %vm343, 0, %v335
      %v349 = vsel %vm343, 0, %v336
      %v352 = vsel %vm343, %v337, 0
      %v354 = vsel %vm343, %v339, 0
      %v355 = vld [vmem:[%s3] sm:$0xff]
      %v356 = vld [vmem:[%s3 + $0x8] sm:$0xff]
      %v357 = vld [vmem:[%s3 + $0x10] sm:$0xff]
      %v358 = vld [vmem:[%s3 + $0x18] sm:$0xff]
      %v359 = vld [vmem:[%s3 + $0x20] sm:$0xff]
      %v360 = vld [vmem:[%s3 + $0x28] sm:$0xff]
      %v361 = vld [vmem:[%s3 + $0x30] sm:$0xff]
      %v362 = vld [vmem:[%s3 + $0x38] sm:$0xff]
      %v363 = vld [vmem:[%s3 + $0x40] sm:$0xff]
      %v364 = vld [vmem:[%s3 + $0x48] sm:$0xff]
      %v365 = vld [vmem:[%s3 + $0x50] sm:$0xff]
      %v366 = vld [vmem:[%s3 + $0x58] sm:$0xff]
      %v367 = vld [vmem:[%s3 + $0x60] sm:$0xff]
      %v368 = vld [vmem:[%s3 + $0x68] sm:$0xff]
      %v369 = vld [vmem:[%s3 + $0x70] sm:$0xff]
      %v370 = vld [vmem:[%s3 + $0x78] sm:$0xff]
      %v371 = vld [vmem:[%s3 + $0x80] sm:$0xff]
      %v372 = vld [vmem:[%s3 + $0x88] sm:$0xff]
      %v373 = vld [vmem:[%s3 + $0x90] sm:$0xff]
      %v374 = vld [vmem:[%s3 + $0x98] sm:$0xff]
      %v375 = vld [vmem:[%s3 + $0xa0] sm:$0xff]
      %v376 = vld [vmem:[%s3 + $0xa8] sm:$0xff]
      %v377 = vld [vmem:[%s3 + $0xb0] sm:$0xff]
      %v378 = vld [vmem:[%s3 + $0xb8] sm:$0xff]
      %v379 = vld [vmem:[%s3 + $0xc0] sm:$0xff]
      %v380 = vld [vmem:[%s3 + $0xc8] sm:$0xff]
      %v381 = vld [vmem:[%s3 + $0xd0] sm:$0xff]
      %v382 = vld [vmem:[%s3 + $0xd8] sm:$0xff]
      %v383 = vld [vmem:[%s3 + $0xe0] sm:$0xff]
      %v384 = vld [vmem:[%s3 + $0xe8] sm:$0xff]
      %v385 = vld [vmem:[%s3 + $0xf0] sm:$0xff]
      %v386 = vld [vmem:[%s3 + $0xf8] sm:$0xff]
      %s387 = scalar_lea.vmem %s3, 256
      %v388 = vld [vmem:[%s387] sm:$0xff]
      %v389 = vld [vmem:[%s387 + $0x8] sm:$0xff]
      %v390 = vld [vmem:[%s387 + $0x10] sm:$0xff]
      %v391 = vld [vmem:[%s387 + $0x18] sm:$0xff]
      %v392 = vld [vmem:[%s387 + $0x20] sm:$0xff]
      %v393 = vld [vmem:[%s387 + $0x28] sm:$0xff]
      %v394 = vld [vmem:[%s387 + $0x30] sm:$0xff]
      %v395 = vld [vmem:[%s387 + $0x38] sm:$0xff]
      %v396 = vld [vmem:[%s387 + $0x40] sm:$0xff]
      %v397 = vld [vmem:[%s387 + $0x48] sm:$0xff]
      %v398 = vld [vmem:[%s387 + $0x50] sm:$0xff]
      %v399 = vld [vmem:[%s387 + $0x58] sm:$0xff]
      %v400 = vld [vmem:[%s387 + $0x60] sm:$0xff]
      %v401 = vld [vmem:[%s387 + $0x68] sm:$0xff]
      %v402 = vld [vmem:[%s387 + $0x70] sm:$0xff]
      %v403 = vld [vmem:[%s387 + $0x78] sm:$0xff]
      %v404 = vld [vmem:[%s387 + $0x80] sm:$0xff]
      %v405 = vld [vmem:[%s387 + $0x88] sm:$0xff]
      %v406 = vld [vmem:[%s387 + $0x90] sm:$0xff]
      %v407 = vld [vmem:[%s387 + $0x98] sm:$0xff]
      %v408 = vld [vmem:[%s387 + $0xa0] sm:$0xff]
      %v409 = vld [vmem:[%s387 + $0xa8] sm:$0xff]
      %v410 = vld [vmem:[%s387 + $0xb0] sm:$0xff]
      %v411 = vld [vmem:[%s387 + $0xb8] sm:$0xff]
      %v412 = vld [vmem:[%s387 + $0xc0] sm:$0xff]
      %v413 = vld [vmem:[%s387 + $0xc8] sm:$0xff]
      %v414 = vld [vmem:[%s387 + $0xd0] sm:$0xff]
      %v415 = vld [vmem:[%s387 + $0xd8] sm:$0xff]
      %v416 = vld [vmem:[%s387 + $0xe0] sm:$0xff]
      %v417 = vld [vmem:[%s387 + $0xe8] sm:$0xff]
      %v418 = vld [vmem:[%s387 + $0xf0] sm:$0xff]
      %v419 = vld [vmem:[%s387 + $0xf8] sm:$0xff]
      %vm420 = vsmask.f32 7424
      %v421 = vshrl.u32 %v346, 16
      %v423 = vshll.u32 %v346, 16
      %v425 = vrot.slane %v423, 1
      %v426 = vor.u32 %v421, %v425
      %v428 = vshll.u32 %v338, 16
      %v430 = vrot.slane %v428, 1
      %v431 = vsel %vm420, %v426, %v430
      %v432 = vshrl.u32 %v349, 16
      %v434 = vshll.u32 %v349, 16
      %v436 = vrot.slane %v434, 1
      %v437 = vor.u32 %v432, %v436
      %v439 = vshll.u32 %v340, 16
      %v441 = vrot.slane %v439, 1
      %v442 = vsel %vm420, %v437, %v441
      %v443 = vshrl.u32 %v338, 16
      %v445 = vor.u32 %v443, %v430
      %v446 = vshll.u32 %v352, 16
      %v448 = vrot.slane %v446, 1
      %v449 = vsel %vm420, %v445, %v448
      %v450 = vshrl.u32 %v340, 16
      %v452 = vor.u32 %v450, %v441
      %v453 = vshll.u32 %v354, 16
      %v455 = vrot.slane %v453, 1
      %v456 = vsel %vm420, %v452, %v455
      %v493 = vunpack.c.l.b16 %v388
      %v494 = vunpack.c.h.b16 %v388
      %v495 = vunpack.c.l.b16 %v389
      %v496 = vunpack.c.h.b16 %v389
      %v497 = vunpack.c.l.b16 %v390
      %v498 = vunpack.c.h.b16 %v390
      %v499 = vunpack.c.l.b16 %v391
      %v500 = vunpack.c.h.b16 %v391
      %v501 = vunpack.c.l.b16 %v392
      %v502 = vunpack.c.h.b16 %v392
      %v503 = vunpack.c.l.b16 %v393
      %v504 = vunpack.c.h.b16 %v393
      %v505 = vunpack.c.l.b16 %v394
      %v506 = vunpack.c.h.b16 %v394
      %v507 = vunpack.c.l.b16 %v395
      %v508 = vunpack.c.h.b16 %v395
      %v509 = vunpack.c.l.b16 %v396
      %v510 = vunpack.c.h.b16 %v396
      %v511 = vunpack.c.l.b16 %v397
      %v512 = vunpack.c.h.b16 %v397
      %v513 = vunpack.c.l.b16 %v398
      %v514 = vunpack.c.h.b16 %v398
      %v515 = vunpack.c.l.b16 %v399
      %v516 = vunpack.c.h.b16 %v399
      %v517 = vunpack.c.l.b16 %v400
      %v518 = vunpack.c.h.b16 %v400
      %v519 = vunpack.c.l.b16 %v401
      %v520 = vunpack.c.h.b16 %v401
      %v521 = vunpack.c.l.b16 %v402
      %v522 = vunpack.c.h.b16 %v402
      %v523 = vunpack.c.l.b16 %v403
      %v524 = vunpack.c.h.b16 %v403
      %v525 = vunpack.c.l.b16 %v404
      %v526 = vunpack.c.h.b16 %v404
      %v527 = vunpack.c.l.b16 %v405
      %v528 = vunpack.c.h.b16 %v405
      %v529 = vunpack.c.l.b16 %v406
      %v530 = vunpack.c.h.b16 %v406
      %v531 = vunpack.c.l.b16 %v407
      %v532 = vunpack.c.h.b16 %v407
      %v533 = vunpack.c.l.b16 %v408
      %v534 = vunpack.c.h.b16 %v408
      %v535 = vunpack.c.l.b16 %v409
      %v536 = vunpack.c.h.b16 %v409
      %v537 = vunpack.c.l.b16 %v410
      %v538 = vunpack.c.h.b16 %v410
      %v539 = vunpack.c.l.b16 %v411
      %v540 = vunpack.c.h.b16 %v411
      %v541 = vunpack.c.l.b16 %v412
      %v542 = vunpack.c.h.b16 %v412
      %v543 = vunpack.c.l.b16 %v413
      %v544 = vunpack.c.h.b16 %v413
      %v545 = vunpack.c.l.b16 %v414
      %v546 = vunpack.c.h.b16 %v414
      %v547 = vunpack.c.l.b16 %v415
      %v548 = vunpack.c.h.b16 %v415
      %v549 = vunpack.c.l.b16 %v416
      %v550 = vunpack.c.h.b16 %v416
      %v551 = vunpack.c.l.b16 %v417
      %v552 = vunpack.c.h.b16 %v417
      %v553 = vunpack.c.l.b16 %v418
      %v554 = vunpack.c.h.b16 %v418
      %v555 = vunpack.c.l.b16 %v419
      %v556 = vunpack.c.h.b16 %v419
      %v557 = vpack.c.b16 %v495, %v493
      %v558 = vpack.c.b16 %v496, %v494
      %v559 = vpack.c.b16 %v499, %v497
      %v560 = vpack.c.b16 %v500, %v498
      %v561 = vpack.c.b16 %v503, %v501
      %v562 = vpack.c.b16 %v504, %v502
      %v563 = vpack.c.b16 %v507, %v505
      %v564 = vpack.c.b16 %v508, %v506
      %v565 = vpack.c.b16 %v511, %v509
      %v566 = vpack.c.b16 %v512, %v510
      %v567 = vpack.c.b16 %v515, %v513
      %v568 = vpack.c.b16 %v516, %v514
      %v569 = vpack.c.b16 %v519, %v517
      %v570 = vpack.c.b16 %v520, %v518
      %v571 = vpack.c.b16 %v523, %v521
      %v572 = vpack.c.b16 %v524, %v522
      %v573 = vpack.c.b16 %v527, %v525
      %v574 = vpack.c.b16 %v528, %v526
      %v575 = vpack.c.b16 %v531, %v529
      %v576 = vpack.c.b16 %v532, %v530
      %v577 = vpack.c.b16 %v535, %v533
      %v578 = vpack.c.b16 %v536, %v534
      %v579 = vpack.c.b16 %v539, %v537
      %v580 = vpack.c.b16 %v540, %v538
      %v581 = vpack.c.b16 %v543, %v541
      %v582 = vpack.c.b16 %v544, %v542
      %v583 = vpack.c.b16 %v547, %v545
      %v584 = vpack.c.b16 %v548, %v546
      %v585 = vpack.c.b16 %v551, %v549
      %v586 = vpack.c.b16 %v552, %v550
      %v587 = vpack.c.b16 %v555, %v553
      %v588 = vpack.c.b16 %v556, %v554
      %621 = vmatpush.bf16.msra.mxu0 %v571
      %622 = vmatpush.bf16.msra.mxu0 %v569
      %623 = vmatpush.bf16.msra.mxu0 %v567
      %624 = vmatpush.bf16.msra.mxu0 %v565
      %625 = vmatpush.bf16.msra.mxu0 %v563
      %626 = vmatpush.bf16.msra.mxu0 %v561
      %627 = vmatpush.bf16.msra.mxu0 %v559
      %628 = vmatpush.bf16.msra.mxu0 %v557
      %629 = vmatmul.bf16.gmra.mxu0 %v431
      %v630 = vpop.f32.mrf.mxu0
      %v631 = vadd.f32 0.0, %v630
      %v632 = vpop.f32.mrf.mxu0
      %v633 = vadd.f32 0.0, %v632
      %634 = vmatmul.bf16.gmra.mxu0 %v449
      %v635 = vpop.f32.mrf.mxu0
      %v636 = vadd.f32 0.0, %v635
      %v637 = vpop.f32.mrf.mxu0
      %v638 = vadd.f32 0.0, %v637
      %639 = vdwg.mxu0
      %640 = vmatpush.bf16.msra.mxu0 %v587
      %641 = vmatpush.bf16.msra.mxu0 %v585
      %642 = vmatpush.bf16.msra.mxu0 %v583
      %643 = vmatpush.bf16.msra.mxu0 %v581
      %644 = vmatpush.bf16.msra.mxu0 %v579
      %645 = vmatpush.bf16.msra.mxu0 %v577
      %646 = vmatpush.bf16.msra.mxu0 %v575
      %647 = vmatpush.bf16.msra.mxu0 %v573
      %648 = vmatmul.bf16.gmra.mxu0 %v442
      %v649 = vpop.f32.mrf.mxu0
      %v650 = vadd.f32 %v631, %v649
      %v651 = vpop.f32.mrf.mxu0
      %v652 = vadd.f32 %v633, %v651
      %653 = vmatmul.bf16.gmra.mxu0 %v456
      %v654 = vpop.f32.mrf.mxu0
      %v655 = vadd.f32 %v636, %v654
      %v656 = vpop.f32.mrf.mxu0
      %v657 = vadd.f32 %v638, %v656
      %658 = vdwg.mxu0
      %659 = vmatpush.bf16.msra.mxu0 %v572
      %660 = vmatpush.bf16.msra.mxu0 %v570
      %661 = vmatpush.bf16.msra.mxu0 %v568
      %662 = vmatpush.bf16.msra.mxu0 %v566
      %663 = vmatpush.bf16.msra.mxu0 %v564
      %664 = vmatpush.bf16.msra.mxu0 %v562
      %665 = vmatpush.bf16.msra.mxu0 %v560
      %666 = vmatpush.bf16.msra.mxu0 %v558
      %667 = vmatmul.bf16.gmra.mxu0 %v431
      %v668 = vpop.f32.mrf.mxu0
      %v669 = vadd.f32 0.0, %v668
      %v670 = vpop.f32.mrf.mxu0
      %v671 = vadd.f32 0.0, %v670
      %672 = vmatmul.bf16.gmra.mxu0 %v449
      %v673 = vpop.f32.mrf.mxu0
      %v674 = vadd.f32 0.0, %v673
      %v675 = vpop.f32.mrf.mxu0
      %v676 = vadd.f32 0.0, %v675
      %677 = vdwg.mxu0
      %678 = vmatpush.bf16.msra.mxu0 %v588
      %679 = vmatpush.bf16.msra.mxu0 %v586
      %680 = vmatpush.bf16.msra.mxu0 %v584
      %681 = vmatpush.bf16.msra.mxu0 %v582
      %682 = vmatpush.bf16.msra.mxu0 %v580
      %683 = vmatpush.bf16.msra.mxu0 %v578
      %684 = vmatpush.bf16.msra.mxu0 %v576
      %685 = vmatpush.bf16.msra.mxu0 %v574
      %686 = vmatmul.bf16.gmra.mxu0 %v442
      %v687 = vpop.f32.mrf.mxu0
      %v688 = vadd.f32 %v669, %v687
      %v689 = vpop.f32.mrf.mxu0
      %v690 = vadd.f32 %v671, %v689
      %691 = vmatmul.bf16.gmra.mxu0 %v456
      %v692 = vpop.f32.mrf.mxu0
      %v693 = vadd.f32 %v674, %v692
      %v694 = vpop.f32.mrf.mxu0
      %v695 = vadd.f32 %v676, %v694
      %696 = vdwg.mxu0
      %v729 = vunpack.c.l.b16 %v355
      %v730 = vunpack.c.h.b16 %v355
      %v731 = vunpack.c.l.b16 %v356
      %v732 = vunpack.c.h.b16 %v356
      %v733 = vunpack.c.l.b16 %v357
      %v734 = vunpack.c.h.b16 %v357
      %v735 = vunpack.c.l.b16 %v358
      %v736 = vunpack.c.h.b16 %v358
      %v737 = vunpack.c.l.b16 %v359
      %v738 = vunpack.c.h.b16 %v359
      %v739 = vunpack.c.l.b16 %v360
      %v740 = vunpack.c.h.b16 %v360
      %v741 = vunpack.c.l.b16 %v361
      %v742 = vunpack.c.h.b16 %v361
      %v743 = vunpack.c.l.b16 %v362
      %v744 = vunpack.c.h.b16 %v362
      %v745 = vunpack.c.l.b16 %v363
      %v746 = vunpack.c.h.b16 %v363
      %v747 = vunpack.c.l.b16 %v364
      %v748 = vunpack.c.h.b16 %v364
      %v749 = vunpack.c.l.b16 %v365
      %v750 = vunpack.c.h.b16 %v365
      %v751 = vunpack.c.l.b16 %v366
      %v752 = vunpack.c.h.b16 %v366
      %v753 = vunpack.c.l.b16 %v367
      %v754 = vunpack.c.h.b16 %v367
      %v755 = vunpack.c.l.b16 %v368
      %v756 = vunpack.c.h.b16 %v368
      %v757 = vunpack.c.l.b16 %v369
      %v758 = vunpack.c.h.b16 %v369
      %v759 = vunpack.c.l.b16 %v370
      %v760 = vunpack.c.h.b16 %v370
      %v761 = vunpack.c.l.b16 %v371
      %v762 = vunpack.c.h.b16 %v371
      %v763 = vunpack.c.l.b16 %v372
      %v764 = vunpack.c.h.b16 %v372
      %v765 = vunpack.c.l.b16 %v373
      %v766 = vunpack.c.h.b16 %v373
      %v767 = vunpack.c.l.b16 %v374
      %v768 = vunpack.c.h.b16 %v374
      %v769 = vunpack.c.l.b16 %v375
      %v770 = vunpack.c.h.b16 %v375
      %v771 = vunpack.c.l.b16 %v376
      %v772 = vunpack.c.h.b16 %v376
      %v773 = vunpack.c.l.b16 %v377
      %v774 = vunpack.c.h.b16 %v377
      %v775 = vunpack.c.l.b16 %v378
      %v776 = vunpack.c.h.b16 %v378
      %v777 = vunpack.c.l.b16 %v379
      %v778 = vunpack.c.h.b16 %v379
      %v779 = vunpack.c.l.b16 %v380
      %v780 = vunpack.c.h.b16 %v380
      %v781 = vunpack.c.l.b16 %v381
      %v782 = vunpack.c.h.b16 %v381
      %v783 = vunpack.c.l.b16 %v382
      %v784 = vunpack.c.h.b16 %v382
      %v785 = vunpack.c.l.b16 %v383
      %v786 = vunpack.c.h.b16 %v383
      %v787 = vunpack.c.l.b16 %v384
      %v788 = vunpack.c.h.b16 %v384
      %v789 = vunpack.c.l.b16 %v385
      %v790 = vunpack.c.h.b16 %v385
      %v791 = vunpack.c.l.b16 %v386
      %v792 = vunpack.c.h.b16 %v386
      %v793 = vpack.c.b16 %v731, %v729
      %v794 = vpack.c.b16 %v732, %v730
      %v795 = vpack.c.b16 %v735, %v733
      %v796 = vpack.c.b16 %v736, %v734
      %v797 = vpack.c.b16 %v739, %v737
      %v798 = vpack.c.b16 %v740, %v738
      %v799 = vpack.c.b16 %v743, %v741
      %v800 = vpack.c.b16 %v744, %v742
      %v801 = vpack.c.b16 %v747, %v745
      %v802 = vpack.c.b16 %v748, %v746
      %v803 = vpack.c.b16 %v751, %v749
      %v804 = vpack.c.b16 %v752, %v750
      %v805 = vpack.c.b16 %v755, %v753
      %v806 = vpack.c.b16 %v756, %v754
      %v807 = vpack.c.b16 %v759, %v757
      %v808 = vpack.c.b16 %v760, %v758
      %v809 = vpack.c.b16 %v763, %v761
      %v810 = vpack.c.b16 %v764, %v762
      %v811 = vpack.c.b16 %v767, %v765
      %v812 = vpack.c.b16 %v768, %v766
      %v813 = vpack.c.b16 %v771, %v769
      %v814 = vpack.c.b16 %v772, %v770
      %v815 = vpack.c.b16 %v775, %v773
      %v816 = vpack.c.b16 %v776, %v774
      %v817 = vpack.c.b16 %v779, %v777
      %v818 = vpack.c.b16 %v780, %v778
      %v819 = vpack.c.b16 %v783, %v781
      %v820 = vpack.c.b16 %v784, %v782
      %v821 = vpack.c.b16 %v787, %v785
      %v822 = vpack.c.b16 %v788, %v786
      %v823 = vpack.c.b16 %v791, %v789
      %v824 = vpack.c.b16 %v792, %v790
      %857 = vmatpush.bf16.msra.mxu0 %v807
      %858 = vmatpush.bf16.msra.mxu0 %v805
      %859 = vmatpush.bf16.msra.mxu0 %v803
      %860 = vmatpush.bf16.msra.mxu0 %v801
      %861 = vmatpush.bf16.msra.mxu0 %v799
      %862 = vmatpush.bf16.msra.mxu0 %v797
      %863 = vmatpush.bf16.msra.mxu0 %v795
      %864 = vmatpush.bf16.msra.mxu0 %v793
      %865 = vmatmul.bf16.gmra.mxu0 %v346
      %v866 = vpop.f32.mrf.mxu0
      %v867 = vadd.f32 %v650, %v866
      %v868 = vpop.f32.mrf.mxu0
      %v869 = vadd.f32 %v652, %v868
      %870 = vmatmul.bf16.gmra.mxu0 %v338
      %v871 = vpop.f32.mrf.mxu0
      %v872 = vadd.f32 %v655, %v871
      %v873 = vpop.f32.mrf.mxu0
      %v874 = vadd.f32 %v657, %v873
      %875 = vdwg.mxu0
      %876 = vmatpush.bf16.msra.mxu0 %v823
      %877 = vmatpush.bf16.msra.mxu0 %v821
      %878 = vmatpush.bf16.msra.mxu0 %v819
      %879 = vmatpush.bf16.msra.mxu0 %v817
      %880 = vmatpush.bf16.msra.mxu0 %v815
      %881 = vmatpush.bf16.msra.mxu0 %v813
      %882 = vmatpush.bf16.msra.mxu0 %v811
      %883 = vmatpush.bf16.msra.mxu0 %v809
      %884 = vmatmul.bf16.gmra.mxu0 %v349
      %v885 = vpop.f32.mrf.mxu0
      %v886 = vadd.f32 %v867, %v885
      %v887 = vpop.f32.mrf.mxu0
      %v888 = vadd.f32 %v869, %v887
      %889 = vmatmul.bf16.gmra.mxu0 %v340
      %v890 = vpop.f32.mrf.mxu0
      %v891 = vadd.f32 %v872, %v890
      %v892 = vpop.f32.mrf.mxu0
      %v893 = vadd.f32 %v874, %v892
      %894 = vdwg.mxu0
      %895 = vmatpush.bf16.msra.mxu0 %v808
      %896 = vmatpush.bf16.msra.mxu0 %v806
      %897 = vmatpush.bf16.msra.mxu0 %v804
      %898 = vmatpush.bf16.msra.mxu0 %v802
      %899 = vmatpush.bf16.msra.mxu0 %v800
      %900 = vmatpush.bf16.msra.mxu0 %v798
      %901 = vmatpush.bf16.msra.mxu0 %v796
      %902 = vmatpush.bf16.msra.mxu0 %v794
      %903 = vmatmul.bf16.gmra.mxu0 %v346
      %v904 = vpop.f32.mrf.mxu0
      %v905 = vadd.f32 %v688, %v904
      %v906 = vpop.f32.mrf.mxu0
      %v907 = vadd.f32 %v690, %v906
      %908 = vmatmul.bf16.gmra.mxu0 %v338
      %v909 = vpop.f32.mrf.mxu0
      %v910 = vadd.f32 %v693, %v909
      %v911 = vpop.f32.mrf.mxu0
      %v912 = vadd.f32 %v695, %v911
      %913 = vdwg.mxu0
      %914 = vmatpush.bf16.msra.mxu0 %v824
      %915 = vmatpush.bf16.msra.mxu0 %v822
      %916 = vmatpush.bf16.msra.mxu0 %v820
      %917 = vmatpush.bf16.msra.mxu0 %v818
      %918 = vmatpush.bf16.msra.mxu0 %v816
      %919 = vmatpush.bf16.msra.mxu0 %v814
      %920 = vmatpush.bf16.msra.mxu0 %v812
      %921 = vmatpush.bf16.msra.mxu0 %v810
      %922 = vmatmul.bf16.gmra.mxu0 %v349
      %v923 = vpop.f32.mrf.mxu0
      %v924 = vadd.f32 %v905, %v923
      %v925 = vpop.f32.mrf.mxu0
      %v926 = vadd.f32 %v907, %v925
      %927 = vmatmul.bf16.gmra.mxu0 %v340
      %v928 = vpop.f32.mrf.mxu0
      %v929 = vadd.f32 %v910, %v928
      %v930 = vpop.f32.mrf.mxu0
      %v931 = vadd.f32 %v912, %v930
      %932 = vdwg.mxu0
      %s933 = scalar_lea.vmem %s3, 512
      %v934 = vld [vmem:[%s933] sm:$0xff]
      %v935 = vld [vmem:[%s933 + $0x8] sm:$0xff]
      %v936 = vld [vmem:[%s933 + $0x10] sm:$0xff]
      %v937 = vld [vmem:[%s933 + $0x18] sm:$0xff]
      %v938 = vld [vmem:[%s933 + $0x20] sm:$0xff]
      %v939 = vld [vmem:[%s933 + $0x28] sm:$0xff]
      %v940 = vld [vmem:[%s933 + $0x30] sm:$0xff]
      %v941 = vld [vmem:[%s933 + $0x38] sm:$0xff]
      %v942 = vld [vmem:[%s933 + $0x40] sm:$0xff]
      %v943 = vld [vmem:[%s933 + $0x48] sm:$0xff]
      %v944 = vld [vmem:[%s933 + $0x50] sm:$0xff]
      %v945 = vld [vmem:[%s933 + $0x58] sm:$0xff]
      %v946 = vld [vmem:[%s933 + $0x60] sm:$0xff]
      %v947 = vld [vmem:[%s933 + $0x68] sm:$0xff]
      %v948 = vld [vmem:[%s933 + $0x70] sm:$0xff]
      %v949 = vld [vmem:[%s933 + $0x78] sm:$0xff]
      %v950 = vld [vmem:[%s933 + $0x80] sm:$0xff]
      %v951 = vld [vmem:[%s933 + $0x88] sm:$0xff]
      %v952 = vld [vmem:[%s933 + $0x90] sm:$0xff]
      %v953 = vld [vmem:[%s933 + $0x98] sm:$0xff]
      %v954 = vld [vmem:[%s933 + $0xa0] sm:$0xff]
      %v955 = vld [vmem:[%s933 + $0xa8] sm:$0xff]
      %v956 = vld [vmem:[%s933 + $0xb0] sm:$0xff]
      %v957 = vld [vmem:[%s933 + $0xb8] sm:$0xff]
      %v958 = vld [vmem:[%s933 + $0xc0] sm:$0xff]
      %v959 = vld [vmem:[%s933 + $0xc8] sm:$0xff]
      %v960 = vld [vmem:[%s933 + $0xd0] sm:$0xff]
      %v961 = vld [vmem:[%s933 + $0xd8] sm:$0xff]
      %v962 = vld [vmem:[%s933 + $0xe0] sm:$0xff]
      %v963 = vld [vmem:[%s933 + $0xe8] sm:$0xff]
      %v964 = vld [vmem:[%s933 + $0xf0] sm:$0xff]
      %v965 = vld [vmem:[%s933 + $0xf8] sm:$0xff]
      %vm970 = vcmask 1046528
      %v971 = vrot.slane %v346, 1
      %v972 = vrot.slane %v338, 1
      %v973 = vsel %vm970, %v971, %v972
      %v974 = vrot.slane %v349, 1
      %v975 = vrot.slane %v340, 1
      %v976 = vsel %vm970, %v974, %v975
      %v977 = vrot.slane %v352, 1
      %v978 = vsel %vm970, %v972, %v977
      %v979 = vrot.slane %v354, 1
      %v980 = vsel %vm970, %v975, %v979
      %v1017 = vunpack.c.l.b16 %v934
      %v1018 = vunpack.c.h.b16 %v934
      %v1019 = vunpack.c.l.b16 %v935
      %v1020 = vunpack.c.h.b16 %v935
      %v1021 = vunpack.c.l.b16 %v936
      %v1022 = vunpack.c.h.b16 %v936
      %v1023 = vunpack.c.l.b16 %v937
      %v1024 = vunpack.c.h.b16 %v937
      %v1025 = vunpack.c.l.b16 %v938
      %v1026 = vunpack.c.h.b16 %v938
      %v1027 = vunpack.c.l.b16 %v939
      %v1028 = vunpack.c.h.b16 %v939
      %v1029 = vunpack.c.l.b16 %v940
      %v1030 = vunpack.c.h.b16 %v940
      %v1031 = vunpack.c.l.b16 %v941
      %v1032 = vunpack.c.h.b16 %v941
      %v1033 = vunpack.c.l.b16 %v942
      %v1034 = vunpack.c.h.b16 %v942
      %v1035 = vunpack.c.l.b16 %v943
      %v1036 = vunpack.c.h.b16 %v943
      %v1037 = vunpack.c.l.b16 %v944
      %v1038 = vunpack.c.h.b16 %v944
      %v1039 = vunpack.c.l.b16 %v945
      %v1040 = vunpack.c.h.b16 %v945
      %v1041 = vunpack.c.l.b16 %v946
      %v1042 = vunpack.c.h.b16 %v946
      %v1043 = vunpack.c.l.b16 %v947
      %v1044 = vunpack.c.h.b16 %v947
      %v1045 = vunpack.c.l.b16 %v948
      %v1046 = vunpack.c.h.b16 %v948
      %v1047 = vunpack.c.l.b16 %v949
      %v1048 = vunpack.c.h.b16 %v949
      %v1049 = vunpack.c.l.b16 %v950
      %v1050 = vunpack.c.h.b16 %v950
      %v1051 = vunpack.c.l.b16 %v951
      %v1052 = vunpack.c.h.b16 %v951
      %v1053 = vunpack.c.l.b16 %v952
      %v1054 = vunpack.c.h.b16 %v952
      %v1055 = vunpack.c.l.b16 %v953
      %v1056 = vunpack.c.h.b16 %v953
      %v1057 = vunpack.c.l.b16 %v954
      %v1058 = vunpack.c.h.b16 %v954
      %v1059 = vunpack.c.l.b16 %v955
      %v1060 = vunpack.c.h.b16 %v955
      %v1061 = vunpack.c.l.b16 %v956
      %v1062 = vunpack.c.h.b16 %v956
      %v1063 = vunpack.c.l.b16 %v957
      %v1064 = vunpack.c.h.b16 %v957
      %v1065 = vunpack.c.l.b16 %v958
      %v1066 = vunpack.c.h.b16 %v958
      %v1067 = vunpack.c.l.b16 %v959
      %v1068 = vunpack.c.h.b16 %v959
      %v1069 = vunpack.c.l.b16 %v960
      %v1070 = vunpack.c.h.b16 %v960
      %v1071 = vunpack.c.l.b16 %v961
      %v1072 = vunpack.c.h.b16 %v961
      %v1073 = vunpack.c.l.b16 %v962
      %v1074 = vunpack.c.h.b16 %v962
      %v1075 = vunpack.c.l.b16 %v963
      %v1076 = vunpack.c.h.b16 %v963
      %v1077 = vunpack.c.l.b16 %v964
      %v1078 = vunpack.c.h.b16 %v964
      %v1079 = vunpack.c.l.b16 %v965
      %v1080 = vunpack.c.h.b16 %v965
      %v1081 = vpack.c.b16 %v1019, %v1017
      %v1082 = vpack.c.b16 %v1020, %v1018
      %v1083 = vpack.c.b16 %v1023, %v1021
      %v1084 = vpack.c.b16 %v1024, %v1022
      %v1085 = vpack.c.b16 %v1027, %v1025
      %v1086 = vpack.c.b16 %v1028, %v1026
      %v1087 = vpack.c.b16 %v1031, %v1029
      %v1088 = vpack.c.b16 %v1032, %v1030
      %v1089 = vpack.c.b16 %v1035, %v1033
      %v1090 = vpack.c.b16 %v1036, %v1034
      %v1091 = vpack.c.b16 %v1039, %v1037
      %v1092 = vpack.c.b16 %v1040, %v1038
      %v1093 = vpack.c.b16 %v1043, %v1041
      %v1094 = vpack.c.b16 %v1044, %v1042
      %v1095 = vpack.c.b16 %v1047, %v1045
      %v1096 = vpack.c.b16 %v1048, %v1046
      %v1097 = vpack.c.b16 %v1051, %v1049
      %v1098 = vpack.c.b16 %v1052, %v1050
      %v1099 = vpack.c.b16 %v1055, %v1053
      %v1100 = vpack.c.b16 %v1056, %v1054
      %v1101 = vpack.c.b16 %v1059, %v1057
      %v1102 = vpack.c.b16 %v1060, %v1058
      %v1103 = vpack.c.b16 %v1063, %v1061
      %v1104 = vpack.c.b16 %v1064, %v1062
      %v1105 = vpack.c.b16 %v1067, %v1065
      %v1106 = vpack.c.b16 %v1068, %v1066
      %v1107 = vpack.c.b16 %v1071, %v1069
      %v1108 = vpack.c.b16 %v1072, %v1070
      %v1109 = vpack.c.b16 %v1075, %v1073
      %v1110 = vpack.c.b16 %v1076, %v1074
      %v1111 = vpack.c.b16 %v1079, %v1077
      %v1112 = vpack.c.b16 %v1080, %v1078
      %1145 = vmatpush.bf16.msra.mxu0 %v1095
      %1146 = vmatpush.bf16.msra.mxu0 %v1093
      %1147 = vmatpush.bf16.msra.mxu0 %v1091
      %1148 = vmatpush.bf16.msra.mxu0 %v1089
      %1149 = vmatpush.bf16.msra.mxu0 %v1087
      %1150 = vmatpush.bf16.msra.mxu0 %v1085
      %1151 = vmatpush.bf16.msra.mxu0 %v1083
      %1152 = vmatpush.bf16.msra.mxu0 %v1081
      %1153 = vmatmul.bf16.gmra.mxu0 %v973
      %v1154 = vpop.f32.mrf.mxu0
      %v1155 = vadd.f32 0.0, %v1154
      %v1156 = vpop.f32.mrf.mxu0
      %v1157 = vadd.f32 0.0, %v1156
      %1158 = vmatmul.bf16.gmra.mxu0 %v978
      %v1159 = vpop.f32.mrf.mxu0
      %v1160 = vadd.f32 0.0, %v1159
      %v1161 = vpop.f32.mrf.mxu0
      %v1162 = vadd.f32 0.0, %v1161
      %1163 = vdwg.mxu0
      %1164 = vmatpush.bf16.msra.mxu0 %v1111
      %1165 = vmatpush.bf16.msra.mxu0 %v1109
      %1166 = vmatpush.bf16.msra.mxu0 %v1107
      %1167 = vmatpush.bf16.msra.mxu0 %v1105
      %1168 = vmatpush.bf16.msra.mxu0 %v1103
      %1169 = vmatpush.bf16.msra.mxu0 %v1101
      %1170 = vmatpush.bf16.msra.mxu0 %v1099
      %1171 = vmatpush.bf16.msra.mxu0 %v1097
      %1172 = vmatmul.bf16.gmra.mxu0 %v976
      %v1173 = vpop.f32.mrf.mxu0
      %v1174 = vadd.f32 %v1155, %v1173
      %v1175 = vpop.f32.mrf.mxu0
      %v1176 = vadd.f32 %v1157, %v1175
      %1177 = vmatmul.bf16.gmra.mxu0 %v980
      %v1178 = vpop.f32.mrf.mxu0
      %v1179 = vadd.f32 %v1160, %v1178
      %v1180 = vpop.f32.mrf.mxu0
      %v1181 = vadd.f32 %v1162, %v1180
      %1182 = vdwg.mxu0
      %1183 = vmatpush.bf16.msra.mxu0 %v1096
      %1184 = vmatpush.bf16.msra.mxu0 %v1094
      %1185 = vmatpush.bf16.msra.mxu0 %v1092
      %1186 = vmatpush.bf16.msra.mxu0 %v1090
      %1187 = vmatpush.bf16.msra.mxu0 %v1088
      %1188 = vmatpush.bf16.msra.mxu0 %v1086
      %1189 = vmatpush.bf16.msra.mxu0 %v1084
      %1190 = vmatpush.bf16.msra.mxu0 %v1082
      %1191 = vmatmul.bf16.gmra.mxu0 %v973
      %v1192 = vpop.f32.mrf.mxu0
      %v1193 = vadd.f32 0.0, %v1192
      %v1194 = vpop.f32.mrf.mxu0
      %v1195 = vadd.f32 0.0, %v1194
      %1196 = vmatmul.bf16.gmra.mxu0 %v978
      %v1197 = vpop.f32.mrf.mxu0
      %v1198 = vadd.f32 0.0, %v1197
      %v1199 = vpop.f32.mrf.mxu0
      %v1200 = vadd.f32 0.0, %v1199
      %1201 = vdwg.mxu0
      %1202 = vmatpush.bf16.msra.mxu0 %v1112
      %1203 = vmatpush.bf16.msra.mxu0 %v1110
      %1204 = vmatpush.bf16.msra.mxu0 %v1108
      %1205 = vmatpush.bf16.msra.mxu0 %v1106
      %1206 = vmatpush.bf16.msra.mxu0 %v1104
      %1207 = vmatpush.bf16.msra.mxu0 %v1102
      %1208 = vmatpush.bf16.msra.mxu0 %v1100
      %1209 = vmatpush.bf16.msra.mxu0 %v1098
      %1210 = vmatmul.bf16.gmra.mxu0 %v976
      %v1211 = vpop.f32.mrf.mxu0
      %v1212 = vadd.f32 %v1193, %v1211
      %v1213 = vpop.f32.mrf.mxu0
      %v1214 = vadd.f32 %v1195, %v1213
      %1215 = vmatmul.bf16.gmra.mxu0 %v980
      %v1216 = vpop.f32.mrf.mxu0
      %v1217 = vadd.f32 %v1198, %v1216
      %v1218 = vpop.f32.mrf.mxu0
      %v1219 = vadd.f32 %v1200, %v1218
      %1220 = vdwg.mxu0
      %v1221 = vadd.f32 %v886, %v1174
      %v1222 = vadd.f32 %v924, %v1212
      %v1223 = vadd.f32 %v888, %v1176
      %v1224 = vadd.f32 %v926, %v1214
      %v1225 = vadd.f32 %v891, %v1179
      %v1226 = vadd.f32 %v929, %v1217
      %v1227 = vadd.f32 %v893, %v1181
      %v1228 = vadd.f32 %v931, %v1219
      %s1229 = scalar_lea.vmem %s3, 768
      %v1230 = vld [vmem:[%s1229] sm:$0xff]
      %v1231 = vld [vmem:[%s1229 + $0x8] sm:$0xff]
      %v1232 = vld [vmem:[%s1229 + $0x10] sm:$0xff]
      %v1233 = vld [vmem:[%s1229 + $0x18] sm:$0xff]
      %v1234 = vld [vmem:[%s1229 + $0x20] sm:$0xff]
      %v1235 = vld [vmem:[%s1229 + $0x28] sm:$0xff]
      %v1236 = vld [vmem:[%s1229 + $0x30] sm:$0xff]
      %v1237 = vld [vmem:[%s1229 + $0x38] sm:$0xff]
      %v1238 = vld [vmem:[%s1229 + $0x40] sm:$0xff]
      %v1239 = vld [vmem:[%s1229 + $0x48] sm:$0xff]
      %v1240 = vld [vmem:[%s1229 + $0x50] sm:$0xff]
      %v1241 = vld [vmem:[%s1229 + $0x58] sm:$0xff]
      %v1242 = vld [vmem:[%s1229 + $0x60] sm:$0xff]
      %v1243 = vld [vmem:[%s1229 + $0x68] sm:$0xff]
      %v1244 = vld [vmem:[%s1229 + $0x70] sm:$0xff]
      %v1245 = vld [vmem:[%s1229 + $0x78] sm:$0xff]
      %v1246 = vld [vmem:[%s1229 + $0x80] sm:$0xff]
      %v1247 = vld [vmem:[%s1229 + $0x88] sm:$0xff]
      %v1248 = vld [vmem:[%s1229 + $0x90] sm:$0xff]
      %v1249 = vld [vmem:[%s1229 + $0x98] sm:$0xff]
      %v1250 = vld [vmem:[%s1229 + $0xa0] sm:$0xff]
      %v1251 = vld [vmem:[%s1229 + $0xa8] sm:$0xff]
      %v1252 = vld [vmem:[%s1229 + $0xb0] sm:$0xff]
      %v1253 = vld [vmem:[%s1229 + $0xb8] sm:$0xff]
      %v1254 = vld [vmem:[%s1229 + $0xc0] sm:$0xff]
      %v1255 = vld [vmem:[%s1229 + $0xc8] sm:$0xff]
      %v1256 = vld [vmem:[%s1229 + $0xd0] sm:$0xff]
      %v1257 = vld [vmem:[%s1229 + $0xd8] sm:$0xff]
      %v1258 = vld [vmem:[%s1229 + $0xe0] sm:$0xff]
      %v1259 = vld [vmem:[%s1229 + $0xe8] sm:$0xff]
      %v1260 = vld [vmem:[%s1229 + $0xf0] sm:$0xff]
      %v1261 = vld [vmem:[%s1229 + $0xf8] sm:$0xff]
      %vm1262 = vsmask.f32 6400
      %v1263 = vrot.slane %v421, 1
      %v1264 = vrot.slane %v423, 2
      %v1265 = vor.u32 %v1263, %v1264
      %v1266 = vrot.slane %v443, 1
      %v1267 = vrot.slane %v428, 2
      %v1268 = vor.u32 %v1266, %v1267
      %v1269 = vsel %vm1262, %v1265, %v1268
      %v1270 = vrot.slane %v432, 1
      %v1271 = vrot.slane %v434, 2
      %v1272 = vor.u32 %v1270, %v1271
      %v1273 = vrot.slane %v450, 1
      %v1274 = vrot.slane %v439, 2
      %v1275 = vor.u32 %v1273, %v1274
      %v1276 = vsel %vm1262, %v1272, %v1275
      %v1277 = vshrl.u32 %v352, 16
      %v1279 = vrot.slane %v1277, 1
      %v1280 = vrot.slane %v446, 2
      %v1281 = vor.u32 %v1279, %v1280
      %v1282 = vsel %vm1262, %v1268, %v1281
      %v1283 = vshrl.u32 %v354, 16
      %v1285 = vrot.slane %v1283, 1
      %v1286 = vrot.slane %v453, 2
      %v1287 = vor.u32 %v1285, %v1286
      %v1288 = vsel %vm1262, %v1275, %v1287
      %v1325 = vunpack.c.l.b16 %v1230
      %v1326 = vunpack.c.h.b16 %v1230
      %v1327 = vunpack.c.l.b16 %v1231
      %v1328 = vunpack.c.h.b16 %v1231
      %v1329 = vunpack.c.l.b16 %v1232
      %v1330 = vunpack.c.h.b16 %v1232
      %v1331 = vunpack.c.l.b16 %v1233
      %v1332 = vunpack.c.h.b16 %v1233
      %v1333 = vunpack.c.l.b16 %v1234
      %v1334 = vunpack.c.h.b16 %v1234
      %v1335 = vunpack.c.l.b16 %v1235
      %v1336 = vunpack.c.h.b16 %v1235
      %v1337 = vunpack.c.l.b16 %v1236
      %v1338 = vunpack.c.h.b16 %v1236
      %v1339 = vunpack.c.l.b16 %v1237
      %v1340 = vunpack.c.h.b16 %v1237
      %v1341 = vunpack.c.l.b16 %v1238
      %v1342 = vunpack.c.h.b16 %v1238
      %v1343 = vunpack.c.l.b16 %v1239
      %v1344 = vunpack.c.h.b16 %v1239
      %v1345 = vunpack.c.l.b16 %v1240
      %v1346 = vunpack.c.h.b16 %v1240
      %v1347 = vunpack.c.l.b16 %v1241
      %v1348 = vunpack.c.h.b16 %v1241
      %v1349 = vunpack.c.l.b16 %v1242
      %v1350 = vunpack.c.h.b16 %v1242
      %v1351 = vunpack.c.l.b16 %v1243
      %v1352 = vunpack.c.h.b16 %v1243
      %v1353 = vunpack.c.l.b16 %v1244
      %v1354 = vunpack.c.h.b16 %v1244
      %v1355 = vunpack.c.l.b16 %v1245
      %v1356 = vunpack.c.h.b16 %v1245
      %v1357 = vunpack.c.l.b16 %v1246
      %v1358 = vunpack.c.h.b16 %v1246
      %v1359 = vunpack.c.l.b16 %v1247
      %v1360 = vunpack.c.h.b16 %v1247
      %v1361 = vunpack.c.l.b16 %v1248
      %v1362 = vunpack.c.h.b16 %v1248
      %v1363 = vunpack.c.l.b16 %v1249
      %v1364 = vunpack.c.h.b16 %v1249
      %v1365 = vunpack.c.l.b16 %v1250
      %v1366 = vunpack.c.h.b16 %v1250
      %v1367 = vunpack.c.l.b16 %v1251
      %v1368 = vunpack.c.h.b16 %v1251
      %v1369 = vunpack.c.l.b16 %v1252
      %v1370 = vunpack.c.h.b16 %v1252
      %v1371 = vunpack.c.l.b16 %v1253
      %v1372 = vunpack.c.h.b16 %v1253
      %v1373 = vunpack.c.l.b16 %v1254
      %v1374 = vunpack.c.h.b16 %v1254
      %v1375 = vunpack.c.l.b16 %v1255
      %v1376 = vunpack.c.h.b16 %v1255
      %v1377 = vunpack.c.l.b16 %v1256
      %v1378 = vunpack.c.h.b16 %v1256
      %v1379 = vunpack.c.l.b16 %v1257
      %v1380 = vunpack.c.h.b16 %v1257
      %v1381 = vunpack.c.l.b16 %v1258
      %v1382 = vunpack.c.h.b16 %v1258
      %v1383 = vunpack.c.l.b16 %v1259
      %v1384 = vunpack.c.h.b16 %v1259
      %v1385 = vunpack.c.l.b16 %v1260
      %v1386 = vunpack.c.h.b16 %v1260
      %v1387 = vunpack.c.l.b16 %v1261
      %v1388 = vunpack.c.h.b16 %v1261
      %v1389 = vpack.c.b16 %v1327, %v1325
      %v1390 = vpack.c.b16 %v1328, %v1326
      %v1391 = vpack.c.b16 %v1331, %v1329
      %v1392 = vpack.c.b16 %v1332, %v1330
      %v1393 = vpack.c.b16 %v1335, %v1333
      %v1394 = vpack.c.b16 %v1336, %v1334
      %v1395 = vpack.c.b16 %v1339, %v1337
      %v1396 = vpack.c.b16 %v1340, %v1338
      %v1397 = vpack.c.b16 %v1343, %v1341
      %v1398 = vpack.c.b16 %v1344, %v1342
      %v1399 = vpack.c.b16 %v1347, %v1345
      %v1400 = vpack.c.b16 %v1348, %v1346
      %v1401 = vpack.c.b16 %v1351, %v1349
      %v1402 = vpack.c.b16 %v1352, %v1350
      %v1403 = vpack.c.b16 %v1355, %v1353
      %v1404 = vpack.c.b16 %v1356, %v1354
      %v1405 = vpack.c.b16 %v1359, %v1357
      %v1406 = vpack.c.b16 %v1360, %v1358
      %v1407 = vpack.c.b16 %v1363, %v1361
      %v1408 = vpack.c.b16 %v1364, %v1362
      %v1409 = vpack.c.b16 %v1367, %v1365
      %v1410 = vpack.c.b16 %v1368, %v1366
      %v1411 = vpack.c.b16 %v1371, %v1369
      %v1412 = vpack.c.b16 %v1372, %v1370
      %v1413 = vpack.c.b16 %v1375, %v1373
      %v1414 = vpack.c.b16 %v1376, %v1374
      %v1415 = vpack.c.b16 %v1379, %v1377
      %v1416 = vpack.c.b16 %v1380, %v1378
      %v1417 = vpack.c.b16 %v1383, %v1381
      %v1418 = vpack.c.b16 %v1384, %v1382
      %v1419 = vpack.c.b16 %v1387, %v1385
      %v1420 = vpack.c.b16 %v1388, %v1386
      %1453 = vmatpush.bf16.msra.mxu0 %v1403
      %1454 = vmatpush.bf16.msra.mxu0 %v1401
      %1455 = vmatpush.bf16.msra.mxu0 %v1399
      %1456 = vmatpush.bf16.msra.mxu0 %v1397
      %1457 = vmatpush.bf16.msra.mxu0 %v1395
      %1458 = vmatpush.bf16.msra.mxu0 %v1393
      %1459 = vmatpush.bf16.msra.mxu0 %v1391
      %1460 = vmatpush.bf16.msra.mxu0 %v1389
      %1461 = vmatmul.bf16.gmra.mxu0 %v1269
      %v1462 = vpop.f32.mrf.mxu0
      %v1463 = vadd.f32 0.0, %v1462
      %v1464 = vpop.f32.mrf.mxu0
      %v1465 = vadd.f32 0.0, %v1464
      %1466 = vmatmul.bf16.gmra.mxu0 %v1282
      %v1467 = vpop.f32.mrf.mxu0
      %v1468 = vadd.f32 0.0, %v1467
      %v1469 = vpop.f32.mrf.mxu0
      %v1470 = vadd.f32 0.0, %v1469
      %1471 = vdwg.mxu0
      %1472 = vmatpush.bf16.msra.mxu0 %v1419
      %1473 = vmatpush.bf16.msra.mxu0 %v1417
      %1474 = vmatpush.bf16.msra.mxu0 %v1415
      %1475 = vmatpush.bf16.msra.mxu0 %v1413
      %1476 = vmatpush.bf16.msra.mxu0 %v1411
      %1477 = vmatpush.bf16.msra.mxu0 %v1409
      %1478 = vmatpush.bf16.msra.mxu0 %v1407
      %1479 = vmatpush.bf16.msra.mxu0 %v1405
      %1480 = vmatmul.bf16.gmra.mxu0 %v1276
      %v1481 = vpop.f32.mrf.mxu0
      %v1482 = vadd.f32 %v1463, %v1481
      %v1483 = vpop.f32.mrf.mxu0
      %v1484 = vadd.f32 %v1465, %v1483
      %1485 = vmatmul.bf16.gmra.mxu0 %v1288
      %v1486 = vpop.f32.mrf.mxu0
      %v1487 = vadd.f32 %v1468, %v1486
      %v1488 = vpop.f32.mrf.mxu0
      %v1489 = vadd.f32 %v1470, %v1488
      %1490 = vdwg.mxu0
      %1491 = vmatpush.bf16.msra.mxu0 %v1404
      %1492 = vmatpush.bf16.msra.mxu0 %v1402
      %1493 = vmatpush.bf16.msra.mxu0 %v1400
      %1494 = vmatpush.bf16.msra.mxu0 %v1398
      %1495 = vmatpush.bf16.msra.mxu0 %v1396
      %1496 = vmatpush.bf16.msra.mxu0 %v1394
      %1497 = vmatpush.bf16.msra.mxu0 %v1392
      %1498 = vmatpush.bf16.msra.mxu0 %v1390
      %1499 = vmatmul.bf16.gmra.mxu0 %v1269
      %v1500 = vpop.f32.mrf.mxu0
      %v1501 = vadd.f32 0.0, %v1500
      %v1502 = vpop.f32.mrf.mxu0
      %v1503 = vadd.f32 0.0, %v1502
      %1504 = vmatmul.bf16.gmra.mxu0 %v1282
      %v1505 = vpop.f32.mrf.mxu0
      %v1506 = vadd.f32 0.0, %v1505
      %v1507 = vpop.f32.mrf.mxu0
      %v1508 = vadd.f32 0.0, %v1507
      %1509 = vdwg.mxu0
      %1510 = vmatpush.bf16.msra.mxu0 %v1420
      %1511 = vmatpush.bf16.msra.mxu0 %v1418
      %1512 = vmatpush.bf16.msra.mxu0 %v1416
      %1513 = vmatpush.bf16.msra.mxu0 %v1414
      %1514 = vmatpush.bf16.msra.mxu0 %v1412
      %1515 = vmatpush.bf16.msra.mxu0 %v1410
      %1516 = vmatpush.bf16.msra.mxu0 %v1408
      %1517 = vmatpush.bf16.msra.mxu0 %v1406
      %1518 = vmatmul.bf16.gmra.mxu0 %v1276
      %v1519 = vpop.f32.mrf.mxu0
      %v1520 = vadd.f32 %v1501, %v1519
      %v1521 = vpop.f32.mrf.mxu0
      %v1522 = vadd.f32 %v1503, %v1521
      %1523 = vmatmul.bf16.gmra.mxu0 %v1288
      %v1524 = vpop.f32.mrf.mxu0
      %v1525 = vadd.f32 %v1506, %v1524
      %v1526 = vpop.f32.mrf.mxu0
      %v1527 = vadd.f32 %v1508, %v1526
      %1528 = vdwg.mxu0
      %v1529 = vadd.f32 %v1221, %v1482
      %v1530 = vadd.f32 %v1222, %v1520
      %v1531 = vadd.f32 %v1223, %v1484
      %v1532 = vadd.f32 %v1224, %v1522
      %v1533 = vadd.f32 %v1225, %v1487
      %v1534 = vadd.f32 %v1226, %v1525
      %v1535 = vadd.f32 %v1227, %v1489
      %v1536 = vadd.f32 %v1228, %v1527
      %s1537 = scalar_lea.vmem %s3, 1024
      %v1538 = vld [vmem:[%s1537] sm:$0xff]
      %v1539 = vld [vmem:[%s1537 + $0x8] sm:$0xff]
      %v1540 = vld [vmem:[%s1537 + $0x10] sm:$0xff]
      %v1541 = vld [vmem:[%s1537 + $0x18] sm:$0xff]
      %v1542 = vld [vmem:[%s1537 + $0x20] sm:$0xff]
      %v1543 = vld [vmem:[%s1537 + $0x28] sm:$0xff]
      %v1544 = vld [vmem:[%s1537 + $0x30] sm:$0xff]
      %v1545 = vld [vmem:[%s1537 + $0x38] sm:$0xff]
      %v1546 = vld [vmem:[%s1537 + $0x40] sm:$0xff]
      %v1547 = vld [vmem:[%s1537 + $0x48] sm:$0xff]
      %v1548 = vld [vmem:[%s1537 + $0x50] sm:$0xff]
      %v1549 = vld [vmem:[%s1537 + $0x58] sm:$0xff]
      %v1550 = vld [vmem:[%s1537 + $0x60] sm:$0xff]
      %v1551 = vld [vmem:[%s1537 + $0x68] sm:$0xff]
      %v1552 = vld [vmem:[%s1537 + $0x70] sm:$0xff]
      %v1553 = vld [vmem:[%s1537 + $0x78] sm:$0xff]
      %v1554 = vld [vmem:[%s1537 + $0x80] sm:$0xff]
      %v1555 = vld [vmem:[%s1537 + $0x88] sm:$0xff]
      %v1556 = vld [vmem:[%s1537 + $0x90] sm:$0xff]
      %v1557 = vld [vmem:[%s1537 + $0x98] sm:$0xff]
      %v1558 = vld [vmem:[%s1537 + $0xa0] sm:$0xff]
      %v1559 = vld [vmem:[%s1537 + $0xa8] sm:$0xff]
      %v1560 = vld [vmem:[%s1537 + $0xb0] sm:$0xff]
      %v1561 = vld [vmem:[%s1537 + $0xb8] sm:$0xff]
      %v1562 = vld [vmem:[%s1537 + $0xc0] sm:$0xff]
      %v1563 = vld [vmem:[%s1537 + $0xc8] sm:$0xff]
      %v1564 = vld [vmem:[%s1537 + $0xd0] sm:$0xff]
      %v1565 = vld [vmem:[%s1537 + $0xd8] sm:$0xff]
      %v1566 = vld [vmem:[%s1537 + $0xe0] sm:$0xff]
      %v1567 = vld [vmem:[%s1537 + $0xe8] sm:$0xff]
      %v1568 = vld [vmem:[%s1537 + $0xf0] sm:$0xff]
      %v1569 = vld [vmem:[%s1537 + $0xf8] sm:$0xff]
      %vm1570 = vcmask 1045504
      %v1571 = vrot.slane %v346, 2
      %v1572 = vrot.slane %v338, 2
      %v1573 = vsel %vm1570, %v1571, %v1572
      %v1574 = vrot.slane %v349, 2
      %v1575 = vrot.slane %v340, 2
      %v1576 = vsel %vm1570, %v1574, %v1575
      %v1577 = vrot.slane %v352, 2
      %v1578 = vsel %vm1570, %v1572, %v1577
      %v1579 = vrot.slane %v354, 2
      %v1580 = vsel %vm1570, %v1575, %v1579
      %v1617 = vunpack.c.l.b16 %v1538
      %v1618 = vunpack.c.h.b16 %v1538
      %v1619 = vunpack.c.l.b16 %v1539
      %v1620 = vunpack.c.h.b16 %v1539
      %v1621 = vunpack.c.l.b16 %v1540
      %v1622 = vunpack.c.h.b16 %v1540
      %v1623 = vunpack.c.l.b16 %v1541
      %v1624 = vunpack.c.h.b16 %v1541
      %v1625 = vunpack.c.l.b16 %v1542
      %v1626 = vunpack.c.h.b16 %v1542
      %v1627 = vunpack.c.l.b16 %v1543
      %v1628 = vunpack.c.h.b16 %v1543
      %v1629 = vunpack.c.l.b16 %v1544
      %v1630 = vunpack.c.h.b16 %v1544
      %v1631 = vunpack.c.l.b16 %v1545
      %v1632 = vunpack.c.h.b16 %v1545
      %v1633 = vunpack.c.l.b16 %v1546
      %v1634 = vunpack.c.h.b16 %v1546
      %v1635 = vunpack.c.l.b16 %v1547
      %v1636 = vunpack.c.h.b16 %v1547
      %v1637 = vunpack.c.l.b16 %v1548
      %v1638 = vunpack.c.h.b16 %v1548
      %v1639 = vunpack.c.l.b16 %v1549
      %v1640 = vunpack.c.h.b16 %v1549
      %v1641 = vunpack.c.l.b16 %v1550
      %v1642 = vunpack.c.h.b16 %v1550
      %v1643 = vunpack.c.l.b16 %v1551
      %v1644 = vunpack.c.h.b16 %v1551
      %v1645 = vunpack.c.l.b16 %v1552
      %v1646 = vunpack.c.h.b16 %v1552
      %v1647 = vunpack.c.l.b16 %v1553
      %v1648 = vunpack.c.h.b16 %v1553
      %v1649 = vunpack.c.l.b16 %v1554
      %v1650 = vunpack.c.h.b16 %v1554
      %v1651 = vunpack.c.l.b16 %v1555
      %v1652 = vunpack.c.h.b16 %v1555
      %v1653 = vunpack.c.l.b16 %v1556
      %v1654 = vunpack.c.h.b16 %v1556
      %v1655 = vunpack.c.l.b16 %v1557
      %v1656 = vunpack.c.h.b16 %v1557
      %v1657 = vunpack.c.l.b16 %v1558
      %v1658 = vunpack.c.h.b16 %v1558
      %v1659 = vunpack.c.l.b16 %v1559
      %v1660 = vunpack.c.h.b16 %v1559
      %v1661 = vunpack.c.l.b16 %v1560
      %v1662 = vunpack.c.h.b16 %v1560
      %v1663 = vunpack.c.l.b16 %v1561
      %v1664 = vunpack.c.h.b16 %v1561
      %v1665 = vunpack.c.l.b16 %v1562
      %v1666 = vunpack.c.h.b16 %v1562
      %v1667 = vunpack.c.l.b16 %v1563
      %v1668 = vunpack.c.h.b16 %v1563
      %v1669 = vunpack.c.l.b16 %v1564
      %v1670 = vunpack.c.h.b16 %v1564
      %v1671 = vunpack.c.l.b16 %v1565
      %v1672 = vunpack.c.h.b16 %v1565
      %v1673 = vunpack.c.l.b16 %v1566
      %v1674 = vunpack.c.h.b16 %v1566
      %v1675 = vunpack.c.l.b16 %v1567
      %v1676 = vunpack.c.h.b16 %v1567
      %v1677 = vunpack.c.l.b16 %v1568
      %v1678 = vunpack.c.h.b16 %v1568
      %v1679 = vunpack.c.l.b16 %v1569
      %v1680 = vunpack.c.h.b16 %v1569
      %v1681 = vpack.c.b16 %v1619, %v1617
      %v1682 = vpack.c.b16 %v1620, %v1618
      %v1683 = vpack.c.b16 %v1623, %v1621
      %v1684 = vpack.c.b16 %v1624, %v1622
      %v1685 = vpack.c.b16 %v1627, %v1625
      %v1686 = vpack.c.b16 %v1628, %v1626
      %v1687 = vpack.c.b16 %v1631, %v1629
      %v1688 = vpack.c.b16 %v1632, %v1630
      %v1689 = vpack.c.b16 %v1635, %v1633
      %v1690 = vpack.c.b16 %v1636, %v1634
      %v1691 = vpack.c.b16 %v1639, %v1637
      %v1692 = vpack.c.b16 %v1640, %v1638
      %v1693 = vpack.c.b16 %v1643, %v1641
      %v1694 = vpack.c.b16 %v1644, %v1642
      %v1695 = vpack.c.b16 %v1647, %v1645
      %v1696 = vpack.c.b16 %v1648, %v1646
      %v1697 = vpack.c.b16 %v1651, %v1649
      %v1698 = vpack.c.b16 %v1652, %v1650
      %v1699 = vpack.c.b16 %v1655, %v1653
      %v1700 = vpack.c.b16 %v1656, %v1654
      %v1701 = vpack.c.b16 %v1659, %v1657
      %v1702 = vpack.c.b16 %v1660, %v1658
      %v1703 = vpack.c.b16 %v1663, %v1661
      %v1704 = vpack.c.b16 %v1664, %v1662
      %v1705 = vpack.c.b16 %v1667, %v1665
      %v1706 = vpack.c.b16 %v1668, %v1666
      %v1707 = vpack.c.b16 %v1671, %v1669
      %v1708 = vpack.c.b16 %v1672, %v1670
      %v1709 = vpack.c.b16 %v1675, %v1673
      %v1710 = vpack.c.b16 %v1676, %v1674
      %v1711 = vpack.c.b16 %v1679, %v1677
      %v1712 = vpack.c.b16 %v1680, %v1678
      %1745 = vmatpush.bf16.msra.mxu0 %v1695
      %1746 = vmatpush.bf16.msra.mxu0 %v1693
      %1747 = vmatpush.bf16.msra.mxu0 %v1691
      %1748 = vmatpush.bf16.msra.mxu0 %v1689
      %1749 = vmatpush.bf16.msra.mxu0 %v1687
      %1750 = vmatpush.bf16.msra.mxu0 %v1685
      %1751 = vmatpush.bf16.msra.mxu0 %v1683
      %1752 = vmatpush.bf16.msra.mxu0 %v1681
      %1753 = vmatmul.bf16.gmra.mxu0 %v1573
      %v1754 = vpop.f32.mrf.mxu0
      %v1755 = vadd.f32 0.0, %v1754
      %v1756 = vpop.f32.mrf.mxu0
      %v1757 = vadd.f32 0.0, %v1756
      %1758 = vmatmul.bf16.gmra.mxu0 %v1578
      %v1759 = vpop.f32.mrf.mxu0
      %v1760 = vadd.f32 0.0, %v1759
      %v1761 = vpop.f32.mrf.mxu0
      %v1762 = vadd.f32 0.0, %v1761
      %1763 = vdwg.mxu0
      %1764 = vmatpush.bf16.msra.mxu0 %v1711
      %1765 = vmatpush.bf16.msra.mxu0 %v1709
      %1766 = vmatpush.bf16.msra.mxu0 %v1707
      %1767 = vmatpush.bf16.msra.mxu0 %v1705
      %1768 = vmatpush.bf16.msra.mxu0 %v1703
      %1769 = vmatpush.bf16.msra.mxu0 %v1701
      %1770 = vmatpush.bf16.msra.mxu0 %v1699
      %1771 = vmatpush.bf16.msra.mxu0 %v1697
      %1772 = vmatmul.bf16.gmra.mxu0 %v1576
      %v1773 = vpop.f32.mrf.mxu0
      %v1774 = vadd.f32 %v1755, %v1773
      %v1775 = vpop.f32.mrf.mxu0
      %v1776 = vadd.f32 %v1757, %v1775
      %1777 = vmatmul.bf16.gmra.mxu0 %v1580
      %v1778 = vpop.f32.mrf.mxu0
      %v1779 = vadd.f32 %v1760, %v1778
      %v1780 = vpop.f32.mrf.mxu0
      %v1781 = vadd.f32 %v1762, %v1780
      %1782 = vdwg.mxu0
      %1783 = vmatpush.bf16.msra.mxu0 %v1696
      %1784 = vmatpush.bf16.msra.mxu0 %v1694
      %1785 = vmatpush.bf16.msra.mxu0 %v1692
      %1786 = vmatpush.bf16.msra.mxu0 %v1690
      %1787 = vmatpush.bf16.msra.mxu0 %v1688
      %1788 = vmatpush.bf16.msra.mxu0 %v1686
      %1789 = vmatpush.bf16.msra.mxu0 %v1684
      %1790 = vmatpush.bf16.msra.mxu0 %v1682
      %1791 = vmatmul.bf16.gmra.mxu0 %v1573
      %v1792 = vpop.f32.mrf.mxu0
      %v1793 = vadd.f32 0.0, %v1792
      %v1794 = vpop.f32.mrf.mxu0
      %v1795 = vadd.f32 0.0, %v1794
      %1796 = vmatmul.bf16.gmra.mxu0 %v1578
      %v1797 = vpop.f32.mrf.mxu0
      %v1798 = vadd.f32 0.0, %v1797
      %v1799 = vpop.f32.mrf.mxu0
      %v1800 = vadd.f32 0.0, %v1799
      %1801 = vdwg.mxu0
      %1802 = vmatpush.bf16.msra.mxu0 %v1712
      %1803 = vmatpush.bf16.msra.mxu0 %v1710
      %1804 = vmatpush.bf16.msra.mxu0 %v1708
      %1805 = vmatpush.bf16.msra.mxu0 %v1706
      %1806 = vmatpush.bf16.msra.mxu0 %v1704
      %1807 = vmatpush.bf16.msra.mxu0 %v1702
      %1808 = vmatpush.bf16.msra.mxu0 %v1700
      %1809 = vmatpush.bf16.msra.mxu0 %v1698
      %1810 = vmatmul.bf16.gmra.mxu0 %v1576
      %v1811 = vpop.f32.mrf.mxu0
      %v1812 = vadd.f32 %v1793, %v1811
      %v1813 = vpop.f32.mrf.mxu0
      %v1814 = vadd.f32 %v1795, %v1813
      %1815 = vmatmul.bf16.gmra.mxu0 %v1580
      %v1816 = vpop.f32.mrf.mxu0
      %v1817 = vadd.f32 %v1798, %v1816
      %v1818 = vpop.f32.mrf.mxu0
      %v1819 = vadd.f32 %v1800, %v1818
      %1820 = vdwg.mxu0
      %v1821 = vadd.f32 %v1529, %v1774
      %v1822 = vadd.f32 %v1530, %v1812
      %v1823 = vadd.f32 %v1531, %v1776
      %v1824 = vadd.f32 %v1532, %v1814
      %v1825 = vadd.f32 %v1533, %v1779
      %v1826 = vadd.f32 %v1534, %v1817
      %v1827 = vadd.f32 %v1535, %v1781
      %v1828 = vadd.f32 %v1536, %v1819
      %v1829 = vld [vmem:[%s4] sm:$0x3]
      %v1831 = vperm.slane %v1829, 0
      %v1832 = vperm.slane %v1829, 1
      %v1835 = vadd.f32 %v1821, %v1831
      %v1836 = vadd.f32 %v1822, %v1832
      %v1837 = vadd.f32 %v1823, %v1831
      %v1838 = vadd.f32 %v1824, %v1832
      %v1839 = vadd.f32 %v1825, %v1831
      %v1840 = vadd.f32 %v1826, %v1832
      %v1841 = vadd.f32 %v1827, %v1831
      %v1842 = vadd.f32 %v1828, %v1832
      %v1843 = vpack.c.bf16 %v1836, %v1835
      %v1844 = vpack.c.bf16 %v1838, %v1837
      %v1845 = vpack.c.bf16 %v1840, %v1839
      %v1846 = vpack.c.bf16 %v1842, %v1841
      %1847 = vst [vmem:[%s259] sm:$0xff] %v1843
      %1848 = vst [vmem:[%s259 + $0x8] sm:$0xff] %v1844
      %1849 = vst [vmem:[%s259 + $0x10] sm:$0xff] %v1845
      %1850 = vst [vmem:[%s259 + $0x18] sm:$0xff] %v1846
      %v1851 = vadd.f32 %v1835, %v1837
      %v1852 = vadd.f32 %v1851, %v1839
      %v1853 = vadd.f32 %v1852, %v1841
      %v1854 = vrot.slane %v1853, 4
      %v1855 = vadd.f32 %v1853, %v1854
      %v1856 = vrot.slane %v1855, 2
      %v1857 = vadd.f32 %v1855, %v1856
      %v1858 = vrot.slane %v1857, 1
      %v1859 = vadd.f32 %v1857, %v1858
      %v1860 = vadd.f32 %v1836, %v1838
      %v1861 = vadd.f32 %v1860, %v1840
      %v1862 = vadd.f32 %v1861, %v1842
      %v1863 = vrot.slane %v1862, 4
      %v1864 = vadd.f32 %v1862, %v1863
      %v1865 = vrot.slane %v1864, 2
      %v1866 = vadd.f32 %v1864, %v1865
      %v1867 = vrot.slane %v1866, 1
      %v1868 = vadd.f32 %v1866, %v1867
      %v1869 = vmul.f32 %v1835, %v1835
      %v1870 = vmul.f32 %v1836, %v1836
      %v1871 = vmul.f32 %v1837, %v1837
      %v1872 = vmul.f32 %v1838, %v1838
      %v1873 = vmul.f32 %v1839, %v1839
      %v1874 = vmul.f32 %v1840, %v1840
      %v1875 = vmul.f32 %v1841, %v1841
      %v1876 = vmul.f32 %v1842, %v1842
      %v1877 = vadd.f32 %v1869, %v1871
      %v1878 = vadd.f32 %v1877, %v1873
      %v1879 = vadd.f32 %v1878, %v1875
      %v1880 = vrot.slane %v1879, 4
      %v1881 = vadd.f32 %v1879, %v1880
      %v1882 = vrot.slane %v1881, 2
      %v1883 = vadd.f32 %v1881, %v1882
      %v1884 = vrot.slane %v1883, 1
      %v1885 = vadd.f32 %v1883, %v1884
      %v1886 = vadd.f32 %v1870, %v1872
      %v1887 = vadd.f32 %v1886, %v1874
      %v1888 = vadd.f32 %v1887, %v1876
      %v1889 = vrot.slane %v1888, 4
      %v1890 = vadd.f32 %v1888, %v1889
      %v1891 = vrot.slane %v1890, 2
      %v1892 = vadd.f32 %v1890, %v1891
      %v1893 = vrot.slane %v1892, 1
      %v1894 = vadd.f32 %v1892, %v1893
      %v1895 = vsel %vm343, %v1859, %v1885
      %v1896 = vsel %vm343, %v1868, %v1894
      %v1899 = vrot.slane %v1896, 6
      %vm1900 = vcmask 1041408
      %v1901 = vsel %vm1900, %v1895, %v1899
      %1903 = vst [vmem:[%s264] sm:$0xf] %v1901
      %p1904 = scmp.lt.s32.totalorder %s18, 1
      %s1905 = scalar_select %p1904, %s18, 1
      %s1906 = smul.addr %s1905, 8
      %s1907 = smul.addr %s1906, 4
      %s1908 = scalar_lea.vmem %s5, %s1907
      %p1909 = scmp.lt.s32.totalorder %s18, 1
      %s1910 = scalar_select %p1909, %s18, 1
      %s1911 = smul.addr %s1910, 2
      %s1912 = smul.addr %s1911, 2
      %s1913 = scalar_lea.vmem %s6, %s1912
      // Predicated region
      $region41: #{decoder_forward.4} parent=39 // pred_check
        %p1914 = pneg %p146
      $region42: #{decoder_forward.4} parent=39 // pred_check_branch
        %1916 = sbr.rel (%p1914) target = $region44
      $region43: #{decoder_forward.4} parent=39 // pred_region
        _
      $region44: #{decoder_forward.4} parent=39 // pred_fallthru
        _
      // Predicated region
      $region45: #{decoder_forward.4} parent=39 // pred_check
        %p1917 = pneg %p172
      $region46: #{decoder_forward.4} parent=39 // pred_check_branch
        %1919 = sbr.rel (%p1917) target = $region48
      $region47: #{decoder_forward.4} parent=39 // pred_region
        _
      $region48: #{decoder_forward.4} parent=39 // pred_fallthru
        _
    $region40: #{decoder_forward.4} parent=5 // pred_fallthru
      _
    %p1920 = scmp.le.s32.totalorder 2, %s13
    // Predicated region
    $region49: #{decoder_forward.4} parent=5 // pred_check
      %p1921 = pneg %p1920
    $region50: #{decoder_forward.4} parent=5 // pred_check_branch
      %1923 = sbr.rel (%p1921) target = $region52
    $region51: #{decoder_forward.4} parent=5 // pred_region
      %s1924 = ssub.s32 %s13, 2
      // Predicated region
      $region53: #{decoder_forward.4} parent=51 // pred_check
        %p1925 = pneg %p152
      $region54: #{decoder_forward.4} parent=51 // pred_check_branch
        %1927 = sbr.rel (%p1925) target = $region56
      $region55: #{decoder_forward.4} parent=51 // pred_region
        %p1928 = scmp.lt.s32.totalorder %s19, 1
        %s1929 = scalar_select %p1928, %s19, 1
        %s1930 = smul.addr %s1929, 8
        %s1931 = smul.addr %s1930, 4
        %s1932 = scalar_lea.vmem %s5, %s1931
      $region56: #{decoder_forward.4} parent=51 // pred_fallthru
        _
      // Predicated region
      $region57: #{decoder_forward.4} parent=51 // pred_check
        %p1933 = pneg %p178
      $region58: #{decoder_forward.4} parent=51 // pred_check_branch
        %1935 = sbr.rel (%p1933) target = $region60
      $region59: #{decoder_forward.4} parent=51 // pred_region
        %p1936 = scmp.lt.s32.totalorder %s19, 1
        %s1937 = scalar_select %p1936, %s19, 1
        %s1938 = smul.addr %s1937, 2
        %s1939 = smul.addr %s1938, 2
        %s1940 = scalar_lea.vmem %s6, %s1939
      $region60: #{decoder_forward.4} parent=51 // pred_fallthru
        _
    $region52: #{decoder_forward.4} parent=5 // pred_fallthru
      _
  $region6: #{decoder_forward.4} parent=0 // loop_footer
    %s17 = sadd.s32 1, %s13
  $region7: #{decoder_forward.4} parent=0 // loop_footer_branch
    %12 = sbr.rel target = $region3
  $region8: #{decoder_forward.4} parent=0 // loop_exit
    _

// kernel: decoder_forward.5
$region0: #{decoder_forward.5}
  #allocation0 [shape = 'u32[]', space=smem, size = 0x4, offset = 0x4, fixed_abs, tag = 'smem constant byte address 0x4 - core index']
  #allocation1 [shape = 'u32[72,128]{1,0:T(1,128)}', space=vmem, size = 0x9000, scoped, tag = 'internal scratch']
  %s0 = inlined_call_operand.vmem [shape: bf16[2,32,256], index: 0, kind: input, shape index: {}]
  %s1 = inlined_call_operand.vmem [shape: f32[1,256], index: 1, kind: input, shape index: {}]
  %s2 = inlined_call_operand.vmem [shape: f32[1,256], index: 2, kind: input, shape index: {}]
  %s3 = inlined_call_operand.hbm [shape: f32[2,8,32,32], index: 3, kind: output, shape index: {}]
  %s4 = sld [smem:[#allocation0]]
  $region45: #{decoder_forward.5} parent=0
    _
  %s6 = ssub.s32 1, %s4
  %s7 = scalar_select 0, %s6, %s4
  $region1: #{decoder_forward.5} parent=0
    #allocation2 [shape = 'u8[262144]{0}', space=vmem, size = 0x40000, scoped, tag = 'output window, operand 0']
    #allocation3 [shape = 's32[2]{0}', space=sflag, size = 0x8, scoped, tag = 'scoped memory for decoder_forward.5']
    %8 = vsyncpa [#allocation3], 0
    %s9 = scalar_lea.sflag [#allocation3], 1
    %10 = vsyncpa %s9, 0
    loop: start=0, step=1, limit=4
    $region2: #{decoder_forward.5} parent=1 // loop_pre_header
      _
    $region3: #{decoder_forward.5} parent=1 // loop_header
      %s12 = sphi 0, %s16
      %p13 = scmp.ge.s32.totalorder %s12, 4
      %s22 = sphi 0, %s24
      %s25 = sphi 0, %s22
      %s26 = sphi 0, %s25
      %s42 = sphi 0, %s26
      %s46 = sphi 0, %s46
      %s48 = sphi 0, %s46
      %s49 = sphi 0, %s48
      %s63 = sphi 0, %s49
      %s67 = sphi 0, %s67
      %s69 = sphi 0, %s67
      %s70 = sphi 0, %s69
      %s84 = sphi 0, %s70
      %s90 = sphi 0, %s92
      %s93 = sphi 0, %s90
      %s94 = sphi 0, %s93
      %s110 = sphi 0, %s94
    $region4: #{decoder_forward.5} parent=1 // loop_header_branch
      %15 = sbr.rel (%p13) target = $region8
    $region5: #{decoder_forward.5} parent=1 // loop_body
      %s17 = ssub.s32 %s12, 1
      %s18 = ssub.s32 %s12, 2
      %s19 = sadd.s32 %s12, 1
      %s20 = ssub.s32 %s12, %s19
      %p21 = scmp.eq.s32.totalorder %s20, 0
      %s23 = sadd.s32 %s22, 1
      %s24 = scalar_select %p21, %s22, %s23
      %p27 = pneg %p21
      %p28 = scmp.eq.s32.totalorder %s12, 1
      %p29 = por %p27, %p28
      %p30 = scmp.ne.s32.totalorder %s22, %s25
      %p31 = scmp.eq.s32.totalorder %s12, 0
      %p32 = por %p30, %p31
      %p33 = scmp.ne.s32.totalorder %s22, %s25
      %p34 = scmp.eq.s32.totalorder %s17, 1
      %p35 = por %p33, %p34
      %p36 = scmp.ne.s32.totalorder %s25, %s26
      %p37 = scmp.eq.s32.totalorder %s17, 0
      %p38 = por %p36, %p37
      %p39 = scmp.ne.s32.totalorder %s25, %s26
      %p40 = scmp.eq.s32.totalorder %s18, 1
      %p41 = por %p39, %p40
      %p43 = scmp.ne.s32.totalorder %s26, %s42
      %p44 = scmp.eq.s32.totalorder %s18, 0
      %p45 = por %p43, %p44
      %s47 = sadd.s32 %s46, 1
      %p50 = scmp.eq.s32.totalorder %s12, 1
      %p51 = scmp.ne.s32.totalorder %s46, %s48
      %p52 = scmp.eq.s32.totalorder %s12, 0
      %p53 = por %p51, %p52
      %p54 = scmp.ne.s32.totalorder %s46, %s48
      %p55 = scmp.eq.s32.totalorder %s17, 1
      %p56 = por %p54, %p55
      %p57 = scmp.ne.s32.totalorder %s48, %s49
      %p58 = scmp.eq.s32.totalorder %s17, 0
      %p59 = por %p57, %p58
      %p60 = scmp.ne.s32.totalorder %s48, %s49
      %p61 = scmp.eq.s32.totalorder %s18, 1
      %p62 = por %p60, %p61
      %p64 = scmp.ne.s32.totalorder %s49, %s63
      %p65 = scmp.eq.s32.totalorder %s18, 0
      %p66 = por %p64, %p65
      %s68 = sadd.s32 %s67, 1
      %p71 = scmp.eq.s32.totalorder %s12, 1
      %p72 = scmp.ne.s32.totalorder %s67, %s69
      %p73 = scmp.eq.s32.totalorder %s12, 0
      %p74 = por %p72, %p73
      %p75 = scmp.ne.s32.totalorder %s67, %s69
      %p76 = scmp.eq.s32.totalorder %s17, 1
      %p77 = por %p75, %p76
      %p78 = scmp.ne.s32.totalorder %s69, %s70
      %p79 = scmp.eq.s32.totalorder %s17, 0
      %p80 = por %p78, %p79
      %p81 = scmp.ne.s32.totalorder %s69, %s70
      %p82 = scmp.eq.s32.totalorder %s18, 1
      %p83 = por %p81, %p82
      %p85 = scmp.ne.s32.totalorder %s70, %s84
      %p86 = scmp.eq.s32.totalorder %s18, 0
      %p87 = por %p85, %p86
      %s88 = ssub.s32 %s12, %s19
      %p89 = scmp.eq.s32.totalorder %s88, 0
      %s91 = sadd.s32 %s90, 1
      %s92 = scalar_select %p89, %s90, %s91
      %p95 = pneg %p89
      %p96 = scmp.eq.s32.totalorder %s12, 1
      %p97 = por %p95, %p96
      %p98 = scmp.ne.s32.totalorder %s90, %s93
      %p99 = scmp.eq.s32.totalorder %s12, 0
      %p100 = por %p98, %p99
      %p101 = scmp.ne.s32.totalorder %s90, %s93
      %p102 = scmp.eq.s32.totalorder %s17, 1
      %p103 = por %p101, %p102
      %p104 = scmp.ne.s32.totalorder %s93, %s94
      %p105 = scmp.eq.s32.totalorder %s17, 0
      %p106 = por %p104, %p105
      %p107 = scmp.ne.s32.totalorder %s93, %s94
      %p108 = scmp.eq.s32.totalorder %s18, 1
      %p109 = por %p107, %p108
      %p111 = scmp.ne.s32.totalorder %s94, %s110
      %p112 = scmp.eq.s32.totalorder %s18, 0
      %p113 = por %p111, %p112
      %p114 = scmp.le.s32.totalorder 1, %s12
      %p115 = scmp.lt.s32.totalorder %s12, 3
      %p116 = pnand %p114, %p115
      %p117 = pneg %p116
      // Predicated region
      $region9: #{decoder_forward.5} parent=5 // pred_check
        _
      $region10: #{decoder_forward.5} parent=5 // pred_check_branch
        %119 = sbr.rel (%p116) target = $region12
      $region11: #{decoder_forward.5} parent=5 // pred_region
        %s120 = ssub.s32 %s12, 1
        // Predicated region
        $region13: #{decoder_forward.5} parent=11 // pred_check
          %p121 = pneg %p59
        $region14: #{decoder_forward.5} parent=11 // pred_check_branch
          %123 = sbr.rel (%p121) target = $region16
        $region15: #{decoder_forward.5} parent=11 // pred_region
          _
        $region16: #{decoder_forward.5} parent=11 // pred_fallthru
          _
        // Predicated region
        $region17: #{decoder_forward.5} parent=11 // pred_check
          %p124 = pneg %p80
        $region18: #{decoder_forward.5} parent=11 // pred_check_branch
          %126 = sbr.rel (%p124) target = $region20
        $region19: #{decoder_forward.5} parent=11 // pred_region
          _
        $region20: #{decoder_forward.5} parent=11 // pred_fallthru
          _
      $region12: #{decoder_forward.5} parent=5 // pred_fallthru
        _
      %p127 = scmp.lt.s32.totalorder %s12, 2
      // Predicated region
      $region21: #{decoder_forward.5} parent=5 // pred_check
        %p128 = pneg %p127
      $region22: #{decoder_forward.5} parent=5 // pred_check_branch
        %130 = sbr.rel (%p128) target = $region24
      $region23: #{decoder_forward.5} parent=5 // pred_region
        // Predicated region
        $region25: #{decoder_forward.5} parent=23 // pred_check
          %p131 = pneg %p32
        $region26: #{decoder_forward.5} parent=23 // pred_check_branch
          %133 = sbr.rel (%p131) target = $region28
        $region27: #{decoder_forward.5} parent=23 // pred_region
          %p134 = scmp.lt.s32.totalorder %s12, 1
          %s135 = scalar_select %p134, %s12, 1
          %s136 = smul.addr %s135, 8
          %s137 = smul.addr %s136, 4
          %s138 = scalar_lea.vmem %s0, %s137
        $region28: #{decoder_forward.5} parent=23 // pred_fallthru
          _
      $region24: #{decoder_forward.5} parent=5 // pred_fallthru
        _
      %p139 = scmp.le.s32.totalorder 1, %s12
      %p140 = scmp.lt.s32.totalorder %s12, 3
      %p141 = pnand %p139, %p140
      %p142 = pneg %p141
      // Predicated region
      $region29: #{decoder_forward.5} parent=5 // pred_check
        _
      $region30: #{decoder_forward.5} parent=5 // pred_check_branch
        %144 = sbr.rel (%p141) target = $region32
      $region31: #{decoder_forward.5} parent=5 // pred_region
        %s145 = ssub.s32 %s12, 1
        %p146 = scmp.lt.s32.totalorder %s17, 1
        %s147 = scalar_select %p146, %s17, 1
        %s148 = smul.addr %s147, 8
        %s149 = smul.addr %s148, 4
        %s150 = scalar_lea.vmem %s0, %s149
        %p151 = pneg %p38
        %p152 = pneg %p35
        %p153 = pneg %p59
        %p154 = pneg %p56
        %p155 = pneg %p80
        %p156 = pneg %p77
        %p157 = pneg %p106
        %p158 = pneg %p103
        %s159 = sand.u32 %s93, 1
        %s160 = scalar_lea.sflag [#allocation3], %s159
        %s161 = sand.u32 %s93, 1
        %s162 = smul.addr %s161, 256
        %s163 = scalar_lea.vmem [#allocation2], %s162
        %p164 = scmp.lt.s32.totalorder %s17, 1
        %s165 = scalar_select %p164, %s17, 1
        %s166 = smul.addr %s165, 8
        %s167 = smul.addr %s166, 4
        %s168 = scalar_lea.vmem %s0, %s167
        %v169 = vld [vmem:[%s168] sm:$0xff]
        %v170 = vld [vmem:[%s168 + $0x8] sm:$0xff]
        %v171 = vld [vmem:[%s168 + $0x10] sm:$0xff]
        %v172 = vld [vmem:[%s168 + $0x18] sm:$0xff]
        %v173 = vunpack.c.l.bf16 %v169
        %v174 = vunpack.c.h.bf16 %v169
        %v175 = vunpack.c.l.bf16 %v170
        %v176 = vunpack.c.h.bf16 %v170
        %v177 = vunpack.c.l.bf16 %v171
        %v178 = vunpack.c.h.bf16 %v171
        %v179 = vunpack.c.l.bf16 %v172
        %v180 = vunpack.c.h.bf16 %v172
        %v181 = vld [vmem:[%s1] sm:$0x3]
        %v183 = vperm.slane %v181, 0
        %v184 = vperm.slane %v181, 1
        %v187 = vmul.f32 %v173, %v183
        %v188 = vmul.f32 %v174, %v184
        %v189 = vmul.f32 %v175, %v183
        %v190 = vmul.f32 %v176, %v184
        %v191 = vmul.f32 %v177, %v183
        %v192 = vmul.f32 %v178, %v184
        %v193 = vmul.f32 %v179, %v183
        %v194 = vmul.f32 %v180, %v184
        %v195 = vld [vmem:[%s2] sm:$0x3]
        %v197 = vperm.slane %v195, 0
        %v198 = vperm.slane %v195, 1
        %v201 = vadd.f32 %v187, %v197
        %v202 = vadd.f32 %v188, %v198
        %v203 = vadd.f32 %v189, %v197
        %v204 = vadd.f32 %v190, %v198
        %v205 = vadd.f32 %v191, %v197
        %v206 = vadd.f32 %v192, %v198
        %v207 = vadd.f32 %v193, %v197
        %v208 = vadd.f32 %v194, %v198
        %v209 = vmax.f32 %v201, 0.0
        %v210 = vmax.f32 %v202, 0.0
        %v211 = vmax.f32 %v203, 0.0
        %v212 = vmax.f32 %v204, 0.0
        %v213 = vmax.f32 %v205, 0.0
        %v214 = vmax.f32 %v206, 0.0
        %v215 = vmax.f32 %v207, 0.0
        %v216 = vmax.f32 %v208, 0.0
        %vm217 = vcmask 261120
        %218 = vst.msk [vmem:[%s163] sm:$0xff] %vm217, %v209
        %219 = vst.msk [vmem:[%s163 + $0x8] sm:$0xff] %vm217, %v211
        %220 = vst.msk [vmem:[%s163 + $0x10] sm:$0xff] %vm217, %v213
        %221 = vst.msk [vmem:[%s163 + $0x18] sm:$0xff] %vm217, %v215
        %226 = vrot.lane.b32.xlu0 %v209, 96
        %v227 = vpop.permute.xlu0 %226
        %228 = vrot.lane.b32.xlu0 %v211, 96
        %v229 = vpop.permute.xlu0 %228
        %230 = vrot.lane.b32.xlu0 %v213, 96
        %v231 = vpop.permute.xlu0 %230
        %232 = vrot.lane.b32.xlu0 %v215, 96
        %v233 = vpop.permute.xlu0 %232
        %s238 = scalar_lea.vmem %s163, 32 [#allocation2]
        %239 = vst.msk [vmem:[%s238] sm:$0xff] %vm217, %v227
        %240 = vst.msk [vmem:[%s238 + $0x8] sm:$0xff] %vm217, %v229
        %241 = vst.msk [vmem:[%s238 + $0x10] sm:$0xff] %vm217, %v231
        %242 = vst.msk [vmem:[%s238 + $0x18] sm:$0xff] %vm217, %v233
        %243 = vrot.lane.b32.xlu0 %v209, 64
        %v244 = vpop.permute.xlu0 %243
        %245 = vrot.lane.b32.xlu0 %v211, 64
        %v246 = vpop.permute.xlu0 %245
        %247 = vrot.lane.b32.xlu0 %v213, 64
        %v248 = vpop.permute.xlu0 %247
        %249 = vrot.lane.b32.xlu0 %v215, 64
        %v250 = vpop.permute.xlu0 %249
        %s255 = scalar_lea.vmem %s163, 64 [#allocation2]
        %256 = vst.msk [vmem:[%s255] sm:$0xff] %vm217, %v244
        %257 = vst.msk [vmem:[%s255 + $0x8] sm:$0xff] %vm217, %v246
        %258 = vst.msk [vmem:[%s255 + $0x10] sm:$0xff] %vm217, %v248
        %259 = vst.msk [vmem:[%s255 + $0x18] sm:$0xff] %vm217, %v250
        %260 = vrot.lane.b32.xlu0 %v209, 32
        %v261 = vpop.permute.xlu0 %260
        %262 = vrot.lane.b32.xlu0 %v211, 32
        %v263 = vpop.permute.xlu0 %262
        %264 = vrot.lane.b32.xlu0 %v213, 32
        %v265 = vpop.permute.xlu0 %264
        %266 = vrot.lane.b32.xlu0 %v215, 32
        %v267 = vpop.permute.xlu0 %266
        %s272 = scalar_lea.vmem %s163, 96 [#allocation2]
        %273 = vst.msk [vmem:[%s272] sm:$0xff] %vm217, %v261
        %274 = vst.msk [vmem:[%s272 + $0x8] sm:$0xff] %vm217, %v263
        %275 = vst.msk [vmem:[%s272 + $0x10] sm:$0xff] %vm217, %v265
        %276 = vst.msk [vmem:[%s272 + $0x18] sm:$0xff] %vm217, %v267
        %s277 = scalar_lea.vmem %s163, 128 [#allocation2]
        %278 = vst.msk [vmem:[%s277] sm:$0xff] %vm217, %v210
        %279 = vst.msk [vmem:[%s277 + $0x8] sm:$0xff] %vm217, %v212
        %280 = vst.msk [vmem:[%s277 + $0x10] sm:$0xff] %vm217, %v214
        %281 = vst.msk [vmem:[%s277 + $0x18] sm:$0xff] %vm217, %v216
        %286 = vrot.lane.b32.xlu0 %v210, 96
        %v287 = vpop.permute.xlu0 %286
        %288 = vrot.lane.b32.xlu0 %v212, 96
        %v289 = vpop.permute.xlu0 %288
        %290 = vrot.lane.b32.xlu0 %v214, 96
        %v291 = vpop.permute.xlu0 %290
        %292 = vrot.lane.b32.xlu0 %v216, 96
        %v293 = vpop.permute.xlu0 %292
        %s298 = scalar_lea.vmem %s163, 160 [#allocation2]
        %299 = vst.msk [vmem:[%s298] sm:$0xff] %vm217, %v287
        %300 = vst.msk [vmem:[%s298 + $0x8] sm:$0xff] %vm217, %v289
        %301 = vst.msk [vmem:[%s298 + $0x10] sm:$0xff] %vm217, %v291
        %302 = vst.msk [vmem:[%s298 + $0x18] sm:$0xff] %vm217, %v293
        %303 = vrot.lane.b32.xlu0 %v210, 64
        %v304 = vpop.permute.xlu0 %303
        %305 = vrot.lane.b32.xlu0 %v212, 64
        %v306 = vpop.permute.xlu0 %305
        %307 = vrot.lane.b32.xlu0 %v214, 64
        %v308 = vpop.permute.xlu0 %307
        %309 = vrot.lane.b32.xlu0 %v216, 64
        %v310 = vpop.permute.xlu0 %309
        %s315 = scalar_lea.vmem %s163, 192 [#allocation2]
        %316 = vst.msk [vmem:[%s315] sm:$0xff] %vm217, %v304
        %317 = vst.msk [vmem:[%s315 + $0x8] sm:$0xff] %vm217, %v306
        %318 = vst.msk [vmem:[%s315 + $0x10] sm:$0xff] %vm217, %v308
        %319 = vst.msk [vmem:[%s315 + $0x18] sm:$0xff] %vm217, %v310
        %320 = vrot.lane.b32.xlu0 %v210, 32
        %v321 = vpop.permute.xlu0 %320
        %322 = vrot.lane.b32.xlu0 %v212, 32
        %v323 = vpop.permute.xlu0 %322
        %324 = vrot.lane.b32.xlu0 %v214, 32
        %v325 = vpop.permute.xlu0 %324
        %326 = vrot.lane.b32.xlu0 %v216, 32
        %v327 = vpop.permute.xlu0 %326
        %s332 = scalar_lea.vmem %s163, 224 [#allocation2]
        %333 = vst.msk [vmem:[%s332] sm:$0xff] %vm217, %v321
        %334 = vst.msk [vmem:[%s332 + $0x8] sm:$0xff] %vm217, %v323
        %335 = vst.msk [vmem:[%s332 + $0x10] sm:$0xff] %vm217, %v325
        %336 = vst.msk [vmem:[%s332 + $0x18] sm:$0xff] %vm217, %v327
        %s337 = sand.u32 %s93, 1
        %s338 = scalar_lea.sflag [#allocation3], %s337
        %s339 = sand.u32 %s93, 1
        %s340 = smul.addr %s339, 256
        %s341 = scalar_lea.vmem [#allocation2], %s340
        // Predicated region
        $region33: #{decoder_forward.5} parent=31 // pred_check
          %p342 = pneg %p103
        $region34: #{decoder_forward.5} parent=31 // pred_check_branch
          %344 = sbr.rel (%p342) target = $region36
        $region35: #{decoder_forward.5} parent=31 // pred_region
          %346 = vsyncadd %s338, 0
          %s347 = smul.addr %s17, 32
          %s348 = smul.addr %s347, 8
          %s349 = scalar_lea.hbm %s3, %s348
          %s350 = sshll.u32 %s341, 4
          %s351 = int_to_ptr.vmem [resolvable:$true] %s350
          %s352 = sshll.u32 %s349, 4
          %s353 = int_to_ptr.hbm [resolvable:$true] %s352
          %358 = dma.vmem_to_hbm [thread:$0]  %s351, 4096, %s353, %s338, 128, 128, 8
        $region36: #{decoder_forward.5} parent=31 // pred_fallthru
          _
      $region32: #{decoder_forward.5} parent=5 // pred_fallthru
        _
      %p359 = scmp.le.s32.totalorder 2, %s12
      // Predicated region
      $region37: #{decoder_forward.5} parent=5 // pred_check
        %p360 = pneg %p359
      $region38: #{decoder_forward.5} parent=5 // pred_check_branch
        %362 = sbr.rel (%p360) target = $region40
      $region39: #{decoder_forward.5} parent=5 // pred_region
        %s363 = ssub.s32 %s12, 2
        // Predicated region
        $region41: #{decoder_forward.5} parent=39 // pred_check
          %p364 = pneg %p109
        $region42: #{decoder_forward.5} parent=39 // pred_check_branch
          %366 = sbr.rel (%p364) target = $region44
        $region43: #{decoder_forward.5} parent=39 // pred_region
          %s367 = sand.u32 %s94, 1
          %s368 = scalar_lea.sflag [#allocation3], %s367
          %s369 = sand.u32 %s94, 1
          %s370 = smul.addr %s369, 256
          %s371 = scalar_lea.vmem [#allocation2], %s370
          %373 = dma.done %s368, 4096
        $region44: #{decoder_forward.5} parent=39 // pred_fallthru
          _
      $region40: #{decoder_forward.5} parent=5 // pred_fallthru
        _
    $region6: #{decoder_forward.5} parent=1 // loop_footer
      %s16 = sadd.s32 1, %s12
    $region7: #{decoder_forward.5} parent=1 // loop_footer_branch
      %11 = sbr.rel target = $region3
    $region8: #{decoder_forward.5} parent=1 // loop_exit
      _
    %374 = vsyncpa [#allocation3], 1
    %s375 = scalar_lea.sflag [#allocation3], 1
    %376 = vsyncpa %s375, 1

</llo_original>
